<compile_context>
chip_gen: v5e
topology: v5e:2x2
jax: 0.10.0
libtpu: 0.0.40
codegen_flags: <defaults>
</compile_context>

<pallas_src>
import functools
import math

import jax
import jax.numpy as jnp
from jax import lax
from jax.experimental import pallas as pl
from jax.experimental.pallas import tpu as pltpu

EPS = 1e-6
HIDDEN = 8

# Packed parameter layout (per layer, flat length 98):
#   [ 0: 8)  w1   = Linear(1,8).weight
#   [ 8:16)  b1
#   [16:80)  w2   stored (in, out) row-major -> flat idx 16 + r*8 + c
#   [80:88)  b2
#   [88:96)  w3   = Linear(8,1).weight
#   [96]     b3
#   [97]     alpha (residual mixing weight of the layer)
P_PER_LAYER = 98


# ---------------------------------------------------------------------------
# Pallas kernel: the WHOLE path search (all layers) for TB batch rows.
# ---------------------------------------------------------------------------
def hyper_path_kernel(q_ref, k_ref, v_ref, mq_ref, mk_ref, p_ref, out_ref):
    n_layer = p_ref.shape[0]

    q = q_ref[...].astype(jnp.float32)     # (TB, 1, D)   Poincare query
    k = k_ref[...].astype(jnp.float32)     # (TB, Nk, D)  Poincare keys
    v = v_ref[...].astype(jnp.float32)     # (TB, Nk, D)  Poincare values
    mq = mq_ref[...].astype(jnp.float32)   # (TB, 1, 1)
    mk = mk_ref[...].astype(jnp.float32)   # (TB, Nk, 1)

    # --- key / value geometry: layer-invariant, computed once ----------------
    k_s = jnp.sum(k * k, axis=-1, keepdims=True)
    k_den = jnp.maximum(1.0 - k_s, EPS)
    k0 = (1.0 + k_s) / k_den                            # hyperboloid time coord
    kx = 2.0 * k / k_den                                # hyperboloid space coords
    v_s = jnp.sum(v * v, axis=-1, keepdims=True)
    v_kl = 2.0 * v / (1.0 + v_s)                        # klein(v)
    g_v = lax.rsqrt(
        jnp.maximum(1.0 - jnp.sum(v_kl * v_kl, axis=-1, keepdims=True), EPS))
    gv_vkl = g_v * v_kl

    for l in range(n_layer):
        pw = lambda i: p_ref[l, i]                      # scalar weight from SMEM

        # --- hyperboloid lift of the carried query ---------------------------
        q_s = jnp.sum(q * q, axis=-1, keepdims=True)    # (TB, 1, 1)
        q_den = jnp.maximum(1.0 - q_s, EPS)
        q0 = (1.0 + q_s) / q_den
        qx = 2.0 * q / q_den

        # --- hyperbolic distance: arccosh(-<q,k>_Minkowski), stable form -----
        mink = jnp.sum(qx * kx, axis=-1, keepdims=True) - q0 * k0   # (TB,Nk,1)
        t = jnp.maximum(-mink - 1.0, EPS)               # x - 1, clamped
        x = 1.0 + t
        d = jnp.log(x + jnp.sqrt(t * (t + 2.0)))        # arccosh(x)

        # --- alignment MLP: unrolled scalar-weight broadcast-MACs (VPU only) -
        h1 = [jnp.maximum(d * pw(r) + pw(8 + r), 0.0) for r in range(HIDDEN)]
        h2 = []
        for c in range(HIDDEN):
            s = h1[0] * pw(16 + c)
            for r in range(1, HIDDEN):
                s = s + h1[r] * pw(16 + r * HIDDEN + c)
            h2.append(jnp.maximum(s + pw(80 + c), 0.0))
        z = h2[0] * pw(88)
        for c in range(1, HIDDEN):
            z = z + h2[c] * pw(88 + c)
        z = z + pw(96)
        sig = 1.0 / (1.0 + jnp.exp(-z))
        align = 1.0 / (sig + EPS)                       # (TB, Nk, 1)
        # TODO(synk): torch `if v.isnan().any(): breakpoint()` debug guard has
        # no Pallas equivalent and is omitted.

        # --- stabilized exp (ratio-invariant in the Einstein midpoint) -------
        masked = jnp.where(mk > 0.0, align, jnp.float32(-1e30))
        m = jnp.max(masked, axis=-2, keepdims=True)     # (TB, 1, 1)
        alpha_att = jnp.exp(jnp.minimum(align - m, 0.0)) * mk

        # --- Einstein midpoint over keys (Klein model of v) ------------------
        num = jnp.sum(alpha_att * gv_vkl, axis=-2, keepdims=True)   # (TB,1,D)
        den = jnp.sum(alpha_att * g_v, axis=-2, keepdims=True)      # (TB,1,1)
        att = num * pl.reciprocal(jnp.maximum(den, EPS), approx=True) * mq

        # --- residual midpoint of {klein(q), att} with weights (a, 1-a) ------
        q_kl = 2.0 * q / (1.0 + q_s)
        g_q = lax.rsqrt(
            jnp.maximum(1.0 - jnp.sum(q_kl * q_kl, axis=-1, keepdims=True), EPS))
        g_a = lax.rsqrt(
            jnp.maximum(1.0 - jnp.sum(att * att, axis=-1, keepdims=True), EPS))
        a0 = pw(97)
        a1 = 1.0 - a0
        agg = (a0 * g_q * q_kl + a1 * g_a * att) * pl.reciprocal(
            a0 * g_q + a1 * g_a, approx=True)

        # --- rev_klein: Klein -> Poincare (becomes next layer's query) -------
        agg_s = jnp.sum(agg * agg, axis=-1, keepdims=True)
        q = agg * pl.reciprocal(
            1.0 + jnp.sqrt(jnp.maximum(1.0 - agg_s, 0.0)), approx=True)

    out_ref[...] = q.astype(out_ref.dtype)


# ---------------------------------------------------------------------------
# Wrapper: ONE pallas_call for the whole module; grid tiles the batch.
# ---------------------------------------------------------------------------
def _pick_tb(batch):
    """Largest power-of-two batch tile (<=8) that divides B, keeping >=2 grid
    steps when possible so v7x can shard across both TensorCores."""
    tb = math.gcd(batch, 8)
    if batch // tb < 2 and tb > 1:
        tb //= 2
    return max(tb, 1)


def _pack_params(params_list):
    rows = []
    for (w1, b1, w2, b2, w3, b3, al) in params_list:
        rows.append(jnp.concatenate([
            w1.reshape(-1), b1.reshape(-1), w2.reshape(-1),
            b2.reshape(-1), w3.reshape(-1), b3.reshape(-1), al.reshape(-1),
        ]).astype(jnp.float32))
    return jnp.stack(rows)                               # (L, 98) -> SMEM


@jax.jit
def hyperbolic_path_search(q, k, v, params_list, mask_q, mask_k):
    B, Nq, D = q.shape
    Nk = k.shape[1]
    assert Nq == 1, "reference residual aggregation requires a single query point"
    mq = mask_q.reshape(B, 1, 1).astype(jnp.float32)
    mk = mask_k.reshape(B, Nk, 1).astype(jnp.float32)
    params = _pack_params(params_list)
    tb = _pick_tb(B)

    # NOTE: output blocks are (tb, 1, D) with D << 128, so stores are partial;
    # at these toy sizes a lane-dense repack is not worth the layout plumbing.
    return pl.pallas_call(
        hyper_path_kernel,
        out_shape=jax.ShapeDtypeStruct((B, 1, D), q.dtype),
        grid=(B // tb,),
        in_specs=[
            pl.BlockSpec((tb, 1, D), lambda b: (b, 0, 0)),    # q
            pl.BlockSpec((tb, Nk, D), lambda b: (b, 0, 0)),   # k
            pl.BlockSpec((tb, Nk, D), lambda b: (b, 0, 0)),   # v
            pl.BlockSpec((tb, 1, 1), lambda b: (b, 0, 0)),    # mask_q
            pl.BlockSpec((tb, Nk, 1), lambda b: (b, 0, 0)),   # mask_k
            pl.BlockSpec(memory_space=pltpu.MemorySpace.SMEM),  # packed params
        ],
        out_specs=pl.BlockSpec((tb, 1, D), lambda b: (b, 0, 0)),
        compiler_params=pltpu.CompilerParams(
            dimension_semantics=("parallel",)),
    )(q, k, v, mq, mk, params)


# ---------------------------------------------------------------------------
# Pure-JAX reference (module semantics, no Pallas) — sanity check only.
# ---------------------------------------------------------------------------
def _ref_layer(q, k, v, mq, mk, p):
    w1, b1, w2, b2, w3, b3, al = p
    sq = lambda x: jnp.sum(x * x, axis=-1, keepdims=True)
    klein = lambda x: 2.0 * x / (1.0 + sq(x))

    def hyperboloid(x):
        s = sq(x)
        return jnp.concatenate([(1.0 + s) / (1.0 - s), 2.0 * x / (1.0 - s)], -1)

    q_h, k_h = hyperboloid(q), hyperboloid(k)
    sign = jnp.concatenate([-jnp.ones((1,)), jnp.ones((q.shape[-1],))])
    mink = jnp.sum((q_h * sign)[:, :, None, :] * k_h[:, None, :, :], -1)  # (B,1,Nk)
    x = jnp.maximum(-mink, 1.0 + EPS)
    d = jnp.arccosh(x)[..., None]                                       # (B,1,Nk,1)
    h1 = jax.nn.relu(d * w1.reshape(HIDDEN) + b1.reshape(HIDDEN))
    h2 = jax.nn.relu(jnp.sum(h1[..., :, None] * w2, axis=-2) + b2.reshape(HIDDEN))
    z = jnp.sum(h2 * w3.reshape(HIDDEN), -1, keepdims=True) + b3.reshape(1)
    align = 1.0 / (jax.nn.sigmoid(z)[..., 0] + EPS)                     # (B,1,Nk)
    alpha = jnp.exp(align) * mk[:, :, 0][:, None, :]
    v_kl = klein(v)
    g_v = 1.0 / jnp.sqrt(1.0 - sq(v_kl))
    num = jnp.sum(alpha[..., None] * (g_v * v_kl)[:, None, :, :], axis=-2)
    den = jnp.sum(alpha[..., None] * g_v[:, None, :, :], axis=-2)
    att = num / den * mq
    q_kl = klein(q)
    g_q = 1.0 / jnp.sqrt(1.0 - sq(q_kl))
    g_a = 1.0 / jnp.sqrt(1.0 - sq(att))
    a0, a1 = al[0, 0], 1.0 - al[0, 0]
    agg = (a0 * g_q * q_kl + a1 * g_a * att) / (a0 * g_q + a1 * g_a)
    return agg / (1.0 + jnp.sqrt(jnp.maximum(1.0 - sq(agg), 0.0)))


def _ref_path_search(q, k, v, params_list, mask_q, mask_k):
    B, Nq, D = q.shape
    Nk = k.shape[1]
    mq = mask_q.reshape(B, 1, 1)
    mk = mask_k.reshape(B, Nk, 1)
    att = q
    for p in params_list:
        att = _ref_layer(att, k, v, mq, mk, p)
    return att


# ---------------------------------------------------------------------------
# Deterministic parameter init (synthetic; not a checkpoint load).
# ---------------------------------------------------------------------------
def init_params(n_layer, key):
    params = []
    for i in range(n_layer):
        ks = jax.random.split(jax.random.fold_in(key, i), 7)
        w1 = 0.3 * jax.random.normal(ks[0], (1, HIDDEN), jnp.float32)
        b1 = 0.1 * jax.random.normal(ks[1], (1, HIDDEN), jnp.float32)
        w2 = 0.3 * jax.random.normal(ks[2], (HIDDEN, HIDDEN), jnp.float32)
        b2 = 0.1 * jax.random.normal(ks[3], (1, HIDDEN), jnp.float32)
        # Non-negative final weights keep sigmoid >= 0.5 so the *reference*
        # (plain exp, like the torch module) stays finite; the kernel itself is
        # hardened via max-subtraction and would survive arbitrary weights.
        w3 = 0.3 * jnp.abs(jax.random.normal(ks[4], (1, HIDDEN), jnp.float32))
        b3 = jnp.zeros((1, 1), jnp.float32)
        alpha = jax.random.uniform(ks[6], (1, 1), jnp.float32)  # torch.rand(1)
        params.append((w1, b1, w2, b2, w3, b3, alpha))
    return params


def _ball_points(key, shape, scale=0.5):
    x = jax.random.normal(key, shape, jnp.float32)
    n = jnp.linalg.norm(x, axis=-1, keepdims=True)
    return scale * x / (1.0 + n)   # norm strictly < scale < 1


if __name__ == "__main__":
    B, Nk, D = 8, 8, 4
    n_layer = 3

    key = jax.random.PRNGKey(0)
    kq, kk, kv, kp = jax.random.split(key, 4)
    q = _ball_points(kq, (B, 1, D))      # single query point per batch item
    k = _ball_points(kk, (B, Nk, D))
    v = _ball_points(kv, (B, Nk, D))
    mask_q = jnp.ones((B, 1), jnp.float32)
    mask_k = jnp.ones((B, Nk), jnp.float32).at[:, -1].set(0.0)

    params = init_params(n_layer, kp)

    out = hyperbolic_path_search(q, k, v, params, mask_q, mask_k)
    out = jax.block_until_ready(out)

    ref = _ref_path_search(q, k, v, params, mask_q, mask_k)
    assert out.shape == (B, 1, D), out.shape
    assert jnp.all(jnp.isfinite(out)), "non-finite output"
    # tolerance loosened slightly vs exact math: kernel uses approximate
    # (EUP) reciprocals for the midpoint / rev_klein denominators.
    assert jnp.allclose(out, ref, atol=2e-3, rtol=2e-3), (out, ref)

    print("KERNEL_OK")
</pallas_src>

<mosaic_0001>
module attributes {stable_mosaic.version = 11 : i64} {
  func.func @hyper_path_kernel(%arg0: i32, %arg1: memref<4x1x4xf32, #tpu.memory_space<vmem>>, %arg2: memref<4x8x4xf32, #tpu.memory_space<vmem>>, %arg3: memref<4x8x4xf32, #tpu.memory_space<vmem>>, %arg4: memref<4x1x1xf32, #tpu.memory_space<vmem>>, %arg5: memref<4x8x1xf32, #tpu.memory_space<vmem>>, %arg6: memref<3x98xf32, #tpu.memory_space<smem>>, %arg7: memref<4x1x4xf32, #tpu.memory_space<vmem>>) attributes {dimension_semantics = [#tpu.dimension_semantics<parallel>], iteration_bounds = array<i64: 2>, scalar_prefetch = 0 : i64, scratch_operands = 0 : i64, tpu.core_type = #tpu.core_type<tc>, window_params = [{transform_indices = @transform_0, window_bounds = array<i64: 4, 1, 4>}, {transform_indices = @transform_1, window_bounds = array<i64: 4, 8, 4>}, {transform_indices = @transform_2, window_bounds = array<i64: 4, 8, 4>}, {transform_indices = @transform_3, window_bounds = array<i64: 4, 1, 1>}, {transform_indices = @transform_4, window_bounds = array<i64: 4, 8, 1>}, {transform_indices = @transform_5, window_bounds = array<i64: 3, 98>}, {transform_indices = @transform_6, window_bounds = array<i64: 4, 1, 4>}]} {
    %c0 = arith.constant 0 : index
    %c0_0 = arith.constant 0 : index
    %c0_1 = arith.constant 0 : index
    %0 = vector.load %arg1[%c0, %c0_0, %c0_1] : memref<4x1x4xf32, #tpu.memory_space<vmem>>, vector<4x1x4xf32>
    %c0_2 = arith.constant 0 : index
    %c0_3 = arith.constant 0 : index
    %c0_4 = arith.constant 0 : index
    %1 = vector.load %arg2[%c0_2, %c0_3, %c0_4] : memref<4x8x4xf32, #tpu.memory_space<vmem>>, vector<4x8x4xf32>
    %c0_5 = arith.constant 0 : index
    %c0_6 = arith.constant 0 : index
    %c0_7 = arith.constant 0 : index
    %2 = vector.load %arg3[%c0_5, %c0_6, %c0_7] : memref<4x8x4xf32, #tpu.memory_space<vmem>>, vector<4x8x4xf32>
    %c0_8 = arith.constant 0 : index
    %c0_9 = arith.constant 0 : index
    %c0_10 = arith.constant 0 : index
    %3 = vector.load %arg4[%c0_8, %c0_9, %c0_10] : memref<4x1x1xf32, #tpu.memory_space<vmem>>, vector<4x1x1xf32>
    %c0_11 = arith.constant 0 : index
    %c0_12 = arith.constant 0 : index
    %c0_13 = arith.constant 0 : index
    %4 = vector.load %arg5[%c0_11, %c0_12, %c0_13] : memref<4x8x1xf32, #tpu.memory_space<vmem>>, vector<4x8x1xf32>
    %5 = arith.mulf %1, %1 : vector<4x8x4xf32>
    %cst = arith.constant dense<0.000000e+00> : vector<4x8xf32>
    %6 = vector.multi_reduction <add>, %5, %cst [2] : vector<4x8x4xf32> to vector<4x8xf32>
    %7 = vector.shape_cast %6 : vector<4x8xf32> to vector<4x8x1xf32>
    %cst_14 = arith.constant 1.000000e+00 : f32
    %8 = vector.broadcast %cst_14 : f32 to vector<4x8x1xf32>
    %9 = arith.subf %8, %7 : vector<4x8x1xf32>
    %cst_15 = arith.constant 9.99999997E-7 : f32
    %10 = vector.broadcast %cst_15 : f32 to vector<4x8x1xf32>
    %11 = arith.maximumf %9, %10 : vector<4x8x1xf32>
    %cst_16 = arith.constant 1.000000e+00 : f32
    %12 = vector.broadcast %cst_16 : f32 to vector<4x8x1xf32>
    %13 = arith.addf %12, %7 : vector<4x8x1xf32>
    %14 = arith.divf %13, %11 : vector<4x8x1xf32>
    %cst_17 = arith.constant 2.000000e+00 : f32
    %15 = vector.broadcast %cst_17 : f32 to vector<4x8x4xf32>
    %16 = arith.mulf %15, %1 : vector<4x8x4xf32>
    %17 = vector.broadcast %11 : vector<4x8x1xf32> to vector<4x8x4xf32>
    %18 = arith.divf %16, %17 : vector<4x8x4xf32>
    %19 = arith.mulf %2, %2 : vector<4x8x4xf32>
    %cst_18 = arith.constant dense<0.000000e+00> : vector<4x8xf32>
    %20 = vector.multi_reduction <add>, %19, %cst_18 [2] : vector<4x8x4xf32> to vector<4x8xf32>
    %21 = vector.shape_cast %20 : vector<4x8xf32> to vector<4x8x1xf32>
    %cst_19 = arith.constant 2.000000e+00 : f32
    %22 = vector.broadcast %cst_19 : f32 to vector<4x8x4xf32>
    %23 = arith.mulf %22, %2 : vector<4x8x4xf32>
    %cst_20 = arith.constant 1.000000e+00 : f32
    %24 = vector.broadcast %cst_20 : f32 to vector<4x8x1xf32>
    %25 = arith.addf %24, %21 : vector<4x8x1xf32>
    %26 = vector.broadcast %25 : vector<4x8x1xf32> to vector<4x8x4xf32>
    %27 = arith.divf %23, %26 : vector<4x8x4xf32>
    %28 = arith.mulf %27, %27 : vector<4x8x4xf32>
    %cst_21 = arith.constant dense<0.000000e+00> : vector<4x8xf32>
    %29 = vector.multi_reduction <add>, %28, %cst_21 [2] : vector<4x8x4xf32> to vector<4x8xf32>
    %30 = vector.shape_cast %29 : vector<4x8xf32> to vector<4x8x1xf32>
    %cst_22 = arith.constant 1.000000e+00 : f32
    %31 = vector.broadcast %cst_22 : f32 to vector<4x8x1xf32>
    %32 = arith.subf %31, %30 : vector<4x8x1xf32>
    %cst_23 = arith.constant 9.99999997E-7 : f32
    %33 = vector.broadcast %cst_23 : f32 to vector<4x8x1xf32>
    %34 = arith.maximumf %32, %33 : vector<4x8x1xf32>
    %35 = math.rsqrt %34 : vector<4x8x1xf32>
    %36 = vector.broadcast %35 : vector<4x8x1xf32> to vector<4x8x4xf32>
    %37 = arith.mulf %36, %27 : vector<4x8x4xf32>
    %38 = arith.mulf %0, %0 : vector<4x1x4xf32>
    %cst_24 = arith.constant dense<0.000000e+00> : vector<4x1xf32>
    %39 = vector.multi_reduction <add>, %38, %cst_24 [2] : vector<4x1x4xf32> to vector<4x1xf32>
    %40 = vector.shape_cast %39 : vector<4x1xf32> to vector<4x1x1xf32>
    %cst_25 = arith.constant 1.000000e+00 : f32
    %41 = vector.broadcast %cst_25 : f32 to vector<4x1x1xf32>
    %42 = arith.subf %41, %40 : vector<4x1x1xf32>
    %cst_26 = arith.constant 9.99999997E-7 : f32
    %43 = vector.broadcast %cst_26 : f32 to vector<4x1x1xf32>
    %44 = arith.maximumf %42, %43 : vector<4x1x1xf32>
    %cst_27 = arith.constant 1.000000e+00 : f32
    %45 = vector.broadcast %cst_27 : f32 to vector<4x1x1xf32>
    %46 = arith.addf %45, %40 : vector<4x1x1xf32>
    %47 = arith.divf %46, %44 : vector<4x1x1xf32>
    %cst_28 = arith.constant 2.000000e+00 : f32
    %48 = vector.broadcast %cst_28 : f32 to vector<4x1x4xf32>
    %49 = arith.mulf %48, %0 : vector<4x1x4xf32>
    %50 = vector.broadcast %44 : vector<4x1x1xf32> to vector<4x1x4xf32>
    %51 = arith.divf %49, %50 : vector<4x1x4xf32>
    %52 = vector.broadcast %51 : vector<4x1x4xf32> to vector<4x8x4xf32>
    %53 = arith.mulf %52, %18 : vector<4x8x4xf32>
    %cst_29 = arith.constant dense<0.000000e+00> : vector<4x8xf32>
    %54 = vector.multi_reduction <add>, %53, %cst_29 [2] : vector<4x8x4xf32> to vector<4x8xf32>
    %55 = vector.shape_cast %54 : vector<4x8xf32> to vector<4x8x1xf32>
    %56 = vector.broadcast %47 : vector<4x1x1xf32> to vector<4x8x1xf32>
    %57 = arith.mulf %56, %14 : vector<4x8x1xf32>
    %58 = arith.subf %55, %57 : vector<4x8x1xf32>
    %cst_30 = arith.constant 0.000000e+00 : f32
    %59 = vector.broadcast %cst_30 : f32 to vector<4x8x1xf32>
    %60 = arith.subf %59, %58 : vector<4x8x1xf32>
    %cst_31 = arith.constant 1.000000e+00 : f32
    %61 = vector.broadcast %cst_31 : f32 to vector<4x8x1xf32>
    %62 = arith.subf %60, %61 : vector<4x8x1xf32>
    %cst_32 = arith.constant 9.99999997E-7 : f32
    %63 = vector.broadcast %cst_32 : f32 to vector<4x8x1xf32>
    %64 = arith.maximumf %62, %63 : vector<4x8x1xf32>
    %cst_33 = arith.constant 1.000000e+00 : f32
    %65 = vector.broadcast %cst_33 : f32 to vector<4x8x1xf32>
    %66 = arith.addf %65, %64 : vector<4x8x1xf32>
    %cst_34 = arith.constant 2.000000e+00 : f32
    %67 = vector.broadcast %cst_34 : f32 to vector<4x8x1xf32>
    %68 = arith.addf %64, %67 : vector<4x8x1xf32>
    %69 = arith.mulf %64, %68 : vector<4x8x1xf32>
    %70 = math.sqrt %69 : vector<4x8x1xf32>
    %71 = arith.addf %66, %70 : vector<4x8x1xf32>
    %72 = math.log %71 : vector<4x8x1xf32>
    %c0_35 = arith.constant 0 : index
    %c0_36 = arith.constant 0 : index
    %73 = memref.load %arg6[%c0_35, %c0_36] : memref<3x98xf32, #tpu.memory_space<smem>>
    %74 = vector.broadcast %73 : f32 to vector<4x8x1xf32>
    %75 = arith.mulf %72, %74 : vector<4x8x1xf32>
    %c0_37 = arith.constant 0 : index
    %c8 = arith.constant 8 : index
    %76 = memref.load %arg6[%c0_37, %c8] : memref<3x98xf32, #tpu.memory_space<smem>>
    %77 = vector.broadcast %76 : f32 to vector<4x8x1xf32>
    %78 = arith.addf %75, %77 : vector<4x8x1xf32>
    %cst_38 = arith.constant 0.000000e+00 : f32
    %79 = vector.broadcast %cst_38 : f32 to vector<4x8x1xf32>
    %80 = arith.maximumf %78, %79 : vector<4x8x1xf32>
    %c0_39 = arith.constant 0 : index
    %c1 = arith.constant 1 : index
    %81 = memref.load %arg6[%c0_39, %c1] : memref<3x98xf32, #tpu.memory_space<smem>>
    %82 = vector.broadcast %81 : f32 to vector<4x8x1xf32>
    %83 = arith.mulf %72, %82 : vector<4x8x1xf32>
    %c0_40 = arith.constant 0 : index
    %c9 = arith.constant 9 : index
    %84 = memref.load %arg6[%c0_40, %c9] : memref<3x98xf32, #tpu.memory_space<smem>>
    %85 = vector.broadcast %84 : f32 to vector<4x8x1xf32>
    %86 = arith.addf %83, %85 : vector<4x8x1xf32>
    %cst_41 = arith.constant 0.000000e+00 : f32
    %87 = vector.broadcast %cst_41 : f32 to vector<4x8x1xf32>
    %88 = arith.maximumf %86, %87 : vector<4x8x1xf32>
    %c0_42 = arith.constant 0 : index
    %c2 = arith.constant 2 : index
    %89 = memref.load %arg6[%c0_42, %c2] : memref<3x98xf32, #tpu.memory_space<smem>>
    %90 = vector.broadcast %89 : f32 to vector<4x8x1xf32>
    %91 = arith.mulf %72, %90 : vector<4x8x1xf32>
    %c0_43 = arith.constant 0 : index
    %c10 = arith.constant 10 : index
    %92 = memref.load %arg6[%c0_43, %c10] : memref<3x98xf32, #tpu.memory_space<smem>>
    %93 = vector.broadcast %92 : f32 to vector<4x8x1xf32>
    %94 = arith.addf %91, %93 : vector<4x8x1xf32>
    %cst_44 = arith.constant 0.000000e+00 : f32
    %95 = vector.broadcast %cst_44 : f32 to vector<4x8x1xf32>
    %96 = arith.maximumf %94, %95 : vector<4x8x1xf32>
    %c0_45 = arith.constant 0 : index
    %c3 = arith.constant 3 : index
    %97 = memref.load %arg6[%c0_45, %c3] : memref<3x98xf32, #tpu.memory_space<smem>>
    %98 = vector.broadcast %97 : f32 to vector<4x8x1xf32>
    %99 = arith.mulf %72, %98 : vector<4x8x1xf32>
    %c0_46 = arith.constant 0 : index
    %c11 = arith.constant 11 : index
    %100 = memref.load %arg6[%c0_46, %c11] : memref<3x98xf32, #tpu.memory_space<smem>>
    %101 = vector.broadcast %100 : f32 to vector<4x8x1xf32>
    %102 = arith.addf %99, %101 : vector<4x8x1xf32>
    %cst_47 = arith.constant 0.000000e+00 : f32
    %103 = vector.broadcast %cst_47 : f32 to vector<4x8x1xf32>
    %104 = arith.maximumf %102, %103 : vector<4x8x1xf32>
    %c0_48 = arith.constant 0 : index
    %c4 = arith.constant 4 : index
    %105 = memref.load %arg6[%c0_48, %c4] : memref<3x98xf32, #tpu.memory_space<smem>>
    %106 = vector.broadcast %105 : f32 to vector<4x8x1xf32>
    %107 = arith.mulf %72, %106 : vector<4x8x1xf32>
    %c0_49 = arith.constant 0 : index
    %c12 = arith.constant 12 : index
    %108 = memref.load %arg6[%c0_49, %c12] : memref<3x98xf32, #tpu.memory_space<smem>>
    %109 = vector.broadcast %108 : f32 to vector<4x8x1xf32>
    %110 = arith.addf %107, %109 : vector<4x8x1xf32>
    %cst_50 = arith.constant 0.000000e+00 : f32
    %111 = vector.broadcast %cst_50 : f32 to vector<4x8x1xf32>
    %112 = arith.maximumf %110, %111 : vector<4x8x1xf32>
    %c0_51 = arith.constant 0 : index
    %c5 = arith.constant 5 : index
    %113 = memref.load %arg6[%c0_51, %c5] : memref<3x98xf32, #tpu.memory_space<smem>>
    %114 = vector.broadcast %113 : f32 to vector<4x8x1xf32>
    %115 = arith.mulf %72, %114 : vector<4x8x1xf32>
    %c0_52 = arith.constant 0 : index
    %c13 = arith.constant 13 : index
    %116 = memref.load %arg6[%c0_52, %c13] : memref<3x98xf32, #tpu.memory_space<smem>>
    %117 = vector.broadcast %116 : f32 to vector<4x8x1xf32>
    %118 = arith.addf %115, %117 : vector<4x8x1xf32>
    %cst_53 = arith.constant 0.000000e+00 : f32
    %119 = vector.broadcast %cst_53 : f32 to vector<4x8x1xf32>
    %120 = arith.maximumf %118, %119 : vector<4x8x1xf32>
    %c0_54 = arith.constant 0 : index
    %c6 = arith.constant 6 : index
    %121 = memref.load %arg6[%c0_54, %c6] : memref<3x98xf32, #tpu.memory_space<smem>>
    %122 = vector.broadcast %121 : f32 to vector<4x8x1xf32>
    %123 = arith.mulf %72, %122 : vector<4x8x1xf32>
    %c0_55 = arith.constant 0 : index
    %c14 = arith.constant 14 : index
    %124 = memref.load %arg6[%c0_55, %c14] : memref<3x98xf32, #tpu.memory_space<smem>>
    %125 = vector.broadcast %124 : f32 to vector<4x8x1xf32>
    %126 = arith.addf %123, %125 : vector<4x8x1xf32>
    %cst_56 = arith.constant 0.000000e+00 : f32
    %127 = vector.broadcast %cst_56 : f32 to vector<4x8x1xf32>
    %128 = arith.maximumf %126, %127 : vector<4x8x1xf32>
    %c0_57 = arith.constant 0 : index
    %c7 = arith.constant 7 : index
    %129 = memref.load %arg6[%c0_57, %c7] : memref<3x98xf32, #tpu.memory_space<smem>>
    %130 = vector.broadcast %129 : f32 to vector<4x8x1xf32>
    %131 = arith.mulf %72, %130 : vector<4x8x1xf32>
    %c0_58 = arith.constant 0 : index
    %c15 = arith.constant 15 : index
    %132 = memref.load %arg6[%c0_58, %c15] : memref<3x98xf32, #tpu.memory_space<smem>>
    %133 = vector.broadcast %132 : f32 to vector<4x8x1xf32>
    %134 = arith.addf %131, %133 : vector<4x8x1xf32>
    %cst_59 = arith.constant 0.000000e+00 : f32
    %135 = vector.broadcast %cst_59 : f32 to vector<4x8x1xf32>
    %136 = arith.maximumf %134, %135 : vector<4x8x1xf32>
    %c0_60 = arith.constant 0 : index
    %c16 = arith.constant 16 : index
    %137 = memref.load %arg6[%c0_60, %c16] : memref<3x98xf32, #tpu.memory_space<smem>>
    %138 = vector.broadcast %137 : f32 to vector<4x8x1xf32>
    %139 = arith.mulf %80, %138 : vector<4x8x1xf32>
    %c0_61 = arith.constant 0 : index
    %c24 = arith.constant 24 : index
    %140 = memref.load %arg6[%c0_61, %c24] : memref<3x98xf32, #tpu.memory_space<smem>>
    %141 = vector.broadcast %140 : f32 to vector<4x8x1xf32>
    %142 = arith.mulf %88, %141 : vector<4x8x1xf32>
    %143 = arith.addf %139, %142 : vector<4x8x1xf32>
    %c0_62 = arith.constant 0 : index
    %c32 = arith.constant 32 : index
    %144 = memref.load %arg6[%c0_62, %c32] : memref<3x98xf32, #tpu.memory_space<smem>>
    %145 = vector.broadcast %144 : f32 to vector<4x8x1xf32>
    %146 = arith.mulf %96, %145 : vector<4x8x1xf32>
    %147 = arith.addf %143, %146 : vector<4x8x1xf32>
    %c0_63 = arith.constant 0 : index
    %c40 = arith.constant 40 : index
    %148 = memref.load %arg6[%c0_63, %c40] : memref<3x98xf32, #tpu.memory_space<smem>>
    %149 = vector.broadcast %148 : f32 to vector<4x8x1xf32>
    %150 = arith.mulf %104, %149 : vector<4x8x1xf32>
    %151 = arith.addf %147, %150 : vector<4x8x1xf32>
    %c0_64 = arith.constant 0 : index
    %c48 = arith.constant 48 : index
    %152 = memref.load %arg6[%c0_64, %c48] : memref<3x98xf32, #tpu.memory_space<smem>>
    %153 = vector.broadcast %152 : f32 to vector<4x8x1xf32>
    %154 = arith.mulf %112, %153 : vector<4x8x1xf32>
    %155 = arith.addf %151, %154 : vector<4x8x1xf32>
    %c0_65 = arith.constant 0 : index
    %c56 = arith.constant 56 : index
    %156 = memref.load %arg6[%c0_65, %c56] : memref<3x98xf32, #tpu.memory_space<smem>>
    %157 = vector.broadcast %156 : f32 to vector<4x8x1xf32>
    %158 = arith.mulf %120, %157 : vector<4x8x1xf32>
    %159 = arith.addf %155, %158 : vector<4x8x1xf32>
    %c0_66 = arith.constant 0 : index
    %c64 = arith.constant 64 : index
    %160 = memref.load %arg6[%c0_66, %c64] : memref<3x98xf32, #tpu.memory_space<smem>>
    %161 = vector.broadcast %160 : f32 to vector<4x8x1xf32>
    %162 = arith.mulf %128, %161 : vector<4x8x1xf32>
    %163 = arith.addf %159, %162 : vector<4x8x1xf32>
    %c0_67 = arith.constant 0 : index
    %c72 = arith.constant 72 : index
    %164 = memref.load %arg6[%c0_67, %c72] : memref<3x98xf32, #tpu.memory_space<smem>>
    %165 = vector.broadcast %164 : f32 to vector<4x8x1xf32>
    %166 = arith.mulf %136, %165 : vector<4x8x1xf32>
    %167 = arith.addf %163, %166 : vector<4x8x1xf32>
    %c0_68 = arith.constant 0 : index
    %c80 = arith.constant 80 : index
    %168 = memref.load %arg6[%c0_68, %c80] : memref<3x98xf32, #tpu.memory_space<smem>>
    %169 = vector.broadcast %168 : f32 to vector<4x8x1xf32>
    %170 = arith.addf %167, %169 : vector<4x8x1xf32>
    %cst_69 = arith.constant 0.000000e+00 : f32
    %171 = vector.broadcast %cst_69 : f32 to vector<4x8x1xf32>
    %172 = arith.maximumf %170, %171 : vector<4x8x1xf32>
    %c0_70 = arith.constant 0 : index
    %c17 = arith.constant 17 : index
    %173 = memref.load %arg6[%c0_70, %c17] : memref<3x98xf32, #tpu.memory_space<smem>>
    %174 = vector.broadcast %173 : f32 to vector<4x8x1xf32>
    %175 = arith.mulf %80, %174 : vector<4x8x1xf32>
    %c0_71 = arith.constant 0 : index
    %c25 = arith.constant 25 : index
    %176 = memref.load %arg6[%c0_71, %c25] : memref<3x98xf32, #tpu.memory_space<smem>>
    %177 = vector.broadcast %176 : f32 to vector<4x8x1xf32>
    %178 = arith.mulf %88, %177 : vector<4x8x1xf32>
    %179 = arith.addf %175, %178 : vector<4x8x1xf32>
    %c0_72 = arith.constant 0 : index
    %c33 = arith.constant 33 : index
    %180 = memref.load %arg6[%c0_72, %c33] : memref<3x98xf32, #tpu.memory_space<smem>>
    %181 = vector.broadcast %180 : f32 to vector<4x8x1xf32>
    %182 = arith.mulf %96, %181 : vector<4x8x1xf32>
    %183 = arith.addf %179, %182 : vector<4x8x1xf32>
    %c0_73 = arith.constant 0 : index
    %c41 = arith.constant 41 : index
    %184 = memref.load %arg6[%c0_73, %c41] : memref<3x98xf32, #tpu.memory_space<smem>>
    %185 = vector.broadcast %184 : f32 to vector<4x8x1xf32>
    %186 = arith.mulf %104, %185 : vector<4x8x1xf32>
    %187 = arith.addf %183, %186 : vector<4x8x1xf32>
    %c0_74 = arith.constant 0 : index
    %c49 = arith.constant 49 : index
    %188 = memref.load %arg6[%c0_74, %c49] : memref<3x98xf32, #tpu.memory_space<smem>>
    %189 = vector.broadcast %188 : f32 to vector<4x8x1xf32>
    %190 = arith.mulf %112, %189 : vector<4x8x1xf32>
    %191 = arith.addf %187, %190 : vector<4x8x1xf32>
    %c0_75 = arith.constant 0 : index
    %c57 = arith.constant 57 : index
    %192 = memref.load %arg6[%c0_75, %c57] : memref<3x98xf32, #tpu.memory_space<smem>>
    %193 = vector.broadcast %192 : f32 to vector<4x8x1xf32>
    %194 = arith.mulf %120, %193 : vector<4x8x1xf32>
    %195 = arith.addf %191, %194 : vector<4x8x1xf32>
    %c0_76 = arith.constant 0 : index
    %c65 = arith.constant 65 : index
    %196 = memref.load %arg6[%c0_76, %c65] : memref<3x98xf32, #tpu.memory_space<smem>>
    %197 = vector.broadcast %196 : f32 to vector<4x8x1xf32>
    %198 = arith.mulf %128, %197 : vector<4x8x1xf32>
    %199 = arith.addf %195, %198 : vector<4x8x1xf32>
    %c0_77 = arith.constant 0 : index
    %c73 = arith.constant 73 : index
    %200 = memref.load %arg6[%c0_77, %c73] : memref<3x98xf32, #tpu.memory_space<smem>>
    %201 = vector.broadcast %200 : f32 to vector<4x8x1xf32>
    %202 = arith.mulf %136, %201 : vector<4x8x1xf32>
    %203 = arith.addf %199, %202 : vector<4x8x1xf32>
    %c0_78 = arith.constant 0 : index
    %c81 = arith.constant 81 : index
    %204 = memref.load %arg6[%c0_78, %c81] : memref<3x98xf32, #tpu.memory_space<smem>>
    %205 = vector.broadcast %204 : f32 to vector<4x8x1xf32>
    %206 = arith.addf %203, %205 : vector<4x8x1xf32>
    %cst_79 = arith.constant 0.000000e+00 : f32
    %207 = vector.broadcast %cst_79 : f32 to vector<4x8x1xf32>
    %208 = arith.maximumf %206, %207 : vector<4x8x1xf32>
    %c0_80 = arith.constant 0 : index
    %c18 = arith.constant 18 : index
    %209 = memref.load %arg6[%c0_80, %c18] : memref<3x98xf32, #tpu.memory_space<smem>>
    %210 = vector.broadcast %209 : f32 to vector<4x8x1xf32>
    %211 = arith.mulf %80, %210 : vector<4x8x1xf32>
    %c0_81 = arith.constant 0 : index
    %c26 = arith.constant 26 : index
    %212 = memref.load %arg6[%c0_81, %c26] : memref<3x98xf32, #tpu.memory_space<smem>>
    %213 = vector.broadcast %212 : f32 to vector<4x8x1xf32>
    %214 = arith.mulf %88, %213 : vector<4x8x1xf32>
    %215 = arith.addf %211, %214 : vector<4x8x1xf32>
    %c0_82 = arith.constant 0 : index
    %c34 = arith.constant 34 : index
    %216 = memref.load %arg6[%c0_82, %c34] : memref<3x98xf32, #tpu.memory_space<smem>>
    %217 = vector.broadcast %216 : f32 to vector<4x8x1xf32>
    %218 = arith.mulf %96, %217 : vector<4x8x1xf32>
    %219 = arith.addf %215, %218 : vector<4x8x1xf32>
    %c0_83 = arith.constant 0 : index
    %c42 = arith.constant 42 : index
    %220 = memref.load %arg6[%c0_83, %c42] : memref<3x98xf32, #tpu.memory_space<smem>>
    %221 = vector.broadcast %220 : f32 to vector<4x8x1xf32>
    %222 = arith.mulf %104, %221 : vector<4x8x1xf32>
    %223 = arith.addf %219, %222 : vector<4x8x1xf32>
    %c0_84 = arith.constant 0 : index
    %c50 = arith.constant 50 : index
    %224 = memref.load %arg6[%c0_84, %c50] : memref<3x98xf32, #tpu.memory_space<smem>>
    %225 = vector.broadcast %224 : f32 to vector<4x8x1xf32>
    %226 = arith.mulf %112, %225 : vector<4x8x1xf32>
    %227 = arith.addf %223, %226 : vector<4x8x1xf32>
    %c0_85 = arith.constant 0 : index
    %c58 = arith.constant 58 : index
    %228 = memref.load %arg6[%c0_85, %c58] : memref<3x98xf32, #tpu.memory_space<smem>>
    %229 = vector.broadcast %228 : f32 to vector<4x8x1xf32>
    %230 = arith.mulf %120, %229 : vector<4x8x1xf32>
    %231 = arith.addf %227, %230 : vector<4x8x1xf32>
    %c0_86 = arith.constant 0 : index
    %c66 = arith.constant 66 : index
    %232 = memref.load %arg6[%c0_86, %c66] : memref<3x98xf32, #tpu.memory_space<smem>>
    %233 = vector.broadcast %232 : f32 to vector<4x8x1xf32>
    %234 = arith.mulf %128, %233 : vector<4x8x1xf32>
    %235 = arith.addf %231, %234 : vector<4x8x1xf32>
    %c0_87 = arith.constant 0 : index
    %c74 = arith.constant 74 : index
    %236 = memref.load %arg6[%c0_87, %c74] : memref<3x98xf32, #tpu.memory_space<smem>>
    %237 = vector.broadcast %236 : f32 to vector<4x8x1xf32>
    %238 = arith.mulf %136, %237 : vector<4x8x1xf32>
    %239 = arith.addf %235, %238 : vector<4x8x1xf32>
    %c0_88 = arith.constant 0 : index
    %c82 = arith.constant 82 : index
    %240 = memref.load %arg6[%c0_88, %c82] : memref<3x98xf32, #tpu.memory_space<smem>>
    %241 = vector.broadcast %240 : f32 to vector<4x8x1xf32>
    %242 = arith.addf %239, %241 : vector<4x8x1xf32>
    %cst_89 = arith.constant 0.000000e+00 : f32
    %243 = vector.broadcast %cst_89 : f32 to vector<4x8x1xf32>
    %244 = arith.maximumf %242, %243 : vector<4x8x1xf32>
    %c0_90 = arith.constant 0 : index
    %c19 = arith.constant 19 : index
    %245 = memref.load %arg6[%c0_90, %c19] : memref<3x98xf32, #tpu.memory_space<smem>>
    %246 = vector.broadcast %245 : f32 to vector<4x8x1xf32>
    %247 = arith.mulf %80, %246 : vector<4x8x1xf32>
    %c0_91 = arith.constant 0 : index
    %c27 = arith.constant 27 : index
    %248 = memref.load %arg6[%c0_91, %c27] : memref<3x98xf32, #tpu.memory_space<smem>>
    %249 = vector.broadcast %248 : f32 to vector<4x8x1xf32>
    %250 = arith.mulf %88, %249 : vector<4x8x1xf32>
    %251 = arith.addf %247, %250 : vector<4x8x1xf32>
    %c0_92 = arith.constant 0 : index
    %c35 = arith.constant 35 : index
    %252 = memref.load %arg6[%c0_92, %c35] : memref<3x98xf32, #tpu.memory_space<smem>>
    %253 = vector.broadcast %252 : f32 to vector<4x8x1xf32>
    %254 = arith.mulf %96, %253 : vector<4x8x1xf32>
    %255 = arith.addf %251, %254 : vector<4x8x1xf32>
    %c0_93 = arith.constant 0 : index
    %c43 = arith.constant 43 : index
    %256 = memref.load %arg6[%c0_93, %c43] : memref<3x98xf32, #tpu.memory_space<smem>>
    %257 = vector.broadcast %256 : f32 to vector<4x8x1xf32>
    %258 = arith.mulf %104, %257 : vector<4x8x1xf32>
    %259 = arith.addf %255, %258 : vector<4x8x1xf32>
    %c0_94 = arith.constant 0 : index
    %c51 = arith.constant 51 : index
    %260 = memref.load %arg6[%c0_94, %c51] : memref<3x98xf32, #tpu.memory_space<smem>>
    %261 = vector.broadcast %260 : f32 to vector<4x8x1xf32>
    %262 = arith.mulf %112, %261 : vector<4x8x1xf32>
    %263 = arith.addf %259, %262 : vector<4x8x1xf32>
    %c0_95 = arith.constant 0 : index
    %c59 = arith.constant 59 : index
    %264 = memref.load %arg6[%c0_95, %c59] : memref<3x98xf32, #tpu.memory_space<smem>>
    %265 = vector.broadcast %264 : f32 to vector<4x8x1xf32>
    %266 = arith.mulf %120, %265 : vector<4x8x1xf32>
    %267 = arith.addf %263, %266 : vector<4x8x1xf32>
    %c0_96 = arith.constant 0 : index
    %c67 = arith.constant 67 : index
    %268 = memref.load %arg6[%c0_96, %c67] : memref<3x98xf32, #tpu.memory_space<smem>>
    %269 = vector.broadcast %268 : f32 to vector<4x8x1xf32>
    %270 = arith.mulf %128, %269 : vector<4x8x1xf32>
    %271 = arith.addf %267, %270 : vector<4x8x1xf32>
    %c0_97 = arith.constant 0 : index
    %c75 = arith.constant 75 : index
    %272 = memref.load %arg6[%c0_97, %c75] : memref<3x98xf32, #tpu.memory_space<smem>>
    %273 = vector.broadcast %272 : f32 to vector<4x8x1xf32>
    %274 = arith.mulf %136, %273 : vector<4x8x1xf32>
    %275 = arith.addf %271, %274 : vector<4x8x1xf32>
    %c0_98 = arith.constant 0 : index
    %c83 = arith.constant 83 : index
    %276 = memref.load %arg6[%c0_98, %c83] : memref<3x98xf32, #tpu.memory_space<smem>>
    %277 = vector.broadcast %276 : f32 to vector<4x8x1xf32>
    %278 = arith.addf %275, %277 : vector<4x8x1xf32>
    %cst_99 = arith.constant 0.000000e+00 : f32
    %279 = vector.broadcast %cst_99 : f32 to vector<4x8x1xf32>
    %280 = arith.maximumf %278, %279 : vector<4x8x1xf32>
    %c0_100 = arith.constant 0 : index
    %c20 = arith.constant 20 : index
    %281 = memref.load %arg6[%c0_100, %c20] : memref<3x98xf32, #tpu.memory_space<smem>>
    %282 = vector.broadcast %281 : f32 to vector<4x8x1xf32>
    %283 = arith.mulf %80, %282 : vector<4x8x1xf32>
    %c0_101 = arith.constant 0 : index
    %c28 = arith.constant 28 : index
    %284 = memref.load %arg6[%c0_101, %c28] : memref<3x98xf32, #tpu.memory_space<smem>>
    %285 = vector.broadcast %284 : f32 to vector<4x8x1xf32>
    %286 = arith.mulf %88, %285 : vector<4x8x1xf32>
    %287 = arith.addf %283, %286 : vector<4x8x1xf32>
    %c0_102 = arith.constant 0 : index
    %c36 = arith.constant 36 : index
    %288 = memref.load %arg6[%c0_102, %c36] : memref<3x98xf32, #tpu.memory_space<smem>>
    %289 = vector.broadcast %288 : f32 to vector<4x8x1xf32>
    %290 = arith.mulf %96, %289 : vector<4x8x1xf32>
    %291 = arith.addf %287, %290 : vector<4x8x1xf32>
    %c0_103 = arith.constant 0 : index
    %c44 = arith.constant 44 : index
    %292 = memref.load %arg6[%c0_103, %c44] : memref<3x98xf32, #tpu.memory_space<smem>>
    %293 = vector.broadcast %292 : f32 to vector<4x8x1xf32>
    %294 = arith.mulf %104, %293 : vector<4x8x1xf32>
    %295 = arith.addf %291, %294 : vector<4x8x1xf32>
    %c0_104 = arith.constant 0 : index
    %c52 = arith.constant 52 : index
    %296 = memref.load %arg6[%c0_104, %c52] : memref<3x98xf32, #tpu.memory_space<smem>>
    %297 = vector.broadcast %296 : f32 to vector<4x8x1xf32>
    %298 = arith.mulf %112, %297 : vector<4x8x1xf32>
    %299 = arith.addf %295, %298 : vector<4x8x1xf32>
    %c0_105 = arith.constant 0 : index
    %c60 = arith.constant 60 : index
    %300 = memref.load %arg6[%c0_105, %c60] : memref<3x98xf32, #tpu.memory_space<smem>>
    %301 = vector.broadcast %300 : f32 to vector<4x8x1xf32>
    %302 = arith.mulf %120, %301 : vector<4x8x1xf32>
    %303 = arith.addf %299, %302 : vector<4x8x1xf32>
    %c0_106 = arith.constant 0 : index
    %c68 = arith.constant 68 : index
    %304 = memref.load %arg6[%c0_106, %c68] : memref<3x98xf32, #tpu.memory_space<smem>>
    %305 = vector.broadcast %304 : f32 to vector<4x8x1xf32>
    %306 = arith.mulf %128, %305 : vector<4x8x1xf32>
    %307 = arith.addf %303, %306 : vector<4x8x1xf32>
    %c0_107 = arith.constant 0 : index
    %c76 = arith.constant 76 : index
    %308 = memref.load %arg6[%c0_107, %c76] : memref<3x98xf32, #tpu.memory_space<smem>>
    %309 = vector.broadcast %308 : f32 to vector<4x8x1xf32>
    %310 = arith.mulf %136, %309 : vector<4x8x1xf32>
    %311 = arith.addf %307, %310 : vector<4x8x1xf32>
    %c0_108 = arith.constant 0 : index
    %c84 = arith.constant 84 : index
    %312 = memref.load %arg6[%c0_108, %c84] : memref<3x98xf32, #tpu.memory_space<smem>>
    %313 = vector.broadcast %312 : f32 to vector<4x8x1xf32>
    %314 = arith.addf %311, %313 : vector<4x8x1xf32>
    %cst_109 = arith.constant 0.000000e+00 : f32
    %315 = vector.broadcast %cst_109 : f32 to vector<4x8x1xf32>
    %316 = arith.maximumf %314, %315 : vector<4x8x1xf32>
    %c0_110 = arith.constant 0 : index
    %c21 = arith.constant 21 : index
    %317 = memref.load %arg6[%c0_110, %c21] : memref<3x98xf32, #tpu.memory_space<smem>>
    %318 = vector.broadcast %317 : f32 to vector<4x8x1xf32>
    %319 = arith.mulf %80, %318 : vector<4x8x1xf32>
    %c0_111 = arith.constant 0 : index
    %c29 = arith.constant 29 : index
    %320 = memref.load %arg6[%c0_111, %c29] : memref<3x98xf32, #tpu.memory_space<smem>>
    %321 = vector.broadcast %320 : f32 to vector<4x8x1xf32>
    %322 = arith.mulf %88, %321 : vector<4x8x1xf32>
    %323 = arith.addf %319, %322 : vector<4x8x1xf32>
    %c0_112 = arith.constant 0 : index
    %c37 = arith.constant 37 : index
    %324 = memref.load %arg6[%c0_112, %c37] : memref<3x98xf32, #tpu.memory_space<smem>>
    %325 = vector.broadcast %324 : f32 to vector<4x8x1xf32>
    %326 = arith.mulf %96, %325 : vector<4x8x1xf32>
    %327 = arith.addf %323, %326 : vector<4x8x1xf32>
    %c0_113 = arith.constant 0 : index
    %c45 = arith.constant 45 : index
    %328 = memref.load %arg6[%c0_113, %c45] : memref<3x98xf32, #tpu.memory_space<smem>>
    %329 = vector.broadcast %328 : f32 to vector<4x8x1xf32>
    %330 = arith.mulf %104, %329 : vector<4x8x1xf32>
    %331 = arith.addf %327, %330 : vector<4x8x1xf32>
    %c0_114 = arith.constant 0 : index
    %c53 = arith.constant 53 : index
    %332 = memref.load %arg6[%c0_114, %c53] : memref<3x98xf32, #tpu.memory_space<smem>>
    %333 = vector.broadcast %332 : f32 to vector<4x8x1xf32>
    %334 = arith.mulf %112, %333 : vector<4x8x1xf32>
    %335 = arith.addf %331, %334 : vector<4x8x1xf32>
    %c0_115 = arith.constant 0 : index
    %c61 = arith.constant 61 : index
    %336 = memref.load %arg6[%c0_115, %c61] : memref<3x98xf32, #tpu.memory_space<smem>>
    %337 = vector.broadcast %336 : f32 to vector<4x8x1xf32>
    %338 = arith.mulf %120, %337 : vector<4x8x1xf32>
    %339 = arith.addf %335, %338 : vector<4x8x1xf32>
    %c0_116 = arith.constant 0 : index
    %c69 = arith.constant 69 : index
    %340 = memref.load %arg6[%c0_116, %c69] : memref<3x98xf32, #tpu.memory_space<smem>>
    %341 = vector.broadcast %340 : f32 to vector<4x8x1xf32>
    %342 = arith.mulf %128, %341 : vector<4x8x1xf32>
    %343 = arith.addf %339, %342 : vector<4x8x1xf32>
    %c0_117 = arith.constant 0 : index
    %c77 = arith.constant 77 : index
    %344 = memref.load %arg6[%c0_117, %c77] : memref<3x98xf32, #tpu.memory_space<smem>>
    %345 = vector.broadcast %344 : f32 to vector<4x8x1xf32>
    %346 = arith.mulf %136, %345 : vector<4x8x1xf32>
    %347 = arith.addf %343, %346 : vector<4x8x1xf32>
    %c0_118 = arith.constant 0 : index
    %c85 = arith.constant 85 : index
    %348 = memref.load %arg6[%c0_118, %c85] : memref<3x98xf32, #tpu.memory_space<smem>>
    %349 = vector.broadcast %348 : f32 to vector<4x8x1xf32>
    %350 = arith.addf %347, %349 : vector<4x8x1xf32>
    %cst_119 = arith.constant 0.000000e+00 : f32
    %351 = vector.broadcast %cst_119 : f32 to vector<4x8x1xf32>
    %352 = arith.maximumf %350, %351 : vector<4x8x1xf32>
    %c0_120 = arith.constant 0 : index
    %c22 = arith.constant 22 : index
    %353 = memref.load %arg6[%c0_120, %c22] : memref<3x98xf32, #tpu.memory_space<smem>>
    %354 = vector.broadcast %353 : f32 to vector<4x8x1xf32>
    %355 = arith.mulf %80, %354 : vector<4x8x1xf32>
    %c0_121 = arith.constant 0 : index
    %c30 = arith.constant 30 : index
    %356 = memref.load %arg6[%c0_121, %c30] : memref<3x98xf32, #tpu.memory_space<smem>>
    %357 = vector.broadcast %356 : f32 to vector<4x8x1xf32>
    %358 = arith.mulf %88, %357 : vector<4x8x1xf32>
    %359 = arith.addf %355, %358 : vector<4x8x1xf32>
    %c0_122 = arith.constant 0 : index
    %c38 = arith.constant 38 : index
    %360 = memref.load %arg6[%c0_122, %c38] : memref<3x98xf32, #tpu.memory_space<smem>>
    %361 = vector.broadcast %360 : f32 to vector<4x8x1xf32>
    %362 = arith.mulf %96, %361 : vector<4x8x1xf32>
    %363 = arith.addf %359, %362 : vector<4x8x1xf32>
    %c0_123 = arith.constant 0 : index
    %c46 = arith.constant 46 : index
    %364 = memref.load %arg6[%c0_123, %c46] : memref<3x98xf32, #tpu.memory_space<smem>>
    %365 = vector.broadcast %364 : f32 to vector<4x8x1xf32>
    %366 = arith.mulf %104, %365 : vector<4x8x1xf32>
    %367 = arith.addf %363, %366 : vector<4x8x1xf32>
    %c0_124 = arith.constant 0 : index
    %c54 = arith.constant 54 : index
    %368 = memref.load %arg6[%c0_124, %c54] : memref<3x98xf32, #tpu.memory_space<smem>>
    %369 = vector.broadcast %368 : f32 to vector<4x8x1xf32>
    %370 = arith.mulf %112, %369 : vector<4x8x1xf32>
    %371 = arith.addf %367, %370 : vector<4x8x1xf32>
    %c0_125 = arith.constant 0 : index
    %c62 = arith.constant 62 : index
    %372 = memref.load %arg6[%c0_125, %c62] : memref<3x98xf32, #tpu.memory_space<smem>>
    %373 = vector.broadcast %372 : f32 to vector<4x8x1xf32>
    %374 = arith.mulf %120, %373 : vector<4x8x1xf32>
    %375 = arith.addf %371, %374 : vector<4x8x1xf32>
    %c0_126 = arith.constant 0 : index
    %c70 = arith.constant 70 : index
    %376 = memref.load %arg6[%c0_126, %c70] : memref<3x98xf32, #tpu.memory_space<smem>>
    %377 = vector.broadcast %376 : f32 to vector<4x8x1xf32>
    %378 = arith.mulf %128, %377 : vector<4x8x1xf32>
    %379 = arith.addf %375, %378 : vector<4x8x1xf32>
    %c0_127 = arith.constant 0 : index
    %c78 = arith.constant 78 : index
    %380 = memref.load %arg6[%c0_127, %c78] : memref<3x98xf32, #tpu.memory_space<smem>>
    %381 = vector.broadcast %380 : f32 to vector<4x8x1xf32>
    %382 = arith.mulf %136, %381 : vector<4x8x1xf32>
    %383 = arith.addf %379, %382 : vector<4x8x1xf32>
    %c0_128 = arith.constant 0 : index
    %c86 = arith.constant 86 : index
    %384 = memref.load %arg6[%c0_128, %c86] : memref<3x98xf32, #tpu.memory_space<smem>>
    %385 = vector.broadcast %384 : f32 to vector<4x8x1xf32>
    %386 = arith.addf %383, %385 : vector<4x8x1xf32>
    %cst_129 = arith.constant 0.000000e+00 : f32
    %387 = vector.broadcast %cst_129 : f32 to vector<4x8x1xf32>
    %388 = arith.maximumf %386, %387 : vector<4x8x1xf32>
    %c0_130 = arith.constant 0 : index
    %c23 = arith.constant 23 : index
    %389 = memref.load %arg6[%c0_130, %c23] : memref<3x98xf32, #tpu.memory_space<smem>>
    %390 = vector.broadcast %389 : f32 to vector<4x8x1xf32>
    %391 = arith.mulf %80, %390 : vector<4x8x1xf32>
    %c0_131 = arith.constant 0 : index
    %c31 = arith.constant 31 : index
    %392 = memref.load %arg6[%c0_131, %c31] : memref<3x98xf32, #tpu.memory_space<smem>>
    %393 = vector.broadcast %392 : f32 to vector<4x8x1xf32>
    %394 = arith.mulf %88, %393 : vector<4x8x1xf32>
    %395 = arith.addf %391, %394 : vector<4x8x1xf32>
    %c0_132 = arith.constant 0 : index
    %c39 = arith.constant 39 : index
    %396 = memref.load %arg6[%c0_132, %c39] : memref<3x98xf32, #tpu.memory_space<smem>>
    %397 = vector.broadcast %396 : f32 to vector<4x8x1xf32>
    %398 = arith.mulf %96, %397 : vector<4x8x1xf32>
    %399 = arith.addf %395, %398 : vector<4x8x1xf32>
    %c0_133 = arith.constant 0 : index
    %c47 = arith.constant 47 : index
    %400 = memref.load %arg6[%c0_133, %c47] : memref<3x98xf32, #tpu.memory_space<smem>>
    %401 = vector.broadcast %400 : f32 to vector<4x8x1xf32>
    %402 = arith.mulf %104, %401 : vector<4x8x1xf32>
    %403 = arith.addf %399, %402 : vector<4x8x1xf32>
    %c0_134 = arith.constant 0 : index
    %c55 = arith.constant 55 : index
    %404 = memref.load %arg6[%c0_134, %c55] : memref<3x98xf32, #tpu.memory_space<smem>>
    %405 = vector.broadcast %404 : f32 to vector<4x8x1xf32>
    %406 = arith.mulf %112, %405 : vector<4x8x1xf32>
    %407 = arith.addf %403, %406 : vector<4x8x1xf32>
    %c0_135 = arith.constant 0 : index
    %c63 = arith.constant 63 : index
    %408 = memref.load %arg6[%c0_135, %c63] : memref<3x98xf32, #tpu.memory_space<smem>>
    %409 = vector.broadcast %408 : f32 to vector<4x8x1xf32>
    %410 = arith.mulf %120, %409 : vector<4x8x1xf32>
    %411 = arith.addf %407, %410 : vector<4x8x1xf32>
    %c0_136 = arith.constant 0 : index
    %c71 = arith.constant 71 : index
    %412 = memref.load %arg6[%c0_136, %c71] : memref<3x98xf32, #tpu.memory_space<smem>>
    %413 = vector.broadcast %412 : f32 to vector<4x8x1xf32>
    %414 = arith.mulf %128, %413 : vector<4x8x1xf32>
    %415 = arith.addf %411, %414 : vector<4x8x1xf32>
    %c0_137 = arith.constant 0 : index
    %c79 = arith.constant 79 : index
    %416 = memref.load %arg6[%c0_137, %c79] : memref<3x98xf32, #tpu.memory_space<smem>>
    %417 = vector.broadcast %416 : f32 to vector<4x8x1xf32>
    %418 = arith.mulf %136, %417 : vector<4x8x1xf32>
    %419 = arith.addf %415, %418 : vector<4x8x1xf32>
    %c0_138 = arith.constant 0 : index
    %c87 = arith.constant 87 : index
    %420 = memref.load %arg6[%c0_138, %c87] : memref<3x98xf32, #tpu.memory_space<smem>>
    %421 = vector.broadcast %420 : f32 to vector<4x8x1xf32>
    %422 = arith.addf %419, %421 : vector<4x8x1xf32>
    %cst_139 = arith.constant 0.000000e+00 : f32
    %423 = vector.broadcast %cst_139 : f32 to vector<4x8x1xf32>
    %424 = arith.maximumf %422, %423 : vector<4x8x1xf32>
    %c0_140 = arith.constant 0 : index
    %c88 = arith.constant 88 : index
    %425 = memref.load %arg6[%c0_140, %c88] : memref<3x98xf32, #tpu.memory_space<smem>>
    %426 = vector.broadcast %425 : f32 to vector<4x8x1xf32>
    %427 = arith.mulf %172, %426 : vector<4x8x1xf32>
    %c0_141 = arith.constant 0 : index
    %c89 = arith.constant 89 : index
    %428 = memref.load %arg6[%c0_141, %c89] : memref<3x98xf32, #tpu.memory_space<smem>>
    %429 = vector.broadcast %428 : f32 to vector<4x8x1xf32>
    %430 = arith.mulf %208, %429 : vector<4x8x1xf32>
    %431 = arith.addf %427, %430 : vector<4x8x1xf32>
    %c0_142 = arith.constant 0 : index
    %c90 = arith.constant 90 : index
    %432 = memref.load %arg6[%c0_142, %c90] : memref<3x98xf32, #tpu.memory_space<smem>>
    %433 = vector.broadcast %432 : f32 to vector<4x8x1xf32>
    %434 = arith.mulf %244, %433 : vector<4x8x1xf32>
    %435 = arith.addf %431, %434 : vector<4x8x1xf32>
    %c0_143 = arith.constant 0 : index
    %c91 = arith.constant 91 : index
    %436 = memref.load %arg6[%c0_143, %c91] : memref<3x98xf32, #tpu.memory_space<smem>>
    %437 = vector.broadcast %436 : f32 to vector<4x8x1xf32>
    %438 = arith.mulf %280, %437 : vector<4x8x1xf32>
    %439 = arith.addf %435, %438 : vector<4x8x1xf32>
    %c0_144 = arith.constant 0 : index
    %c92 = arith.constant 92 : index
    %440 = memref.load %arg6[%c0_144, %c92] : memref<3x98xf32, #tpu.memory_space<smem>>
    %441 = vector.broadcast %440 : f32 to vector<4x8x1xf32>
    %442 = arith.mulf %316, %441 : vector<4x8x1xf32>
    %443 = arith.addf %439, %442 : vector<4x8x1xf32>
    %c0_145 = arith.constant 0 : index
    %c93 = arith.constant 93 : index
    %444 = memref.load %arg6[%c0_145, %c93] : memref<3x98xf32, #tpu.memory_space<smem>>
    %445 = vector.broadcast %444 : f32 to vector<4x8x1xf32>
    %446 = arith.mulf %352, %445 : vector<4x8x1xf32>
    %447 = arith.addf %443, %446 : vector<4x8x1xf32>
    %c0_146 = arith.constant 0 : index
    %c94 = arith.constant 94 : index
    %448 = memref.load %arg6[%c0_146, %c94] : memref<3x98xf32, #tpu.memory_space<smem>>
    %449 = vector.broadcast %448 : f32 to vector<4x8x1xf32>
    %450 = arith.mulf %388, %449 : vector<4x8x1xf32>
    %451 = arith.addf %447, %450 : vector<4x8x1xf32>
    %c0_147 = arith.constant 0 : index
    %c95 = arith.constant 95 : index
    %452 = memref.load %arg6[%c0_147, %c95] : memref<3x98xf32, #tpu.memory_space<smem>>
    %453 = vector.broadcast %452 : f32 to vector<4x8x1xf32>
    %454 = arith.mulf %424, %453 : vector<4x8x1xf32>
    %455 = arith.addf %451, %454 : vector<4x8x1xf32>
    %c0_148 = arith.constant 0 : index
    %c96 = arith.constant 96 : index
    %456 = memref.load %arg6[%c0_148, %c96] : memref<3x98xf32, #tpu.memory_space<smem>>
    %457 = vector.broadcast %456 : f32 to vector<4x8x1xf32>
    %458 = arith.addf %455, %457 : vector<4x8x1xf32>
    %cst_149 = arith.constant 0.000000e+00 : f32
    %459 = vector.broadcast %cst_149 : f32 to vector<4x8x1xf32>
    %460 = arith.subf %459, %458 : vector<4x8x1xf32>
    %461 = math.exp %460 : vector<4x8x1xf32>
    %cst_150 = arith.constant 1.000000e+00 : f32
    %462 = vector.broadcast %cst_150 : f32 to vector<4x8x1xf32>
    %463 = arith.addf %462, %461 : vector<4x8x1xf32>
    %cst_151 = arith.constant 1.000000e+00 : f32
    %464 = vector.broadcast %cst_151 : f32 to vector<4x8x1xf32>
    %465 = arith.divf %464, %463 : vector<4x8x1xf32>
    %cst_152 = arith.constant 9.99999997E-7 : f32
    %466 = vector.broadcast %cst_152 : f32 to vector<4x8x1xf32>
    %467 = arith.addf %465, %466 : vector<4x8x1xf32>
    %cst_153 = arith.constant 1.000000e+00 : f32
    %468 = vector.broadcast %cst_153 : f32 to vector<4x8x1xf32>
    %469 = arith.divf %468, %467 : vector<4x8x1xf32>
    %cst_154 = arith.constant 0.000000e+00 : f32
    %470 = vector.broadcast %cst_154 : f32 to vector<4x8x1xf32>
    %471 = arith.cmpf ogt, %4, %470 : vector<4x8x1xf32>
    %cst_155 = arith.constant -1.000000e+30 : f32
    %472 = vector.broadcast %cst_155 : f32 to vector<4x8x1xf32>
    %473 = arith.select %471, %469, %472 : vector<4x8x1xi1>, vector<4x8x1xf32>
    %cst_156 = arith.constant dense<0xFF800000> : vector<4x1xf32>
    %474 = vector.multi_reduction <maximumf>, %473, %cst_156 [1] : vector<4x8x1xf32> to vector<4x1xf32>
    %475 = vector.shape_cast %474 : vector<4x1xf32> to vector<4x1x1xf32>
    %476 = vector.broadcast %475 : vector<4x1x1xf32> to vector<4x8x1xf32>
    %477 = arith.subf %469, %476 : vector<4x8x1xf32>
    %cst_157 = arith.constant 0.000000e+00 : f32
    %478 = vector.broadcast %cst_157 : f32 to vector<4x8x1xf32>
    %479 = arith.minimumf %477, %478 : vector<4x8x1xf32>
    %480 = math.exp %479 : vector<4x8x1xf32>
    %481 = arith.mulf %480, %4 : vector<4x8x1xf32>
    %482 = vector.broadcast %481 : vector<4x8x1xf32> to vector<4x8x4xf32>
    %483 = arith.mulf %482, %37 : vector<4x8x4xf32>
    %cst_158 = arith.constant dense<0.000000e+00> : vector<4x4xf32>
    %484 = vector.multi_reduction <add>, %483, %cst_158 [1] : vector<4x8x4xf32> to vector<4x4xf32>
    %485 = vector.shape_cast %484 : vector<4x4xf32> to vector<4x1x4xf32>
    %486 = arith.mulf %481, %35 : vector<4x8x1xf32>
    %cst_159 = arith.constant dense<0.000000e+00> : vector<4x1xf32>
    %487 = vector.multi_reduction <add>, %486, %cst_159 [1] : vector<4x8x1xf32> to vector<4x1xf32>
    %488 = vector.shape_cast %487 : vector<4x1xf32> to vector<4x1x1xf32>
    %cst_160 = arith.constant 9.99999997E-7 : f32
    %489 = vector.broadcast %cst_160 : f32 to vector<4x1x1xf32>
    %490 = arith.maximumf %488, %489 : vector<4x1x1xf32>
    %491 = tpu.reciprocal %490 {approx = true} : vector<4x1x1xf32> -> vector<4x1x1xf32>
    %492 = vector.broadcast %491 : vector<4x1x1xf32> to vector<4x1x4xf32>
    %493 = arith.mulf %485, %492 : vector<4x1x4xf32>
    %494 = vector.broadcast %3 : vector<4x1x1xf32> to vector<4x1x4xf32>
    %495 = arith.mulf %493, %494 : vector<4x1x4xf32>
    %cst_161 = arith.constant 2.000000e+00 : f32
    %496 = vector.broadcast %cst_161 : f32 to vector<4x1x4xf32>
    %497 = arith.mulf %496, %0 : vector<4x1x4xf32>
    %cst_162 = arith.constant 1.000000e+00 : f32
    %498 = vector.broadcast %cst_162 : f32 to vector<4x1x1xf32>
    %499 = arith.addf %498, %40 : vector<4x1x1xf32>
    %500 = vector.broadcast %499 : vector<4x1x1xf32> to vector<4x1x4xf32>
    %501 = arith.divf %497, %500 : vector<4x1x4xf32>
    %502 = arith.mulf %501, %501 : vector<4x1x4xf32>
    %cst_163 = arith.constant dense<0.000000e+00> : vector<4x1xf32>
    %503 = vector.multi_reduction <add>, %502, %cst_163 [2] : vector<4x1x4xf32> to vector<4x1xf32>
    %504 = vector.shape_cast %503 : vector<4x1xf32> to vector<4x1x1xf32>
    %cst_164 = arith.constant 1.000000e+00 : f32
    %505 = vector.broadcast %cst_164 : f32 to vector<4x1x1xf32>
    %506 = arith.subf %505, %504 : vector<4x1x1xf32>
    %cst_165 = arith.constant 9.99999997E-7 : f32
    %507 = vector.broadcast %cst_165 : f32 to vector<4x1x1xf32>
    %508 = arith.maximumf %506, %507 : vector<4x1x1xf32>
    %509 = math.rsqrt %508 : vector<4x1x1xf32>
    %510 = arith.mulf %495, %495 : vector<4x1x4xf32>
    %cst_166 = arith.constant dense<0.000000e+00> : vector<4x1xf32>
    %511 = vector.multi_reduction <add>, %510, %cst_166 [2] : vector<4x1x4xf32> to vector<4x1xf32>
    %512 = vector.shape_cast %511 : vector<4x1xf32> to vector<4x1x1xf32>
    %cst_167 = arith.constant 1.000000e+00 : f32
    %513 = vector.broadcast %cst_167 : f32 to vector<4x1x1xf32>
    %514 = arith.subf %513, %512 : vector<4x1x1xf32>
    %cst_168 = arith.constant 9.99999997E-7 : f32
    %515 = vector.broadcast %cst_168 : f32 to vector<4x1x1xf32>
    %516 = arith.maximumf %514, %515 : vector<4x1x1xf32>
    %517 = math.rsqrt %516 : vector<4x1x1xf32>
    %c0_169 = arith.constant 0 : index
    %c97 = arith.constant 97 : index
    %518 = memref.load %arg6[%c0_169, %c97] : memref<3x98xf32, #tpu.memory_space<smem>>
    %cst_170 = arith.constant 1.000000e+00 : f32
    %519 = arith.subf %cst_170, %518 : f32
    %520 = vector.broadcast %518 : f32 to vector<4x1x1xf32>
    %521 = arith.mulf %520, %509 : vector<4x1x1xf32>
    %522 = vector.broadcast %521 : vector<4x1x1xf32> to vector<4x1x4xf32>
    %523 = arith.mulf %522, %501 : vector<4x1x4xf32>
    %524 = vector.broadcast %519 : f32 to vector<4x1x1xf32>
    %525 = arith.mulf %524, %517 : vector<4x1x1xf32>
    %526 = vector.broadcast %525 : vector<4x1x1xf32> to vector<4x1x4xf32>
    %527 = arith.mulf %526, %495 : vector<4x1x4xf32>
    %528 = arith.addf %523, %527 : vector<4x1x4xf32>
    %529 = vector.broadcast %518 : f32 to vector<4x1x1xf32>
    %530 = arith.mulf %529, %509 : vector<4x1x1xf32>
    %531 = vector.broadcast %519 : f32 to vector<4x1x1xf32>
    %532 = arith.mulf %531, %517 : vector<4x1x1xf32>
    %533 = arith.addf %530, %532 : vector<4x1x1xf32>
    %534 = tpu.reciprocal %533 {approx = true} : vector<4x1x1xf32> -> vector<4x1x1xf32>
    %535 = vector.broadcast %534 : vector<4x1x1xf32> to vector<4x1x4xf32>
    %536 = arith.mulf %528, %535 : vector<4x1x4xf32>
    %537 = arith.mulf %536, %536 : vector<4x1x4xf32>
    %cst_171 = arith.constant dense<0.000000e+00> : vector<4x1xf32>
    %538 = vector.multi_reduction <add>, %537, %cst_171 [2] : vector<4x1x4xf32> to vector<4x1xf32>
    %539 = vector.shape_cast %538 : vector<4x1xf32> to vector<4x1x1xf32>
    %cst_172 = arith.constant 1.000000e+00 : f32
    %540 = vector.broadcast %cst_172 : f32 to vector<4x1x1xf32>
    %541 = arith.subf %540, %539 : vector<4x1x1xf32>
    %cst_173 = arith.constant 0.000000e+00 : f32
    %542 = vector.broadcast %cst_173 : f32 to vector<4x1x1xf32>
    %543 = arith.maximumf %541, %542 : vector<4x1x1xf32>
    %544 = math.sqrt %543 : vector<4x1x1xf32>
    %cst_174 = arith.constant 1.000000e+00 : f32
    %545 = vector.broadcast %cst_174 : f32 to vector<4x1x1xf32>
    %546 = arith.addf %545, %544 : vector<4x1x1xf32>
    %547 = tpu.reciprocal %546 {approx = true} : vector<4x1x1xf32> -> vector<4x1x1xf32>
    %548 = vector.broadcast %547 : vector<4x1x1xf32> to vector<4x1x4xf32>
    %549 = arith.mulf %536, %548 : vector<4x1x4xf32>
    %550 = arith.mulf %549, %549 : vector<4x1x4xf32>
    %cst_175 = arith.constant dense<0.000000e+00> : vector<4x1xf32>
    %551 = vector.multi_reduction <add>, %550, %cst_175 [2] : vector<4x1x4xf32> to vector<4x1xf32>
    %552 = vector.shape_cast %551 : vector<4x1xf32> to vector<4x1x1xf32>
    %cst_176 = arith.constant 1.000000e+00 : f32
    %553 = vector.broadcast %cst_176 : f32 to vector<4x1x1xf32>
    %554 = arith.subf %553, %552 : vector<4x1x1xf32>
    %cst_177 = arith.constant 9.99999997E-7 : f32
    %555 = vector.broadcast %cst_177 : f32 to vector<4x1x1xf32>
    %556 = arith.maximumf %554, %555 : vector<4x1x1xf32>
    %cst_178 = arith.constant 1.000000e+00 : f32
    %557 = vector.broadcast %cst_178 : f32 to vector<4x1x1xf32>
    %558 = arith.addf %557, %552 : vector<4x1x1xf32>
    %559 = arith.divf %558, %556 : vector<4x1x1xf32>
    %cst_179 = arith.constant 2.000000e+00 : f32
    %560 = vector.broadcast %cst_179 : f32 to vector<4x1x4xf32>
    %561 = arith.mulf %560, %549 : vector<4x1x4xf32>
    %562 = vector.broadcast %556 : vector<4x1x1xf32> to vector<4x1x4xf32>
    %563 = arith.divf %561, %562 : vector<4x1x4xf32>
    %564 = vector.broadcast %563 : vector<4x1x4xf32> to vector<4x8x4xf32>
    %565 = arith.mulf %564, %18 : vector<4x8x4xf32>
    %cst_180 = arith.constant dense<0.000000e+00> : vector<4x8xf32>
    %566 = vector.multi_reduction <add>, %565, %cst_180 [2] : vector<4x8x4xf32> to vector<4x8xf32>
    %567 = vector.shape_cast %566 : vector<4x8xf32> to vector<4x8x1xf32>
    %568 = vector.broadcast %559 : vector<4x1x1xf32> to vector<4x8x1xf32>
    %569 = arith.mulf %568, %14 : vector<4x8x1xf32>
    %570 = arith.subf %567, %569 : vector<4x8x1xf32>
    %cst_181 = arith.constant 0.000000e+00 : f32
    %571 = vector.broadcast %cst_181 : f32 to vector<4x8x1xf32>
    %572 = arith.subf %571, %570 : vector<4x8x1xf32>
    %cst_182 = arith.constant 1.000000e+00 : f32
    %573 = vector.broadcast %cst_182 : f32 to vector<4x8x1xf32>
    %574 = arith.subf %572, %573 : vector<4x8x1xf32>
    %cst_183 = arith.constant 9.99999997E-7 : f32
    %575 = vector.broadcast %cst_183 : f32 to vector<4x8x1xf32>
    %576 = arith.maximumf %574, %575 : vector<4x8x1xf32>
    %cst_184 = arith.constant 1.000000e+00 : f32
    %577 = vector.broadcast %cst_184 : f32 to vector<4x8x1xf32>
    %578 = arith.addf %577, %576 : vector<4x8x1xf32>
    %cst_185 = arith.constant 2.000000e+00 : f32
    %579 = vector.broadcast %cst_185 : f32 to vector<4x8x1xf32>
    %580 = arith.addf %576, %579 : vector<4x8x1xf32>
    %581 = arith.mulf %576, %580 : vector<4x8x1xf32>
    %582 = math.sqrt %581 : vector<4x8x1xf32>
    %583 = arith.addf %578, %582 : vector<4x8x1xf32>
    %584 = math.log %583 : vector<4x8x1xf32>
    %c1_186 = arith.constant 1 : index
    %c0_187 = arith.constant 0 : index
    %585 = memref.load %arg6[%c1_186, %c0_187] : memref<3x98xf32, #tpu.memory_space<smem>>
    %586 = vector.broadcast %585 : f32 to vector<4x8x1xf32>
    %587 = arith.mulf %584, %586 : vector<4x8x1xf32>
    %c1_188 = arith.constant 1 : index
    %c8_189 = arith.constant 8 : index
    %588 = memref.load %arg6[%c1_188, %c8_189] : memref<3x98xf32, #tpu.memory_space<smem>>
    %589 = vector.broadcast %588 : f32 to vector<4x8x1xf32>
    %590 = arith.addf %587, %589 : vector<4x8x1xf32>
    %cst_190 = arith.constant 0.000000e+00 : f32
    %591 = vector.broadcast %cst_190 : f32 to vector<4x8x1xf32>
    %592 = arith.maximumf %590, %591 : vector<4x8x1xf32>
    %c1_191 = arith.constant 1 : index
    %c1_192 = arith.constant 1 : index
    %593 = memref.load %arg6[%c1_191, %c1_192] : memref<3x98xf32, #tpu.memory_space<smem>>
    %594 = vector.broadcast %593 : f32 to vector<4x8x1xf32>
    %595 = arith.mulf %584, %594 : vector<4x8x1xf32>
    %c1_193 = arith.constant 1 : index
    %c9_194 = arith.constant 9 : index
    %596 = memref.load %arg6[%c1_193, %c9_194] : memref<3x98xf32, #tpu.memory_space<smem>>
    %597 = vector.broadcast %596 : f32 to vector<4x8x1xf32>
    %598 = arith.addf %595, %597 : vector<4x8x1xf32>
    %cst_195 = arith.constant 0.000000e+00 : f32
    %599 = vector.broadcast %cst_195 : f32 to vector<4x8x1xf32>
    %600 = arith.maximumf %598, %599 : vector<4x8x1xf32>
    %c1_196 = arith.constant 1 : index
    %c2_197 = arith.constant 2 : index
    %601 = memref.load %arg6[%c1_196, %c2_197] : memref<3x98xf32, #tpu.memory_space<smem>>
    %602 = vector.broadcast %601 : f32 to vector<4x8x1xf32>
    %603 = arith.mulf %584, %602 : vector<4x8x1xf32>
    %c1_198 = arith.constant 1 : index
    %c10_199 = arith.constant 10 : index
    %604 = memref.load %arg6[%c1_198, %c10_199] : memref<3x98xf32, #tpu.memory_space<smem>>
    %605 = vector.broadcast %604 : f32 to vector<4x8x1xf32>
    %606 = arith.addf %603, %605 : vector<4x8x1xf32>
    %cst_200 = arith.constant 0.000000e+00 : f32
    %607 = vector.broadcast %cst_200 : f32 to vector<4x8x1xf32>
    %608 = arith.maximumf %606, %607 : vector<4x8x1xf32>
    %c1_201 = arith.constant 1 : index
    %c3_202 = arith.constant 3 : index
    %609 = memref.load %arg6[%c1_201, %c3_202] : memref<3x98xf32, #tpu.memory_space<smem>>
    %610 = vector.broadcast %609 : f32 to vector<4x8x1xf32>
    %611 = arith.mulf %584, %610 : vector<4x8x1xf32>
    %c1_203 = arith.constant 1 : index
    %c11_204 = arith.constant 11 : index
    %612 = memref.load %arg6[%c1_203, %c11_204] : memref<3x98xf32, #tpu.memory_space<smem>>
    %613 = vector.broadcast %612 : f32 to vector<4x8x1xf32>
    %614 = arith.addf %611, %613 : vector<4x8x1xf32>
    %cst_205 = arith.constant 0.000000e+00 : f32
    %615 = vector.broadcast %cst_205 : f32 to vector<4x8x1xf32>
    %616 = arith.maximumf %614, %615 : vector<4x8x1xf32>
    %c1_206 = arith.constant 1 : index
    %c4_207 = arith.constant 4 : index
    %617 = memref.load %arg6[%c1_206, %c4_207] : memref<3x98xf32, #tpu.memory_space<smem>>
    %618 = vector.broadcast %617 : f32 to vector<4x8x1xf32>
    %619 = arith.mulf %584, %618 : vector<4x8x1xf32>
    %c1_208 = arith.constant 1 : index
    %c12_209 = arith.constant 12 : index
    %620 = memref.load %arg6[%c1_208, %c12_209] : memref<3x98xf32, #tpu.memory_space<smem>>
    %621 = vector.broadcast %620 : f32 to vector<4x8x1xf32>
    %622 = arith.addf %619, %621 : vector<4x8x1xf32>
    %cst_210 = arith.constant 0.000000e+00 : f32
    %623 = vector.broadcast %cst_210 : f32 to vector<4x8x1xf32>
    %624 = arith.maximumf %622, %623 : vector<4x8x1xf32>
    %c1_211 = arith.constant 1 : index
    %c5_212 = arith.constant 5 : index
    %625 = memref.load %arg6[%c1_211, %c5_212] : memref<3x98xf32, #tpu.memory_space<smem>>
    %626 = vector.broadcast %625 : f32 to vector<4x8x1xf32>
    %627 = arith.mulf %584, %626 : vector<4x8x1xf32>
    %c1_213 = arith.constant 1 : index
    %c13_214 = arith.constant 13 : index
    %628 = memref.load %arg6[%c1_213, %c13_214] : memref<3x98xf32, #tpu.memory_space<smem>>
    %629 = vector.broadcast %628 : f32 to vector<4x8x1xf32>
    %630 = arith.addf %627, %629 : vector<4x8x1xf32>
    %cst_215 = arith.constant 0.000000e+00 : f32
    %631 = vector.broadcast %cst_215 : f32 to vector<4x8x1xf32>
    %632 = arith.maximumf %630, %631 : vector<4x8x1xf32>
    %c1_216 = arith.constant 1 : index
    %c6_217 = arith.constant 6 : index
    %633 = memref.load %arg6[%c1_216, %c6_217] : memref<3x98xf32, #tpu.memory_space<smem>>
    %634 = vector.broadcast %633 : f32 to vector<4x8x1xf32>
    %635 = arith.mulf %584, %634 : vector<4x8x1xf32>
    %c1_218 = arith.constant 1 : index
    %c14_219 = arith.constant 14 : index
    %636 = memref.load %arg6[%c1_218, %c14_219] : memref<3x98xf32, #tpu.memory_space<smem>>
    %637 = vector.broadcast %636 : f32 to vector<4x8x1xf32>
    %638 = arith.addf %635, %637 : vector<4x8x1xf32>
    %cst_220 = arith.constant 0.000000e+00 : f32
    %639 = vector.broadcast %cst_220 : f32 to vector<4x8x1xf32>
    %640 = arith.maximumf %638, %639 : vector<4x8x1xf32>
    %c1_221 = arith.constant 1 : index
    %c7_222 = arith.constant 7 : index
    %641 = memref.load %arg6[%c1_221, %c7_222] : memref<3x98xf32, #tpu.memory_space<smem>>
    %642 = vector.broadcast %641 : f32 to vector<4x8x1xf32>
    %643 = arith.mulf %584, %642 : vector<4x8x1xf32>
    %c1_223 = arith.constant 1 : index
    %c15_224 = arith.constant 15 : index
    %644 = memref.load %arg6[%c1_223, %c15_224] : memref<3x98xf32, #tpu.memory_space<smem>>
    %645 = vector.broadcast %644 : f32 to vector<4x8x1xf32>
    %646 = arith.addf %643, %645 : vector<4x8x1xf32>
    %cst_225 = arith.constant 0.000000e+00 : f32
    %647 = vector.broadcast %cst_225 : f32 to vector<4x8x1xf32>
    %648 = arith.maximumf %646, %647 : vector<4x8x1xf32>
    %c1_226 = arith.constant 1 : index
    %c16_227 = arith.constant 16 : index
    %649 = memref.load %arg6[%c1_226, %c16_227] : memref<3x98xf32, #tpu.memory_space<smem>>
    %650 = vector.broadcast %649 : f32 to vector<4x8x1xf32>
    %651 = arith.mulf %592, %650 : vector<4x8x1xf32>
    %c1_228 = arith.constant 1 : index
    %c24_229 = arith.constant 24 : index
    %652 = memref.load %arg6[%c1_228, %c24_229] : memref<3x98xf32, #tpu.memory_space<smem>>
    %653 = vector.broadcast %652 : f32 to vector<4x8x1xf32>
    %654 = arith.mulf %600, %653 : vector<4x8x1xf32>
    %655 = arith.addf %651, %654 : vector<4x8x1xf32>
    %c1_230 = arith.constant 1 : index
    %c32_231 = arith.constant 32 : index
    %656 = memref.load %arg6[%c1_230, %c32_231] : memref<3x98xf32, #tpu.memory_space<smem>>
    %657 = vector.broadcast %656 : f32 to vector<4x8x1xf32>
    %658 = arith.mulf %608, %657 : vector<4x8x1xf32>
    %659 = arith.addf %655, %658 : vector<4x8x1xf32>
    %c1_232 = arith.constant 1 : index
    %c40_233 = arith.constant 40 : index
    %660 = memref.load %arg6[%c1_232, %c40_233] : memref<3x98xf32, #tpu.memory_space<smem>>
    %661 = vector.broadcast %660 : f32 to vector<4x8x1xf32>
    %662 = arith.mulf %616, %661 : vector<4x8x1xf32>
    %663 = arith.addf %659, %662 : vector<4x8x1xf32>
    %c1_234 = arith.constant 1 : index
    %c48_235 = arith.constant 48 : index
    %664 = memref.load %arg6[%c1_234, %c48_235] : memref<3x98xf32, #tpu.memory_space<smem>>
    %665 = vector.broadcast %664 : f32 to vector<4x8x1xf32>
    %666 = arith.mulf %624, %665 : vector<4x8x1xf32>
    %667 = arith.addf %663, %666 : vector<4x8x1xf32>
    %c1_236 = arith.constant 1 : index
    %c56_237 = arith.constant 56 : index
    %668 = memref.load %arg6[%c1_236, %c56_237] : memref<3x98xf32, #tpu.memory_space<smem>>
    %669 = vector.broadcast %668 : f32 to vector<4x8x1xf32>
    %670 = arith.mulf %632, %669 : vector<4x8x1xf32>
    %671 = arith.addf %667, %670 : vector<4x8x1xf32>
    %c1_238 = arith.constant 1 : index
    %c64_239 = arith.constant 64 : index
    %672 = memref.load %arg6[%c1_238, %c64_239] : memref<3x98xf32, #tpu.memory_space<smem>>
    %673 = vector.broadcast %672 : f32 to vector<4x8x1xf32>
    %674 = arith.mulf %640, %673 : vector<4x8x1xf32>
    %675 = arith.addf %671, %674 : vector<4x8x1xf32>
    %c1_240 = arith.constant 1 : index
    %c72_241 = arith.constant 72 : index
    %676 = memref.load %arg6[%c1_240, %c72_241] : memref<3x98xf32, #tpu.memory_space<smem>>
    %677 = vector.broadcast %676 : f32 to vector<4x8x1xf32>
    %678 = arith.mulf %648, %677 : vector<4x8x1xf32>
    %679 = arith.addf %675, %678 : vector<4x8x1xf32>
    %c1_242 = arith.constant 1 : index
    %c80_243 = arith.constant 80 : index
    %680 = memref.load %arg6[%c1_242, %c80_243] : memref<3x98xf32, #tpu.memory_space<smem>>
    %681 = vector.broadcast %680 : f32 to vector<4x8x1xf32>
    %682 = arith.addf %679, %681 : vector<4x8x1xf32>
    %cst_244 = arith.constant 0.000000e+00 : f32
    %683 = vector.broadcast %cst_244 : f32 to vector<4x8x1xf32>
    %684 = arith.maximumf %682, %683 : vector<4x8x1xf32>
    %c1_245 = arith.constant 1 : index
    %c17_246 = arith.constant 17 : index
    %685 = memref.load %arg6[%c1_245, %c17_246] : memref<3x98xf32, #tpu.memory_space<smem>>
    %686 = vector.broadcast %685 : f32 to vector<4x8x1xf32>
    %687 = arith.mulf %592, %686 : vector<4x8x1xf32>
    %c1_247 = arith.constant 1 : index
    %c25_248 = arith.constant 25 : index
    %688 = memref.load %arg6[%c1_247, %c25_248] : memref<3x98xf32, #tpu.memory_space<smem>>
    %689 = vector.broadcast %688 : f32 to vector<4x8x1xf32>
    %690 = arith.mulf %600, %689 : vector<4x8x1xf32>
    %691 = arith.addf %687, %690 : vector<4x8x1xf32>
    %c1_249 = arith.constant 1 : index
    %c33_250 = arith.constant 33 : index
    %692 = memref.load %arg6[%c1_249, %c33_250] : memref<3x98xf32, #tpu.memory_space<smem>>
    %693 = vector.broadcast %692 : f32 to vector<4x8x1xf32>
    %694 = arith.mulf %608, %693 : vector<4x8x1xf32>
    %695 = arith.addf %691, %694 : vector<4x8x1xf32>
    %c1_251 = arith.constant 1 : index
    %c41_252 = arith.constant 41 : index
    %696 = memref.load %arg6[%c1_251, %c41_252] : memref<3x98xf32, #tpu.memory_space<smem>>
    %697 = vector.broadcast %696 : f32 to vector<4x8x1xf32>
    %698 = arith.mulf %616, %697 : vector<4x8x1xf32>
    %699 = arith.addf %695, %698 : vector<4x8x1xf32>
    %c1_253 = arith.constant 1 : index
    %c49_254 = arith.constant 49 : index
    %700 = memref.load %arg6[%c1_253, %c49_254] : memref<3x98xf32, #tpu.memory_space<smem>>
    %701 = vector.broadcast %700 : f32 to vector<4x8x1xf32>
    %702 = arith.mulf %624, %701 : vector<4x8x1xf32>
    %703 = arith.addf %699, %702 : vector<4x8x1xf32>
    %c1_255 = arith.constant 1 : index
    %c57_256 = arith.constant 57 : index
    %704 = memref.load %arg6[%c1_255, %c57_256] : memref<3x98xf32, #tpu.memory_space<smem>>
    %705 = vector.broadcast %704 : f32 to vector<4x8x1xf32>
    %706 = arith.mulf %632, %705 : vector<4x8x1xf32>
    %707 = arith.addf %703, %706 : vector<4x8x1xf32>
    %c1_257 = arith.constant 1 : index
    %c65_258 = arith.constant 65 : index
    %708 = memref.load %arg6[%c1_257, %c65_258] : memref<3x98xf32, #tpu.memory_space<smem>>
    %709 = vector.broadcast %708 : f32 to vector<4x8x1xf32>
    %710 = arith.mulf %640, %709 : vector<4x8x1xf32>
    %711 = arith.addf %707, %710 : vector<4x8x1xf32>
    %c1_259 = arith.constant 1 : index
    %c73_260 = arith.constant 73 : index
    %712 = memref.load %arg6[%c1_259, %c73_260] : memref<3x98xf32, #tpu.memory_space<smem>>
    %713 = vector.broadcast %712 : f32 to vector<4x8x1xf32>
    %714 = arith.mulf %648, %713 : vector<4x8x1xf32>
    %715 = arith.addf %711, %714 : vector<4x8x1xf32>
    %c1_261 = arith.constant 1 : index
    %c81_262 = arith.constant 81 : index
    %716 = memref.load %arg6[%c1_261, %c81_262] : memref<3x98xf32, #tpu.memory_space<smem>>
    %717 = vector.broadcast %716 : f32 to vector<4x8x1xf32>
    %718 = arith.addf %715, %717 : vector<4x8x1xf32>
    %cst_263 = arith.constant 0.000000e+00 : f32
    %719 = vector.broadcast %cst_263 : f32 to vector<4x8x1xf32>
    %720 = arith.maximumf %718, %719 : vector<4x8x1xf32>
    %c1_264 = arith.constant 1 : index
    %c18_265 = arith.constant 18 : index
    %721 = memref.load %arg6[%c1_264, %c18_265] : memref<3x98xf32, #tpu.memory_space<smem>>
    %722 = vector.broadcast %721 : f32 to vector<4x8x1xf32>
    %723 = arith.mulf %592, %722 : vector<4x8x1xf32>
    %c1_266 = arith.constant 1 : index
    %c26_267 = arith.constant 26 : index
    %724 = memref.load %arg6[%c1_266, %c26_267] : memref<3x98xf32, #tpu.memory_space<smem>>
    %725 = vector.broadcast %724 : f32 to vector<4x8x1xf32>
    %726 = arith.mulf %600, %725 : vector<4x8x1xf32>
    %727 = arith.addf %723, %726 : vector<4x8x1xf32>
    %c1_268 = arith.constant 1 : index
    %c34_269 = arith.constant 34 : index
    %728 = memref.load %arg6[%c1_268, %c34_269] : memref<3x98xf32, #tpu.memory_space<smem>>
    %729 = vector.broadcast %728 : f32 to vector<4x8x1xf32>
    %730 = arith.mulf %608, %729 : vector<4x8x1xf32>
    %731 = arith.addf %727, %730 : vector<4x8x1xf32>
    %c1_270 = arith.constant 1 : index
    %c42_271 = arith.constant 42 : index
    %732 = memref.load %arg6[%c1_270, %c42_271] : memref<3x98xf32, #tpu.memory_space<smem>>
    %733 = vector.broadcast %732 : f32 to vector<4x8x1xf32>
    %734 = arith.mulf %616, %733 : vector<4x8x1xf32>
    %735 = arith.addf %731, %734 : vector<4x8x1xf32>
    %c1_272 = arith.constant 1 : index
    %c50_273 = arith.constant 50 : index
    %736 = memref.load %arg6[%c1_272, %c50_273] : memref<3x98xf32, #tpu.memory_space<smem>>
    %737 = vector.broadcast %736 : f32 to vector<4x8x1xf32>
    %738 = arith.mulf %624, %737 : vector<4x8x1xf32>
    %739 = arith.addf %735, %738 : vector<4x8x1xf32>
    %c1_274 = arith.constant 1 : index
    %c58_275 = arith.constant 58 : index
    %740 = memref.load %arg6[%c1_274, %c58_275] : memref<3x98xf32, #tpu.memory_space<smem>>
    %741 = vector.broadcast %740 : f32 to vector<4x8x1xf32>
    %742 = arith.mulf %632, %741 : vector<4x8x1xf32>
    %743 = arith.addf %739, %742 : vector<4x8x1xf32>
    %c1_276 = arith.constant 1 : index
    %c66_277 = arith.constant 66 : index
    %744 = memref.load %arg6[%c1_276, %c66_277] : memref<3x98xf32, #tpu.memory_space<smem>>
    %745 = vector.broadcast %744 : f32 to vector<4x8x1xf32>
    %746 = arith.mulf %640, %745 : vector<4x8x1xf32>
    %747 = arith.addf %743, %746 : vector<4x8x1xf32>
    %c1_278 = arith.constant 1 : index
    %c74_279 = arith.constant 74 : index
    %748 = memref.load %arg6[%c1_278, %c74_279] : memref<3x98xf32, #tpu.memory_space<smem>>
    %749 = vector.broadcast %748 : f32 to vector<4x8x1xf32>
    %750 = arith.mulf %648, %749 : vector<4x8x1xf32>
    %751 = arith.addf %747, %750 : vector<4x8x1xf32>
    %c1_280 = arith.constant 1 : index
    %c82_281 = arith.constant 82 : index
    %752 = memref.load %arg6[%c1_280, %c82_281] : memref<3x98xf32, #tpu.memory_space<smem>>
    %753 = vector.broadcast %752 : f32 to vector<4x8x1xf32>
    %754 = arith.addf %751, %753 : vector<4x8x1xf32>
    %cst_282 = arith.constant 0.000000e+00 : f32
    %755 = vector.broadcast %cst_282 : f32 to vector<4x8x1xf32>
    %756 = arith.maximumf %754, %755 : vector<4x8x1xf32>
    %c1_283 = arith.constant 1 : index
    %c19_284 = arith.constant 19 : index
    %757 = memref.load %arg6[%c1_283, %c19_284] : memref<3x98xf32, #tpu.memory_space<smem>>
    %758 = vector.broadcast %757 : f32 to vector<4x8x1xf32>
    %759 = arith.mulf %592, %758 : vector<4x8x1xf32>
    %c1_285 = arith.constant 1 : index
    %c27_286 = arith.constant 27 : index
    %760 = memref.load %arg6[%c1_285, %c27_286] : memref<3x98xf32, #tpu.memory_space<smem>>
    %761 = vector.broadcast %760 : f32 to vector<4x8x1xf32>
    %762 = arith.mulf %600, %761 : vector<4x8x1xf32>
    %763 = arith.addf %759, %762 : vector<4x8x1xf32>
    %c1_287 = arith.constant 1 : index
    %c35_288 = arith.constant 35 : index
    %764 = memref.load %arg6[%c1_287, %c35_288] : memref<3x98xf32, #tpu.memory_space<smem>>
    %765 = vector.broadcast %764 : f32 to vector<4x8x1xf32>
    %766 = arith.mulf %608, %765 : vector<4x8x1xf32>
    %767 = arith.addf %763, %766 : vector<4x8x1xf32>
    %c1_289 = arith.constant 1 : index
    %c43_290 = arith.constant 43 : index
    %768 = memref.load %arg6[%c1_289, %c43_290] : memref<3x98xf32, #tpu.memory_space<smem>>
    %769 = vector.broadcast %768 : f32 to vector<4x8x1xf32>
    %770 = arith.mulf %616, %769 : vector<4x8x1xf32>
    %771 = arith.addf %767, %770 : vector<4x8x1xf32>
    %c1_291 = arith.constant 1 : index
    %c51_292 = arith.constant 51 : index
    %772 = memref.load %arg6[%c1_291, %c51_292] : memref<3x98xf32, #tpu.memory_space<smem>>
    %773 = vector.broadcast %772 : f32 to vector<4x8x1xf32>
    %774 = arith.mulf %624, %773 : vector<4x8x1xf32>
    %775 = arith.addf %771, %774 : vector<4x8x1xf32>
    %c1_293 = arith.constant 1 : index
    %c59_294 = arith.constant 59 : index
    %776 = memref.load %arg6[%c1_293, %c59_294] : memref<3x98xf32, #tpu.memory_space<smem>>
    %777 = vector.broadcast %776 : f32 to vector<4x8x1xf32>
    %778 = arith.mulf %632, %777 : vector<4x8x1xf32>
    %779 = arith.addf %775, %778 : vector<4x8x1xf32>
    %c1_295 = arith.constant 1 : index
    %c67_296 = arith.constant 67 : index
    %780 = memref.load %arg6[%c1_295, %c67_296] : memref<3x98xf32, #tpu.memory_space<smem>>
    %781 = vector.broadcast %780 : f32 to vector<4x8x1xf32>
    %782 = arith.mulf %640, %781 : vector<4x8x1xf32>
    %783 = arith.addf %779, %782 : vector<4x8x1xf32>
    %c1_297 = arith.constant 1 : index
    %c75_298 = arith.constant 75 : index
    %784 = memref.load %arg6[%c1_297, %c75_298] : memref<3x98xf32, #tpu.memory_space<smem>>
    %785 = vector.broadcast %784 : f32 to vector<4x8x1xf32>
    %786 = arith.mulf %648, %785 : vector<4x8x1xf32>
    %787 = arith.addf %783, %786 : vector<4x8x1xf32>
    %c1_299 = arith.constant 1 : index
    %c83_300 = arith.constant 83 : index
    %788 = memref.load %arg6[%c1_299, %c83_300] : memref<3x98xf32, #tpu.memory_space<smem>>
    %789 = vector.broadcast %788 : f32 to vector<4x8x1xf32>
    %790 = arith.addf %787, %789 : vector<4x8x1xf32>
    %cst_301 = arith.constant 0.000000e+00 : f32
    %791 = vector.broadcast %cst_301 : f32 to vector<4x8x1xf32>
    %792 = arith.maximumf %790, %791 : vector<4x8x1xf32>
    %c1_302 = arith.constant 1 : index
    %c20_303 = arith.constant 20 : index
    %793 = memref.load %arg6[%c1_302, %c20_303] : memref<3x98xf32, #tpu.memory_space<smem>>
    %794 = vector.broadcast %793 : f32 to vector<4x8x1xf32>
    %795 = arith.mulf %592, %794 : vector<4x8x1xf32>
    %c1_304 = arith.constant 1 : index
    %c28_305 = arith.constant 28 : index
    %796 = memref.load %arg6[%c1_304, %c28_305] : memref<3x98xf32, #tpu.memory_space<smem>>
    %797 = vector.broadcast %796 : f32 to vector<4x8x1xf32>
    %798 = arith.mulf %600, %797 : vector<4x8x1xf32>
    %799 = arith.addf %795, %798 : vector<4x8x1xf32>
    %c1_306 = arith.constant 1 : index
    %c36_307 = arith.constant 36 : index
    %800 = memref.load %arg6[%c1_306, %c36_307] : memref<3x98xf32, #tpu.memory_space<smem>>
    %801 = vector.broadcast %800 : f32 to vector<4x8x1xf32>
    %802 = arith.mulf %608, %801 : vector<4x8x1xf32>
    %803 = arith.addf %799, %802 : vector<4x8x1xf32>
    %c1_308 = arith.constant 1 : index
    %c44_309 = arith.constant 44 : index
    %804 = memref.load %arg6[%c1_308, %c44_309] : memref<3x98xf32, #tpu.memory_space<smem>>
    %805 = vector.broadcast %804 : f32 to vector<4x8x1xf32>
    %806 = arith.mulf %616, %805 : vector<4x8x1xf32>
    %807 = arith.addf %803, %806 : vector<4x8x1xf32>
    %c1_310 = arith.constant 1 : index
    %c52_311 = arith.constant 52 : index
    %808 = memref.load %arg6[%c1_310, %c52_311] : memref<3x98xf32, #tpu.memory_space<smem>>
    %809 = vector.broadcast %808 : f32 to vector<4x8x1xf32>
    %810 = arith.mulf %624, %809 : vector<4x8x1xf32>
    %811 = arith.addf %807, %810 : vector<4x8x1xf32>
    %c1_312 = arith.constant 1 : index
    %c60_313 = arith.constant 60 : index
    %812 = memref.load %arg6[%c1_312, %c60_313] : memref<3x98xf32, #tpu.memory_space<smem>>
    %813 = vector.broadcast %812 : f32 to vector<4x8x1xf32>
    %814 = arith.mulf %632, %813 : vector<4x8x1xf32>
    %815 = arith.addf %811, %814 : vector<4x8x1xf32>
    %c1_314 = arith.constant 1 : index
    %c68_315 = arith.constant 68 : index
    %816 = memref.load %arg6[%c1_314, %c68_315] : memref<3x98xf32, #tpu.memory_space<smem>>
    %817 = vector.broadcast %816 : f32 to vector<4x8x1xf32>
    %818 = arith.mulf %640, %817 : vector<4x8x1xf32>
    %819 = arith.addf %815, %818 : vector<4x8x1xf32>
    %c1_316 = arith.constant 1 : index
    %c76_317 = arith.constant 76 : index
    %820 = memref.load %arg6[%c1_316, %c76_317] : memref<3x98xf32, #tpu.memory_space<smem>>
    %821 = vector.broadcast %820 : f32 to vector<4x8x1xf32>
    %822 = arith.mulf %648, %821 : vector<4x8x1xf32>
    %823 = arith.addf %819, %822 : vector<4x8x1xf32>
    %c1_318 = arith.constant 1 : index
    %c84_319 = arith.constant 84 : index
    %824 = memref.load %arg6[%c1_318, %c84_319] : memref<3x98xf32, #tpu.memory_space<smem>>
    %825 = vector.broadcast %824 : f32 to vector<4x8x1xf32>
    %826 = arith.addf %823, %825 : vector<4x8x1xf32>
    %cst_320 = arith.constant 0.000000e+00 : f32
    %827 = vector.broadcast %cst_320 : f32 to vector<4x8x1xf32>
    %828 = arith.maximumf %826, %827 : vector<4x8x1xf32>
    %c1_321 = arith.constant 1 : index
    %c21_322 = arith.constant 21 : index
    %829 = memref.load %arg6[%c1_321, %c21_322] : memref<3x98xf32, #tpu.memory_space<smem>>
    %830 = vector.broadcast %829 : f32 to vector<4x8x1xf32>
    %831 = arith.mulf %592, %830 : vector<4x8x1xf32>
    %c1_323 = arith.constant 1 : index
    %c29_324 = arith.constant 29 : index
    %832 = memref.load %arg6[%c1_323, %c29_324] : memref<3x98xf32, #tpu.memory_space<smem>>
    %833 = vector.broadcast %832 : f32 to vector<4x8x1xf32>
    %834 = arith.mulf %600, %833 : vector<4x8x1xf32>
    %835 = arith.addf %831, %834 : vector<4x8x1xf32>
    %c1_325 = arith.constant 1 : index
    %c37_326 = arith.constant 37 : index
    %836 = memref.load %arg6[%c1_325, %c37_326] : memref<3x98xf32, #tpu.memory_space<smem>>
    %837 = vector.broadcast %836 : f32 to vector<4x8x1xf32>
    %838 = arith.mulf %608, %837 : vector<4x8x1xf32>
    %839 = arith.addf %835, %838 : vector<4x8x1xf32>
    %c1_327 = arith.constant 1 : index
    %c45_328 = arith.constant 45 : index
    %840 = memref.load %arg6[%c1_327, %c45_328] : memref<3x98xf32, #tpu.memory_space<smem>>
    %841 = vector.broadcast %840 : f32 to vector<4x8x1xf32>
    %842 = arith.mulf %616, %841 : vector<4x8x1xf32>
    %843 = arith.addf %839, %842 : vector<4x8x1xf32>
    %c1_329 = arith.constant 1 : index
    %c53_330 = arith.constant 53 : index
    %844 = memref.load %arg6[%c1_329, %c53_330] : memref<3x98xf32, #tpu.memory_space<smem>>
    %845 = vector.broadcast %844 : f32 to vector<4x8x1xf32>
    %846 = arith.mulf %624, %845 : vector<4x8x1xf32>
    %847 = arith.addf %843, %846 : vector<4x8x1xf32>
    %c1_331 = arith.constant 1 : index
    %c61_332 = arith.constant 61 : index
    %848 = memref.load %arg6[%c1_331, %c61_332] : memref<3x98xf32, #tpu.memory_space<smem>>
    %849 = vector.broadcast %848 : f32 to vector<4x8x1xf32>
    %850 = arith.mulf %632, %849 : vector<4x8x1xf32>
    %851 = arith.addf %847, %850 : vector<4x8x1xf32>
    %c1_333 = arith.constant 1 : index
    %c69_334 = arith.constant 69 : index
    %852 = memref.load %arg6[%c1_333, %c69_334] : memref<3x98xf32, #tpu.memory_space<smem>>
    %853 = vector.broadcast %852 : f32 to vector<4x8x1xf32>
    %854 = arith.mulf %640, %853 : vector<4x8x1xf32>
    %855 = arith.addf %851, %854 : vector<4x8x1xf32>
    %c1_335 = arith.constant 1 : index
    %c77_336 = arith.constant 77 : index
    %856 = memref.load %arg6[%c1_335, %c77_336] : memref<3x98xf32, #tpu.memory_space<smem>>
    %857 = vector.broadcast %856 : f32 to vector<4x8x1xf32>
    %858 = arith.mulf %648, %857 : vector<4x8x1xf32>
    %859 = arith.addf %855, %858 : vector<4x8x1xf32>
    %c1_337 = arith.constant 1 : index
    %c85_338 = arith.constant 85 : index
    %860 = memref.load %arg6[%c1_337, %c85_338] : memref<3x98xf32, #tpu.memory_space<smem>>
    %861 = vector.broadcast %860 : f32 to vector<4x8x1xf32>
    %862 = arith.addf %859, %861 : vector<4x8x1xf32>
    %cst_339 = arith.constant 0.000000e+00 : f32
    %863 = vector.broadcast %cst_339 : f32 to vector<4x8x1xf32>
    %864 = arith.maximumf %862, %863 : vector<4x8x1xf32>
    %c1_340 = arith.constant 1 : index
    %c22_341 = arith.constant 22 : index
    %865 = memref.load %arg6[%c1_340, %c22_341] : memref<3x98xf32, #tpu.memory_space<smem>>
    %866 = vector.broadcast %865 : f32 to vector<4x8x1xf32>
    %867 = arith.mulf %592, %866 : vector<4x8x1xf32>
    %c1_342 = arith.constant 1 : index
    %c30_343 = arith.constant 30 : index
    %868 = memref.load %arg6[%c1_342, %c30_343] : memref<3x98xf32, #tpu.memory_space<smem>>
    %869 = vector.broadcast %868 : f32 to vector<4x8x1xf32>
    %870 = arith.mulf %600, %869 : vector<4x8x1xf32>
    %871 = arith.addf %867, %870 : vector<4x8x1xf32>
    %c1_344 = arith.constant 1 : index
    %c38_345 = arith.constant 38 : index
    %872 = memref.load %arg6[%c1_344, %c38_345] : memref<3x98xf32, #tpu.memory_space<smem>>
    %873 = vector.broadcast %872 : f32 to vector<4x8x1xf32>
    %874 = arith.mulf %608, %873 : vector<4x8x1xf32>
    %875 = arith.addf %871, %874 : vector<4x8x1xf32>
    %c1_346 = arith.constant 1 : index
    %c46_347 = arith.constant 46 : index
    %876 = memref.load %arg6[%c1_346, %c46_347] : memref<3x98xf32, #tpu.memory_space<smem>>
    %877 = vector.broadcast %876 : f32 to vector<4x8x1xf32>
    %878 = arith.mulf %616, %877 : vector<4x8x1xf32>
    %879 = arith.addf %875, %878 : vector<4x8x1xf32>
    %c1_348 = arith.constant 1 : index
    %c54_349 = arith.constant 54 : index
    %880 = memref.load %arg6[%c1_348, %c54_349] : memref<3x98xf32, #tpu.memory_space<smem>>
    %881 = vector.broadcast %880 : f32 to vector<4x8x1xf32>
    %882 = arith.mulf %624, %881 : vector<4x8x1xf32>
    %883 = arith.addf %879, %882 : vector<4x8x1xf32>
    %c1_350 = arith.constant 1 : index
    %c62_351 = arith.constant 62 : index
    %884 = memref.load %arg6[%c1_350, %c62_351] : memref<3x98xf32, #tpu.memory_space<smem>>
    %885 = vector.broadcast %884 : f32 to vector<4x8x1xf32>
    %886 = arith.mulf %632, %885 : vector<4x8x1xf32>
    %887 = arith.addf %883, %886 : vector<4x8x1xf32>
    %c1_352 = arith.constant 1 : index
    %c70_353 = arith.constant 70 : index
    %888 = memref.load %arg6[%c1_352, %c70_353] : memref<3x98xf32, #tpu.memory_space<smem>>
    %889 = vector.broadcast %888 : f32 to vector<4x8x1xf32>
    %890 = arith.mulf %640, %889 : vector<4x8x1xf32>
    %891 = arith.addf %887, %890 : vector<4x8x1xf32>
    %c1_354 = arith.constant 1 : index
    %c78_355 = arith.constant 78 : index
    %892 = memref.load %arg6[%c1_354, %c78_355] : memref<3x98xf32, #tpu.memory_space<smem>>
    %893 = vector.broadcast %892 : f32 to vector<4x8x1xf32>
    %894 = arith.mulf %648, %893 : vector<4x8x1xf32>
    %895 = arith.addf %891, %894 : vector<4x8x1xf32>
    %c1_356 = arith.constant 1 : index
    %c86_357 = arith.constant 86 : index
    %896 = memref.load %arg6[%c1_356, %c86_357] : memref<3x98xf32, #tpu.memory_space<smem>>
    %897 = vector.broadcast %896 : f32 to vector<4x8x1xf32>
    %898 = arith.addf %895, %897 : vector<4x8x1xf32>
    %cst_358 = arith.constant 0.000000e+00 : f32
    %899 = vector.broadcast %cst_358 : f32 to vector<4x8x1xf32>
    %900 = arith.maximumf %898, %899 : vector<4x8x1xf32>
    %c1_359 = arith.constant 1 : index
    %c23_360 = arith.constant 23 : index
    %901 = memref.load %arg6[%c1_359, %c23_360] : memref<3x98xf32, #tpu.memory_space<smem>>
    %902 = vector.broadcast %901 : f32 to vector<4x8x1xf32>
    %903 = arith.mulf %592, %902 : vector<4x8x1xf32>
    %c1_361 = arith.constant 1 : index
    %c31_362 = arith.constant 31 : index
    %904 = memref.load %arg6[%c1_361, %c31_362] : memref<3x98xf32, #tpu.memory_space<smem>>
    %905 = vector.broadcast %904 : f32 to vector<4x8x1xf32>
    %906 = arith.mulf %600, %905 : vector<4x8x1xf32>
    %907 = arith.addf %903, %906 : vector<4x8x1xf32>
    %c1_363 = arith.constant 1 : index
    %c39_364 = arith.constant 39 : index
    %908 = memref.load %arg6[%c1_363, %c39_364] : memref<3x98xf32, #tpu.memory_space<smem>>
    %909 = vector.broadcast %908 : f32 to vector<4x8x1xf32>
    %910 = arith.mulf %608, %909 : vector<4x8x1xf32>
    %911 = arith.addf %907, %910 : vector<4x8x1xf32>
    %c1_365 = arith.constant 1 : index
    %c47_366 = arith.constant 47 : index
    %912 = memref.load %arg6[%c1_365, %c47_366] : memref<3x98xf32, #tpu.memory_space<smem>>
    %913 = vector.broadcast %912 : f32 to vector<4x8x1xf32>
    %914 = arith.mulf %616, %913 : vector<4x8x1xf32>
    %915 = arith.addf %911, %914 : vector<4x8x1xf32>
    %c1_367 = arith.constant 1 : index
    %c55_368 = arith.constant 55 : index
    %916 = memref.load %arg6[%c1_367, %c55_368] : memref<3x98xf32, #tpu.memory_space<smem>>
    %917 = vector.broadcast %916 : f32 to vector<4x8x1xf32>
    %918 = arith.mulf %624, %917 : vector<4x8x1xf32>
    %919 = arith.addf %915, %918 : vector<4x8x1xf32>
    %c1_369 = arith.constant 1 : index
    %c63_370 = arith.constant 63 : index
    %920 = memref.load %arg6[%c1_369, %c63_370] : memref<3x98xf32, #tpu.memory_space<smem>>
    %921 = vector.broadcast %920 : f32 to vector<4x8x1xf32>
    %922 = arith.mulf %632, %921 : vector<4x8x1xf32>
    %923 = arith.addf %919, %922 : vector<4x8x1xf32>
    %c1_371 = arith.constant 1 : index
    %c71_372 = arith.constant 71 : index
    %924 = memref.load %arg6[%c1_371, %c71_372] : memref<3x98xf32, #tpu.memory_space<smem>>
    %925 = vector.broadcast %924 : f32 to vector<4x8x1xf32>
    %926 = arith.mulf %640, %925 : vector<4x8x1xf32>
    %927 = arith.addf %923, %926 : vector<4x8x1xf32>
    %c1_373 = arith.constant 1 : index
    %c79_374 = arith.constant 79 : index
    %928 = memref.load %arg6[%c1_373, %c79_374] : memref<3x98xf32, #tpu.memory_space<smem>>
    %929 = vector.broadcast %928 : f32 to vector<4x8x1xf32>
    %930 = arith.mulf %648, %929 : vector<4x8x1xf32>
    %931 = arith.addf %927, %930 : vector<4x8x1xf32>
    %c1_375 = arith.constant 1 : index
    %c87_376 = arith.constant 87 : index
    %932 = memref.load %arg6[%c1_375, %c87_376] : memref<3x98xf32, #tpu.memory_space<smem>>
    %933 = vector.broadcast %932 : f32 to vector<4x8x1xf32>
    %934 = arith.addf %931, %933 : vector<4x8x1xf32>
    %cst_377 = arith.constant 0.000000e+00 : f32
    %935 = vector.broadcast %cst_377 : f32 to vector<4x8x1xf32>
    %936 = arith.maximumf %934, %935 : vector<4x8x1xf32>
    %c1_378 = arith.constant 1 : index
    %c88_379 = arith.constant 88 : index
    %937 = memref.load %arg6[%c1_378, %c88_379] : memref<3x98xf32, #tpu.memory_space<smem>>
    %938 = vector.broadcast %937 : f32 to vector<4x8x1xf32>
    %939 = arith.mulf %684, %938 : vector<4x8x1xf32>
    %c1_380 = arith.constant 1 : index
    %c89_381 = arith.constant 89 : index
    %940 = memref.load %arg6[%c1_380, %c89_381] : memref<3x98xf32, #tpu.memory_space<smem>>
    %941 = vector.broadcast %940 : f32 to vector<4x8x1xf32>
    %942 = arith.mulf %720, %941 : vector<4x8x1xf32>
    %943 = arith.addf %939, %942 : vector<4x8x1xf32>
    %c1_382 = arith.constant 1 : index
    %c90_383 = arith.constant 90 : index
    %944 = memref.load %arg6[%c1_382, %c90_383] : memref<3x98xf32, #tpu.memory_space<smem>>
    %945 = vector.broadcast %944 : f32 to vector<4x8x1xf32>
    %946 = arith.mulf %756, %945 : vector<4x8x1xf32>
    %947 = arith.addf %943, %946 : vector<4x8x1xf32>
    %c1_384 = arith.constant 1 : index
    %c91_385 = arith.constant 91 : index
    %948 = memref.load %arg6[%c1_384, %c91_385] : memref<3x98xf32, #tpu.memory_space<smem>>
    %949 = vector.broadcast %948 : f32 to vector<4x8x1xf32>
    %950 = arith.mulf %792, %949 : vector<4x8x1xf32>
    %951 = arith.addf %947, %950 : vector<4x8x1xf32>
    %c1_386 = arith.constant 1 : index
    %c92_387 = arith.constant 92 : index
    %952 = memref.load %arg6[%c1_386, %c92_387] : memref<3x98xf32, #tpu.memory_space<smem>>
    %953 = vector.broadcast %952 : f32 to vector<4x8x1xf32>
    %954 = arith.mulf %828, %953 : vector<4x8x1xf32>
    %955 = arith.addf %951, %954 : vector<4x8x1xf32>
    %c1_388 = arith.constant 1 : index
    %c93_389 = arith.constant 93 : index
    %956 = memref.load %arg6[%c1_388, %c93_389] : memref<3x98xf32, #tpu.memory_space<smem>>
    %957 = vector.broadcast %956 : f32 to vector<4x8x1xf32>
    %958 = arith.mulf %864, %957 : vector<4x8x1xf32>
    %959 = arith.addf %955, %958 : vector<4x8x1xf32>
    %c1_390 = arith.constant 1 : index
    %c94_391 = arith.constant 94 : index
    %960 = memref.load %arg6[%c1_390, %c94_391] : memref<3x98xf32, #tpu.memory_space<smem>>
    %961 = vector.broadcast %960 : f32 to vector<4x8x1xf32>
    %962 = arith.mulf %900, %961 : vector<4x8x1xf32>
    %963 = arith.addf %959, %962 : vector<4x8x1xf32>
    %c1_392 = arith.constant 1 : index
    %c95_393 = arith.constant 95 : index
    %964 = memref.load %arg6[%c1_392, %c95_393] : memref<3x98xf32, #tpu.memory_space<smem>>
    %965 = vector.broadcast %964 : f32 to vector<4x8x1xf32>
    %966 = arith.mulf %936, %965 : vector<4x8x1xf32>
    %967 = arith.addf %963, %966 : vector<4x8x1xf32>
    %c1_394 = arith.constant 1 : index
    %c96_395 = arith.constant 96 : index
    %968 = memref.load %arg6[%c1_394, %c96_395] : memref<3x98xf32, #tpu.memory_space<smem>>
    %969 = vector.broadcast %968 : f32 to vector<4x8x1xf32>
    %970 = arith.addf %967, %969 : vector<4x8x1xf32>
    %cst_396 = arith.constant 0.000000e+00 : f32
    %971 = vector.broadcast %cst_396 : f32 to vector<4x8x1xf32>
    %972 = arith.subf %971, %970 : vector<4x8x1xf32>
    %973 = math.exp %972 : vector<4x8x1xf32>
    %cst_397 = arith.constant 1.000000e+00 : f32
    %974 = vector.broadcast %cst_397 : f32 to vector<4x8x1xf32>
    %975 = arith.addf %974, %973 : vector<4x8x1xf32>
    %cst_398 = arith.constant 1.000000e+00 : f32
    %976 = vector.broadcast %cst_398 : f32 to vector<4x8x1xf32>
    %977 = arith.divf %976, %975 : vector<4x8x1xf32>
    %cst_399 = arith.constant 9.99999997E-7 : f32
    %978 = vector.broadcast %cst_399 : f32 to vector<4x8x1xf32>
    %979 = arith.addf %977, %978 : vector<4x8x1xf32>
    %cst_400 = arith.constant 1.000000e+00 : f32
    %980 = vector.broadcast %cst_400 : f32 to vector<4x8x1xf32>
    %981 = arith.divf %980, %979 : vector<4x8x1xf32>
    %cst_401 = arith.constant 0.000000e+00 : f32
    %982 = vector.broadcast %cst_401 : f32 to vector<4x8x1xf32>
    %983 = arith.cmpf ogt, %4, %982 : vector<4x8x1xf32>
    %cst_402 = arith.constant -1.000000e+30 : f32
    %984 = vector.broadcast %cst_402 : f32 to vector<4x8x1xf32>
    %985 = arith.select %983, %981, %984 : vector<4x8x1xi1>, vector<4x8x1xf32>
    %cst_403 = arith.constant dense<0xFF800000> : vector<4x1xf32>
    %986 = vector.multi_reduction <maximumf>, %985, %cst_403 [1] : vector<4x8x1xf32> to vector<4x1xf32>
    %987 = vector.shape_cast %986 : vector<4x1xf32> to vector<4x1x1xf32>
    %988 = vector.broadcast %987 : vector<4x1x1xf32> to vector<4x8x1xf32>
    %989 = arith.subf %981, %988 : vector<4x8x1xf32>
    %cst_404 = arith.constant 0.000000e+00 : f32
    %990 = vector.broadcast %cst_404 : f32 to vector<4x8x1xf32>
    %991 = arith.minimumf %989, %990 : vector<4x8x1xf32>
    %992 = math.exp %991 : vector<4x8x1xf32>
    %993 = arith.mulf %992, %4 : vector<4x8x1xf32>
    %994 = vector.broadcast %993 : vector<4x8x1xf32> to vector<4x8x4xf32>
    %995 = arith.mulf %994, %37 : vector<4x8x4xf32>
    %cst_405 = arith.constant dense<0.000000e+00> : vector<4x4xf32>
    %996 = vector.multi_reduction <add>, %995, %cst_405 [1] : vector<4x8x4xf32> to vector<4x4xf32>
    %997 = vector.shape_cast %996 : vector<4x4xf32> to vector<4x1x4xf32>
    %998 = arith.mulf %993, %35 : vector<4x8x1xf32>
    %cst_406 = arith.constant dense<0.000000e+00> : vector<4x1xf32>
    %999 = vector.multi_reduction <add>, %998, %cst_406 [1] : vector<4x8x1xf32> to vector<4x1xf32>
    %1000 = vector.shape_cast %999 : vector<4x1xf32> to vector<4x1x1xf32>
    %cst_407 = arith.constant 9.99999997E-7 : f32
    %1001 = vector.broadcast %cst_407 : f32 to vector<4x1x1xf32>
    %1002 = arith.maximumf %1000, %1001 : vector<4x1x1xf32>
    %1003 = tpu.reciprocal %1002 {approx = true} : vector<4x1x1xf32> -> vector<4x1x1xf32>
    %1004 = vector.broadcast %1003 : vector<4x1x1xf32> to vector<4x1x4xf32>
    %1005 = arith.mulf %997, %1004 : vector<4x1x4xf32>
    %1006 = vector.broadcast %3 : vector<4x1x1xf32> to vector<4x1x4xf32>
    %1007 = arith.mulf %1005, %1006 : vector<4x1x4xf32>
    %cst_408 = arith.constant 2.000000e+00 : f32
    %1008 = vector.broadcast %cst_408 : f32 to vector<4x1x4xf32>
    %1009 = arith.mulf %1008, %549 : vector<4x1x4xf32>
    %cst_409 = arith.constant 1.000000e+00 : f32
    %1010 = vector.broadcast %cst_409 : f32 to vector<4x1x1xf32>
    %1011 = arith.addf %1010, %552 : vector<4x1x1xf32>
    %1012 = vector.broadcast %1011 : vector<4x1x1xf32> to vector<4x1x4xf32>
    %1013 = arith.divf %1009, %1012 : vector<4x1x4xf32>
    %1014 = arith.mulf %1013, %1013 : vector<4x1x4xf32>
    %cst_410 = arith.constant dense<0.000000e+00> : vector<4x1xf32>
    %1015 = vector.multi_reduction <add>, %1014, %cst_410 [2] : vector<4x1x4xf32> to vector<4x1xf32>
    %1016 = vector.shape_cast %1015 : vector<4x1xf32> to vector<4x1x1xf32>
    %cst_411 = arith.constant 1.000000e+00 : f32
    %1017 = vector.broadcast %cst_411 : f32 to vector<4x1x1xf32>
    %1018 = arith.subf %1017, %1016 : vector<4x1x1xf32>
    %cst_412 = arith.constant 9.99999997E-7 : f32
    %1019 = vector.broadcast %cst_412 : f32 to vector<4x1x1xf32>
    %1020 = arith.maximumf %1018, %1019 : vector<4x1x1xf32>
    %1021 = math.rsqrt %1020 : vector<4x1x1xf32>
    %1022 = arith.mulf %1007, %1007 : vector<4x1x4xf32>
    %cst_413 = arith.constant dense<0.000000e+00> : vector<4x1xf32>
    %1023 = vector.multi_reduction <add>, %1022, %cst_413 [2] : vector<4x1x4xf32> to vector<4x1xf32>
    %1024 = vector.shape_cast %1023 : vector<4x1xf32> to vector<4x1x1xf32>
    %cst_414 = arith.constant 1.000000e+00 : f32
    %1025 = vector.broadcast %cst_414 : f32 to vector<4x1x1xf32>
    %1026 = arith.subf %1025, %1024 : vector<4x1x1xf32>
    %cst_415 = arith.constant 9.99999997E-7 : f32
    %1027 = vector.broadcast %cst_415 : f32 to vector<4x1x1xf32>
    %1028 = arith.maximumf %1026, %1027 : vector<4x1x1xf32>
    %1029 = math.rsqrt %1028 : vector<4x1x1xf32>
    %c1_416 = arith.constant 1 : index
    %c97_417 = arith.constant 97 : index
    %1030 = memref.load %arg6[%c1_416, %c97_417] : memref<3x98xf32, #tpu.memory_space<smem>>
    %cst_418 = arith.constant 1.000000e+00 : f32
    %1031 = arith.subf %cst_418, %1030 : f32
    %1032 = vector.broadcast %1030 : f32 to vector<4x1x1xf32>
    %1033 = arith.mulf %1032, %1021 : vector<4x1x1xf32>
    %1034 = vector.broadcast %1033 : vector<4x1x1xf32> to vector<4x1x4xf32>
    %1035 = arith.mulf %1034, %1013 : vector<4x1x4xf32>
    %1036 = vector.broadcast %1031 : f32 to vector<4x1x1xf32>
    %1037 = arith.mulf %1036, %1029 : vector<4x1x1xf32>
    %1038 = vector.broadcast %1037 : vector<4x1x1xf32> to vector<4x1x4xf32>
    %1039 = arith.mulf %1038, %1007 : vector<4x1x4xf32>
    %1040 = arith.addf %1035, %1039 : vector<4x1x4xf32>
    %1041 = vector.broadcast %1030 : f32 to vector<4x1x1xf32>
    %1042 = arith.mulf %1041, %1021 : vector<4x1x1xf32>
    %1043 = vector.broadcast %1031 : f32 to vector<4x1x1xf32>
    %1044 = arith.mulf %1043, %1029 : vector<4x1x1xf32>
    %1045 = arith.addf %1042, %1044 : vector<4x1x1xf32>
    %1046 = tpu.reciprocal %1045 {approx = true} : vector<4x1x1xf32> -> vector<4x1x1xf32>
    %1047 = vector.broadcast %1046 : vector<4x1x1xf32> to vector<4x1x4xf32>
    %1048 = arith.mulf %1040, %1047 : vector<4x1x4xf32>
    %1049 = arith.mulf %1048, %1048 : vector<4x1x4xf32>
    %cst_419 = arith.constant dense<0.000000e+00> : vector<4x1xf32>
    %1050 = vector.multi_reduction <add>, %1049, %cst_419 [2] : vector<4x1x4xf32> to vector<4x1xf32>
    %1051 = vector.shape_cast %1050 : vector<4x1xf32> to vector<4x1x1xf32>
    %cst_420 = arith.constant 1.000000e+00 : f32
    %1052 = vector.broadcast %cst_420 : f32 to vector<4x1x1xf32>
    %1053 = arith.subf %1052, %1051 : vector<4x1x1xf32>
    %cst_421 = arith.constant 0.000000e+00 : f32
    %1054 = vector.broadcast %cst_421 : f32 to vector<4x1x1xf32>
    %1055 = arith.maximumf %1053, %1054 : vector<4x1x1xf32>
    %1056 = math.sqrt %1055 : vector<4x1x1xf32>
    %cst_422 = arith.constant 1.000000e+00 : f32
    %1057 = vector.broadcast %cst_422 : f32 to vector<4x1x1xf32>
    %1058 = arith.addf %1057, %1056 : vector<4x1x1xf32>
    %1059 = tpu.reciprocal %1058 {approx = true} : vector<4x1x1xf32> -> vector<4x1x1xf32>
    %1060 = vector.broadcast %1059 : vector<4x1x1xf32> to vector<4x1x4xf32>
    %1061 = arith.mulf %1048, %1060 : vector<4x1x4xf32>
    %1062 = arith.mulf %1061, %1061 : vector<4x1x4xf32>
    %cst_423 = arith.constant dense<0.000000e+00> : vector<4x1xf32>
    %1063 = vector.multi_reduction <add>, %1062, %cst_423 [2] : vector<4x1x4xf32> to vector<4x1xf32>
    %1064 = vector.shape_cast %1063 : vector<4x1xf32> to vector<4x1x1xf32>
    %cst_424 = arith.constant 1.000000e+00 : f32
    %1065 = vector.broadcast %cst_424 : f32 to vector<4x1x1xf32>
    %1066 = arith.subf %1065, %1064 : vector<4x1x1xf32>
    %cst_425 = arith.constant 9.99999997E-7 : f32
    %1067 = vector.broadcast %cst_425 : f32 to vector<4x1x1xf32>
    %1068 = arith.maximumf %1066, %1067 : vector<4x1x1xf32>
    %cst_426 = arith.constant 1.000000e+00 : f32
    %1069 = vector.broadcast %cst_426 : f32 to vector<4x1x1xf32>
    %1070 = arith.addf %1069, %1064 : vector<4x1x1xf32>
    %1071 = arith.divf %1070, %1068 : vector<4x1x1xf32>
    %cst_427 = arith.constant 2.000000e+00 : f32
    %1072 = vector.broadcast %cst_427 : f32 to vector<4x1x4xf32>
    %1073 = arith.mulf %1072, %1061 : vector<4x1x4xf32>
    %1074 = vector.broadcast %1068 : vector<4x1x1xf32> to vector<4x1x4xf32>
    %1075 = arith.divf %1073, %1074 : vector<4x1x4xf32>
    %1076 = vector.broadcast %1075 : vector<4x1x4xf32> to vector<4x8x4xf32>
    %1077 = arith.mulf %1076, %18 : vector<4x8x4xf32>
    %cst_428 = arith.constant dense<0.000000e+00> : vector<4x8xf32>
    %1078 = vector.multi_reduction <add>, %1077, %cst_428 [2] : vector<4x8x4xf32> to vector<4x8xf32>
    %1079 = vector.shape_cast %1078 : vector<4x8xf32> to vector<4x8x1xf32>
    %1080 = vector.broadcast %1071 : vector<4x1x1xf32> to vector<4x8x1xf32>
    %1081 = arith.mulf %1080, %14 : vector<4x8x1xf32>
    %1082 = arith.subf %1079, %1081 : vector<4x8x1xf32>
    %cst_429 = arith.constant 0.000000e+00 : f32
    %1083 = vector.broadcast %cst_429 : f32 to vector<4x8x1xf32>
    %1084 = arith.subf %1083, %1082 : vector<4x8x1xf32>
    %cst_430 = arith.constant 1.000000e+00 : f32
    %1085 = vector.broadcast %cst_430 : f32 to vector<4x8x1xf32>
    %1086 = arith.subf %1084, %1085 : vector<4x8x1xf32>
    %cst_431 = arith.constant 9.99999997E-7 : f32
    %1087 = vector.broadcast %cst_431 : f32 to vector<4x8x1xf32>
    %1088 = arith.maximumf %1086, %1087 : vector<4x8x1xf32>
    %cst_432 = arith.constant 1.000000e+00 : f32
    %1089 = vector.broadcast %cst_432 : f32 to vector<4x8x1xf32>
    %1090 = arith.addf %1089, %1088 : vector<4x8x1xf32>
    %cst_433 = arith.constant 2.000000e+00 : f32
    %1091 = vector.broadcast %cst_433 : f32 to vector<4x8x1xf32>
    %1092 = arith.addf %1088, %1091 : vector<4x8x1xf32>
    %1093 = arith.mulf %1088, %1092 : vector<4x8x1xf32>
    %1094 = math.sqrt %1093 : vector<4x8x1xf32>
    %1095 = arith.addf %1090, %1094 : vector<4x8x1xf32>
    %1096 = math.log %1095 : vector<4x8x1xf32>
    %c2_434 = arith.constant 2 : index
    %c0_435 = arith.constant 0 : index
    %1097 = memref.load %arg6[%c2_434, %c0_435] : memref<3x98xf32, #tpu.memory_space<smem>>
    %1098 = vector.broadcast %1097 : f32 to vector<4x8x1xf32>
    %1099 = arith.mulf %1096, %1098 : vector<4x8x1xf32>
    %c2_436 = arith.constant 2 : index
    %c8_437 = arith.constant 8 : index
    %1100 = memref.load %arg6[%c2_436, %c8_437] : memref<3x98xf32, #tpu.memory_space<smem>>
    %1101 = vector.broadcast %1100 : f32 to vector<4x8x1xf32>
    %1102 = arith.addf %1099, %1101 : vector<4x8x1xf32>
    %cst_438 = arith.constant 0.000000e+00 : f32
    %1103 = vector.broadcast %cst_438 : f32 to vector<4x8x1xf32>
    %1104 = arith.maximumf %1102, %1103 : vector<4x8x1xf32>
    %c2_439 = arith.constant 2 : index
    %c1_440 = arith.constant 1 : index
    %1105 = memref.load %arg6[%c2_439, %c1_440] : memref<3x98xf32, #tpu.memory_space<smem>>
    %1106 = vector.broadcast %1105 : f32 to vector<4x8x1xf32>
    %1107 = arith.mulf %1096, %1106 : vector<4x8x1xf32>
    %c2_441 = arith.constant 2 : index
    %c9_442 = arith.constant 9 : index
    %1108 = memref.load %arg6[%c2_441, %c9_442] : memref<3x98xf32, #tpu.memory_space<smem>>
    %1109 = vector.broadcast %1108 : f32 to vector<4x8x1xf32>
    %1110 = arith.addf %1107, %1109 : vector<4x8x1xf32>
    %cst_443 = arith.constant 0.000000e+00 : f32
    %1111 = vector.broadcast %cst_443 : f32 to vector<4x8x1xf32>
    %1112 = arith.maximumf %1110, %1111 : vector<4x8x1xf32>
    %c2_444 = arith.constant 2 : index
    %c2_445 = arith.constant 2 : index
    %1113 = memref.load %arg6[%c2_444, %c2_445] : memref<3x98xf32, #tpu.memory_space<smem>>
    %1114 = vector.broadcast %1113 : f32 to vector<4x8x1xf32>
    %1115 = arith.mulf %1096, %1114 : vector<4x8x1xf32>
    %c2_446 = arith.constant 2 : index
    %c10_447 = arith.constant 10 : index
    %1116 = memref.load %arg6[%c2_446, %c10_447] : memref<3x98xf32, #tpu.memory_space<smem>>
    %1117 = vector.broadcast %1116 : f32 to vector<4x8x1xf32>
    %1118 = arith.addf %1115, %1117 : vector<4x8x1xf32>
    %cst_448 = arith.constant 0.000000e+00 : f32
    %1119 = vector.broadcast %cst_448 : f32 to vector<4x8x1xf32>
    %1120 = arith.maximumf %1118, %1119 : vector<4x8x1xf32>
    %c2_449 = arith.constant 2 : index
    %c3_450 = arith.constant 3 : index
    %1121 = memref.load %arg6[%c2_449, %c3_450] : memref<3x98xf32, #tpu.memory_space<smem>>
    %1122 = vector.broadcast %1121 : f32 to vector<4x8x1xf32>
    %1123 = arith.mulf %1096, %1122 : vector<4x8x1xf32>
    %c2_451 = arith.constant 2 : index
    %c11_452 = arith.constant 11 : index
    %1124 = memref.load %arg6[%c2_451, %c11_452] : memref<3x98xf32, #tpu.memory_space<smem>>
    %1125 = vector.broadcast %1124 : f32 to vector<4x8x1xf32>
    %1126 = arith.addf %1123, %1125 : vector<4x8x1xf32>
    %cst_453 = arith.constant 0.000000e+00 : f32
    %1127 = vector.broadcast %cst_453 : f32 to vector<4x8x1xf32>
    %1128 = arith.maximumf %1126, %1127 : vector<4x8x1xf32>
    %c2_454 = arith.constant 2 : index
    %c4_455 = arith.constant 4 : index
    %1129 = memref.load %arg6[%c2_454, %c4_455] : memref<3x98xf32, #tpu.memory_space<smem>>
    %1130 = vector.broadcast %1129 : f32 to vector<4x8x1xf32>
    %1131 = arith.mulf %1096, %1130 : vector<4x8x1xf32>
    %c2_456 = arith.constant 2 : index
    %c12_457 = arith.constant 12 : index
    %1132 = memref.load %arg6[%c2_456, %c12_457] : memref<3x98xf32, #tpu.memory_space<smem>>
    %1133 = vector.broadcast %1132 : f32 to vector<4x8x1xf32>
    %1134 = arith.addf %1131, %1133 : vector<4x8x1xf32>
    %cst_458 = arith.constant 0.000000e+00 : f32
    %1135 = vector.broadcast %cst_458 : f32 to vector<4x8x1xf32>
    %1136 = arith.maximumf %1134, %1135 : vector<4x8x1xf32>
    %c2_459 = arith.constant 2 : index
    %c5_460 = arith.constant 5 : index
    %1137 = memref.load %arg6[%c2_459, %c5_460] : memref<3x98xf32, #tpu.memory_space<smem>>
    %1138 = vector.broadcast %1137 : f32 to vector<4x8x1xf32>
    %1139 = arith.mulf %1096, %1138 : vector<4x8x1xf32>
    %c2_461 = arith.constant 2 : index
    %c13_462 = arith.constant 13 : index
    %1140 = memref.load %arg6[%c2_461, %c13_462] : memref<3x98xf32, #tpu.memory_space<smem>>
    %1141 = vector.broadcast %1140 : f32 to vector<4x8x1xf32>
    %1142 = arith.addf %1139, %1141 : vector<4x8x1xf32>
    %cst_463 = arith.constant 0.000000e+00 : f32
    %1143 = vector.broadcast %cst_463 : f32 to vector<4x8x1xf32>
    %1144 = arith.maximumf %1142, %1143 : vector<4x8x1xf32>
    %c2_464 = arith.constant 2 : index
    %c6_465 = arith.constant 6 : index
    %1145 = memref.load %arg6[%c2_464, %c6_465] : memref<3x98xf32, #tpu.memory_space<smem>>
    %1146 = vector.broadcast %1145 : f32 to vector<4x8x1xf32>
    %1147 = arith.mulf %1096, %1146 : vector<4x8x1xf32>
    %c2_466 = arith.constant 2 : index
    %c14_467 = arith.constant 14 : index
    %1148 = memref.load %arg6[%c2_466, %c14_467] : memref<3x98xf32, #tpu.memory_space<smem>>
    %1149 = vector.broadcast %1148 : f32 to vector<4x8x1xf32>
    %1150 = arith.addf %1147, %1149 : vector<4x8x1xf32>
    %cst_468 = arith.constant 0.000000e+00 : f32
    %1151 = vector.broadcast %cst_468 : f32 to vector<4x8x1xf32>
    %1152 = arith.maximumf %1150, %1151 : vector<4x8x1xf32>
    %c2_469 = arith.constant 2 : index
    %c7_470 = arith.constant 7 : index
    %1153 = memref.load %arg6[%c2_469, %c7_470] : memref<3x98xf32, #tpu.memory_space<smem>>
    %1154 = vector.broadcast %1153 : f32 to vector<4x8x1xf32>
    %1155 = arith.mulf %1096, %1154 : vector<4x8x1xf32>
    %c2_471 = arith.constant 2 : index
    %c15_472 = arith.constant 15 : index
    %1156 = memref.load %arg6[%c2_471, %c15_472] : memref<3x98xf32, #tpu.memory_space<smem>>
    %1157 = vector.broadcast %1156 : f32 to vector<4x8x1xf32>
    %1158 = arith.addf %1155, %1157 : vector<4x8x1xf32>
    %cst_473 = arith.constant 0.000000e+00 : f32
    %1159 = vector.broadcast %cst_473 : f32 to vector<4x8x1xf32>
    %1160 = arith.maximumf %1158, %1159 : vector<4x8x1xf32>
    %c2_474 = arith.constant 2 : index
    %c16_475 = arith.constant 16 : index
    %1161 = memref.load %arg6[%c2_474, %c16_475] : memref<3x98xf32, #tpu.memory_space<smem>>
    %1162 = vector.broadcast %1161 : f32 to vector<4x8x1xf32>
    %1163 = arith.mulf %1104, %1162 : vector<4x8x1xf32>
    %c2_476 = arith.constant 2 : index
    %c24_477 = arith.constant 24 : index
    %1164 = memref.load %arg6[%c2_476, %c24_477] : memref<3x98xf32, #tpu.memory_space<smem>>
    %1165 = vector.broadcast %1164 : f32 to vector<4x8x1xf32>
    %1166 = arith.mulf %1112, %1165 : vector<4x8x1xf32>
    %1167 = arith.addf %1163, %1166 : vector<4x8x1xf32>
    %c2_478 = arith.constant 2 : index
    %c32_479 = arith.constant 32 : index
    %1168 = memref.load %arg6[%c2_478, %c32_479] : memref<3x98xf32, #tpu.memory_space<smem>>
    %1169 = vector.broadcast %1168 : f32 to vector<4x8x1xf32>
    %1170 = arith.mulf %1120, %1169 : vector<4x8x1xf32>
    %1171 = arith.addf %1167, %1170 : vector<4x8x1xf32>
    %c2_480 = arith.constant 2 : index
    %c40_481 = arith.constant 40 : index
    %1172 = memref.load %arg6[%c2_480, %c40_481] : memref<3x98xf32, #tpu.memory_space<smem>>
    %1173 = vector.broadcast %1172 : f32 to vector<4x8x1xf32>
    %1174 = arith.mulf %1128, %1173 : vector<4x8x1xf32>
    %1175 = arith.addf %1171, %1174 : vector<4x8x1xf32>
    %c2_482 = arith.constant 2 : index
    %c48_483 = arith.constant 48 : index
    %1176 = memref.load %arg6[%c2_482, %c48_483] : memref<3x98xf32, #tpu.memory_space<smem>>
    %1177 = vector.broadcast %1176 : f32 to vector<4x8x1xf32>
    %1178 = arith.mulf %1136, %1177 : vector<4x8x1xf32>
    %1179 = arith.addf %1175, %1178 : vector<4x8x1xf32>
    %c2_484 = arith.constant 2 : index
    %c56_485 = arith.constant 56 : index
    %1180 = memref.load %arg6[%c2_484, %c56_485] : memref<3x98xf32, #tpu.memory_space<smem>>
    %1181 = vector.broadcast %1180 : f32 to vector<4x8x1xf32>
    %1182 = arith.mulf %1144, %1181 : vector<4x8x1xf32>
    %1183 = arith.addf %1179, %1182 : vector<4x8x1xf32>
    %c2_486 = arith.constant 2 : index
    %c64_487 = arith.constant 64 : index
    %1184 = memref.load %arg6[%c2_486, %c64_487] : memref<3x98xf32, #tpu.memory_space<smem>>
    %1185 = vector.broadcast %1184 : f32 to vector<4x8x1xf32>
    %1186 = arith.mulf %1152, %1185 : vector<4x8x1xf32>
    %1187 = arith.addf %1183, %1186 : vector<4x8x1xf32>
    %c2_488 = arith.constant 2 : index
    %c72_489 = arith.constant 72 : index
    %1188 = memref.load %arg6[%c2_488, %c72_489] : memref<3x98xf32, #tpu.memory_space<smem>>
    %1189 = vector.broadcast %1188 : f32 to vector<4x8x1xf32>
    %1190 = arith.mulf %1160, %1189 : vector<4x8x1xf32>
    %1191 = arith.addf %1187, %1190 : vector<4x8x1xf32>
    %c2_490 = arith.constant 2 : index
    %c80_491 = arith.constant 80 : index
    %1192 = memref.load %arg6[%c2_490, %c80_491] : memref<3x98xf32, #tpu.memory_space<smem>>
    %1193 = vector.broadcast %1192 : f32 to vector<4x8x1xf32>
    %1194 = arith.addf %1191, %1193 : vector<4x8x1xf32>
    %cst_492 = arith.constant 0.000000e+00 : f32
    %1195 = vector.broadcast %cst_492 : f32 to vector<4x8x1xf32>
    %1196 = arith.maximumf %1194, %1195 : vector<4x8x1xf32>
    %c2_493 = arith.constant 2 : index
    %c17_494 = arith.constant 17 : index
    %1197 = memref.load %arg6[%c2_493, %c17_494] : memref<3x98xf32, #tpu.memory_space<smem>>
    %1198 = vector.broadcast %1197 : f32 to vector<4x8x1xf32>
    %1199 = arith.mulf %1104, %1198 : vector<4x8x1xf32>
    %c2_495 = arith.constant 2 : index
    %c25_496 = arith.constant 25 : index
    %1200 = memref.load %arg6[%c2_495, %c25_496] : memref<3x98xf32, #tpu.memory_space<smem>>
    %1201 = vector.broadcast %1200 : f32 to vector<4x8x1xf32>
    %1202 = arith.mulf %1112, %1201 : vector<4x8x1xf32>
    %1203 = arith.addf %1199, %1202 : vector<4x8x1xf32>
    %c2_497 = arith.constant 2 : index
    %c33_498 = arith.constant 33 : index
    %1204 = memref.load %arg6[%c2_497, %c33_498] : memref<3x98xf32, #tpu.memory_space<smem>>
    %1205 = vector.broadcast %1204 : f32 to vector<4x8x1xf32>
    %1206 = arith.mulf %1120, %1205 : vector<4x8x1xf32>
    %1207 = arith.addf %1203, %1206 : vector<4x8x1xf32>
    %c2_499 = arith.constant 2 : index
    %c41_500 = arith.constant 41 : index
    %1208 = memref.load %arg6[%c2_499, %c41_500] : memref<3x98xf32, #tpu.memory_space<smem>>
    %1209 = vector.broadcast %1208 : f32 to vector<4x8x1xf32>
    %1210 = arith.mulf %1128, %1209 : vector<4x8x1xf32>
    %1211 = arith.addf %1207, %1210 : vector<4x8x1xf32>
    %c2_501 = arith.constant 2 : index
    %c49_502 = arith.constant 49 : index
    %1212 = memref.load %arg6[%c2_501, %c49_502] : memref<3x98xf32, #tpu.memory_space<smem>>
    %1213 = vector.broadcast %1212 : f32 to vector<4x8x1xf32>
    %1214 = arith.mulf %1136, %1213 : vector<4x8x1xf32>
    %1215 = arith.addf %1211, %1214 : vector<4x8x1xf32>
    %c2_503 = arith.constant 2 : index
    %c57_504 = arith.constant 57 : index
    %1216 = memref.load %arg6[%c2_503, %c57_504] : memref<3x98xf32, #tpu.memory_space<smem>>
    %1217 = vector.broadcast %1216 : f32 to vector<4x8x1xf32>
    %1218 = arith.mulf %1144, %1217 : vector<4x8x1xf32>
    %1219 = arith.addf %1215, %1218 : vector<4x8x1xf32>
    %c2_505 = arith.constant 2 : index
    %c65_506 = arith.constant 65 : index
    %1220 = memref.load %arg6[%c2_505, %c65_506] : memref<3x98xf32, #tpu.memory_space<smem>>
    %1221 = vector.broadcast %1220 : f32 to vector<4x8x1xf32>
    %1222 = arith.mulf %1152, %1221 : vector<4x8x1xf32>
    %1223 = arith.addf %1219, %1222 : vector<4x8x1xf32>
    %c2_507 = arith.constant 2 : index
    %c73_508 = arith.constant 73 : index
    %1224 = memref.load %arg6[%c2_507, %c73_508] : memref<3x98xf32, #tpu.memory_space<smem>>
    %1225 = vector.broadcast %1224 : f32 to vector<4x8x1xf32>
    %1226 = arith.mulf %1160, %1225 : vector<4x8x1xf32>
    %1227 = arith.addf %1223, %1226 : vector<4x8x1xf32>
    %c2_509 = arith.constant 2 : index
    %c81_510 = arith.constant 81 : index
    %1228 = memref.load %arg6[%c2_509, %c81_510] : memref<3x98xf32, #tpu.memory_space<smem>>
    %1229 = vector.broadcast %1228 : f32 to vector<4x8x1xf32>
    %1230 = arith.addf %1227, %1229 : vector<4x8x1xf32>
    %cst_511 = arith.constant 0.000000e+00 : f32
    %1231 = vector.broadcast %cst_511 : f32 to vector<4x8x1xf32>
    %1232 = arith.maximumf %1230, %1231 : vector<4x8x1xf32>
    %c2_512 = arith.constant 2 : index
    %c18_513 = arith.constant 18 : index
    %1233 = memref.load %arg6[%c2_512, %c18_513] : memref<3x98xf32, #tpu.memory_space<smem>>
    %1234 = vector.broadcast %1233 : f32 to vector<4x8x1xf32>
    %1235 = arith.mulf %1104, %1234 : vector<4x8x1xf32>
    %c2_514 = arith.constant 2 : index
    %c26_515 = arith.constant 26 : index
    %1236 = memref.load %arg6[%c2_514, %c26_515] : memref<3x98xf32, #tpu.memory_space<smem>>
    %1237 = vector.broadcast %1236 : f32 to vector<4x8x1xf32>
    %1238 = arith.mulf %1112, %1237 : vector<4x8x1xf32>
    %1239 = arith.addf %1235, %1238 : vector<4x8x1xf32>
    %c2_516 = arith.constant 2 : index
    %c34_517 = arith.constant 34 : index
    %1240 = memref.load %arg6[%c2_516, %c34_517] : memref<3x98xf32, #tpu.memory_space<smem>>
    %1241 = vector.broadcast %1240 : f32 to vector<4x8x1xf32>
    %1242 = arith.mulf %1120, %1241 : vector<4x8x1xf32>
    %1243 = arith.addf %1239, %1242 : vector<4x8x1xf32>
    %c2_518 = arith.constant 2 : index
    %c42_519 = arith.constant 42 : index
    %1244 = memref.load %arg6[%c2_518, %c42_519] : memref<3x98xf32, #tpu.memory_space<smem>>
    %1245 = vector.broadcast %1244 : f32 to vector<4x8x1xf32>
    %1246 = arith.mulf %1128, %1245 : vector<4x8x1xf32>
    %1247 = arith.addf %1243, %1246 : vector<4x8x1xf32>
    %c2_520 = arith.constant 2 : index
    %c50_521 = arith.constant 50 : index
    %1248 = memref.load %arg6[%c2_520, %c50_521] : memref<3x98xf32, #tpu.memory_space<smem>>
    %1249 = vector.broadcast %1248 : f32 to vector<4x8x1xf32>
    %1250 = arith.mulf %1136, %1249 : vector<4x8x1xf32>
    %1251 = arith.addf %1247, %1250 : vector<4x8x1xf32>
    %c2_522 = arith.constant 2 : index
    %c58_523 = arith.constant 58 : index
    %1252 = memref.load %arg6[%c2_522, %c58_523] : memref<3x98xf32, #tpu.memory_space<smem>>
    %1253 = vector.broadcast %1252 : f32 to vector<4x8x1xf32>
    %1254 = arith.mulf %1144, %1253 : vector<4x8x1xf32>
    %1255 = arith.addf %1251, %1254 : vector<4x8x1xf32>
    %c2_524 = arith.constant 2 : index
    %c66_525 = arith.constant 66 : index
    %1256 = memref.load %arg6[%c2_524, %c66_525] : memref<3x98xf32, #tpu.memory_space<smem>>
    %1257 = vector.broadcast %1256 : f32 to vector<4x8x1xf32>
    %1258 = arith.mulf %1152, %1257 : vector<4x8x1xf32>
    %1259 = arith.addf %1255, %1258 : vector<4x8x1xf32>
    %c2_526 = arith.constant 2 : index
    %c74_527 = arith.constant 74 : index
    %1260 = memref.load %arg6[%c2_526, %c74_527] : memref<3x98xf32, #tpu.memory_space<smem>>
    %1261 = vector.broadcast %1260 : f32 to vector<4x8x1xf32>
    %1262 = arith.mulf %1160, %1261 : vector<4x8x1xf32>
    %1263 = arith.addf %1259, %1262 : vector<4x8x1xf32>
    %c2_528 = arith.constant 2 : index
    %c82_529 = arith.constant 82 : index
    %1264 = memref.load %arg6[%c2_528, %c82_529] : memref<3x98xf32, #tpu.memory_space<smem>>
    %1265 = vector.broadcast %1264 : f32 to vector<4x8x1xf32>
    %1266 = arith.addf %1263, %1265 : vector<4x8x1xf32>
    %cst_530 = arith.constant 0.000000e+00 : f32
    %1267 = vector.broadcast %cst_530 : f32 to vector<4x8x1xf32>
    %1268 = arith.maximumf %1266, %1267 : vector<4x8x1xf32>
    %c2_531 = arith.constant 2 : index
    %c19_532 = arith.constant 19 : index
    %1269 = memref.load %arg6[%c2_531, %c19_532] : memref<3x98xf32, #tpu.memory_space<smem>>
    %1270 = vector.broadcast %1269 : f32 to vector<4x8x1xf32>
    %1271 = arith.mulf %1104, %1270 : vector<4x8x1xf32>
    %c2_533 = arith.constant 2 : index
    %c27_534 = arith.constant 27 : index
    %1272 = memref.load %arg6[%c2_533, %c27_534] : memref<3x98xf32, #tpu.memory_space<smem>>
    %1273 = vector.broadcast %1272 : f32 to vector<4x8x1xf32>
    %1274 = arith.mulf %1112, %1273 : vector<4x8x1xf32>
    %1275 = arith.addf %1271, %1274 : vector<4x8x1xf32>
    %c2_535 = arith.constant 2 : index
    %c35_536 = arith.constant 35 : index
    %1276 = memref.load %arg6[%c2_535, %c35_536] : memref<3x98xf32, #tpu.memory_space<smem>>
    %1277 = vector.broadcast %1276 : f32 to vector<4x8x1xf32>
    %1278 = arith.mulf %1120, %1277 : vector<4x8x1xf32>
    %1279 = arith.addf %1275, %1278 : vector<4x8x1xf32>
    %c2_537 = arith.constant 2 : index
    %c43_538 = arith.constant 43 : index
    %1280 = memref.load %arg6[%c2_537, %c43_538] : memref<3x98xf32, #tpu.memory_space<smem>>
    %1281 = vector.broadcast %1280 : f32 to vector<4x8x1xf32>
    %1282 = arith.mulf %1128, %1281 : vector<4x8x1xf32>
    %1283 = arith.addf %1279, %1282 : vector<4x8x1xf32>
    %c2_539 = arith.constant 2 : index
    %c51_540 = arith.constant 51 : index
    %1284 = memref.load %arg6[%c2_539, %c51_540] : memref<3x98xf32, #tpu.memory_space<smem>>
    %1285 = vector.broadcast %1284 : f32 to vector<4x8x1xf32>
    %1286 = arith.mulf %1136, %1285 : vector<4x8x1xf32>
    %1287 = arith.addf %1283, %1286 : vector<4x8x1xf32>
    %c2_541 = arith.constant 2 : index
    %c59_542 = arith.constant 59 : index
    %1288 = memref.load %arg6[%c2_541, %c59_542] : memref<3x98xf32, #tpu.memory_space<smem>>
    %1289 = vector.broadcast %1288 : f32 to vector<4x8x1xf32>
    %1290 = arith.mulf %1144, %1289 : vector<4x8x1xf32>
    %1291 = arith.addf %1287, %1290 : vector<4x8x1xf32>
    %c2_543 = arith.constant 2 : index
    %c67_544 = arith.constant 67 : index
    %1292 = memref.load %arg6[%c2_543, %c67_544] : memref<3x98xf32, #tpu.memory_space<smem>>
    %1293 = vector.broadcast %1292 : f32 to vector<4x8x1xf32>
    %1294 = arith.mulf %1152, %1293 : vector<4x8x1xf32>
    %1295 = arith.addf %1291, %1294 : vector<4x8x1xf32>
    %c2_545 = arith.constant 2 : index
    %c75_546 = arith.constant 75 : index
    %1296 = memref.load %arg6[%c2_545, %c75_546] : memref<3x98xf32, #tpu.memory_space<smem>>
    %1297 = vector.broadcast %1296 : f32 to vector<4x8x1xf32>
    %1298 = arith.mulf %1160, %1297 : vector<4x8x1xf32>
    %1299 = arith.addf %1295, %1298 : vector<4x8x1xf32>
    %c2_547 = arith.constant 2 : index
    %c83_548 = arith.constant 83 : index
    %1300 = memref.load %arg6[%c2_547, %c83_548] : memref<3x98xf32, #tpu.memory_space<smem>>
    %1301 = vector.broadcast %1300 : f32 to vector<4x8x1xf32>
    %1302 = arith.addf %1299, %1301 : vector<4x8x1xf32>
    %cst_549 = arith.constant 0.000000e+00 : f32
    %1303 = vector.broadcast %cst_549 : f32 to vector<4x8x1xf32>
    %1304 = arith.maximumf %1302, %1303 : vector<4x8x1xf32>
    %c2_550 = arith.constant 2 : index
    %c20_551 = arith.constant 20 : index
    %1305 = memref.load %arg6[%c2_550, %c20_551] : memref<3x98xf32, #tpu.memory_space<smem>>
    %1306 = vector.broadcast %1305 : f32 to vector<4x8x1xf32>
    %1307 = arith.mulf %1104, %1306 : vector<4x8x1xf32>
    %c2_552 = arith.constant 2 : index
    %c28_553 = arith.constant 28 : index
    %1308 = memref.load %arg6[%c2_552, %c28_553] : memref<3x98xf32, #tpu.memory_space<smem>>
    %1309 = vector.broadcast %1308 : f32 to vector<4x8x1xf32>
    %1310 = arith.mulf %1112, %1309 : vector<4x8x1xf32>
    %1311 = arith.addf %1307, %1310 : vector<4x8x1xf32>
    %c2_554 = arith.constant 2 : index
    %c36_555 = arith.constant 36 : index
    %1312 = memref.load %arg6[%c2_554, %c36_555] : memref<3x98xf32, #tpu.memory_space<smem>>
    %1313 = vector.broadcast %1312 : f32 to vector<4x8x1xf32>
    %1314 = arith.mulf %1120, %1313 : vector<4x8x1xf32>
    %1315 = arith.addf %1311, %1314 : vector<4x8x1xf32>
    %c2_556 = arith.constant 2 : index
    %c44_557 = arith.constant 44 : index
    %1316 = memref.load %arg6[%c2_556, %c44_557] : memref<3x98xf32, #tpu.memory_space<smem>>
    %1317 = vector.broadcast %1316 : f32 to vector<4x8x1xf32>
    %1318 = arith.mulf %1128, %1317 : vector<4x8x1xf32>
    %1319 = arith.addf %1315, %1318 : vector<4x8x1xf32>
    %c2_558 = arith.constant 2 : index
    %c52_559 = arith.constant 52 : index
    %1320 = memref.load %arg6[%c2_558, %c52_559] : memref<3x98xf32, #tpu.memory_space<smem>>
    %1321 = vector.broadcast %1320 : f32 to vector<4x8x1xf32>
    %1322 = arith.mulf %1136, %1321 : vector<4x8x1xf32>
    %1323 = arith.addf %1319, %1322 : vector<4x8x1xf32>
    %c2_560 = arith.constant 2 : index
    %c60_561 = arith.constant 60 : index
    %1324 = memref.load %arg6[%c2_560, %c60_561] : memref<3x98xf32, #tpu.memory_space<smem>>
    %1325 = vector.broadcast %1324 : f32 to vector<4x8x1xf32>
    %1326 = arith.mulf %1144, %1325 : vector<4x8x1xf32>
    %1327 = arith.addf %1323, %1326 : vector<4x8x1xf32>
    %c2_562 = arith.constant 2 : index
    %c68_563 = arith.constant 68 : index
    %1328 = memref.load %arg6[%c2_562, %c68_563] : memref<3x98xf32, #tpu.memory_space<smem>>
    %1329 = vector.broadcast %1328 : f32 to vector<4x8x1xf32>
    %1330 = arith.mulf %1152, %1329 : vector<4x8x1xf32>
    %1331 = arith.addf %1327, %1330 : vector<4x8x1xf32>
    %c2_564 = arith.constant 2 : index
    %c76_565 = arith.constant 76 : index
    %1332 = memref.load %arg6[%c2_564, %c76_565] : memref<3x98xf32, #tpu.memory_space<smem>>
    %1333 = vector.broadcast %1332 : f32 to vector<4x8x1xf32>
    %1334 = arith.mulf %1160, %1333 : vector<4x8x1xf32>
    %1335 = arith.addf %1331, %1334 : vector<4x8x1xf32>
    %c2_566 = arith.constant 2 : index
    %c84_567 = arith.constant 84 : index
    %1336 = memref.load %arg6[%c2_566, %c84_567] : memref<3x98xf32, #tpu.memory_space<smem>>
    %1337 = vector.broadcast %1336 : f32 to vector<4x8x1xf32>
    %1338 = arith.addf %1335, %1337 : vector<4x8x1xf32>
    %cst_568 = arith.constant 0.000000e+00 : f32
    %1339 = vector.broadcast %cst_568 : f32 to vector<4x8x1xf32>
    %1340 = arith.maximumf %1338, %1339 : vector<4x8x1xf32>
    %c2_569 = arith.constant 2 : index
    %c21_570 = arith.constant 21 : index
    %1341 = memref.load %arg6[%c2_569, %c21_570] : memref<3x98xf32, #tpu.memory_space<smem>>
    %1342 = vector.broadcast %1341 : f32 to vector<4x8x1xf32>
    %1343 = arith.mulf %1104, %1342 : vector<4x8x1xf32>
    %c2_571 = arith.constant 2 : index
    %c29_572 = arith.constant 29 : index
    %1344 = memref.load %arg6[%c2_571, %c29_572] : memref<3x98xf32, #tpu.memory_space<smem>>
    %1345 = vector.broadcast %1344 : f32 to vector<4x8x1xf32>
    %1346 = arith.mulf %1112, %1345 : vector<4x8x1xf32>
    %1347 = arith.addf %1343, %1346 : vector<4x8x1xf32>
    %c2_573 = arith.constant 2 : index
    %c37_574 = arith.constant 37 : index
    %1348 = memref.load %arg6[%c2_573, %c37_574] : memref<3x98xf32, #tpu.memory_space<smem>>
    %1349 = vector.broadcast %1348 : f32 to vector<4x8x1xf32>
    %1350 = arith.mulf %1120, %1349 : vector<4x8x1xf32>
    %1351 = arith.addf %1347, %1350 : vector<4x8x1xf32>
    %c2_575 = arith.constant 2 : index
    %c45_576 = arith.constant 45 : index
    %1352 = memref.load %arg6[%c2_575, %c45_576] : memref<3x98xf32, #tpu.memory_space<smem>>
    %1353 = vector.broadcast %1352 : f32 to vector<4x8x1xf32>
    %1354 = arith.mulf %1128, %1353 : vector<4x8x1xf32>
    %1355 = arith.addf %1351, %1354 : vector<4x8x1xf32>
    %c2_577 = arith.constant 2 : index
    %c53_578 = arith.constant 53 : index
    %1356 = memref.load %arg6[%c2_577, %c53_578] : memref<3x98xf32, #tpu.memory_space<smem>>
    %1357 = vector.broadcast %1356 : f32 to vector<4x8x1xf32>
    %1358 = arith.mulf %1136, %1357 : vector<4x8x1xf32>
    %1359 = arith.addf %1355, %1358 : vector<4x8x1xf32>
    %c2_579 = arith.constant 2 : index
    %c61_580 = arith.constant 61 : index
    %1360 = memref.load %arg6[%c2_579, %c61_580] : memref<3x98xf32, #tpu.memory_space<smem>>
    %1361 = vector.broadcast %1360 : f32 to vector<4x8x1xf32>
    %1362 = arith.mulf %1144, %1361 : vector<4x8x1xf32>
    %1363 = arith.addf %1359, %1362 : vector<4x8x1xf32>
    %c2_581 = arith.constant 2 : index
    %c69_582 = arith.constant 69 : index
    %1364 = memref.load %arg6[%c2_581, %c69_582] : memref<3x98xf32, #tpu.memory_space<smem>>
    %1365 = vector.broadcast %1364 : f32 to vector<4x8x1xf32>
    %1366 = arith.mulf %1152, %1365 : vector<4x8x1xf32>
    %1367 = arith.addf %1363, %1366 : vector<4x8x1xf32>
    %c2_583 = arith.constant 2 : index
    %c77_584 = arith.constant 77 : index
    %1368 = memref.load %arg6[%c2_583, %c77_584] : memref<3x98xf32, #tpu.memory_space<smem>>
    %1369 = vector.broadcast %1368 : f32 to vector<4x8x1xf32>
    %1370 = arith.mulf %1160, %1369 : vector<4x8x1xf32>
    %1371 = arith.addf %1367, %1370 : vector<4x8x1xf32>
    %c2_585 = arith.constant 2 : index
    %c85_586 = arith.constant 85 : index
    %1372 = memref.load %arg6[%c2_585, %c85_586] : memref<3x98xf32, #tpu.memory_space<smem>>
    %1373 = vector.broadcast %1372 : f32 to vector<4x8x1xf32>
    %1374 = arith.addf %1371, %1373 : vector<4x8x1xf32>
    %cst_587 = arith.constant 0.000000e+00 : f32
    %1375 = vector.broadcast %cst_587 : f32 to vector<4x8x1xf32>
    %1376 = arith.maximumf %1374, %1375 : vector<4x8x1xf32>
    %c2_588 = arith.constant 2 : index
    %c22_589 = arith.constant 22 : index
    %1377 = memref.load %arg6[%c2_588, %c22_589] : memref<3x98xf32, #tpu.memory_space<smem>>
    %1378 = vector.broadcast %1377 : f32 to vector<4x8x1xf32>
    %1379 = arith.mulf %1104, %1378 : vector<4x8x1xf32>
    %c2_590 = arith.constant 2 : index
    %c30_591 = arith.constant 30 : index
    %1380 = memref.load %arg6[%c2_590, %c30_591] : memref<3x98xf32, #tpu.memory_space<smem>>
    %1381 = vector.broadcast %1380 : f32 to vector<4x8x1xf32>
    %1382 = arith.mulf %1112, %1381 : vector<4x8x1xf32>
    %1383 = arith.addf %1379, %1382 : vector<4x8x1xf32>
    %c2_592 = arith.constant 2 : index
    %c38_593 = arith.constant 38 : index
    %1384 = memref.load %arg6[%c2_592, %c38_593] : memref<3x98xf32, #tpu.memory_space<smem>>
    %1385 = vector.broadcast %1384 : f32 to vector<4x8x1xf32>
    %1386 = arith.mulf %1120, %1385 : vector<4x8x1xf32>
    %1387 = arith.addf %1383, %1386 : vector<4x8x1xf32>
    %c2_594 = arith.constant 2 : index
    %c46_595 = arith.constant 46 : index
    %1388 = memref.load %arg6[%c2_594, %c46_595] : memref<3x98xf32, #tpu.memory_space<smem>>
    %1389 = vector.broadcast %1388 : f32 to vector<4x8x1xf32>
    %1390 = arith.mulf %1128, %1389 : vector<4x8x1xf32>
    %1391 = arith.addf %1387, %1390 : vector<4x8x1xf32>
    %c2_596 = arith.constant 2 : index
    %c54_597 = arith.constant 54 : index
    %1392 = memref.load %arg6[%c2_596, %c54_597] : memref<3x98xf32, #tpu.memory_space<smem>>
    %1393 = vector.broadcast %1392 : f32 to vector<4x8x1xf32>
    %1394 = arith.mulf %1136, %1393 : vector<4x8x1xf32>
    %1395 = arith.addf %1391, %1394 : vector<4x8x1xf32>
    %c2_598 = arith.constant 2 : index
    %c62_599 = arith.constant 62 : index
    %1396 = memref.load %arg6[%c2_598, %c62_599] : memref<3x98xf32, #tpu.memory_space<smem>>
    %1397 = vector.broadcast %1396 : f32 to vector<4x8x1xf32>
    %1398 = arith.mulf %1144, %1397 : vector<4x8x1xf32>
    %1399 = arith.addf %1395, %1398 : vector<4x8x1xf32>
    %c2_600 = arith.constant 2 : index
    %c70_601 = arith.constant 70 : index
    %1400 = memref.load %arg6[%c2_600, %c70_601] : memref<3x98xf32, #tpu.memory_space<smem>>
    %1401 = vector.broadcast %1400 : f32 to vector<4x8x1xf32>
    %1402 = arith.mulf %1152, %1401 : vector<4x8x1xf32>
    %1403 = arith.addf %1399, %1402 : vector<4x8x1xf32>
    %c2_602 = arith.constant 2 : index
    %c78_603 = arith.constant 78 : index
    %1404 = memref.load %arg6[%c2_602, %c78_603] : memref<3x98xf32, #tpu.memory_space<smem>>
    %1405 = vector.broadcast %1404 : f32 to vector<4x8x1xf32>
    %1406 = arith.mulf %1160, %1405 : vector<4x8x1xf32>
    %1407 = arith.addf %1403, %1406 : vector<4x8x1xf32>
    %c2_604 = arith.constant 2 : index
    %c86_605 = arith.constant 86 : index
    %1408 = memref.load %arg6[%c2_604, %c86_605] : memref<3x98xf32, #tpu.memory_space<smem>>
    %1409 = vector.broadcast %1408 : f32 to vector<4x8x1xf32>
    %1410 = arith.addf %1407, %1409 : vector<4x8x1xf32>
    %cst_606 = arith.constant 0.000000e+00 : f32
    %1411 = vector.broadcast %cst_606 : f32 to vector<4x8x1xf32>
    %1412 = arith.maximumf %1410, %1411 : vector<4x8x1xf32>
    %c2_607 = arith.constant 2 : index
    %c23_608 = arith.constant 23 : index
    %1413 = memref.load %arg6[%c2_607, %c23_608] : memref<3x98xf32, #tpu.memory_space<smem>>
    %1414 = vector.broadcast %1413 : f32 to vector<4x8x1xf32>
    %1415 = arith.mulf %1104, %1414 : vector<4x8x1xf32>
    %c2_609 = arith.constant 2 : index
    %c31_610 = arith.constant 31 : index
    %1416 = memref.load %arg6[%c2_609, %c31_610] : memref<3x98xf32, #tpu.memory_space<smem>>
    %1417 = vector.broadcast %1416 : f32 to vector<4x8x1xf32>
    %1418 = arith.mulf %1112, %1417 : vector<4x8x1xf32>
    %1419 = arith.addf %1415, %1418 : vector<4x8x1xf32>
    %c2_611 = arith.constant 2 : index
    %c39_612 = arith.constant 39 : index
    %1420 = memref.load %arg6[%c2_611, %c39_612] : memref<3x98xf32, #tpu.memory_space<smem>>
    %1421 = vector.broadcast %1420 : f32 to vector<4x8x1xf32>
    %1422 = arith.mulf %1120, %1421 : vector<4x8x1xf32>
    %1423 = arith.addf %1419, %1422 : vector<4x8x1xf32>
    %c2_613 = arith.constant 2 : index
    %c47_614 = arith.constant 47 : index
    %1424 = memref.load %arg6[%c2_613, %c47_614] : memref<3x98xf32, #tpu.memory_space<smem>>
    %1425 = vector.broadcast %1424 : f32 to vector<4x8x1xf32>
    %1426 = arith.mulf %1128, %1425 : vector<4x8x1xf32>
    %1427 = arith.addf %1423, %1426 : vector<4x8x1xf32>
    %c2_615 = arith.constant 2 : index
    %c55_616 = arith.constant 55 : index
    %1428 = memref.load %arg6[%c2_615, %c55_616] : memref<3x98xf32, #tpu.memory_space<smem>>
    %1429 = vector.broadcast %1428 : f32 to vector<4x8x1xf32>
    %1430 = arith.mulf %1136, %1429 : vector<4x8x1xf32>
    %1431 = arith.addf %1427, %1430 : vector<4x8x1xf32>
    %c2_617 = arith.constant 2 : index
    %c63_618 = arith.constant 63 : index
    %1432 = memref.load %arg6[%c2_617, %c63_618] : memref<3x98xf32, #tpu.memory_space<smem>>
    %1433 = vector.broadcast %1432 : f32 to vector<4x8x1xf32>
    %1434 = arith.mulf %1144, %1433 : vector<4x8x1xf32>
    %1435 = arith.addf %1431, %1434 : vector<4x8x1xf32>
    %c2_619 = arith.constant 2 : index
    %c71_620 = arith.constant 71 : index
    %1436 = memref.load %arg6[%c2_619, %c71_620] : memref<3x98xf32, #tpu.memory_space<smem>>
    %1437 = vector.broadcast %1436 : f32 to vector<4x8x1xf32>
    %1438 = arith.mulf %1152, %1437 : vector<4x8x1xf32>
    %1439 = arith.addf %1435, %1438 : vector<4x8x1xf32>
    %c2_621 = arith.constant 2 : index
    %c79_622 = arith.constant 79 : index
    %1440 = memref.load %arg6[%c2_621, %c79_622] : memref<3x98xf32, #tpu.memory_space<smem>>
    %1441 = vector.broadcast %1440 : f32 to vector<4x8x1xf32>
    %1442 = arith.mulf %1160, %1441 : vector<4x8x1xf32>
    %1443 = arith.addf %1439, %1442 : vector<4x8x1xf32>
    %c2_623 = arith.constant 2 : index
    %c87_624 = arith.constant 87 : index
    %1444 = memref.load %arg6[%c2_623, %c87_624] : memref<3x98xf32, #tpu.memory_space<smem>>
    %1445 = vector.broadcast %1444 : f32 to vector<4x8x1xf32>
    %1446 = arith.addf %1443, %1445 : vector<4x8x1xf32>
    %cst_625 = arith.constant 0.000000e+00 : f32
    %1447 = vector.broadcast %cst_625 : f32 to vector<4x8x1xf32>
    %1448 = arith.maximumf %1446, %1447 : vector<4x8x1xf32>
    %c2_626 = arith.constant 2 : index
    %c88_627 = arith.constant 88 : index
    %1449 = memref.load %arg6[%c2_626, %c88_627] : memref<3x98xf32, #tpu.memory_space<smem>>
    %1450 = vector.broadcast %1449 : f32 to vector<4x8x1xf32>
    %1451 = arith.mulf %1196, %1450 : vector<4x8x1xf32>
    %c2_628 = arith.constant 2 : index
    %c89_629 = arith.constant 89 : index
    %1452 = memref.load %arg6[%c2_628, %c89_629] : memref<3x98xf32, #tpu.memory_space<smem>>
    %1453 = vector.broadcast %1452 : f32 to vector<4x8x1xf32>
    %1454 = arith.mulf %1232, %1453 : vector<4x8x1xf32>
    %1455 = arith.addf %1451, %1454 : vector<4x8x1xf32>
    %c2_630 = arith.constant 2 : index
    %c90_631 = arith.constant 90 : index
    %1456 = memref.load %arg6[%c2_630, %c90_631] : memref<3x98xf32, #tpu.memory_space<smem>>
    %1457 = vector.broadcast %1456 : f32 to vector<4x8x1xf32>
    %1458 = arith.mulf %1268, %1457 : vector<4x8x1xf32>
    %1459 = arith.addf %1455, %1458 : vector<4x8x1xf32>
    %c2_632 = arith.constant 2 : index
    %c91_633 = arith.constant 91 : index
    %1460 = memref.load %arg6[%c2_632, %c91_633] : memref<3x98xf32, #tpu.memory_space<smem>>
    %1461 = vector.broadcast %1460 : f32 to vector<4x8x1xf32>
    %1462 = arith.mulf %1304, %1461 : vector<4x8x1xf32>
    %1463 = arith.addf %1459, %1462 : vector<4x8x1xf32>
    %c2_634 = arith.constant 2 : index
    %c92_635 = arith.constant 92 : index
    %1464 = memref.load %arg6[%c2_634, %c92_635] : memref<3x98xf32, #tpu.memory_space<smem>>
    %1465 = vector.broadcast %1464 : f32 to vector<4x8x1xf32>
    %1466 = arith.mulf %1340, %1465 : vector<4x8x1xf32>
    %1467 = arith.addf %1463, %1466 : vector<4x8x1xf32>
    %c2_636 = arith.constant 2 : index
    %c93_637 = arith.constant 93 : index
    %1468 = memref.load %arg6[%c2_636, %c93_637] : memref<3x98xf32, #tpu.memory_space<smem>>
    %1469 = vector.broadcast %1468 : f32 to vector<4x8x1xf32>
    %1470 = arith.mulf %1376, %1469 : vector<4x8x1xf32>
    %1471 = arith.addf %1467, %1470 : vector<4x8x1xf32>
    %c2_638 = arith.constant 2 : index
    %c94_639 = arith.constant 94 : index
    %1472 = memref.load %arg6[%c2_638, %c94_639] : memref<3x98xf32, #tpu.memory_space<smem>>
    %1473 = vector.broadcast %1472 : f32 to vector<4x8x1xf32>
    %1474 = arith.mulf %1412, %1473 : vector<4x8x1xf32>
    %1475 = arith.addf %1471, %1474 : vector<4x8x1xf32>
    %c2_640 = arith.constant 2 : index
    %c95_641 = arith.constant 95 : index
    %1476 = memref.load %arg6[%c2_640, %c95_641] : memref<3x98xf32, #tpu.memory_space<smem>>
    %1477 = vector.broadcast %1476 : f32 to vector<4x8x1xf32>
    %1478 = arith.mulf %1448, %1477 : vector<4x8x1xf32>
    %1479 = arith.addf %1475, %1478 : vector<4x8x1xf32>
    %c2_642 = arith.constant 2 : index
    %c96_643 = arith.constant 96 : index
    %1480 = memref.load %arg6[%c2_642, %c96_643] : memref<3x98xf32, #tpu.memory_space<smem>>
    %1481 = vector.broadcast %1480 : f32 to vector<4x8x1xf32>
    %1482 = arith.addf %1479, %1481 : vector<4x8x1xf32>
    %cst_644 = arith.constant 0.000000e+00 : f32
    %1483 = vector.broadcast %cst_644 : f32 to vector<4x8x1xf32>
    %1484 = arith.subf %1483, %1482 : vector<4x8x1xf32>
    %1485 = math.exp %1484 : vector<4x8x1xf32>
    %cst_645 = arith.constant 1.000000e+00 : f32
    %1486 = vector.broadcast %cst_645 : f32 to vector<4x8x1xf32>
    %1487 = arith.addf %1486, %1485 : vector<4x8x1xf32>
    %cst_646 = arith.constant 1.000000e+00 : f32
    %1488 = vector.broadcast %cst_646 : f32 to vector<4x8x1xf32>
    %1489 = arith.divf %1488, %1487 : vector<4x8x1xf32>
    %cst_647 = arith.constant 9.99999997E-7 : f32
    %1490 = vector.broadcast %cst_647 : f32 to vector<4x8x1xf32>
    %1491 = arith.addf %1489, %1490 : vector<4x8x1xf32>
    %cst_648 = arith.constant 1.000000e+00 : f32
    %1492 = vector.broadcast %cst_648 : f32 to vector<4x8x1xf32>
    %1493 = arith.divf %1492, %1491 : vector<4x8x1xf32>
    %cst_649 = arith.constant 0.000000e+00 : f32
    %1494 = vector.broadcast %cst_649 : f32 to vector<4x8x1xf32>
    %1495 = arith.cmpf ogt, %4, %1494 : vector<4x8x1xf32>
    %cst_650 = arith.constant -1.000000e+30 : f32
    %1496 = vector.broadcast %cst_650 : f32 to vector<4x8x1xf32>
    %1497 = arith.select %1495, %1493, %1496 : vector<4x8x1xi1>, vector<4x8x1xf32>
    %cst_651 = arith.constant dense<0xFF800000> : vector<4x1xf32>
    %1498 = vector.multi_reduction <maximumf>, %1497, %cst_651 [1] : vector<4x8x1xf32> to vector<4x1xf32>
    %1499 = vector.shape_cast %1498 : vector<4x1xf32> to vector<4x1x1xf32>
    %1500 = vector.broadcast %1499 : vector<4x1x1xf32> to vector<4x8x1xf32>
    %1501 = arith.subf %1493, %1500 : vector<4x8x1xf32>
    %cst_652 = arith.constant 0.000000e+00 : f32
    %1502 = vector.broadcast %cst_652 : f32 to vector<4x8x1xf32>
    %1503 = arith.minimumf %1501, %1502 : vector<4x8x1xf32>
    %1504 = math.exp %1503 : vector<4x8x1xf32>
    %1505 = arith.mulf %1504, %4 : vector<4x8x1xf32>
    %1506 = vector.broadcast %1505 : vector<4x8x1xf32> to vector<4x8x4xf32>
    %1507 = arith.mulf %1506, %37 : vector<4x8x4xf32>
    %cst_653 = arith.constant dense<0.000000e+00> : vector<4x4xf32>
    %1508 = vector.multi_reduction <add>, %1507, %cst_653 [1] : vector<4x8x4xf32> to vector<4x4xf32>
    %1509 = vector.shape_cast %1508 : vector<4x4xf32> to vector<4x1x4xf32>
    %1510 = arith.mulf %1505, %35 : vector<4x8x1xf32>
    %cst_654 = arith.constant dense<0.000000e+00> : vector<4x1xf32>
    %1511 = vector.multi_reduction <add>, %1510, %cst_654 [1] : vector<4x8x1xf32> to vector<4x1xf32>
    %1512 = vector.shape_cast %1511 : vector<4x1xf32> to vector<4x1x1xf32>
    %cst_655 = arith.constant 9.99999997E-7 : f32
    %1513 = vector.broadcast %cst_655 : f32 to vector<4x1x1xf32>
    %1514 = arith.maximumf %1512, %1513 : vector<4x1x1xf32>
    %1515 = tpu.reciprocal %1514 {approx = true} : vector<4x1x1xf32> -> vector<4x1x1xf32>
    %1516 = vector.broadcast %1515 : vector<4x1x1xf32> to vector<4x1x4xf32>
    %1517 = arith.mulf %1509, %1516 : vector<4x1x4xf32>
    %1518 = vector.broadcast %3 : vector<4x1x1xf32> to vector<4x1x4xf32>
    %1519 = arith.mulf %1517, %1518 : vector<4x1x4xf32>
    %cst_656 = arith.constant 2.000000e+00 : f32
    %1520 = vector.broadcast %cst_656 : f32 to vector<4x1x4xf32>
    %1521 = arith.mulf %1520, %1061 : vector<4x1x4xf32>
    %cst_657 = arith.constant 1.000000e+00 : f32
    %1522 = vector.broadcast %cst_657 : f32 to vector<4x1x1xf32>
    %1523 = arith.addf %1522, %1064 : vector<4x1x1xf32>
    %1524 = vector.broadcast %1523 : vector<4x1x1xf32> to vector<4x1x4xf32>
    %1525 = arith.divf %1521, %1524 : vector<4x1x4xf32>
    %1526 = arith.mulf %1525, %1525 : vector<4x1x4xf32>
    %cst_658 = arith.constant dense<0.000000e+00> : vector<4x1xf32>
    %1527 = vector.multi_reduction <add>, %1526, %cst_658 [2] : vector<4x1x4xf32> to vector<4x1xf32>
    %1528 = vector.shape_cast %1527 : vector<4x1xf32> to vector<4x1x1xf32>
    %cst_659 = arith.constant 1.000000e+00 : f32
    %1529 = vector.broadcast %cst_659 : f32 to vector<4x1x1xf32>
    %1530 = arith.subf %1529, %1528 : vector<4x1x1xf32>
    %cst_660 = arith.constant 9.99999997E-7 : f32
    %1531 = vector.broadcast %cst_660 : f32 to vector<4x1x1xf32>
    %1532 = arith.maximumf %1530, %1531 : vector<4x1x1xf32>
    %1533 = math.rsqrt %1532 : vector<4x1x1xf32>
    %1534 = arith.mulf %1519, %1519 : vector<4x1x4xf32>
    %cst_661 = arith.constant dense<0.000000e+00> : vector<4x1xf32>
    %1535 = vector.multi_reduction <add>, %1534, %cst_661 [2] : vector<4x1x4xf32> to vector<4x1xf32>
    %1536 = vector.shape_cast %1535 : vector<4x1xf32> to vector<4x1x1xf32>
    %cst_662 = arith.constant 1.000000e+00 : f32
    %1537 = vector.broadcast %cst_662 : f32 to vector<4x1x1xf32>
    %1538 = arith.subf %1537, %1536 : vector<4x1x1xf32>
    %cst_663 = arith.constant 9.99999997E-7 : f32
    %1539 = vector.broadcast %cst_663 : f32 to vector<4x1x1xf32>
    %1540 = arith.maximumf %1538, %1539 : vector<4x1x1xf32>
    %1541 = math.rsqrt %1540 : vector<4x1x1xf32>
    %c2_664 = arith.constant 2 : index
    %c97_665 = arith.constant 97 : index
    %1542 = memref.load %arg6[%c2_664, %c97_665] : memref<3x98xf32, #tpu.memory_space<smem>>
    %cst_666 = arith.constant 1.000000e+00 : f32
    %1543 = arith.subf %cst_666, %1542 : f32
    %1544 = vector.broadcast %1542 : f32 to vector<4x1x1xf32>
    %1545 = arith.mulf %1544, %1533 : vector<4x1x1xf32>
    %1546 = vector.broadcast %1545 : vector<4x1x1xf32> to vector<4x1x4xf32>
    %1547 = arith.mulf %1546, %1525 : vector<4x1x4xf32>
    %1548 = vector.broadcast %1543 : f32 to vector<4x1x1xf32>
    %1549 = arith.mulf %1548, %1541 : vector<4x1x1xf32>
    %1550 = vector.broadcast %1549 : vector<4x1x1xf32> to vector<4x1x4xf32>
    %1551 = arith.mulf %1550, %1519 : vector<4x1x4xf32>
    %1552 = arith.addf %1547, %1551 : vector<4x1x4xf32>
    %1553 = vector.broadcast %1542 : f32 to vector<4x1x1xf32>
    %1554 = arith.mulf %1553, %1533 : vector<4x1x1xf32>
    %1555 = vector.broadcast %1543 : f32 to vector<4x1x1xf32>
    %1556 = arith.mulf %1555, %1541 : vector<4x1x1xf32>
    %1557 = arith.addf %1554, %1556 : vector<4x1x1xf32>
    %1558 = tpu.reciprocal %1557 {approx = true} : vector<4x1x1xf32> -> vector<4x1x1xf32>
    %1559 = vector.broadcast %1558 : vector<4x1x1xf32> to vector<4x1x4xf32>
    %1560 = arith.mulf %1552, %1559 : vector<4x1x4xf32>
    %1561 = arith.mulf %1560, %1560 : vector<4x1x4xf32>
    %cst_667 = arith.constant dense<0.000000e+00> : vector<4x1xf32>
    %1562 = vector.multi_reduction <add>, %1561, %cst_667 [2] : vector<4x1x4xf32> to vector<4x1xf32>
    %1563 = vector.shape_cast %1562 : vector<4x1xf32> to vector<4x1x1xf32>
    %cst_668 = arith.constant 1.000000e+00 : f32
    %1564 = vector.broadcast %cst_668 : f32 to vector<4x1x1xf32>
    %1565 = arith.subf %1564, %1563 : vector<4x1x1xf32>
    %cst_669 = arith.constant 0.000000e+00 : f32
    %1566 = vector.broadcast %cst_669 : f32 to vector<4x1x1xf32>
    %1567 = arith.maximumf %1565, %1566 : vector<4x1x1xf32>
    %1568 = math.sqrt %1567 : vector<4x1x1xf32>
    %cst_670 = arith.constant 1.000000e+00 : f32
    %1569 = vector.broadcast %cst_670 : f32 to vector<4x1x1xf32>
    %1570 = arith.addf %1569, %1568 : vector<4x1x1xf32>
    %1571 = tpu.reciprocal %1570 {approx = true} : vector<4x1x1xf32> -> vector<4x1x1xf32>
    %1572 = vector.broadcast %1571 : vector<4x1x1xf32> to vector<4x1x4xf32>
    %1573 = arith.mulf %1560, %1572 : vector<4x1x4xf32>
    %c0_671 = arith.constant 0 : index
    %c0_672 = arith.constant 0 : index
    %c0_673 = arith.constant 0 : index
    %1574 = vector.load %arg7[%c0_671, %c0_672, %c0_673] : memref<4x1x4xf32, #tpu.memory_space<vmem>>, vector<4x1x4xf32>
    tpu.vector_store %arg7[%c0_671, %c0_672, %c0_673], %1573 {strides = array<i32>} : memref<4x1x4xf32, #tpu.memory_space<vmem>>, vector<4x1x4xf32>,
    return
  }
  func.func @transform_0(%arg0: i32) -> (i32, i32, i32) {
    %c0_i32 = arith.constant 0 : i32
    %c0_i32_0 = arith.constant 0 : i32
    %c0_i32_1 = arith.constant 0 : i32
    return %arg0, %c0_i32, %c0_i32_0 : i32, i32, i32
  }
  func.func @transform_1(%arg0: i32) -> (i32, i32, i32) {
    %c0_i32 = arith.constant 0 : i32
    %c0_i32_0 = arith.constant 0 : i32
    %c0_i32_1 = arith.constant 0 : i32
    return %arg0, %c0_i32, %c0_i32_0 : i32, i32, i32
  }
  func.func @transform_2(%arg0: i32) -> (i32, i32, i32) {
    %c0_i32 = arith.constant 0 : i32
    %c0_i32_0 = arith.constant 0 : i32
    %c0_i32_1 = arith.constant 0 : i32
    return %arg0, %c0_i32, %c0_i32_0 : i32, i32, i32
  }
  func.func @transform_3(%arg0: i32) -> (i32, i32, i32) {
    %c0_i32 = arith.constant 0 : i32
    %c0_i32_0 = arith.constant 0 : i32
    %c0_i32_1 = arith.constant 0 : i32
    return %arg0, %c0_i32, %c0_i32_0 : i32, i32, i32
  }
  func.func @transform_4(%arg0: i32) -> (i32, i32, i32) {
    %c0_i32 = arith.constant 0 : i32
    %c0_i32_0 = arith.constant 0 : i32
    %c0_i32_1 = arith.constant 0 : i32
    return %arg0, %c0_i32, %c0_i32_0 : i32, i32, i32
  }
  func.func @transform_5(%arg0: i32) -> (i32, i32) {
    %c0_i32 = arith.constant 0 : i32
    %c0_i32_0 = arith.constant 0 : i32
    %c0_i32_1 = arith.constant 0 : i32
    return %c0_i32, %c0_i32_0 : i32, i32
  }
  func.func @transform_6(%arg0: i32) -> (i32, i32, i32) {
    %c0_i32 = arith.constant 0 : i32
    %c0_i32_0 = arith.constant 0 : i32
    %c0_i32_1 = arith.constant 0 : i32
    return %arg0, %c0_i32, %c0_i32_0 : i32, i32, i32
  }
}

</mosaic_0001>

<llo_original>
// kernel: hyperbolic_path_search.1
$region0: #{hyperbolic_path_search.1}
  #allocation0 [shape = 'u32[]', space=smem, size = 0x4, offset = 0x4, fixed_abs, tag = 'smem constant byte address 0x4 - core index']
  #allocation1 [shape = 'u32[72,128]{1,0:T(1,128)}', space=vmem, size = 0x9000, scoped, tag = 'internal scratch']
  %s0 = inlined_call_operand.vmem [shape: f32[8,1,4], index: 0, kind: input, shape index: {}]
  %s1 = inlined_call_operand.vmem [shape: f32[8,8,4], index: 1, kind: input, shape index: {}]
  %s2 = inlined_call_operand.vmem [shape: f32[8,8,4], index: 2, kind: input, shape index: {}]
  %s3 = inlined_call_operand.vmem [shape: f32[8,1,1], index: 3, kind: input, shape index: {}]
  %s4 = inlined_call_operand.vmem [shape: f32[8,8,1], index: 4, kind: input, shape index: {}]
  %s5 = inlined_call_operand.vmem [shape: f32[3,98], index: 5, kind: input, shape index: {}]
  %s6 = inlined_call_operand.vmem [shape: f32[8,1,4], index: 6, kind: output, shape index: {}]
  %s7 = sld [smem:[#allocation0]]
  $region61: #{hyperbolic_path_search.1} parent=0
    _
  %s9 = ssub.s32 1, %s7
  %s10 = scalar_select 0, %s9, %s7
  $region1: #{hyperbolic_path_search.1} parent=0
    #allocation2 [shape = 'u8[2048]{0}', space=smem, size = 0x800, scoped, tag = 'input window, operand 5, single buffered']
    #allocation3 [shape = 's32[2]{0}', space=sflag, size = 0x8, scoped, tag = 'scoped memory for hyperbolic_path_search.1']
    %11 = vsyncpa [#allocation3], 0
    loop: start=0, step=1, limit=4
    $region2: #{hyperbolic_path_search.1} parent=1 // loop_pre_header
      _
    $region3: #{hyperbolic_path_search.1} parent=1 // loop_header
      %s13 = sphi 0, %s17
      %p14 = scmp.ge.s32.totalorder %s13, 4
      %s23 = sphi 0, %s25
      %s26 = sphi 0, %s23
      %s27 = sphi 0, %s26
      %s43 = sphi 0, %s27
      %s49 = sphi 0, %s51
      %s52 = sphi 0, %s49
      %s53 = sphi 0, %s52
      %s69 = sphi 0, %s53
      %s75 = sphi 0, %s77
      %s78 = sphi 0, %s75
      %s79 = sphi 0, %s78
      %s95 = sphi 0, %s79
      %s101 = sphi 0, %s103
      %s104 = sphi 0, %s101
      %s105 = sphi 0, %s104
      %s121 = sphi 0, %s105
      %s127 = sphi 0, %s129
      %s130 = sphi 0, %s127
      %s131 = sphi 0, %s130
      %s147 = sphi 0, %s131
      %s151 = sphi 0, %s151
      %s153 = sphi 0, %s151
      %s154 = sphi 0, %s153
      %s168 = sphi 0, %s154
      %s174 = sphi 0, %s176
      %s177 = sphi 0, %s174
      %s178 = sphi 0, %s177
      %s194 = sphi 0, %s178
    $region4: #{hyperbolic_path_search.1} parent=1 // loop_header_branch
      %16 = sbr.rel (%p14) target = $region8
    $region5: #{hyperbolic_path_search.1} parent=1 // loop_body
      %s18 = ssub.s32 %s13, 1
      %s19 = ssub.s32 %s13, 2
      %s20 = sadd.s32 %s13, 1
      %s21 = ssub.s32 %s13, %s20
      %p22 = scmp.eq.s32.totalorder %s21, 0
      %s24 = sadd.s32 %s23, 1
      %s25 = scalar_select %p22, %s23, %s24
      %p28 = pneg %p22
      %p29 = scmp.eq.s32.totalorder %s13, 1
      %p30 = por %p28, %p29
      %p31 = scmp.ne.s32.totalorder %s23, %s26
      %p32 = scmp.eq.s32.totalorder %s13, 0
      %p33 = por %p31, %p32
      %p34 = scmp.ne.s32.totalorder %s23, %s26
      %p35 = scmp.eq.s32.totalorder %s18, 1
      %p36 = por %p34, %p35
      %p37 = scmp.ne.s32.totalorder %s26, %s27
      %p38 = scmp.eq.s32.totalorder %s18, 0
      %p39 = por %p37, %p38
      %p40 = scmp.ne.s32.totalorder %s26, %s27
      %p41 = scmp.eq.s32.totalorder %s19, 1
      %p42 = por %p40, %p41
      %p44 = scmp.ne.s32.totalorder %s27, %s43
      %p45 = scmp.eq.s32.totalorder %s19, 0
      %p46 = por %p44, %p45
      %s47 = ssub.s32 %s13, %s20
      %p48 = scmp.eq.s32.totalorder %s47, 0
      %s50 = sadd.s32 %s49, 1
      %s51 = scalar_select %p48, %s49, %s50
      %p54 = pneg %p48
      %p55 = scmp.eq.s32.totalorder %s13, 1
      %p56 = por %p54, %p55
      %p57 = scmp.ne.s32.totalorder %s49, %s52
      %p58 = scmp.eq.s32.totalorder %s13, 0
      %p59 = por %p57, %p58
      %p60 = scmp.ne.s32.totalorder %s49, %s52
      %p61 = scmp.eq.s32.totalorder %s18, 1
      %p62 = por %p60, %p61
      %p63 = scmp.ne.s32.totalorder %s52, %s53
      %p64 = scmp.eq.s32.totalorder %s18, 0
      %p65 = por %p63, %p64
      %p66 = scmp.ne.s32.totalorder %s52, %s53
      %p67 = scmp.eq.s32.totalorder %s19, 1
      %p68 = por %p66, %p67
      %p70 = scmp.ne.s32.totalorder %s53, %s69
      %p71 = scmp.eq.s32.totalorder %s19, 0
      %p72 = por %p70, %p71
      %s73 = ssub.s32 %s13, %s20
      %p74 = scmp.eq.s32.totalorder %s73, 0
      %s76 = sadd.s32 %s75, 1
      %s77 = scalar_select %p74, %s75, %s76
      %p80 = pneg %p74
      %p81 = scmp.eq.s32.totalorder %s13, 1
      %p82 = por %p80, %p81
      %p83 = scmp.ne.s32.totalorder %s75, %s78
      %p84 = scmp.eq.s32.totalorder %s13, 0
      %p85 = por %p83, %p84
      %p86 = scmp.ne.s32.totalorder %s75, %s78
      %p87 = scmp.eq.s32.totalorder %s18, 1
      %p88 = por %p86, %p87
      %p89 = scmp.ne.s32.totalorder %s78, %s79
      %p90 = scmp.eq.s32.totalorder %s18, 0
      %p91 = por %p89, %p90
      %p92 = scmp.ne.s32.totalorder %s78, %s79
      %p93 = scmp.eq.s32.totalorder %s19, 1
      %p94 = por %p92, %p93
      %p96 = scmp.ne.s32.totalorder %s79, %s95
      %p97 = scmp.eq.s32.totalorder %s19, 0
      %p98 = por %p96, %p97
      %s99 = ssub.s32 %s13, %s20
      %p100 = scmp.eq.s32.totalorder %s99, 0
      %s102 = sadd.s32 %s101, 1
      %s103 = scalar_select %p100, %s101, %s102
      %p106 = pneg %p100
      %p107 = scmp.eq.s32.totalorder %s13, 1
      %p108 = por %p106, %p107
      %p109 = scmp.ne.s32.totalorder %s101, %s104
      %p110 = scmp.eq.s32.totalorder %s13, 0
      %p111 = por %p109, %p110
      %p112 = scmp.ne.s32.totalorder %s101, %s104
      %p113 = scmp.eq.s32.totalorder %s18, 1
      %p114 = por %p112, %p113
      %p115 = scmp.ne.s32.totalorder %s104, %s105
      %p116 = scmp.eq.s32.totalorder %s18, 0
      %p117 = por %p115, %p116
      %p118 = scmp.ne.s32.totalorder %s104, %s105
      %p119 = scmp.eq.s32.totalorder %s19, 1
      %p120 = por %p118, %p119
      %p122 = scmp.ne.s32.totalorder %s105, %s121
      %p123 = scmp.eq.s32.totalorder %s19, 0
      %p124 = por %p122, %p123
      %s125 = ssub.s32 %s13, %s20
      %p126 = scmp.eq.s32.totalorder %s125, 0
      %s128 = sadd.s32 %s127, 1
      %s129 = scalar_select %p126, %s127, %s128
      %p132 = pneg %p126
      %p133 = scmp.eq.s32.totalorder %s13, 1
      %p134 = por %p132, %p133
      %p135 = scmp.ne.s32.totalorder %s127, %s130
      %p136 = scmp.eq.s32.totalorder %s13, 0
      %p137 = por %p135, %p136
      %p138 = scmp.ne.s32.totalorder %s127, %s130
      %p139 = scmp.eq.s32.totalorder %s18, 1
      %p140 = por %p138, %p139
      %p141 = scmp.ne.s32.totalorder %s130, %s131
      %p142 = scmp.eq.s32.totalorder %s18, 0
      %p143 = por %p141, %p142
      %p144 = scmp.ne.s32.totalorder %s130, %s131
      %p145 = scmp.eq.s32.totalorder %s19, 1
      %p146 = por %p144, %p145
      %p148 = scmp.ne.s32.totalorder %s131, %s147
      %p149 = scmp.eq.s32.totalorder %s19, 0
      %p150 = por %p148, %p149
      %s152 = sadd.s32 %s151, 1
      %p155 = scmp.eq.s32.totalorder %s13, 1
      %p156 = scmp.ne.s32.totalorder %s151, %s153
      %p157 = scmp.eq.s32.totalorder %s13, 0
      %p158 = por %p156, %p157
      %p159 = scmp.ne.s32.totalorder %s151, %s153
      %p160 = scmp.eq.s32.totalorder %s18, 1
      %p161 = por %p159, %p160
      %p162 = scmp.ne.s32.totalorder %s153, %s154
      %p163 = scmp.eq.s32.totalorder %s18, 0
      %p164 = por %p162, %p163
      %p165 = scmp.ne.s32.totalorder %s153, %s154
      %p166 = scmp.eq.s32.totalorder %s19, 1
      %p167 = por %p165, %p166
      %p169 = scmp.ne.s32.totalorder %s154, %s168
      %p170 = scmp.eq.s32.totalorder %s19, 0
      %p171 = por %p169, %p170
      %s172 = ssub.s32 %s13, %s20
      %p173 = scmp.eq.s32.totalorder %s172, 0
      %s175 = sadd.s32 %s174, 1
      %s176 = scalar_select %p173, %s174, %s175
      %p179 = pneg %p173
      %p180 = scmp.eq.s32.totalorder %s13, 1
      %p181 = por %p179, %p180
      %p182 = scmp.ne.s32.totalorder %s174, %s177
      %p183 = scmp.eq.s32.totalorder %s13, 0
      %p184 = por %p182, %p183
      %p185 = scmp.ne.s32.totalorder %s174, %s177
      %p186 = scmp.eq.s32.totalorder %s18, 1
      %p187 = por %p185, %p186
      %p188 = scmp.ne.s32.totalorder %s177, %s178
      %p189 = scmp.eq.s32.totalorder %s18, 0
      %p190 = por %p188, %p189
      %p191 = scmp.ne.s32.totalorder %s177, %s178
      %p192 = scmp.eq.s32.totalorder %s19, 1
      %p193 = por %p191, %p192
      %p195 = scmp.ne.s32.totalorder %s178, %s194
      %p196 = scmp.eq.s32.totalorder %s19, 0
      %p197 = por %p195, %p196
      %p198 = scmp.le.s32.totalorder 1, %s13
      %p199 = scmp.lt.s32.totalorder %s13, 3
      %p200 = pnand %p198, %p199
      %p201 = pneg %p200
      // Predicated region
      $region9: #{hyperbolic_path_search.1} parent=5 // pred_check
        _
      $region10: #{hyperbolic_path_search.1} parent=5 // pred_check_branch
        %203 = sbr.rel (%p200) target = $region12
      $region11: #{hyperbolic_path_search.1} parent=5 // pred_region
        %s204 = ssub.s32 %s13, 1
        // Predicated region
        $region13: #{hyperbolic_path_search.1} parent=11 // pred_check
          %p205 = pneg %p164
        $region14: #{hyperbolic_path_search.1} parent=11 // pred_check_branch
          %207 = sbr.rel (%p205) target = $region16
        $region15: #{hyperbolic_path_search.1} parent=11 // pred_region
          %209 = vsyncadd [#allocation3], 0
          %s211 = sshll.u32 %s5, 4
          %s212 = int_to_ptr.vmem [resolvable:$true] %s211
          %214 = dma.vmem_to_smem %s212, 64, [#allocation2], [#allocation3]
        $region16: #{hyperbolic_path_search.1} parent=11 // pred_fallthru
          _
      $region12: #{hyperbolic_path_search.1} parent=5 // pred_fallthru
        _
      %p215 = scmp.lt.s32.totalorder %s13, 2
      // Predicated region
      $region17: #{hyperbolic_path_search.1} parent=5 // pred_check
        %p216 = pneg %p215
      $region18: #{hyperbolic_path_search.1} parent=5 // pred_check_branch
        %218 = sbr.rel (%p216) target = $region20
      $region19: #{hyperbolic_path_search.1} parent=5 // pred_region
        // Predicated region
        $region21: #{hyperbolic_path_search.1} parent=19 // pred_check
          %p219 = pneg %p33
        $region22: #{hyperbolic_path_search.1} parent=19 // pred_check_branch
          %221 = sbr.rel (%p219) target = $region24
        $region23: #{hyperbolic_path_search.1} parent=19 // pred_region
          %s222 = smul.u32 4, %s13
          %p223 = scmp.lt.s32.totalorder %s222, 7
          %s224 = scalar_select %p223, %s222, 7
          %s225 = scalar_lea.vmem %s0, %s224
          %s226 = smul.u32 4, %s13
        $region24: #{hyperbolic_path_search.1} parent=19 // pred_fallthru
          _
        // Predicated region
        $region25: #{hyperbolic_path_search.1} parent=19 // pred_check
          %p227 = pneg %p59
        $region26: #{hyperbolic_path_search.1} parent=19 // pred_check_branch
          %229 = sbr.rel (%p227) target = $region28
        $region27: #{hyperbolic_path_search.1} parent=19 // pred_region
          %s230 = smul.u32 4, %s13
          %p231 = scmp.lt.s32.totalorder %s230, 7
          %s232 = scalar_select %p231, %s230, 7
          %s233 = smul.addr %s232, 8
          %s234 = scalar_lea.vmem %s1, %s233
          %s235 = smul.u32 4, %s13
        $region28: #{hyperbolic_path_search.1} parent=19 // pred_fallthru
          _
        // Predicated region
        $region29: #{hyperbolic_path_search.1} parent=19 // pred_check
          %p236 = pneg %p85
        $region30: #{hyperbolic_path_search.1} parent=19 // pred_check_branch
          %238 = sbr.rel (%p236) target = $region32
        $region31: #{hyperbolic_path_search.1} parent=19 // pred_region
          %s239 = smul.u32 4, %s13
          %p240 = scmp.lt.s32.totalorder %s239, 7
          %s241 = scalar_select %p240, %s239, 7
          %s242 = smul.addr %s241, 8
          %s243 = scalar_lea.vmem %s2, %s242
          %s244 = smul.u32 4, %s13
        $region32: #{hyperbolic_path_search.1} parent=19 // pred_fallthru
          _
        // Predicated region
        $region33: #{hyperbolic_path_search.1} parent=19 // pred_check
          %p245 = pneg %p111
        $region34: #{hyperbolic_path_search.1} parent=19 // pred_check_branch
          %247 = sbr.rel (%p245) target = $region36
        $region35: #{hyperbolic_path_search.1} parent=19 // pred_region
          %s248 = smul.u32 4, %s13
          %p249 = scmp.lt.s32.totalorder %s248, 7
          %s250 = scalar_select %p249, %s248, 7
          %s251 = scalar_lea.vmem %s3, %s250
          %s252 = smul.u32 4, %s13
        $region36: #{hyperbolic_path_search.1} parent=19 // pred_fallthru
          _
        // Predicated region
        $region37: #{hyperbolic_path_search.1} parent=19 // pred_check
          %p253 = pneg %p137
        $region38: #{hyperbolic_path_search.1} parent=19 // pred_check_branch
          %255 = sbr.rel (%p253) target = $region40
        $region39: #{hyperbolic_path_search.1} parent=19 // pred_region
          %s256 = smul.u32 4, %s13
          %p257 = scmp.lt.s32.totalorder %s256, 7
          %s258 = scalar_select %p257, %s256, 7
          %s259 = smul.addr %s258, 8
          %s260 = scalar_lea.vmem %s4, %s259
          %s261 = smul.u32 4, %s13
        $region40: #{hyperbolic_path_search.1} parent=19 // pred_fallthru
          _
      $region20: #{hyperbolic_path_search.1} parent=5 // pred_fallthru
        _
      %p262 = scmp.le.s32.totalorder 1, %s13
      %p263 = scmp.lt.s32.totalorder %s13, 3
      %p264 = pnand %p262, %p263
      %p265 = pneg %p264
      // Predicated region
      $region41: #{hyperbolic_path_search.1} parent=5 // pred_check
        _
      $region42: #{hyperbolic_path_search.1} parent=5 // pred_check_branch
        %267 = sbr.rel (%p264) target = $region44
      $region43: #{hyperbolic_path_search.1} parent=5 // pred_region
        %s268 = ssub.s32 %s13, 1
        // Predicated region
        $region45: #{hyperbolic_path_search.1} parent=43 // pred_check
          %p269 = pneg %p164
        $region46: #{hyperbolic_path_search.1} parent=43 // pred_check_branch
          %271 = sbr.rel (%p269) target = $region48
        $region47: #{hyperbolic_path_search.1} parent=43 // pred_region
          %273 = dma.done [#allocation3], 64
        $region48: #{hyperbolic_path_search.1} parent=43 // pred_fallthru
          _
        %274 = sfence
        %s275 = smul.u32 4, %s18
        %p276 = scmp.lt.s32.totalorder %s275, 7
        %s277 = scalar_select %p276, %s275, 7
        %s278 = scalar_lea.vmem %s0, %s277
        %p279 = pneg %p39
        %p280 = pneg %p36
        %s281 = smul.u32 4, %s18
        %p282 = scmp.lt.s32.totalorder %s281, 7
        %s283 = scalar_select %p282, %s281, 7
        %s284 = smul.addr %s283, 8
        %s285 = scalar_lea.vmem %s1, %s284
        %p286 = pneg %p65
        %p287 = pneg %p62
        %s288 = smul.u32 4, %s18
        %p289 = scmp.lt.s32.totalorder %s288, 7
        %s290 = scalar_select %p289, %s288, 7
        %s291 = smul.addr %s290, 8
        %s292 = scalar_lea.vmem %s2, %s291
        %p293 = pneg %p91
        %p294 = pneg %p88
        %s295 = smul.u32 4, %s18
        %p296 = scmp.lt.s32.totalorder %s295, 7
        %s297 = scalar_select %p296, %s295, 7
        %s298 = scalar_lea.vmem %s3, %s297
        %p299 = pneg %p117
        %p300 = pneg %p114
        %s301 = smul.u32 4, %s18
        %p302 = scmp.lt.s32.totalorder %s301, 7
        %s303 = scalar_select %p302, %s301, 7
        %s304 = smul.addr %s303, 8
        %s305 = scalar_lea.vmem %s4, %s304
        %p306 = pneg %p143
        %p307 = pneg %p140
        %p308 = pneg %p164
        %p309 = pneg %p161
        %p310 = pneg %p190
        %p311 = pneg %p187
        %s312 = smul.u32 4, %s18
        %p313 = scmp.lt.s32.totalorder %s312, 7
        %s314 = scalar_select %p313, %s312, 7
        %s315 = scalar_lea.vmem %s6, %s314
        %s316 = smul.u32 4, %s18
        %p317 = scmp.lt.s32.totalorder %s316, 7
        %s318 = scalar_select %p317, %s316, 7
        %s319 = scalar_lea.vmem %s0, %s318
        %s320 = smul.u32 4, %s18
        %s321 = smul.u32 4, %s18
        %p322 = scmp.lt.s32.totalorder %s321, 7
        %s323 = scalar_select %p322, %s321, 7
        %s324 = smul.addr %s323, 8
        %s325 = scalar_lea.vmem %s1, %s324
        %s326 = smul.u32 4, %s18
        %s327 = smul.u32 4, %s18
        %p328 = scmp.lt.s32.totalorder %s327, 7
        %s329 = scalar_select %p328, %s327, 7
        %s330 = smul.addr %s329, 8
        %s331 = scalar_lea.vmem %s2, %s330
        %s332 = smul.u32 4, %s18
        %s333 = smul.u32 4, %s18
        %p334 = scmp.lt.s32.totalorder %s333, 7
        %s335 = scalar_select %p334, %s333, 7
        %s336 = scalar_lea.vmem %s3, %s335
        %s337 = smul.u32 4, %s18
        %s338 = smul.u32 4, %s18
        %p339 = scmp.lt.s32.totalorder %s338, 7
        %s340 = scalar_select %p339, %s338, 7
        %s341 = smul.addr %s340, 8
        %s342 = scalar_lea.vmem %s4, %s341
        %s343 = smul.u32 4, %s18
        %s344 = smul.u32 4, %s18
        %p345 = scmp.lt.s32.totalorder %s344, 7
        %s346 = scalar_select %p345, %s344, 7
        %s347 = scalar_lea.vmem %s6, %s346
        %s348 = smul.u32 4, %s18
        %v349 = vld [vmem:[%s319] sm:$0x1]
        %v350 = vld [vmem:[%s319 + $0x1] sm:$0x1]
        %v351 = vld [vmem:[%s319 + $0x2] sm:$0x1]
        %v352 = vld [vmem:[%s319 + $0x3] sm:$0x1]
        %v353 = vld [vmem:[%s325] sm:$0xff]
        %v354 = vld [vmem:[%s325 + $0x8] sm:$0xff]
        %v355 = vld [vmem:[%s325 + $0x10] sm:$0xff]
        %v356 = vld [vmem:[%s325 + $0x18] sm:$0xff]
        %v357 = vld [vmem:[%s331] sm:$0xff]
        %v358 = vld [vmem:[%s331 + $0x8] sm:$0xff]
        %v359 = vld [vmem:[%s331 + $0x10] sm:$0xff]
        %v360 = vld [vmem:[%s331 + $0x18] sm:$0xff]
        %v361 = vld [vmem:[%s336] sm:$0x1]
        %v362 = vld [vmem:[%s336 + $0x1] sm:$0x1]
        %v363 = vld [vmem:[%s336 + $0x2] sm:$0x1]
        %v364 = vld [vmem:[%s336 + $0x3] sm:$0x1]
        %v365 = vld [vmem:[%s342] sm:$0xff]
        %v366 = vld [vmem:[%s342 + $0x8] sm:$0xff]
        %v367 = vld [vmem:[%s342 + $0x10] sm:$0xff]
        %v368 = vld [vmem:[%s342 + $0x18] sm:$0xff]
        %v369 = vmul.f32 %v353, %v353
        %v370 = vmul.f32 %v354, %v354
        %v371 = vmul.f32 %v355, %v355
        %v372 = vmul.f32 %v356, %v356
        %vm373 = vcmask 31744
        %v374 = vsel %vm373, %v369, 0.0
        %375 = vadd.xlane.f32.xlu0 %v374
        %v376 = vpop.xlane.xlu0 %375
        %v377 = vsel %vm373, %v370, 0.0
        %378 = vadd.xlane.f32.xlu0 %v377
        %v379 = vpop.xlane.xlu0 %378
        %v380 = vsel %vm373, %v371, 0.0
        %381 = vadd.xlane.f32.xlu0 %v380
        %v382 = vpop.xlane.xlu0 %381
        %v383 = vsel %vm373, %v372, 0.0
        %384 = vadd.xlane.f32.xlu0 %v383
        %v385 = vpop.xlane.xlu0 %384
        %v386 = vsub.f32 1.0, %v376
        %v387 = vsub.f32 1.0, %v379
        %v388 = vsub.f32 1.0, %v382
        %v389 = vsub.f32 1.0, %v385
        %v390 = vmax.f32 %v386, 1e-06
        %v391 = vmax.f32 %v387, 1e-06
        %v392 = vmax.f32 %v388, 1e-06
        %v393 = vmax.f32 %v389, 1e-06
        %v394 = vadd.f32 %v376, 1.0
        %v395 = vadd.f32 %v379, 1.0
        %v396 = vadd.f32 %v382, 1.0
        %v397 = vadd.f32 %v385, 1.0
        %v398 = vrcp.pop %v390
        %v399 = vmul.f32 %v390, %v398
        %v400 = vsub.f32 1.0, %v399
        %v401 = vmul.f32 %v398, %v400
        %v402 = vadd.f32 %v398, %v401
        %vm403 = vweird.f32 %v390
        %vm404 = vweird.f32 %v398
        %vm405 = vmor %vm403, %vm404
        %v406 = vsel %vm405, %v398, %v402
        %v407 = vand.u32 2147483647, %v390
        %vm408 = vcmp.eq.f32.partialorder %v407, 8.507059e+37
        %v409 = vand.u32 %v390, 2147483648
        %v410 = vor.u32 1.1754944e-38, %v409
        %v411 = vsel %vm408, %v410, %v406
        %v412 = vmul.f32 %v394, %v411
        %v413 = vrcp.pop %v391
        %v414 = vmul.f32 %v391, %v413
        %v415 = vsub.f32 1.0, %v414
        %v416 = vmul.f32 %v413, %v415
        %v417 = vadd.f32 %v413, %v416
        %vm418 = vweird.f32 %v391
        %vm419 = vweird.f32 %v413
        %vm420 = vmor %vm418, %vm419
        %v421 = vsel %vm420, %v413, %v417
        %v422 = vand.u32 2147483647, %v391
        %vm423 = vcmp.eq.f32.partialorder %v422, 8.507059e+37
        %v424 = vand.u32 %v391, 2147483648
        %v425 = vor.u32 1.1754944e-38, %v424
        %v426 = vsel %vm423, %v425, %v421
        %v427 = vmul.f32 %v395, %v426
        %v428 = vrcp.pop %v392
        %v429 = vmul.f32 %v392, %v428
        %v430 = vsub.f32 1.0, %v429
        %v431 = vmul.f32 %v428, %v430
        %v432 = vadd.f32 %v428, %v431
        %vm433 = vweird.f32 %v392
        %vm434 = vweird.f32 %v428
        %vm435 = vmor %vm433, %vm434
        %v436 = vsel %vm435, %v428, %v432
        %v437 = vand.u32 2147483647, %v392
        %vm438 = vcmp.eq.f32.partialorder %v437, 8.507059e+37
        %v439 = vand.u32 %v392, 2147483648
        %v440 = vor.u32 1.1754944e-38, %v439
        %v441 = vsel %vm438, %v440, %v436
        %v442 = vmul.f32 %v396, %v441
        %v443 = vrcp.pop %v393
        %v444 = vmul.f32 %v393, %v443
        %v445 = vsub.f32 1.0, %v444
        %v446 = vmul.f32 %v443, %v445
        %v447 = vadd.f32 %v443, %v446
        %vm448 = vweird.f32 %v393
        %vm449 = vweird.f32 %v443
        %vm450 = vmor %vm448, %vm449
        %v451 = vsel %vm450, %v443, %v447
        %v452 = vand.u32 2147483647, %v393
        %vm453 = vcmp.eq.f32.partialorder %v452, 8.507059e+37
        %v454 = vand.u32 %v393, 2147483648
        %v455 = vor.u32 1.1754944e-38, %v454
        %v456 = vsel %vm453, %v455, %v451
        %v457 = vmul.f32 %v397, %v456
        %v458 = vmul.f32 %v353, 2.0
        %v459 = vmul.f32 %v354, 2.0
        %v460 = vmul.f32 %v355, 2.0
        %v461 = vmul.f32 %v356, 2.0
        %v462 = vmul.f32 %v458, %v411
        %v463 = vmul.f32 %v459, %v426
        %v464 = vmul.f32 %v460, %v441
        %v465 = vmul.f32 %v461, %v456
        %v466 = vmul.f32 %v357, %v357
        %v467 = vmul.f32 %v358, %v358
        %v468 = vmul.f32 %v359, %v359
        %v469 = vmul.f32 %v360, %v360
        %v470 = vsel %vm373, %v466, 0.0
        %471 = vadd.xlane.f32.xlu0 %v470
        %v472 = vpop.xlane.xlu0 %471
        %v473 = vsel %vm373, %v467, 0.0
        %474 = vadd.xlane.f32.xlu0 %v473
        %v475 = vpop.xlane.xlu0 %474
        %v476 = vsel %vm373, %v468, 0.0
        %477 = vadd.xlane.f32.xlu0 %v476
        %v478 = vpop.xlane.xlu0 %477
        %v479 = vsel %vm373, %v469, 0.0
        %480 = vadd.xlane.f32.xlu0 %v479
        %v481 = vpop.xlane.xlu0 %480
        %v482 = vmul.f32 %v357, 2.0
        %v483 = vmul.f32 %v358, 2.0
        %v484 = vmul.f32 %v359, 2.0
        %v485 = vmul.f32 %v360, 2.0
        %v486 = vadd.f32 %v472, 1.0
        %v487 = vadd.f32 %v475, 1.0
        %v488 = vadd.f32 %v478, 1.0
        %v489 = vadd.f32 %v481, 1.0
        %v490 = vrcp.pop %v486
        %v491 = vmul.f32 %v486, %v490
        %v492 = vsub.f32 1.0, %v491
        %v493 = vmul.f32 %v490, %v492
        %v494 = vadd.f32 %v490, %v493
        %vm495 = vweird.f32 %v486
        %vm496 = vweird.f32 %v490
        %vm497 = vmor %vm495, %vm496
        %v498 = vsel %vm497, %v490, %v494
        %v499 = vand.u32 2147483647, %v486
        %vm500 = vcmp.eq.f32.partialorder %v499, 8.507059e+37
        %v501 = vand.u32 %v486, 2147483648
        %v502 = vor.u32 1.1754944e-38, %v501
        %v503 = vsel %vm500, %v502, %v498
        %v504 = vmul.f32 %v482, %v503
        %v505 = vrcp.pop %v487
        %v506 = vmul.f32 %v487, %v505
        %v507 = vsub.f32 1.0, %v506
        %v508 = vmul.f32 %v505, %v507
        %v509 = vadd.f32 %v505, %v508
        %vm510 = vweird.f32 %v487
        %vm511 = vweird.f32 %v505
        %vm512 = vmor %vm510, %vm511
        %v513 = vsel %vm512, %v505, %v509
        %v514 = vand.u32 2147483647, %v487
        %vm515 = vcmp.eq.f32.partialorder %v514, 8.507059e+37
        %v516 = vand.u32 %v487, 2147483648
        %v517 = vor.u32 1.1754944e-38, %v516
        %v518 = vsel %vm515, %v517, %v513
        %v519 = vmul.f32 %v483, %v518
        %v520 = vrcp.pop %v488
        %v521 = vmul.f32 %v488, %v520
        %v522 = vsub.f32 1.0, %v521
        %v523 = vmul.f32 %v520, %v522
        %v524 = vadd.f32 %v520, %v523
        %vm525 = vweird.f32 %v488
        %vm526 = vweird.f32 %v520
        %vm527 = vmor %vm525, %vm526
        %v528 = vsel %vm527, %v520, %v524
        %v529 = vand.u32 2147483647, %v488
        %vm530 = vcmp.eq.f32.partialorder %v529, 8.507059e+37
        %v531 = vand.u32 %v488, 2147483648
        %v532 = vor.u32 1.1754944e-38, %v531
        %v533 = vsel %vm530, %v532, %v528
        %v534 = vmul.f32 %v484, %v533
        %v535 = vrcp.pop %v489
        %v536 = vmul.f32 %v489, %v535
        %v537 = vsub.f32 1.0, %v536
        %v538 = vmul.f32 %v535, %v537
        %v539 = vadd.f32 %v535, %v538
        %vm540 = vweird.f32 %v489
        %vm541 = vweird.f32 %v535
        %vm542 = vmor %vm540, %vm541
        %v543 = vsel %vm542, %v535, %v539
        %v544 = vand.u32 2147483647, %v489
        %vm545 = vcmp.eq.f32.partialorder %v544, 8.507059e+37
        %v546 = vand.u32 %v489, 2147483648
        %v547 = vor.u32 1.1754944e-38, %v546
        %v548 = vsel %vm545, %v547, %v543
        %v549 = vmul.f32 %v485, %v548
        %v550 = vmul.f32 %v504, %v504
        %v551 = vmul.f32 %v519, %v519
        %v552 = vmul.f32 %v534, %v534
        %v553 = vmul.f32 %v549, %v549
        %v554 = vsel %vm373, %v550, 0.0
        %555 = vadd.xlane.f32.xlu0 %v554
        %v556 = vpop.xlane.xlu0 %555
        %v557 = vsel %vm373, %v551, 0.0
        %558 = vadd.xlane.f32.xlu0 %v557
        %v559 = vpop.xlane.xlu0 %558
        %v560 = vsel %vm373, %v552, 0.0
        %561 = vadd.xlane.f32.xlu0 %v560
        %v562 = vpop.xlane.xlu0 %561
        %v563 = vsel %vm373, %v553, 0.0
        %564 = vadd.xlane.f32.xlu0 %v563
        %v565 = vpop.xlane.xlu0 %564
        %v566 = vsub.f32 1.0, %v556
        %v567 = vsub.f32 1.0, %v559
        %v568 = vsub.f32 1.0, %v562
        %v569 = vsub.f32 1.0, %v565
        %v570 = vmax.f32 %v566, 1e-06
        %v571 = vmax.f32 %v567, 1e-06
        %v572 = vmax.f32 %v568, 1e-06
        %v573 = vmax.f32 %v569, 1e-06
        %v574 = vrsqrt.pop %v570
        %v575 = vmul.f32 %v574, %v570
        %v576 = vmul.f32 %v575, %v574
        %v577 = vmul.f32 0.5, %v576
        %v578 = vsub.f32 1.5, %v577
        %v579 = vmul.f32 %v574, %v578
        %vm580 = vweird.f32 %v570
        %vm581 = vweird.f32 %v574
        %vm582 = vmor %vm580, %vm581
        %v583 = vsel %vm582, %v574, %v579
        %v584 = vrsqrt.pop %v571
        %v585 = vmul.f32 %v584, %v571
        %v586 = vmul.f32 %v585, %v584
        %v587 = vmul.f32 0.5, %v586
        %v588 = vsub.f32 1.5, %v587
        %v589 = vmul.f32 %v584, %v588
        %vm590 = vweird.f32 %v571
        %vm591 = vweird.f32 %v584
        %vm592 = vmor %vm590, %vm591
        %v593 = vsel %vm592, %v584, %v589
        %v594 = vrsqrt.pop %v572
        %v595 = vmul.f32 %v594, %v572
        %v596 = vmul.f32 %v595, %v594
        %v597 = vmul.f32 0.5, %v596
        %v598 = vsub.f32 1.5, %v597
        %v599 = vmul.f32 %v594, %v598
        %vm600 = vweird.f32 %v572
        %vm601 = vweird.f32 %v594
        %vm602 = vmor %vm600, %vm601
        %v603 = vsel %vm602, %v594, %v599
        %v604 = vrsqrt.pop %v573
        %v605 = vmul.f32 %v604, %v573
        %v606 = vmul.f32 %v605, %v604
        %v607 = vmul.f32 0.5, %v606
        %v608 = vsub.f32 1.5, %v607
        %v609 = vmul.f32 %v604, %v608
        %vm610 = vweird.f32 %v573
        %vm611 = vweird.f32 %v604
        %vm612 = vmor %vm610, %vm611
        %v613 = vsel %vm612, %v604, %v609
        %v614 = vmul.f32 %v583, %v504
        %v615 = vmul.f32 %v593, %v519
        %v616 = vmul.f32 %v603, %v534
        %v617 = vmul.f32 %v613, %v549
        %v618 = vmul.f32 %v349, %v349
        %v619 = vmul.f32 %v350, %v350
        %v620 = vmul.f32 %v351, %v351
        %v621 = vmul.f32 %v352, %v352
        %vm622 = vcmask 24576
        %v623 = vsel %vm622, %v618, 0.0
        %624 = vadd.xlane.f32.xlu0 %v623
        %v625 = vpop.xlane.xlu0 %624
        %v626 = vsel %vm622, %v619, 0.0
        %627 = vadd.xlane.f32.xlu0 %v626
        %v628 = vpop.xlane.xlu0 %627
        %v629 = vsel %vm622, %v620, 0.0
        %630 = vadd.xlane.f32.xlu0 %v629
        %v631 = vpop.xlane.xlu0 %630
        %v632 = vsel %vm622, %v621, 0.0
        %633 = vadd.xlane.f32.xlu0 %v632
        %v634 = vpop.xlane.xlu0 %633
        %v635 = vsub.f32 1.0, %v625
        %v636 = vsub.f32 1.0, %v628
        %v637 = vsub.f32 1.0, %v631
        %v638 = vsub.f32 1.0, %v634
        %v639 = vmax.f32 %v635, 1e-06
        %v640 = vmax.f32 %v636, 1e-06
        %v641 = vmax.f32 %v637, 1e-06
        %v642 = vmax.f32 %v638, 1e-06
        %v643 = vadd.f32 %v625, 1.0
        %v644 = vadd.f32 %v628, 1.0
        %v645 = vadd.f32 %v631, 1.0
        %v646 = vadd.f32 %v634, 1.0
        %v647 = vrcp.pop %v639
        %v648 = vmul.f32 %v639, %v647
        %v649 = vsub.f32 1.0, %v648
        %v650 = vmul.f32 %v647, %v649
        %v651 = vadd.f32 %v647, %v650
        %vm652 = vweird.f32 %v639
        %vm653 = vweird.f32 %v647
        %vm654 = vmor %vm652, %vm653
        %v655 = vsel %vm654, %v647, %v651
        %v656 = vand.u32 2147483647, %v639
        %vm657 = vcmp.eq.f32.partialorder %v656, 8.507059e+37
        %v658 = vand.u32 %v639, 2147483648
        %v659 = vor.u32 1.1754944e-38, %v658
        %v660 = vsel %vm657, %v659, %v655
        %v661 = vmul.f32 %v643, %v660
        %v662 = vrcp.pop %v640
        %v663 = vmul.f32 %v640, %v662
        %v664 = vsub.f32 1.0, %v663
        %v665 = vmul.f32 %v662, %v664
        %v666 = vadd.f32 %v662, %v665
        %vm667 = vweird.f32 %v640
        %vm668 = vweird.f32 %v662
        %vm669 = vmor %vm667, %vm668
        %v670 = vsel %vm669, %v662, %v666
        %v671 = vand.u32 2147483647, %v640
        %vm672 = vcmp.eq.f32.partialorder %v671, 8.507059e+37
        %v673 = vand.u32 %v640, 2147483648
        %v674 = vor.u32 1.1754944e-38, %v673
        %v675 = vsel %vm672, %v674, %v670
        %v676 = vmul.f32 %v644, %v675
        %v677 = vrcp.pop %v641
        %v678 = vmul.f32 %v641, %v677
        %v679 = vsub.f32 1.0, %v678
        %v680 = vmul.f32 %v677, %v679
        %v681 = vadd.f32 %v677, %v680
        %vm682 = vweird.f32 %v641
        %vm683 = vweird.f32 %v677
        %vm684 = vmor %vm682, %vm683
        %v685 = vsel %vm684, %v677, %v681
        %v686 = vand.u32 2147483647, %v641
        %vm687 = vcmp.eq.f32.partialorder %v686, 8.507059e+37
        %v688 = vand.u32 %v641, 2147483648
        %v689 = vor.u32 1.1754944e-38, %v688
        %v690 = vsel %vm687, %v689, %v685
        %v691 = vmul.f32 %v645, %v690
        %v692 = vrcp.pop %v642
        %v693 = vmul.f32 %v642, %v692
        %v694 = vsub.f32 1.0, %v693
        %v695 = vmul.f32 %v692, %v694
        %v696 = vadd.f32 %v692, %v695
        %vm697 = vweird.f32 %v642
        %vm698 = vweird.f32 %v692
        %vm699 = vmor %vm697, %vm698
        %v700 = vsel %vm699, %v692, %v696
        %v701 = vand.u32 2147483647, %v642
        %vm702 = vcmp.eq.f32.partialorder %v701, 8.507059e+37
        %v703 = vand.u32 %v642, 2147483648
        %v704 = vor.u32 1.1754944e-38, %v703
        %v705 = vsel %vm702, %v704, %v700
        %v706 = vmul.f32 %v646, %v705
        %v707 = vmul.f32 %v349, 2.0
        %v708 = vmul.f32 %v350, 2.0
        %v709 = vmul.f32 %v351, 2.0
        %v710 = vmul.f32 %v352, 2.0
        %v711 = vmul.f32 %v707, %v660
        %v712 = vmul.f32 %v708, %v675
        %v713 = vmul.f32 %v709, %v690
        %v714 = vmul.f32 %v710, %v705
        %v719 = vperm.slane %v711, 0
        %v720 = vperm.slane %v712, 0
        %v721 = vperm.slane %v713, 0
        %v722 = vperm.slane %v714, 0
        %v727 = vmul.f32 %v719, %v462
        %v728 = vmul.f32 %v720, %v463
        %v729 = vmul.f32 %v721, %v464
        %v730 = vmul.f32 %v722, %v465
        %v731 = vsel %vm373, %v727, 0.0
        %732 = vadd.xlane.f32.xlu0 %v731
        %v733 = vpop.xlane.xlu0 %732
        %v734 = vsel %vm373, %v728, 0.0
        %735 = vadd.xlane.f32.xlu0 %v734
        %v736 = vpop.xlane.xlu0 %735
        %v737 = vsel %vm373, %v729, 0.0
        %738 = vadd.xlane.f32.xlu0 %v737
        %v739 = vpop.xlane.xlu0 %738
        %v740 = vsel %vm373, %v730, 0.0
        %741 = vadd.xlane.f32.xlu0 %v740
        %v742 = vpop.xlane.xlu0 %741
        %v743 = vperm.slane %v661, 0
        %v744 = vperm.slane %v676, 0
        %v745 = vperm.slane %v691, 0
        %v746 = vperm.slane %v706, 0
        %v747 = vmul.f32 %v743, %v412
        %v748 = vmul.f32 %v744, %v427
        %v749 = vmul.f32 %v745, %v442
        %v750 = vmul.f32 %v746, %v457
        %v751 = vsub.f32 %v733, %v747
        %v752 = vsub.f32 %v736, %v748
        %v753 = vsub.f32 %v739, %v749
        %v754 = vsub.f32 %v742, %v750
        %v755 = vsub.f32 0.0, %v751
        %v756 = vsub.f32 0.0, %v752
        %v757 = vsub.f32 0.0, %v753
        %v758 = vsub.f32 0.0, %v754
        %v759 = vsub.f32 %v755, 1.0
        %v760 = vsub.f32 %v756, 1.0
        %v761 = vsub.f32 %v757, 1.0
        %v762 = vsub.f32 %v758, 1.0
        %v763 = vmax.f32 %v759, 1e-06
        %v764 = vmax.f32 %v760, 1e-06
        %v765 = vmax.f32 %v761, 1e-06
        %v766 = vmax.f32 %v762, 1e-06
        %v767 = vadd.f32 %v763, 1.0
        %v768 = vadd.f32 %v764, 1.0
        %v769 = vadd.f32 %v765, 1.0
        %v770 = vadd.f32 %v766, 1.0
        %v771 = vadd.f32 %v763, 2.0
        %v772 = vadd.f32 %v764, 2.0
        %v773 = vadd.f32 %v765, 2.0
        %v774 = vadd.f32 %v766, 2.0
        %v775 = vmul.f32 %v763, %v771
        %v776 = vmul.f32 %v764, %v772
        %v777 = vmul.f32 %v765, %v773
        %v778 = vmul.f32 %v766, %v774
        %v779 = vrsqrt.pop %v775
        %v780 = vmul.f32 %v779, %v775
        %v781 = vmul.f32 %v780, %v779
        %v782 = vmul.f32 0.5, %v781
        %v783 = vsub.f32 1.5, %v782
        %v784 = vmul.f32 %v779, %v783
        %v785 = vmul.f32 %v775, %v784
        %vm786 = vcmp.eq.f32.partialorder %v775, inf
        %v787 = vsel %vm786, %v775, %v785
        %vm788 = vcmp.eq.f32.partialorder %v775, 0.0
        %v789 = vand.u32 %v775, 2147483648
        %v790 = vsel %vm788, %v789, %v787
        %v791 = vrsqrt.pop %v776
        %v792 = vmul.f32 %v791, %v776
        %v793 = vmul.f32 %v792, %v791
        %v794 = vmul.f32 0.5, %v793
        %v795 = vsub.f32 1.5, %v794
        %v796 = vmul.f32 %v791, %v795
        %v797 = vmul.f32 %v776, %v796
        %vm798 = vcmp.eq.f32.partialorder %v776, inf
        %v799 = vsel %vm798, %v776, %v797
        %vm800 = vcmp.eq.f32.partialorder %v776, 0.0
        %v801 = vand.u32 %v776, 2147483648
        %v802 = vsel %vm800, %v801, %v799
        %v803 = vrsqrt.pop %v777
        %v804 = vmul.f32 %v803, %v777
        %v805 = vmul.f32 %v804, %v803
        %v806 = vmul.f32 0.5, %v805
        %v807 = vsub.f32 1.5, %v806
        %v808 = vmul.f32 %v803, %v807
        %v809 = vmul.f32 %v777, %v808
        %vm810 = vcmp.eq.f32.partialorder %v777, inf
        %v811 = vsel %vm810, %v777, %v809
        %vm812 = vcmp.eq.f32.partialorder %v777, 0.0
        %v813 = vand.u32 %v777, 2147483648
        %v814 = vsel %vm812, %v813, %v811
        %v815 = vrsqrt.pop %v778
        %v816 = vmul.f32 %v815, %v778
        %v817 = vmul.f32 %v816, %v815
        %v818 = vmul.f32 0.5, %v817
        %v819 = vsub.f32 1.5, %v818
        %v820 = vmul.f32 %v815, %v819
        %v821 = vmul.f32 %v778, %v820
        %vm822 = vcmp.eq.f32.partialorder %v778, inf
        %v823 = vsel %vm822, %v778, %v821
        %vm824 = vcmp.eq.f32.partialorder %v778, 0.0
        %v825 = vand.u32 %v778, 2147483648
        %v826 = vsel %vm824, %v825, %v823
        %v827 = vadd.f32 %v767, %v790
        %v828 = vadd.f32 %v768, %v802
        %v829 = vadd.f32 %v769, %v814
        %v830 = vadd.f32 %v770, %v826
        %v831 = vlog2.pop %v827
        %v832 = vmul.f32 %v831, 0.6931472
        %v833 = vlog2.pop %v828
        %v834 = vmul.f32 %v833, 0.6931472
        %v835 = vlog2.pop %v829
        %v836 = vmul.f32 %v835, 0.6931472
        %v837 = vlog2.pop %v830
        %v838 = vmul.f32 %v837, 0.6931472
        %s839 = sld [smem:[#allocation2]]
        %v840 = vstv %s839
        %v841 = vmul.f32 %v832, %v840
        %v842 = vmul.f32 %v834, %v840
        %v843 = vmul.f32 %v836, %v840
        %v844 = vmul.f32 %v838, %v840
        %s845 = sld [smem:[#allocation2 + $0x8]]
        %v846 = vstv %s845
        %v847 = vadd.f32 %v841, %v846
        %v848 = vadd.f32 %v842, %v846
        %v849 = vadd.f32 %v843, %v846
        %v850 = vadd.f32 %v844, %v846
        %v851 = vmax.f32 %v847, 0.0
        %v852 = vmax.f32 %v848, 0.0
        %v853 = vmax.f32 %v849, 0.0
        %v854 = vmax.f32 %v850, 0.0
        %s855 = sld [smem:[#allocation2 + $0x1]]
        %v856 = vstv %s855
        %v857 = vmul.f32 %v832, %v856
        %v858 = vmul.f32 %v834, %v856
        %v859 = vmul.f32 %v836, %v856
        %v860 = vmul.f32 %v838, %v856
        %s861 = sld [smem:[#allocation2 + $0x9]]
        %v862 = vstv %s861
        %v863 = vadd.f32 %v857, %v862
        %v864 = vadd.f32 %v858, %v862
        %v865 = vadd.f32 %v859, %v862
        %v866 = vadd.f32 %v860, %v862
        %v867 = vmax.f32 %v863, 0.0
        %v868 = vmax.f32 %v864, 0.0
        %v869 = vmax.f32 %v865, 0.0
        %v870 = vmax.f32 %v866, 0.0
        %s871 = sld [smem:[#allocation2 + $0x2]]
        %v872 = vstv %s871
        %v873 = vmul.f32 %v832, %v872
        %v874 = vmul.f32 %v834, %v872
        %v875 = vmul.f32 %v836, %v872
        %v876 = vmul.f32 %v838, %v872
        %s877 = sld [smem:[#allocation2 + $0xa]]
        %v878 = vstv %s877
        %v879 = vadd.f32 %v873, %v878
        %v880 = vadd.f32 %v874, %v878
        %v881 = vadd.f32 %v875, %v878
        %v882 = vadd.f32 %v876, %v878
        %v883 = vmax.f32 %v879, 0.0
        %v884 = vmax.f32 %v880, 0.0
        %v885 = vmax.f32 %v881, 0.0
        %v886 = vmax.f32 %v882, 0.0
        %s887 = sld [smem:[#allocation2 + $0x3]]
        %v888 = vstv %s887
        %v889 = vmul.f32 %v832, %v888
        %v890 = vmul.f32 %v834, %v888
        %v891 = vmul.f32 %v836, %v888
        %v892 = vmul.f32 %v838, %v888
        %s893 = sld [smem:[#allocation2 + $0xb]]
        %v894 = vstv %s893
        %v895 = vadd.f32 %v889, %v894
        %v896 = vadd.f32 %v890, %v894
        %v897 = vadd.f32 %v891, %v894
        %v898 = vadd.f32 %v892, %v894
        %v899 = vmax.f32 %v895, 0.0
        %v900 = vmax.f32 %v896, 0.0
        %v901 = vmax.f32 %v897, 0.0
        %v902 = vmax.f32 %v898, 0.0
        %s903 = sld [smem:[#allocation2 + $0x4]]
        %v904 = vstv %s903
        %v905 = vmul.f32 %v832, %v904
        %v906 = vmul.f32 %v834, %v904
        %v907 = vmul.f32 %v836, %v904
        %v908 = vmul.f32 %v838, %v904
        %s909 = sld [smem:[#allocation2 + $0xc]]
        %v910 = vstv %s909
        %v911 = vadd.f32 %v905, %v910
        %v912 = vadd.f32 %v906, %v910
        %v913 = vadd.f32 %v907, %v910
        %v914 = vadd.f32 %v908, %v910
        %v915 = vmax.f32 %v911, 0.0
        %v916 = vmax.f32 %v912, 0.0
        %v917 = vmax.f32 %v913, 0.0
        %v918 = vmax.f32 %v914, 0.0
        %s919 = sld [smem:[#allocation2 + $0x5]]
        %v920 = vstv %s919
        %v921 = vmul.f32 %v832, %v920
        %v922 = vmul.f32 %v834, %v920
        %v923 = vmul.f32 %v836, %v920
        %v924 = vmul.f32 %v838, %v920
        %s925 = sld [smem:[#allocation2 + $0xd]]
        %v926 = vstv %s925
        %v927 = vadd.f32 %v921, %v926
        %v928 = vadd.f32 %v922, %v926
        %v929 = vadd.f32 %v923, %v926
        %v930 = vadd.f32 %v924, %v926
        %v931 = vmax.f32 %v927, 0.0
        %v932 = vmax.f32 %v928, 0.0
        %v933 = vmax.f32 %v929, 0.0
        %v934 = vmax.f32 %v930, 0.0
        %s935 = sld [smem:[#allocation2 + $0x6]]
        %v936 = vstv %s935
        %v937 = vmul.f32 %v832, %v936
        %v938 = vmul.f32 %v834, %v936
        %v939 = vmul.f32 %v836, %v936
        %v940 = vmul.f32 %v838, %v936
        %s941 = sld [smem:[#allocation2 + $0xe]]
        %v942 = vstv %s941
        %v943 = vadd.f32 %v937, %v942
        %v944 = vadd.f32 %v938, %v942
        %v945 = vadd.f32 %v939, %v942
        %v946 = vadd.f32 %v940, %v942
        %v947 = vmax.f32 %v943, 0.0
        %v948 = vmax.f32 %v944, 0.0
        %v949 = vmax.f32 %v945, 0.0
        %v950 = vmax.f32 %v946, 0.0
        %s951 = sld [smem:[#allocation2 + $0x7]]
        %v952 = vstv %s951
        %v953 = vmul.f32 %v832, %v952
        %v954 = vmul.f32 %v834, %v952
        %v955 = vmul.f32 %v836, %v952
        %v956 = vmul.f32 %v838, %v952
        %s957 = sld [smem:[#allocation2 + $0xf]]
        %v958 = vstv %s957
        %v959 = vadd.f32 %v953, %v958
        %v960 = vadd.f32 %v954, %v958
        %v961 = vadd.f32 %v955, %v958
        %v962 = vadd.f32 %v956, %v958
        %v963 = vmax.f32 %v959, 0.0
        %v964 = vmax.f32 %v960, 0.0
        %v965 = vmax.f32 %v961, 0.0
        %v966 = vmax.f32 %v962, 0.0
        %s967 = sld [smem:[#allocation2 + $0x10]]
        %v968 = vstv %s967
        %v969 = vmul.f32 %v851, %v968
        %v970 = vmul.f32 %v852, %v968
        %v971 = vmul.f32 %v853, %v968
        %v972 = vmul.f32 %v854, %v968
        %s973 = sld [smem:[#allocation2 + $0x18]]
        %v974 = vstv %s973
        %v975 = vmul.f32 %v867, %v974
        %v976 = vmul.f32 %v868, %v974
        %v977 = vmul.f32 %v869, %v974
        %v978 = vmul.f32 %v870, %v974
        %v979 = vadd.f32 %v969, %v975
        %v980 = vadd.f32 %v970, %v976
        %v981 = vadd.f32 %v971, %v977
        %v982 = vadd.f32 %v972, %v978
        %s983 = sld [smem:[#allocation2 + $0x20]]
        %v984 = vstv %s983
        %v985 = vmul.f32 %v883, %v984
        %v986 = vmul.f32 %v884, %v984
        %v987 = vmul.f32 %v885, %v984
        %v988 = vmul.f32 %v886, %v984
        %v989 = vadd.f32 %v979, %v985
        %v990 = vadd.f32 %v980, %v986
        %v991 = vadd.f32 %v981, %v987
        %v992 = vadd.f32 %v982, %v988
        %s993 = sld [smem:[#allocation2 + $0x28]]
        %v994 = vstv %s993
        %v995 = vmul.f32 %v899, %v994
        %v996 = vmul.f32 %v900, %v994
        %v997 = vmul.f32 %v901, %v994
        %v998 = vmul.f32 %v902, %v994
        %v999 = vadd.f32 %v989, %v995
        %v1000 = vadd.f32 %v990, %v996
        %v1001 = vadd.f32 %v991, %v997
        %v1002 = vadd.f32 %v992, %v998
        %s1003 = sld [smem:[#allocation2 + $0x30]]
        %v1004 = vstv %s1003
        %v1005 = vmul.f32 %v915, %v1004
        %v1006 = vmul.f32 %v916, %v1004
        %v1007 = vmul.f32 %v917, %v1004
        %v1008 = vmul.f32 %v918, %v1004
        %v1009 = vadd.f32 %v999, %v1005
        %v1010 = vadd.f32 %v1000, %v1006
        %v1011 = vadd.f32 %v1001, %v1007
        %v1012 = vadd.f32 %v1002, %v1008
        %s1013 = sld [smem:[#allocation2 + $0x38]]
        %v1014 = vstv %s1013
        %v1015 = vmul.f32 %v931, %v1014
        %v1016 = vmul.f32 %v932, %v1014
        %v1017 = vmul.f32 %v933, %v1014
        %v1018 = vmul.f32 %v934, %v1014
        %v1019 = vadd.f32 %v1009, %v1015
        %v1020 = vadd.f32 %v1010, %v1016
        %v1021 = vadd.f32 %v1011, %v1017
        %v1022 = vadd.f32 %v1012, %v1018
        %s1023 = sld [smem:[#allocation2 + $0x40]]
        %v1024 = vstv %s1023
        %v1025 = vmul.f32 %v947, %v1024
        %v1026 = vmul.f32 %v948, %v1024
        %v1027 = vmul.f32 %v949, %v1024
        %v1028 = vmul.f32 %v950, %v1024
        %v1029 = vadd.f32 %v1019, %v1025
        %v1030 = vadd.f32 %v1020, %v1026
        %v1031 = vadd.f32 %v1021, %v1027
        %v1032 = vadd.f32 %v1022, %v1028
        %s1033 = sld [smem:[#allocation2 + $0x48]]
        %v1034 = vstv %s1033
        %v1035 = vmul.f32 %v963, %v1034
        %v1036 = vmul.f32 %v964, %v1034
        %v1037 = vmul.f32 %v965, %v1034
        %v1038 = vmul.f32 %v966, %v1034
        %v1039 = vadd.f32 %v1029, %v1035
        %v1040 = vadd.f32 %v1030, %v1036
        %v1041 = vadd.f32 %v1031, %v1037
        %v1042 = vadd.f32 %v1032, %v1038
        %s1043 = sld [smem:[#allocation2 + $0x50]]
        %v1044 = vstv %s1043
        %v1045 = vadd.f32 %v1039, %v1044
        %v1046 = vadd.f32 %v1040, %v1044
        %v1047 = vadd.f32 %v1041, %v1044
        %v1048 = vadd.f32 %v1042, %v1044
        %v1049 = vmax.f32 %v1045, 0.0
        %v1050 = vmax.f32 %v1046, 0.0
        %v1051 = vmax.f32 %v1047, 0.0
        %v1052 = vmax.f32 %v1048, 0.0
        %s1053 = sld [smem:[#allocation2 + $0x11]]
        %v1054 = vstv %s1053
        %v1055 = vmul.f32 %v851, %v1054
        %v1056 = vmul.f32 %v852, %v1054
        %v1057 = vmul.f32 %v853, %v1054
        %v1058 = vmul.f32 %v854, %v1054
        %s1059 = sld [smem:[#allocation2 + $0x19]]
        %v1060 = vstv %s1059
        %v1061 = vmul.f32 %v867, %v1060
        %v1062 = vmul.f32 %v868, %v1060
        %v1063 = vmul.f32 %v869, %v1060
        %v1064 = vmul.f32 %v870, %v1060
        %v1065 = vadd.f32 %v1055, %v1061
        %v1066 = vadd.f32 %v1056, %v1062
        %v1067 = vadd.f32 %v1057, %v1063
        %v1068 = vadd.f32 %v1058, %v1064
        %s1069 = sld [smem:[#allocation2 + $0x21]]
        %v1070 = vstv %s1069
        %v1071 = vmul.f32 %v883, %v1070
        %v1072 = vmul.f32 %v884, %v1070
        %v1073 = vmul.f32 %v885, %v1070
        %v1074 = vmul.f32 %v886, %v1070
        %v1075 = vadd.f32 %v1065, %v1071
        %v1076 = vadd.f32 %v1066, %v1072
        %v1077 = vadd.f32 %v1067, %v1073
        %v1078 = vadd.f32 %v1068, %v1074
        %s1079 = sld [smem:[#allocation2 + $0x29]]
        %v1080 = vstv %s1079
        %v1081 = vmul.f32 %v899, %v1080
        %v1082 = vmul.f32 %v900, %v1080
        %v1083 = vmul.f32 %v901, %v1080
        %v1084 = vmul.f32 %v902, %v1080
        %v1085 = vadd.f32 %v1075, %v1081
        %v1086 = vadd.f32 %v1076, %v1082
        %v1087 = vadd.f32 %v1077, %v1083
        %v1088 = vadd.f32 %v1078, %v1084
        %s1089 = sld [smem:[#allocation2 + $0x31]]
        %v1090 = vstv %s1089
        %v1091 = vmul.f32 %v915, %v1090
        %v1092 = vmul.f32 %v916, %v1090
        %v1093 = vmul.f32 %v917, %v1090
        %v1094 = vmul.f32 %v918, %v1090
        %v1095 = vadd.f32 %v1085, %v1091
        %v1096 = vadd.f32 %v1086, %v1092
        %v1097 = vadd.f32 %v1087, %v1093
        %v1098 = vadd.f32 %v1088, %v1094
        %s1099 = sld [smem:[#allocation2 + $0x39]]
        %v1100 = vstv %s1099
        %v1101 = vmul.f32 %v931, %v1100
        %v1102 = vmul.f32 %v932, %v1100
        %v1103 = vmul.f32 %v933, %v1100
        %v1104 = vmul.f32 %v934, %v1100
        %v1105 = vadd.f32 %v1095, %v1101
        %v1106 = vadd.f32 %v1096, %v1102
        %v1107 = vadd.f32 %v1097, %v1103
        %v1108 = vadd.f32 %v1098, %v1104
        %s1109 = sld [smem:[#allocation2 + $0x41]]
        %v1110 = vstv %s1109
        %v1111 = vmul.f32 %v947, %v1110
        %v1112 = vmul.f32 %v948, %v1110
        %v1113 = vmul.f32 %v949, %v1110
        %v1114 = vmul.f32 %v950, %v1110
        %v1115 = vadd.f32 %v1105, %v1111
        %v1116 = vadd.f32 %v1106, %v1112
        %v1117 = vadd.f32 %v1107, %v1113
        %v1118 = vadd.f32 %v1108, %v1114
        %s1119 = sld [smem:[#allocation2 + $0x49]]
        %v1120 = vstv %s1119
        %v1121 = vmul.f32 %v963, %v1120
        %v1122 = vmul.f32 %v964, %v1120
        %v1123 = vmul.f32 %v965, %v1120
        %v1124 = vmul.f32 %v966, %v1120
        %v1125 = vadd.f32 %v1115, %v1121
        %v1126 = vadd.f32 %v1116, %v1122
        %v1127 = vadd.f32 %v1117, %v1123
        %v1128 = vadd.f32 %v1118, %v1124
        %s1129 = sld [smem:[#allocation2 + $0x51]]
        %v1130 = vstv %s1129
        %v1131 = vadd.f32 %v1125, %v1130
        %v1132 = vadd.f32 %v1126, %v1130
        %v1133 = vadd.f32 %v1127, %v1130
        %v1134 = vadd.f32 %v1128, %v1130
        %v1135 = vmax.f32 %v1131, 0.0
        %v1136 = vmax.f32 %v1132, 0.0
        %v1137 = vmax.f32 %v1133, 0.0
        %v1138 = vmax.f32 %v1134, 0.0
        %s1139 = sld [smem:[#allocation2 + $0x12]]
        %v1140 = vstv %s1139
        %v1141 = vmul.f32 %v851, %v1140
        %v1142 = vmul.f32 %v852, %v1140
        %v1143 = vmul.f32 %v853, %v1140
        %v1144 = vmul.f32 %v854, %v1140
        %s1145 = sld [smem:[#allocation2 + $0x1a]]
        %v1146 = vstv %s1145
        %v1147 = vmul.f32 %v867, %v1146
        %v1148 = vmul.f32 %v868, %v1146
        %v1149 = vmul.f32 %v869, %v1146
        %v1150 = vmul.f32 %v870, %v1146
        %v1151 = vadd.f32 %v1141, %v1147
        %v1152 = vadd.f32 %v1142, %v1148
        %v1153 = vadd.f32 %v1143, %v1149
        %v1154 = vadd.f32 %v1144, %v1150
        %s1155 = sld [smem:[#allocation2 + $0x22]]
        %v1156 = vstv %s1155
        %v1157 = vmul.f32 %v883, %v1156
        %v1158 = vmul.f32 %v884, %v1156
        %v1159 = vmul.f32 %v885, %v1156
        %v1160 = vmul.f32 %v886, %v1156
        %v1161 = vadd.f32 %v1151, %v1157
        %v1162 = vadd.f32 %v1152, %v1158
        %v1163 = vadd.f32 %v1153, %v1159
        %v1164 = vadd.f32 %v1154, %v1160
        %s1165 = sld [smem:[#allocation2 + $0x2a]]
        %v1166 = vstv %s1165
        %v1167 = vmul.f32 %v899, %v1166
        %v1168 = vmul.f32 %v900, %v1166
        %v1169 = vmul.f32 %v901, %v1166
        %v1170 = vmul.f32 %v902, %v1166
        %v1171 = vadd.f32 %v1161, %v1167
        %v1172 = vadd.f32 %v1162, %v1168
        %v1173 = vadd.f32 %v1163, %v1169
        %v1174 = vadd.f32 %v1164, %v1170
        %s1175 = sld [smem:[#allocation2 + $0x32]]
        %v1176 = vstv %s1175
        %v1177 = vmul.f32 %v915, %v1176
        %v1178 = vmul.f32 %v916, %v1176
        %v1179 = vmul.f32 %v917, %v1176
        %v1180 = vmul.f32 %v918, %v1176
        %v1181 = vadd.f32 %v1171, %v1177
        %v1182 = vadd.f32 %v1172, %v1178
        %v1183 = vadd.f32 %v1173, %v1179
        %v1184 = vadd.f32 %v1174, %v1180
        %s1185 = sld [smem:[#allocation2 + $0x3a]]
        %v1186 = vstv %s1185
        %v1187 = vmul.f32 %v931, %v1186
        %v1188 = vmul.f32 %v932, %v1186
        %v1189 = vmul.f32 %v933, %v1186
        %v1190 = vmul.f32 %v934, %v1186
        %v1191 = vadd.f32 %v1181, %v1187
        %v1192 = vadd.f32 %v1182, %v1188
        %v1193 = vadd.f32 %v1183, %v1189
        %v1194 = vadd.f32 %v1184, %v1190
        %s1195 = sld [smem:[#allocation2 + $0x42]]
        %v1196 = vstv %s1195
        %v1197 = vmul.f32 %v947, %v1196
        %v1198 = vmul.f32 %v948, %v1196
        %v1199 = vmul.f32 %v949, %v1196
        %v1200 = vmul.f32 %v950, %v1196
        %v1201 = vadd.f32 %v1191, %v1197
        %v1202 = vadd.f32 %v1192, %v1198
        %v1203 = vadd.f32 %v1193, %v1199
        %v1204 = vadd.f32 %v1194, %v1200
        %s1205 = sld [smem:[#allocation2 + $0x4a]]
        %v1206 = vstv %s1205
        %v1207 = vmul.f32 %v963, %v1206
        %v1208 = vmul.f32 %v964, %v1206
        %v1209 = vmul.f32 %v965, %v1206
        %v1210 = vmul.f32 %v966, %v1206
        %v1211 = vadd.f32 %v1201, %v1207
        %v1212 = vadd.f32 %v1202, %v1208
        %v1213 = vadd.f32 %v1203, %v1209
        %v1214 = vadd.f32 %v1204, %v1210
        %s1215 = sld [smem:[#allocation2 + $0x52]]
        %v1216 = vstv %s1215
        %v1217 = vadd.f32 %v1211, %v1216
        %v1218 = vadd.f32 %v1212, %v1216
        %v1219 = vadd.f32 %v1213, %v1216
        %v1220 = vadd.f32 %v1214, %v1216
        %v1221 = vmax.f32 %v1217, 0.0
        %v1222 = vmax.f32 %v1218, 0.0
        %v1223 = vmax.f32 %v1219, 0.0
        %v1224 = vmax.f32 %v1220, 0.0
        %s1225 = sld [smem:[#allocation2 + $0x13]]
        %v1226 = vstv %s1225
        %v1227 = vmul.f32 %v851, %v1226
        %v1228 = vmul.f32 %v852, %v1226
        %v1229 = vmul.f32 %v853, %v1226
        %v1230 = vmul.f32 %v854, %v1226
        %s1231 = sld [smem:[#allocation2 + $0x1b]]
        %v1232 = vstv %s1231
        %v1233 = vmul.f32 %v867, %v1232
        %v1234 = vmul.f32 %v868, %v1232
        %v1235 = vmul.f32 %v869, %v1232
        %v1236 = vmul.f32 %v870, %v1232
        %v1237 = vadd.f32 %v1227, %v1233
        %v1238 = vadd.f32 %v1228, %v1234
        %v1239 = vadd.f32 %v1229, %v1235
        %v1240 = vadd.f32 %v1230, %v1236
        %s1241 = sld [smem:[#allocation2 + $0x23]]
        %v1242 = vstv %s1241
        %v1243 = vmul.f32 %v883, %v1242
        %v1244 = vmul.f32 %v884, %v1242
        %v1245 = vmul.f32 %v885, %v1242
        %v1246 = vmul.f32 %v886, %v1242
        %v1247 = vadd.f32 %v1237, %v1243
        %v1248 = vadd.f32 %v1238, %v1244
        %v1249 = vadd.f32 %v1239, %v1245
        %v1250 = vadd.f32 %v1240, %v1246
        %s1251 = sld [smem:[#allocation2 + $0x2b]]
        %v1252 = vstv %s1251
        %v1253 = vmul.f32 %v899, %v1252
        %v1254 = vmul.f32 %v900, %v1252
        %v1255 = vmul.f32 %v901, %v1252
        %v1256 = vmul.f32 %v902, %v1252
        %v1257 = vadd.f32 %v1247, %v1253
        %v1258 = vadd.f32 %v1248, %v1254
        %v1259 = vadd.f32 %v1249, %v1255
        %v1260 = vadd.f32 %v1250, %v1256
        %s1261 = sld [smem:[#allocation2 + $0x33]]
        %v1262 = vstv %s1261
        %v1263 = vmul.f32 %v915, %v1262
        %v1264 = vmul.f32 %v916, %v1262
        %v1265 = vmul.f32 %v917, %v1262
        %v1266 = vmul.f32 %v918, %v1262
        %v1267 = vadd.f32 %v1257, %v1263
        %v1268 = vadd.f32 %v1258, %v1264
        %v1269 = vadd.f32 %v1259, %v1265
        %v1270 = vadd.f32 %v1260, %v1266
        %s1271 = sld [smem:[#allocation2 + $0x3b]]
        %v1272 = vstv %s1271
        %v1273 = vmul.f32 %v931, %v1272
        %v1274 = vmul.f32 %v932, %v1272
        %v1275 = vmul.f32 %v933, %v1272
        %v1276 = vmul.f32 %v934, %v1272
        %v1277 = vadd.f32 %v1267, %v1273
        %v1278 = vadd.f32 %v1268, %v1274
        %v1279 = vadd.f32 %v1269, %v1275
        %v1280 = vadd.f32 %v1270, %v1276
        %s1281 = sld [smem:[#allocation2 + $0x43]]
        %v1282 = vstv %s1281
        %v1283 = vmul.f32 %v947, %v1282
        %v1284 = vmul.f32 %v948, %v1282
        %v1285 = vmul.f32 %v949, %v1282
        %v1286 = vmul.f32 %v950, %v1282
        %v1287 = vadd.f32 %v1277, %v1283
        %v1288 = vadd.f32 %v1278, %v1284
        %v1289 = vadd.f32 %v1279, %v1285
        %v1290 = vadd.f32 %v1280, %v1286
        %s1291 = sld [smem:[#allocation2 + $0x4b]]
        %v1292 = vstv %s1291
        %v1293 = vmul.f32 %v963, %v1292
        %v1294 = vmul.f32 %v964, %v1292
        %v1295 = vmul.f32 %v965, %v1292
        %v1296 = vmul.f32 %v966, %v1292
        %v1297 = vadd.f32 %v1287, %v1293
        %v1298 = vadd.f32 %v1288, %v1294
        %v1299 = vadd.f32 %v1289, %v1295
        %v1300 = vadd.f32 %v1290, %v1296
        %s1301 = sld [smem:[#allocation2 + $0x53]]
        %v1302 = vstv %s1301
        %v1303 = vadd.f32 %v1297, %v1302
        %v1304 = vadd.f32 %v1298, %v1302
        %v1305 = vadd.f32 %v1299, %v1302
        %v1306 = vadd.f32 %v1300, %v1302
        %v1307 = vmax.f32 %v1303, 0.0
        %v1308 = vmax.f32 %v1304, 0.0
        %v1309 = vmax.f32 %v1305, 0.0
        %v1310 = vmax.f32 %v1306, 0.0
        %s1311 = sld [smem:[#allocation2 + $0x14]]
        %v1312 = vstv %s1311
        %v1313 = vmul.f32 %v851, %v1312
        %v1314 = vmul.f32 %v852, %v1312
        %v1315 = vmul.f32 %v853, %v1312
        %v1316 = vmul.f32 %v854, %v1312
        %s1317 = sld [smem:[#allocation2 + $0x1c]]
        %v1318 = vstv %s1317
        %v1319 = vmul.f32 %v867, %v1318
        %v1320 = vmul.f32 %v868, %v1318
        %v1321 = vmul.f32 %v869, %v1318
        %v1322 = vmul.f32 %v870, %v1318
        %v1323 = vadd.f32 %v1313, %v1319
        %v1324 = vadd.f32 %v1314, %v1320
        %v1325 = vadd.f32 %v1315, %v1321
        %v1326 = vadd.f32 %v1316, %v1322
        %s1327 = sld [smem:[#allocation2 + $0x24]]
        %v1328 = vstv %s1327
        %v1329 = vmul.f32 %v883, %v1328
        %v1330 = vmul.f32 %v884, %v1328
        %v1331 = vmul.f32 %v885, %v1328
        %v1332 = vmul.f32 %v886, %v1328
        %v1333 = vadd.f32 %v1323, %v1329
        %v1334 = vadd.f32 %v1324, %v1330
        %v1335 = vadd.f32 %v1325, %v1331
        %v1336 = vadd.f32 %v1326, %v1332
        %s1337 = sld [smem:[#allocation2 + $0x2c]]
        %v1338 = vstv %s1337
        %v1339 = vmul.f32 %v899, %v1338
        %v1340 = vmul.f32 %v900, %v1338
        %v1341 = vmul.f32 %v901, %v1338
        %v1342 = vmul.f32 %v902, %v1338
        %v1343 = vadd.f32 %v1333, %v1339
        %v1344 = vadd.f32 %v1334, %v1340
        %v1345 = vadd.f32 %v1335, %v1341
        %v1346 = vadd.f32 %v1336, %v1342
        %s1347 = sld [smem:[#allocation2 + $0x34]]
        %v1348 = vstv %s1347
        %v1349 = vmul.f32 %v915, %v1348
        %v1350 = vmul.f32 %v916, %v1348
        %v1351 = vmul.f32 %v917, %v1348
        %v1352 = vmul.f32 %v918, %v1348
        %v1353 = vadd.f32 %v1343, %v1349
        %v1354 = vadd.f32 %v1344, %v1350
        %v1355 = vadd.f32 %v1345, %v1351
        %v1356 = vadd.f32 %v1346, %v1352
        %s1357 = sld [smem:[#allocation2 + $0x3c]]
        %v1358 = vstv %s1357
        %v1359 = vmul.f32 %v931, %v1358
        %v1360 = vmul.f32 %v932, %v1358
        %v1361 = vmul.f32 %v933, %v1358
        %v1362 = vmul.f32 %v934, %v1358
        %v1363 = vadd.f32 %v1353, %v1359
        %v1364 = vadd.f32 %v1354, %v1360
        %v1365 = vadd.f32 %v1355, %v1361
        %v1366 = vadd.f32 %v1356, %v1362
        %s1367 = sld [smem:[#allocation2 + $0x44]]
        %v1368 = vstv %s1367
        %v1369 = vmul.f32 %v947, %v1368
        %v1370 = vmul.f32 %v948, %v1368
        %v1371 = vmul.f32 %v949, %v1368
        %v1372 = vmul.f32 %v950, %v1368
        %v1373 = vadd.f32 %v1363, %v1369
        %v1374 = vadd.f32 %v1364, %v1370
        %v1375 = vadd.f32 %v1365, %v1371
        %v1376 = vadd.f32 %v1366, %v1372
        %s1377 = sld [smem:[#allocation2 + $0x4c]]
        %v1378 = vstv %s1377
        %v1379 = vmul.f32 %v963, %v1378
        %v1380 = vmul.f32 %v964, %v1378
        %v1381 = vmul.f32 %v965, %v1378
        %v1382 = vmul.f32 %v966, %v1378
        %v1383 = vadd.f32 %v1373, %v1379
        %v1384 = vadd.f32 %v1374, %v1380
        %v1385 = vadd.f32 %v1375, %v1381
        %v1386 = vadd.f32 %v1376, %v1382
        %s1387 = sld [smem:[#allocation2 + $0x54]]
        %v1388 = vstv %s1387
        %v1389 = vadd.f32 %v1383, %v1388
        %v1390 = vadd.f32 %v1384, %v1388
        %v1391 = vadd.f32 %v1385, %v1388
        %v1392 = vadd.f32 %v1386, %v1388
        %v1393 = vmax.f32 %v1389, 0.0
        %v1394 = vmax.f32 %v1390, 0.0
        %v1395 = vmax.f32 %v1391, 0.0
        %v1396 = vmax.f32 %v1392, 0.0
        %s1397 = sld [smem:[#allocation2 + $0x15]]
        %v1398 = vstv %s1397
        %v1399 = vmul.f32 %v851, %v1398
        %v1400 = vmul.f32 %v852, %v1398
        %v1401 = vmul.f32 %v853, %v1398
        %v1402 = vmul.f32 %v854, %v1398
        %s1403 = sld [smem:[#allocation2 + $0x1d]]
        %v1404 = vstv %s1403
        %v1405 = vmul.f32 %v867, %v1404
        %v1406 = vmul.f32 %v868, %v1404
        %v1407 = vmul.f32 %v869, %v1404
        %v1408 = vmul.f32 %v870, %v1404
        %v1409 = vadd.f32 %v1399, %v1405
        %v1410 = vadd.f32 %v1400, %v1406
        %v1411 = vadd.f32 %v1401, %v1407
        %v1412 = vadd.f32 %v1402, %v1408
        %s1413 = sld [smem:[#allocation2 + $0x25]]
        %v1414 = vstv %s1413
        %v1415 = vmul.f32 %v883, %v1414
        %v1416 = vmul.f32 %v884, %v1414
        %v1417 = vmul.f32 %v885, %v1414
        %v1418 = vmul.f32 %v886, %v1414
        %v1419 = vadd.f32 %v1409, %v1415
        %v1420 = vadd.f32 %v1410, %v1416
        %v1421 = vadd.f32 %v1411, %v1417
        %v1422 = vadd.f32 %v1412, %v1418
        %s1423 = sld [smem:[#allocation2 + $0x2d]]
        %v1424 = vstv %s1423
        %v1425 = vmul.f32 %v899, %v1424
        %v1426 = vmul.f32 %v900, %v1424
        %v1427 = vmul.f32 %v901, %v1424
        %v1428 = vmul.f32 %v902, %v1424
        %v1429 = vadd.f32 %v1419, %v1425
        %v1430 = vadd.f32 %v1420, %v1426
        %v1431 = vadd.f32 %v1421, %v1427
        %v1432 = vadd.f32 %v1422, %v1428
        %s1433 = sld [smem:[#allocation2 + $0x35]]
        %v1434 = vstv %s1433
        %v1435 = vmul.f32 %v915, %v1434
        %v1436 = vmul.f32 %v916, %v1434
        %v1437 = vmul.f32 %v917, %v1434
        %v1438 = vmul.f32 %v918, %v1434
        %v1439 = vadd.f32 %v1429, %v1435
        %v1440 = vadd.f32 %v1430, %v1436
        %v1441 = vadd.f32 %v1431, %v1437
        %v1442 = vadd.f32 %v1432, %v1438
        %s1443 = sld [smem:[#allocation2 + $0x3d]]
        %v1444 = vstv %s1443
        %v1445 = vmul.f32 %v931, %v1444
        %v1446 = vmul.f32 %v932, %v1444
        %v1447 = vmul.f32 %v933, %v1444
        %v1448 = vmul.f32 %v934, %v1444
        %v1449 = vadd.f32 %v1439, %v1445
        %v1450 = vadd.f32 %v1440, %v1446
        %v1451 = vadd.f32 %v1441, %v1447
        %v1452 = vadd.f32 %v1442, %v1448
        %s1453 = sld [smem:[#allocation2 + $0x45]]
        %v1454 = vstv %s1453
        %v1455 = vmul.f32 %v947, %v1454
        %v1456 = vmul.f32 %v948, %v1454
        %v1457 = vmul.f32 %v949, %v1454
        %v1458 = vmul.f32 %v950, %v1454
        %v1459 = vadd.f32 %v1449, %v1455
        %v1460 = vadd.f32 %v1450, %v1456
        %v1461 = vadd.f32 %v1451, %v1457
        %v1462 = vadd.f32 %v1452, %v1458
        %s1463 = sld [smem:[#allocation2 + $0x4d]]
        %v1464 = vstv %s1463
        %v1465 = vmul.f32 %v963, %v1464
        %v1466 = vmul.f32 %v964, %v1464
        %v1467 = vmul.f32 %v965, %v1464
        %v1468 = vmul.f32 %v966, %v1464
        %v1469 = vadd.f32 %v1459, %v1465
        %v1470 = vadd.f32 %v1460, %v1466
        %v1471 = vadd.f32 %v1461, %v1467
        %v1472 = vadd.f32 %v1462, %v1468
        %s1473 = sld [smem:[#allocation2 + $0x55]]
        %v1474 = vstv %s1473
        %v1475 = vadd.f32 %v1469, %v1474
        %v1476 = vadd.f32 %v1470, %v1474
        %v1477 = vadd.f32 %v1471, %v1474
        %v1478 = vadd.f32 %v1472, %v1474
        %v1479 = vmax.f32 %v1475, 0.0
        %v1480 = vmax.f32 %v1476, 0.0
        %v1481 = vmax.f32 %v1477, 0.0
        %v1482 = vmax.f32 %v1478, 0.0
        %s1483 = sld [smem:[#allocation2 + $0x16]]
        %v1484 = vstv %s1483
        %v1485 = vmul.f32 %v851, %v1484
        %v1486 = vmul.f32 %v852, %v1484
        %v1487 = vmul.f32 %v853, %v1484
        %v1488 = vmul.f32 %v854, %v1484
        %s1489 = sld [smem:[#allocation2 + $0x1e]]
        %v1490 = vstv %s1489
        %v1491 = vmul.f32 %v867, %v1490
        %v1492 = vmul.f32 %v868, %v1490
        %v1493 = vmul.f32 %v869, %v1490
        %v1494 = vmul.f32 %v870, %v1490
        %v1495 = vadd.f32 %v1485, %v1491
        %v1496 = vadd.f32 %v1486, %v1492
        %v1497 = vadd.f32 %v1487, %v1493
        %v1498 = vadd.f32 %v1488, %v1494
        %s1499 = sld [smem:[#allocation2 + $0x26]]
        %v1500 = vstv %s1499
        %v1501 = vmul.f32 %v883, %v1500
        %v1502 = vmul.f32 %v884, %v1500
        %v1503 = vmul.f32 %v885, %v1500
        %v1504 = vmul.f32 %v886, %v1500
        %v1505 = vadd.f32 %v1495, %v1501
        %v1506 = vadd.f32 %v1496, %v1502
        %v1507 = vadd.f32 %v1497, %v1503
        %v1508 = vadd.f32 %v1498, %v1504
        %s1509 = sld [smem:[#allocation2 + $0x2e]]
        %v1510 = vstv %s1509
        %v1511 = vmul.f32 %v899, %v1510
        %v1512 = vmul.f32 %v900, %v1510
        %v1513 = vmul.f32 %v901, %v1510
        %v1514 = vmul.f32 %v902, %v1510
        %v1515 = vadd.f32 %v1505, %v1511
        %v1516 = vadd.f32 %v1506, %v1512
        %v1517 = vadd.f32 %v1507, %v1513
        %v1518 = vadd.f32 %v1508, %v1514
        %s1519 = sld [smem:[#allocation2 + $0x36]]
        %v1520 = vstv %s1519
        %v1521 = vmul.f32 %v915, %v1520
        %v1522 = vmul.f32 %v916, %v1520
        %v1523 = vmul.f32 %v917, %v1520
        %v1524 = vmul.f32 %v918, %v1520
        %v1525 = vadd.f32 %v1515, %v1521
        %v1526 = vadd.f32 %v1516, %v1522
        %v1527 = vadd.f32 %v1517, %v1523
        %v1528 = vadd.f32 %v1518, %v1524
        %s1529 = sld [smem:[#allocation2 + $0x3e]]
        %v1530 = vstv %s1529
        %v1531 = vmul.f32 %v931, %v1530
        %v1532 = vmul.f32 %v932, %v1530
        %v1533 = vmul.f32 %v933, %v1530
        %v1534 = vmul.f32 %v934, %v1530
        %v1535 = vadd.f32 %v1525, %v1531
        %v1536 = vadd.f32 %v1526, %v1532
        %v1537 = vadd.f32 %v1527, %v1533
        %v1538 = vadd.f32 %v1528, %v1534
        %s1539 = sld [smem:[#allocation2 + $0x46]]
        %v1540 = vstv %s1539
        %v1541 = vmul.f32 %v947, %v1540
        %v1542 = vmul.f32 %v948, %v1540
        %v1543 = vmul.f32 %v949, %v1540
        %v1544 = vmul.f32 %v950, %v1540
        %v1545 = vadd.f32 %v1535, %v1541
        %v1546 = vadd.f32 %v1536, %v1542
        %v1547 = vadd.f32 %v1537, %v1543
        %v1548 = vadd.f32 %v1538, %v1544
        %s1549 = sld [smem:[#allocation2 + $0x4e]]
        %v1550 = vstv %s1549
        %v1551 = vmul.f32 %v963, %v1550
        %v1552 = vmul.f32 %v964, %v1550
        %v1553 = vmul.f32 %v965, %v1550
        %v1554 = vmul.f32 %v966, %v1550
        %v1555 = vadd.f32 %v1545, %v1551
        %v1556 = vadd.f32 %v1546, %v1552
        %v1557 = vadd.f32 %v1547, %v1553
        %v1558 = vadd.f32 %v1548, %v1554
        %s1559 = sld [smem:[#allocation2 + $0x56]]
        %v1560 = vstv %s1559
        %v1561 = vadd.f32 %v1555, %v1560
        %v1562 = vadd.f32 %v1556, %v1560
        %v1563 = vadd.f32 %v1557, %v1560
        %v1564 = vadd.f32 %v1558, %v1560
        %v1565 = vmax.f32 %v1561, 0.0
        %v1566 = vmax.f32 %v1562, 0.0
        %v1567 = vmax.f32 %v1563, 0.0
        %v1568 = vmax.f32 %v1564, 0.0
        %s1569 = sld [smem:[#allocation2 + $0x17]]
        %v1570 = vstv %s1569
        %v1571 = vmul.f32 %v851, %v1570
        %v1572 = vmul.f32 %v852, %v1570
        %v1573 = vmul.f32 %v853, %v1570
        %v1574 = vmul.f32 %v854, %v1570
        %s1575 = sld [smem:[#allocation2 + $0x1f]]
        %v1576 = vstv %s1575
        %v1577 = vmul.f32 %v867, %v1576
        %v1578 = vmul.f32 %v868, %v1576
        %v1579 = vmul.f32 %v869, %v1576
        %v1580 = vmul.f32 %v870, %v1576
        %v1581 = vadd.f32 %v1571, %v1577
        %v1582 = vadd.f32 %v1572, %v1578
        %v1583 = vadd.f32 %v1573, %v1579
        %v1584 = vadd.f32 %v1574, %v1580
        %s1585 = sld [smem:[#allocation2 + $0x27]]
        %v1586 = vstv %s1585
        %v1587 = vmul.f32 %v883, %v1586
        %v1588 = vmul.f32 %v884, %v1586
        %v1589 = vmul.f32 %v885, %v1586
        %v1590 = vmul.f32 %v886, %v1586
        %v1591 = vadd.f32 %v1581, %v1587
        %v1592 = vadd.f32 %v1582, %v1588
        %v1593 = vadd.f32 %v1583, %v1589
        %v1594 = vadd.f32 %v1584, %v1590
        %s1595 = sld [smem:[#allocation2 + $0x2f]]
        %v1596 = vstv %s1595
        %v1597 = vmul.f32 %v899, %v1596
        %v1598 = vmul.f32 %v900, %v1596
        %v1599 = vmul.f32 %v901, %v1596
        %v1600 = vmul.f32 %v902, %v1596
        %v1601 = vadd.f32 %v1591, %v1597
        %v1602 = vadd.f32 %v1592, %v1598
        %v1603 = vadd.f32 %v1593, %v1599
        %v1604 = vadd.f32 %v1594, %v1600
        %s1605 = sld [smem:[#allocation2 + $0x37]]
        %v1606 = vstv %s1605
        %v1607 = vmul.f32 %v915, %v1606
        %v1608 = vmul.f32 %v916, %v1606
        %v1609 = vmul.f32 %v917, %v1606
        %v1610 = vmul.f32 %v918, %v1606
        %v1611 = vadd.f32 %v1601, %v1607
        %v1612 = vadd.f32 %v1602, %v1608
        %v1613 = vadd.f32 %v1603, %v1609
        %v1614 = vadd.f32 %v1604, %v1610
        %s1615 = sld [smem:[#allocation2 + $0x3f]]
        %v1616 = vstv %s1615
        %v1617 = vmul.f32 %v931, %v1616
        %v1618 = vmul.f32 %v932, %v1616
        %v1619 = vmul.f32 %v933, %v1616
        %v1620 = vmul.f32 %v934, %v1616
        %v1621 = vadd.f32 %v1611, %v1617
        %v1622 = vadd.f32 %v1612, %v1618
        %v1623 = vadd.f32 %v1613, %v1619
        %v1624 = vadd.f32 %v1614, %v1620
        %s1625 = sld [smem:[#allocation2 + $0x47]]
        %v1626 = vstv %s1625
        %v1627 = vmul.f32 %v947, %v1626
        %v1628 = vmul.f32 %v948, %v1626
        %v1629 = vmul.f32 %v949, %v1626
        %v1630 = vmul.f32 %v950, %v1626
        %v1631 = vadd.f32 %v1621, %v1627
        %v1632 = vadd.f32 %v1622, %v1628
        %v1633 = vadd.f32 %v1623, %v1629
        %v1634 = vadd.f32 %v1624, %v1630
        %s1635 = sld [smem:[#allocation2 + $0x4f]]
        %v1636 = vstv %s1635
        %v1637 = vmul.f32 %v963, %v1636
        %v1638 = vmul.f32 %v964, %v1636
        %v1639 = vmul.f32 %v965, %v1636
        %v1640 = vmul.f32 %v966, %v1636
        %v1641 = vadd.f32 %v1631, %v1637
        %v1642 = vadd.f32 %v1632, %v1638
        %v1643 = vadd.f32 %v1633, %v1639
        %v1644 = vadd.f32 %v1634, %v1640
        %s1645 = sld [smem:[#allocation2 + $0x57]]
        %v1646 = vstv %s1645
        %v1647 = vadd.f32 %v1641, %v1646
        %v1648 = vadd.f32 %v1642, %v1646
        %v1649 = vadd.f32 %v1643, %v1646
        %v1650 = vadd.f32 %v1644, %v1646
        %v1651 = vmax.f32 %v1647, 0.0
        %v1652 = vmax.f32 %v1648, 0.0
        %v1653 = vmax.f32 %v1649, 0.0
        %v1654 = vmax.f32 %v1650, 0.0
        %s1655 = sld [smem:[#allocation2 + $0x58]]
        %v1656 = vstv %s1655
        %v1657 = vmul.f32 %v1049, %v1656
        %v1658 = vmul.f32 %v1050, %v1656
        %v1659 = vmul.f32 %v1051, %v1656
        %v1660 = vmul.f32 %v1052, %v1656
        %s1661 = sld [smem:[#allocation2 + $0x59]]
        %v1662 = vstv %s1661
        %v1663 = vmul.f32 %v1135, %v1662
        %v1664 = vmul.f32 %v1136, %v1662
        %v1665 = vmul.f32 %v1137, %v1662
        %v1666 = vmul.f32 %v1138, %v1662
        %v1667 = vadd.f32 %v1657, %v1663
        %v1668 = vadd.f32 %v1658, %v1664
        %v1669 = vadd.f32 %v1659, %v1665
        %v1670 = vadd.f32 %v1660, %v1666
        %s1671 = sld [smem:[#allocation2 + $0x5a]]
        %v1672 = vstv %s1671
        %v1673 = vmul.f32 %v1221, %v1672
        %v1674 = vmul.f32 %v1222, %v1672
        %v1675 = vmul.f32 %v1223, %v1672
        %v1676 = vmul.f32 %v1224, %v1672
        %v1677 = vadd.f32 %v1667, %v1673
        %v1678 = vadd.f32 %v1668, %v1674
        %v1679 = vadd.f32 %v1669, %v1675
        %v1680 = vadd.f32 %v1670, %v1676
        %s1681 = sld [smem:[#allocation2 + $0x5b]]
        %v1682 = vstv %s1681
        %v1683 = vmul.f32 %v1307, %v1682
        %v1684 = vmul.f32 %v1308, %v1682
        %v1685 = vmul.f32 %v1309, %v1682
        %v1686 = vmul.f32 %v1310, %v1682
        %v1687 = vadd.f32 %v1677, %v1683
        %v1688 = vadd.f32 %v1678, %v1684
        %v1689 = vadd.f32 %v1679, %v1685
        %v1690 = vadd.f32 %v1680, %v1686
        %s1691 = sld [smem:[#allocation2 + $0x5c]]
        %v1692 = vstv %s1691
        %v1693 = vmul.f32 %v1393, %v1692
        %v1694 = vmul.f32 %v1394, %v1692
        %v1695 = vmul.f32 %v1395, %v1692
        %v1696 = vmul.f32 %v1396, %v1692
        %v1697 = vadd.f32 %v1687, %v1693
        %v1698 = vadd.f32 %v1688, %v1694
        %v1699 = vadd.f32 %v1689, %v1695
        %v1700 = vadd.f32 %v1690, %v1696
        %s1701 = sld [smem:[#allocation2 + $0x5d]]
        %v1702 = vstv %s1701
        %v1703 = vmul.f32 %v1479, %v1702
        %v1704 = vmul.f32 %v1480, %v1702
        %v1705 = vmul.f32 %v1481, %v1702
        %v1706 = vmul.f32 %v1482, %v1702
        %v1707 = vadd.f32 %v1697, %v1703
        %v1708 = vadd.f32 %v1698, %v1704
        %v1709 = vadd.f32 %v1699, %v1705
        %v1710 = vadd.f32 %v1700, %v1706
        %s1711 = sld [smem:[#allocation2 + $0x5e]]
        %v1712 = vstv %s1711
        %v1713 = vmul.f32 %v1565, %v1712
        %v1714 = vmul.f32 %v1566, %v1712
        %v1715 = vmul.f32 %v1567, %v1712
        %v1716 = vmul.f32 %v1568, %v1712
        %v1717 = vadd.f32 %v1707, %v1713
        %v1718 = vadd.f32 %v1708, %v1714
        %v1719 = vadd.f32 %v1709, %v1715
        %v1720 = vadd.f32 %v1710, %v1716
        %s1721 = sld [smem:[#allocation2 + $0x5f]]
        %v1722 = vstv %s1721
        %v1723 = vmul.f32 %v1651, %v1722
        %v1724 = vmul.f32 %v1652, %v1722
        %v1725 = vmul.f32 %v1653, %v1722
        %v1726 = vmul.f32 %v1654, %v1722
        %v1727 = vadd.f32 %v1717, %v1723
        %v1728 = vadd.f32 %v1718, %v1724
        %v1729 = vadd.f32 %v1719, %v1725
        %v1730 = vadd.f32 %v1720, %v1726
        %s1731 = sld [smem:[#allocation2 + $0x60]]
        %v1732 = vstv %s1731
        %v1733 = vadd.f32 %v1727, %v1732
        %v1734 = vadd.f32 %v1728, %v1732
        %v1735 = vadd.f32 %v1729, %v1732
        %v1736 = vadd.f32 %v1730, %v1732
        %v1737 = vsub.f32 0.0, %v1733
        %v1738 = vsub.f32 0.0, %v1734
        %v1739 = vsub.f32 0.0, %v1735
        %v1740 = vsub.f32 0.0, %v1736
        %v1741 = vmul.f32 %v1737, 1.442695
        %v1742 = vpow.pop %v1741
        %v1743 = vmul.f32 %v1738, 1.442695
        %v1744 = vpow.pop %v1743
        %v1745 = vmul.f32 %v1739, 1.442695
        %v1746 = vpow.pop %v1745
        %v1747 = vmul.f32 %v1740, 1.442695
        %v1748 = vpow.pop %v1747
        %v1749 = vadd.f32 %v1742, 1.0
        %v1750 = vadd.f32 %v1744, 1.0
        %v1751 = vadd.f32 %v1746, 1.0
        %v1752 = vadd.f32 %v1748, 1.0
        %v1753 = vrcp.pop %v1749
        %v1754 = vmul.f32 %v1749, %v1753
        %v1755 = vsub.f32 1.0, %v1754
        %v1756 = vmul.f32 %v1753, %v1755
        %v1757 = vadd.f32 %v1753, %v1756
        %vm1758 = vweird.f32 %v1749
        %vm1759 = vweird.f32 %v1753
        %vm1760 = vmor %vm1758, %vm1759
        %v1761 = vsel %vm1760, %v1753, %v1757
        %v1762 = vand.u32 2147483647, %v1749
        %vm1763 = vcmp.eq.f32.partialorder %v1762, 8.507059e+37
        %v1764 = vand.u32 %v1749, 2147483648
        %v1765 = vor.u32 1.1754944e-38, %v1764
        %v1766 = vsel %vm1763, %v1765, %v1761
        %v1767 = vmul.f32 1.0, %v1766
        %v1768 = vrcp.pop %v1750
        %v1769 = vmul.f32 %v1750, %v1768
        %v1770 = vsub.f32 1.0, %v1769
        %v1771 = vmul.f32 %v1768, %v1770
        %v1772 = vadd.f32 %v1768, %v1771
        %vm1773 = vweird.f32 %v1750
        %vm1774 = vweird.f32 %v1768
        %vm1775 = vmor %vm1773, %vm1774
        %v1776 = vsel %vm1775, %v1768, %v1772
        %v1777 = vand.u32 2147483647, %v1750
        %vm1778 = vcmp.eq.f32.partialorder %v1777, 8.507059e+37
        %v1779 = vand.u32 %v1750, 2147483648
        %v1780 = vor.u32 1.1754944e-38, %v1779
        %v1781 = vsel %vm1778, %v1780, %v1776
        %v1782 = vmul.f32 1.0, %v1781
        %v1783 = vrcp.pop %v1751
        %v1784 = vmul.f32 %v1751, %v1783
        %v1785 = vsub.f32 1.0, %v1784
        %v1786 = vmul.f32 %v1783, %v1785
        %v1787 = vadd.f32 %v1783, %v1786
        %vm1788 = vweird.f32 %v1751
        %vm1789 = vweird.f32 %v1783
        %vm1790 = vmor %vm1788, %vm1789
        %v1791 = vsel %vm1790, %v1783, %v1787
        %v1792 = vand.u32 2147483647, %v1751
        %vm1793 = vcmp.eq.f32.partialorder %v1792, 8.507059e+37
        %v1794 = vand.u32 %v1751, 2147483648
        %v1795 = vor.u32 1.1754944e-38, %v1794
        %v1796 = vsel %vm1793, %v1795, %v1791
        %v1797 = vmul.f32 1.0, %v1796
        %v1798 = vrcp.pop %v1752
        %v1799 = vmul.f32 %v1752, %v1798
        %v1800 = vsub.f32 1.0, %v1799
        %v1801 = vmul.f32 %v1798, %v1800
        %v1802 = vadd.f32 %v1798, %v1801
        %vm1803 = vweird.f32 %v1752
        %vm1804 = vweird.f32 %v1798
        %vm1805 = vmor %vm1803, %vm1804
        %v1806 = vsel %vm1805, %v1798, %v1802
        %v1807 = vand.u32 2147483647, %v1752
        %vm1808 = vcmp.eq.f32.partialorder %v1807, 8.507059e+37
        %v1809 = vand.u32 %v1752, 2147483648
        %v1810 = vor.u32 1.1754944e-38, %v1809
        %v1811 = vsel %vm1808, %v1810, %v1806
        %v1812 = vmul.f32 1.0, %v1811
        %v1813 = vadd.f32 %v1767, 1e-06
        %v1814 = vadd.f32 %v1782, 1e-06
        %v1815 = vadd.f32 %v1797, 1e-06
        %v1816 = vadd.f32 %v1812, 1e-06
        %v1817 = vrcp.pop %v1813
        %v1818 = vmul.f32 %v1813, %v1817
        %v1819 = vsub.f32 1.0, %v1818
        %v1820 = vmul.f32 %v1817, %v1819
        %v1821 = vadd.f32 %v1817, %v1820
        %vm1822 = vweird.f32 %v1813
        %vm1823 = vweird.f32 %v1817
        %vm1824 = vmor %vm1822, %vm1823
        %v1825 = vsel %vm1824, %v1817, %v1821
        %v1826 = vand.u32 2147483647, %v1813
        %vm1827 = vcmp.eq.f32.partialorder %v1826, 8.507059e+37
        %v1828 = vand.u32 %v1813, 2147483648
        %v1829 = vor.u32 1.1754944e-38, %v1828
        %v1830 = vsel %vm1827, %v1829, %v1825
        %v1831 = vmul.f32 1.0, %v1830
        %v1832 = vrcp.pop %v1814
        %v1833 = vmul.f32 %v1814, %v1832
        %v1834 = vsub.f32 1.0, %v1833
        %v1835 = vmul.f32 %v1832, %v1834
        %v1836 = vadd.f32 %v1832, %v1835
        %vm1837 = vweird.f32 %v1814
        %vm1838 = vweird.f32 %v1832
        %vm1839 = vmor %vm1837, %vm1838
        %v1840 = vsel %vm1839, %v1832, %v1836
        %v1841 = vand.u32 2147483647, %v1814
        %vm1842 = vcmp.eq.f32.partialorder %v1841, 8.507059e+37
        %v1843 = vand.u32 %v1814, 2147483648
        %v1844 = vor.u32 1.1754944e-38, %v1843
        %v1845 = vsel %vm1842, %v1844, %v1840
        %v1846 = vmul.f32 1.0, %v1845
        %v1847 = vrcp.pop %v1815
        %v1848 = vmul.f32 %v1815, %v1847
        %v1849 = vsub.f32 1.0, %v1848
        %v1850 = vmul.f32 %v1847, %v1849
        %v1851 = vadd.f32 %v1847, %v1850
        %vm1852 = vweird.f32 %v1815
        %vm1853 = vweird.f32 %v1847
        %vm1854 = vmor %vm1852, %vm1853
        %v1855 = vsel %vm1854, %v1847, %v1851
        %v1856 = vand.u32 2147483647, %v1815
        %vm1857 = vcmp.eq.f32.partialorder %v1856, 8.507059e+37
        %v1858 = vand.u32 %v1815, 2147483648
        %v1859 = vor.u32 1.1754944e-38, %v1858
        %v1860 = vsel %vm1857, %v1859, %v1855
        %v1861 = vmul.f32 1.0, %v1860
        %v1862 = vrcp.pop %v1816
        %v1863 = vmul.f32 %v1816, %v1862
        %v1864 = vsub.f32 1.0, %v1863
        %v1865 = vmul.f32 %v1862, %v1864
        %v1866 = vadd.f32 %v1862, %v1865
        %vm1867 = vweird.f32 %v1816
        %vm1868 = vweird.f32 %v1862
        %vm1869 = vmor %vm1867, %vm1868
        %v1870 = vsel %vm1869, %v1862, %v1866
        %v1871 = vand.u32 2147483647, %v1816
        %vm1872 = vcmp.eq.f32.partialorder %v1871, 8.507059e+37
        %v1873 = vand.u32 %v1816, 2147483648
        %v1874 = vor.u32 1.1754944e-38, %v1873
        %v1875 = vsel %vm1872, %v1874, %v1870
        %v1876 = vmul.f32 1.0, %v1875
        %vm1877 = vcmp.gt.f32.partialorder %v365, 0.0
        %vm1878 = vcmp.gt.f32.partialorder %v366, 0.0
        %vm1879 = vcmp.gt.f32.partialorder %v367, 0.0
        %vm1880 = vcmp.gt.f32.partialorder %v368, 0.0
        %v1881 = vsel %vm1877, %v1831, -1e+30
        %v1882 = vsel %vm1878, %v1846, -1e+30
        %v1883 = vsel %vm1879, %v1861, -1e+30
        %v1884 = vsel %vm1880, %v1876, -1e+30
        %vm1885 = vcmask 7168
        %v1886 = vsel %vm1885, %v1881, -inf
        %v1887 = vrot.slane %v1886, 4
        %v1888 = vmax.f32 %v1886, %v1887
        %v1889 = vrot.slane %v1888, 2
        %v1890 = vmax.f32 %v1888, %v1889
        %v1891 = vrot.slane %v1890, 1
        %v1892 = vmax.f32 %v1890, %v1891
        %v1893 = vsel %vm1885, %v1882, -inf
        %v1894 = vrot.slane %v1893, 4
        %v1895 = vmax.f32 %v1893, %v1894
        %v1896 = vrot.slane %v1895, 2
        %v1897 = vmax.f32 %v1895, %v1896
        %v1898 = vrot.slane %v1897, 1
        %v1899 = vmax.f32 %v1897, %v1898
        %v1900 = vsel %vm1885, %v1883, -inf
        %v1901 = vrot.slane %v1900, 4
        %v1902 = vmax.f32 %v1900, %v1901
        %v1903 = vrot.slane %v1902, 2
        %v1904 = vmax.f32 %v1902, %v1903
        %v1905 = vrot.slane %v1904, 1
        %v1906 = vmax.f32 %v1904, %v1905
        %v1907 = vsel %vm1885, %v1884, -inf
        %v1908 = vrot.slane %v1907, 4
        %v1909 = vmax.f32 %v1907, %v1908
        %v1910 = vrot.slane %v1909, 2
        %v1911 = vmax.f32 %v1909, %v1910
        %v1912 = vrot.slane %v1911, 1
        %v1913 = vmax.f32 %v1911, %v1912
        %v1914 = vsub.f32 %v1831, %v1892
        %v1915 = vsub.f32 %v1846, %v1899
        %v1916 = vsub.f32 %v1861, %v1906
        %v1917 = vsub.f32 %v1876, %v1913
        %v1918 = vmin.f32 %v1914, 0.0
        %v1919 = vmin.f32 %v1915, 0.0
        %v1920 = vmin.f32 %v1916, 0.0
        %v1921 = vmin.f32 %v1917, 0.0
        %v1922 = vmul.f32 %v1918, 1.442695
        %v1923 = vpow.pop %v1922
        %v1924 = vmul.f32 %v1919, 1.442695
        %v1925 = vpow.pop %v1924
        %v1926 = vmul.f32 %v1920, 1.442695
        %v1927 = vpow.pop %v1926
        %v1928 = vmul.f32 %v1921, 1.442695
        %v1929 = vpow.pop %v1928
        %v1930 = vmul.f32 %v1923, %v365
        %v1931 = vmul.f32 %v1925, %v366
        %v1932 = vmul.f32 %v1927, %v367
        %v1933 = vmul.f32 %v1929, %v368
        %1935 = vset.pattern.permute.xlu0 0
        %1936 = vperm.xlu0 %1935, %v1930
        %v1937 = vpop.permute.xlu0 %1936
        %1940 = vset.pattern.permute.xlu0 0
        %1941 = vperm.xlu0 %1940, %v1931
        %v1942 = vpop.permute.xlu0 %1941
        %1945 = vset.pattern.permute.xlu0 0
        %1946 = vperm.xlu0 %1945, %v1932
        %v1947 = vpop.permute.xlu0 %1946
        %1950 = vset.pattern.permute.xlu0 0
        %1951 = vperm.xlu0 %1950, %v1933
        %v1952 = vpop.permute.xlu0 %1951
        %v1954 = vmul.f32 %v1937, %v614
        %v1955 = vmul.f32 %v1942, %v615
        %v1956 = vmul.f32 %v1947, %v616
        %v1957 = vmul.f32 %v1952, %v617
        %v1958 = vsel %vm373, %v1954, 0.0
        %v1959 = vrot.slane %v1958, 4
        %v1960 = vadd.f32 %v1958, %v1959
        %v1961 = vrot.slane %v1960, 2
        %v1962 = vadd.f32 %v1960, %v1961
        %v1963 = vrot.slane %v1962, 1
        %v1964 = vadd.f32 %v1962, %v1963
        %v1965 = vsel %vm373, %v1955, 0.0
        %v1966 = vrot.slane %v1965, 4
        %v1967 = vadd.f32 %v1965, %v1966
        %v1968 = vrot.slane %v1967, 2
        %v1969 = vadd.f32 %v1967, %v1968
        %v1970 = vrot.slane %v1969, 1
        %v1971 = vadd.f32 %v1969, %v1970
        %v1972 = vsel %vm373, %v1956, 0.0
        %v1973 = vrot.slane %v1972, 4
        %v1974 = vadd.f32 %v1972, %v1973
        %v1975 = vrot.slane %v1974, 2
        %v1976 = vadd.f32 %v1974, %v1975
        %v1977 = vrot.slane %v1976, 1
        %v1978 = vadd.f32 %v1976, %v1977
        %v1979 = vsel %vm373, %v1957, 0.0
        %v1980 = vrot.slane %v1979, 4
        %v1981 = vadd.f32 %v1979, %v1980
        %v1982 = vrot.slane %v1981, 2
        %v1983 = vadd.f32 %v1981, %v1982
        %v1984 = vrot.slane %v1983, 1
        %v1985 = vadd.f32 %v1983, %v1984
        %v1986 = vmul.f32 %v1930, %v583
        %v1987 = vmul.f32 %v1931, %v593
        %v1988 = vmul.f32 %v1932, %v603
        %v1989 = vmul.f32 %v1933, %v613
        %v1990 = vsel %vm1885, %v1986, 0.0
        %v1991 = vrot.slane %v1990, 4
        %v1992 = vadd.f32 %v1990, %v1991
        %v1993 = vrot.slane %v1992, 2
        %v1994 = vadd.f32 %v1992, %v1993
        %v1995 = vrot.slane %v1994, 1
        %v1996 = vadd.f32 %v1994, %v1995
        %v1997 = vsel %vm1885, %v1987, 0.0
        %v1998 = vrot.slane %v1997, 4
        %v1999 = vadd.f32 %v1997, %v1998
        %v2000 = vrot.slane %v1999, 2
        %v2001 = vadd.f32 %v1999, %v2000
        %v2002 = vrot.slane %v2001, 1
        %v2003 = vadd.f32 %v2001, %v2002
        %v2004 = vsel %vm1885, %v1988, 0.0
        %v2005 = vrot.slane %v2004, 4
        %v2006 = vadd.f32 %v2004, %v2005
        %v2007 = vrot.slane %v2006, 2
        %v2008 = vadd.f32 %v2006, %v2007
        %v2009 = vrot.slane %v2008, 1
        %v2010 = vadd.f32 %v2008, %v2009
        %v2011 = vsel %vm1885, %v1989, 0.0
        %v2012 = vrot.slane %v2011, 4
        %v2013 = vadd.f32 %v2011, %v2012
        %v2014 = vrot.slane %v2013, 2
        %v2015 = vadd.f32 %v2013, %v2014
        %v2016 = vrot.slane %v2015, 1
        %v2017 = vadd.f32 %v2015, %v2016
        %v2018 = vmax.f32 %v1996, 1e-06
        %v2019 = vmax.f32 %v2003, 1e-06
        %v2020 = vmax.f32 %v2010, 1e-06
        %v2021 = vmax.f32 %v2017, 1e-06
        %v2022 = vrcp.pop %v2018
        %v2023 = vrcp.pop %v2019
        %v2024 = vrcp.pop %v2020
        %v2025 = vrcp.pop %v2021
        %2027 = vset.pattern.permute.xlu0 0
        %2028 = vperm.xlu0 %2027, %v2022
        %v2029 = vpop.permute.xlu0 %2028
        %2032 = vset.pattern.permute.xlu0 0
        %2033 = vperm.xlu0 %2032, %v2023
        %v2034 = vpop.permute.xlu0 %2033
        %2037 = vset.pattern.permute.xlu0 0
        %2038 = vperm.xlu0 %2037, %v2024
        %v2039 = vpop.permute.xlu0 %2038
        %2042 = vset.pattern.permute.xlu0 0
        %2043 = vperm.xlu0 %2042, %v2025
        %v2044 = vpop.permute.xlu0 %2043
        %v2046 = vmul.f32 %v1964, %v2029
        %v2047 = vmul.f32 %v1971, %v2034
        %v2048 = vmul.f32 %v1978, %v2039
        %v2049 = vmul.f32 %v1985, %v2044
        %2051 = vset.pattern.permute.xlu0 0
        %2052 = vperm.xlu0 %2051, %v361
        %v2053 = vpop.permute.xlu0 %2052
        %v2055 = vperm.slane %v2053, 0
        %2057 = vset.pattern.permute.xlu0 0
        %2058 = vperm.xlu0 %2057, %v362
        %v2059 = vpop.permute.xlu0 %2058
        %v2061 = vperm.slane %v2059, 0
        %2063 = vset.pattern.permute.xlu0 0
        %2064 = vperm.xlu0 %2063, %v363
        %v2065 = vpop.permute.xlu0 %2064
        %v2067 = vperm.slane %v2065, 0
        %2069 = vset.pattern.permute.xlu0 0
        %2070 = vperm.xlu0 %2069, %v364
        %v2071 = vpop.permute.xlu0 %2070
        %v2073 = vperm.slane %v2071, 0
        %v2074 = vmul.f32 %v2046, %v2055
        %v2075 = vmul.f32 %v2047, %v2061
        %v2076 = vmul.f32 %v2048, %v2067
        %v2077 = vmul.f32 %v2049, %v2073
        %v2078 = vrcp.pop %v643
        %v2079 = vmul.f32 %v643, %v2078
        %v2080 = vsub.f32 1.0, %v2079
        %v2081 = vmul.f32 %v2078, %v2080
        %v2082 = vadd.f32 %v2078, %v2081
        %vm2083 = vweird.f32 %v643
        %vm2084 = vweird.f32 %v2078
        %vm2085 = vmor %vm2083, %vm2084
        %v2086 = vsel %vm2085, %v2078, %v2082
        %v2087 = vand.u32 2147483647, %v643
        %vm2088 = vcmp.eq.f32.partialorder %v2087, 8.507059e+37
        %v2089 = vand.u32 %v643, 2147483648
        %v2090 = vor.u32 1.1754944e-38, %v2089
        %v2091 = vsel %vm2088, %v2090, %v2086
        %v2092 = vmul.f32 %v707, %v2091
        %v2093 = vrcp.pop %v644
        %v2094 = vmul.f32 %v644, %v2093
        %v2095 = vsub.f32 1.0, %v2094
        %v2096 = vmul.f32 %v2093, %v2095
        %v2097 = vadd.f32 %v2093, %v2096
        %vm2098 = vweird.f32 %v644
        %vm2099 = vweird.f32 %v2093
        %vm2100 = vmor %vm2098, %vm2099
        %v2101 = vsel %vm2100, %v2093, %v2097
        %v2102 = vand.u32 2147483647, %v644
        %vm2103 = vcmp.eq.f32.partialorder %v2102, 8.507059e+37
        %v2104 = vand.u32 %v644, 2147483648
        %v2105 = vor.u32 1.1754944e-38, %v2104
        %v2106 = vsel %vm2103, %v2105, %v2101
        %v2107 = vmul.f32 %v708, %v2106
        %v2108 = vrcp.pop %v645
        %v2109 = vmul.f32 %v645, %v2108
        %v2110 = vsub.f32 1.0, %v2109
        %v2111 = vmul.f32 %v2108, %v2110
        %v2112 = vadd.f32 %v2108, %v2111
        %vm2113 = vweird.f32 %v645
        %vm2114 = vweird.f32 %v2108
        %vm2115 = vmor %vm2113, %vm2114
        %v2116 = vsel %vm2115, %v2108, %v2112
        %v2117 = vand.u32 2147483647, %v645
        %vm2118 = vcmp.eq.f32.partialorder %v2117, 8.507059e+37
        %v2119 = vand.u32 %v645, 2147483648
        %v2120 = vor.u32 1.1754944e-38, %v2119
        %v2121 = vsel %vm2118, %v2120, %v2116
        %v2122 = vmul.f32 %v709, %v2121
        %v2123 = vrcp.pop %v646
        %v2124 = vmul.f32 %v646, %v2123
        %v2125 = vsub.f32 1.0, %v2124
        %v2126 = vmul.f32 %v2123, %v2125
        %v2127 = vadd.f32 %v2123, %v2126
        %vm2128 = vweird.f32 %v646
        %vm2129 = vweird.f32 %v2123
        %vm2130 = vmor %vm2128, %vm2129
        %v2131 = vsel %vm2130, %v2123, %v2127
        %v2132 = vand.u32 2147483647, %v646
        %vm2133 = vcmp.eq.f32.partialorder %v2132, 8.507059e+37
        %v2134 = vand.u32 %v646, 2147483648
        %v2135 = vor.u32 1.1754944e-38, %v2134
        %v2136 = vsel %vm2133, %v2135, %v2131
        %v2137 = vmul.f32 %v710, %v2136
        %v2138 = vmul.f32 %v2092, %v2092
        %v2139 = vmul.f32 %v2107, %v2107
        %v2140 = vmul.f32 %v2122, %v2122
        %v2141 = vmul.f32 %v2137, %v2137
        %v2142 = vsel %vm622, %v2138, 0.0
        %2143 = vadd.xlane.f32.xlu0 %v2142
        %v2144 = vpop.xlane.xlu0 %2143
        %v2145 = vsel %vm622, %v2139, 0.0
        %2146 = vadd.xlane.f32.xlu0 %v2145
        %v2147 = vpop.xlane.xlu0 %2146
        %v2148 = vsel %vm622, %v2140, 0.0
        %2149 = vadd.xlane.f32.xlu0 %v2148
        %v2150 = vpop.xlane.xlu0 %2149
        %v2151 = vsel %vm622, %v2141, 0.0
        %2152 = vadd.xlane.f32.xlu0 %v2151
        %v2153 = vpop.xlane.xlu0 %2152
        %v2154 = vsub.f32 1.0, %v2144
        %v2155 = vsub.f32 1.0, %v2147
        %v2156 = vsub.f32 1.0, %v2150
        %v2157 = vsub.f32 1.0, %v2153
        %v2158 = vmax.f32 %v2154, 1e-06
        %v2159 = vmax.f32 %v2155, 1e-06
        %v2160 = vmax.f32 %v2156, 1e-06
        %v2161 = vmax.f32 %v2157, 1e-06
        %v2162 = vrsqrt.pop %v2158
        %v2163 = vmul.f32 %v2162, %v2158
        %v2164 = vmul.f32 %v2163, %v2162
        %v2165 = vmul.f32 0.5, %v2164
        %v2166 = vsub.f32 1.5, %v2165
        %v2167 = vmul.f32 %v2162, %v2166
        %vm2168 = vweird.f32 %v2158
        %vm2169 = vweird.f32 %v2162
        %vm2170 = vmor %vm2168, %vm2169
        %v2171 = vsel %vm2170, %v2162, %v2167
        %v2172 = vrsqrt.pop %v2159
        %v2173 = vmul.f32 %v2172, %v2159
        %v2174 = vmul.f32 %v2173, %v2172
        %v2175 = vmul.f32 0.5, %v2174
        %v2176 = vsub.f32 1.5, %v2175
        %v2177 = vmul.f32 %v2172, %v2176
        %vm2178 = vweird.f32 %v2159
        %vm2179 = vweird.f32 %v2172
        %vm2180 = vmor %vm2178, %vm2179
        %v2181 = vsel %vm2180, %v2172, %v2177
        %v2182 = vrsqrt.pop %v2160
        %v2183 = vmul.f32 %v2182, %v2160
        %v2184 = vmul.f32 %v2183, %v2182
        %v2185 = vmul.f32 0.5, %v2184
        %v2186 = vsub.f32 1.5, %v2185
        %v2187 = vmul.f32 %v2182, %v2186
        %vm2188 = vweird.f32 %v2160
        %vm2189 = vweird.f32 %v2182
        %vm2190 = vmor %vm2188, %vm2189
        %v2191 = vsel %vm2190, %v2182, %v2187
        %v2192 = vrsqrt.pop %v2161
        %v2193 = vmul.f32 %v2192, %v2161
        %v2194 = vmul.f32 %v2193, %v2192
        %v2195 = vmul.f32 0.5, %v2194
        %v2196 = vsub.f32 1.5, %v2195
        %v2197 = vmul.f32 %v2192, %v2196
        %vm2198 = vweird.f32 %v2161
        %vm2199 = vweird.f32 %v2192
        %vm2200 = vmor %vm2198, %vm2199
        %v2201 = vsel %vm2200, %v2192, %v2197
        %v2202 = vmul.f32 %v2074, %v2074
        %v2203 = vmul.f32 %v2075, %v2075
        %v2204 = vmul.f32 %v2076, %v2076
        %v2205 = vmul.f32 %v2077, %v2077
        %v2206 = vsel %vm373, %v2202, 0.0
        %2207 = vadd.xlane.f32.xlu0 %v2206
        %v2208 = vpop.xlane.xlu0 %2207
        %v2209 = vsel %vm373, %v2203, 0.0
        %2210 = vadd.xlane.f32.xlu0 %v2209
        %v2211 = vpop.xlane.xlu0 %2210
        %v2212 = vsel %vm373, %v2204, 0.0
        %2213 = vadd.xlane.f32.xlu0 %v2212
        %v2214 = vpop.xlane.xlu0 %2213
        %v2215 = vsel %vm373, %v2205, 0.0
        %2216 = vadd.xlane.f32.xlu0 %v2215
        %v2217 = vpop.xlane.xlu0 %2216
        %v2218 = vsub.f32 1.0, %v2208
        %v2219 = vsub.f32 1.0, %v2211
        %v2220 = vsub.f32 1.0, %v2214
        %v2221 = vsub.f32 1.0, %v2217
        %v2222 = vmax.f32 %v2218, 1e-06
        %v2223 = vmax.f32 %v2219, 1e-06
        %v2224 = vmax.f32 %v2220, 1e-06
        %v2225 = vmax.f32 %v2221, 1e-06
        %v2226 = vrsqrt.pop %v2222
        %v2227 = vmul.f32 %v2226, %v2222
        %v2228 = vmul.f32 %v2227, %v2226
        %v2229 = vmul.f32 0.5, %v2228
        %v2230 = vsub.f32 1.5, %v2229
        %v2231 = vmul.f32 %v2226, %v2230
        %vm2232 = vweird.f32 %v2222
        %vm2233 = vweird.f32 %v2226
        %vm2234 = vmor %vm2232, %vm2233
        %v2235 = vsel %vm2234, %v2226, %v2231
        %v2236 = vrsqrt.pop %v2223
        %v2237 = vmul.f32 %v2236, %v2223
        %v2238 = vmul.f32 %v2237, %v2236
        %v2239 = vmul.f32 0.5, %v2238
        %v2240 = vsub.f32 1.5, %v2239
        %v2241 = vmul.f32 %v2236, %v2240
        %vm2242 = vweird.f32 %v2223
        %vm2243 = vweird.f32 %v2236
        %vm2244 = vmor %vm2242, %vm2243
        %v2245 = vsel %vm2244, %v2236, %v2241
        %v2246 = vrsqrt.pop %v2224
        %v2247 = vmul.f32 %v2246, %v2224
        %v2248 = vmul.f32 %v2247, %v2246
        %v2249 = vmul.f32 0.5, %v2248
        %v2250 = vsub.f32 1.5, %v2249
        %v2251 = vmul.f32 %v2246, %v2250
        %vm2252 = vweird.f32 %v2224
        %vm2253 = vweird.f32 %v2246
        %vm2254 = vmor %vm2252, %vm2253
        %v2255 = vsel %vm2254, %v2246, %v2251
        %v2256 = vrsqrt.pop %v2225
        %v2257 = vmul.f32 %v2256, %v2225
        %v2258 = vmul.f32 %v2257, %v2256
        %v2259 = vmul.f32 0.5, %v2258
        %v2260 = vsub.f32 1.5, %v2259
        %v2261 = vmul.f32 %v2256, %v2260
        %vm2262 = vweird.f32 %v2225
        %vm2263 = vweird.f32 %v2256
        %vm2264 = vmor %vm2262, %vm2263
        %v2265 = vsel %vm2264, %v2256, %v2261
        %s2266 = sld [smem:[#allocation2 + $0x61]]
        %s2267 = ssub.f32 1.0, %s2266
        %v2268 = vstv %s2266
        %v2269 = vmul.f32 %v2268, %v2171
        %v2270 = vmul.f32 %v2268, %v2181
        %v2271 = vmul.f32 %v2268, %v2191
        %v2272 = vmul.f32 %v2268, %v2201
        %v2273 = vmul.f32 %v2269, %v2092
        %v2274 = vmul.f32 %v2270, %v2107
        %v2275 = vmul.f32 %v2271, %v2122
        %v2276 = vmul.f32 %v2272, %v2137
        %v2277 = vstv %s2267
        %v2278 = vmul.f32 %v2277, %v2235
        %v2279 = vmul.f32 %v2277, %v2245
        %v2280 = vmul.f32 %v2277, %v2255
        %v2281 = vmul.f32 %v2277, %v2265
        %v2282 = vmul.f32 %v2278, %v2074
        %v2283 = vmul.f32 %v2279, %v2075
        %v2284 = vmul.f32 %v2280, %v2076
        %v2285 = vmul.f32 %v2281, %v2077
        %v2286 = vadd.f32 %v2273, %v2282
        %v2287 = vadd.f32 %v2274, %v2283
        %v2288 = vadd.f32 %v2275, %v2284
        %v2289 = vadd.f32 %v2276, %v2285
        %v2290 = vadd.f32 %v2269, %v2278
        %v2291 = vadd.f32 %v2270, %v2279
        %v2292 = vadd.f32 %v2271, %v2280
        %v2293 = vadd.f32 %v2272, %v2281
        %v2294 = vrcp.pop %v2290
        %v2295 = vrcp.pop %v2291
        %v2296 = vrcp.pop %v2292
        %v2297 = vrcp.pop %v2293
        %v2298 = vmul.f32 %v2286, %v2294
        %v2299 = vmul.f32 %v2287, %v2295
        %v2300 = vmul.f32 %v2288, %v2296
        %v2301 = vmul.f32 %v2289, %v2297
        %v2302 = vmul.f32 %v2298, %v2298
        %v2303 = vmul.f32 %v2299, %v2299
        %v2304 = vmul.f32 %v2300, %v2300
        %v2305 = vmul.f32 %v2301, %v2301
        %v2306 = vsel %vm622, %v2302, 0.0
        %2307 = vadd.xlane.f32.xlu0 %v2306
        %v2308 = vpop.xlane.xlu0 %2307
        %v2309 = vsel %vm622, %v2303, 0.0
        %2310 = vadd.xlane.f32.xlu0 %v2309
        %v2311 = vpop.xlane.xlu0 %2310
        %v2312 = vsel %vm622, %v2304, 0.0
        %2313 = vadd.xlane.f32.xlu0 %v2312
        %v2314 = vpop.xlane.xlu0 %2313
        %v2315 = vsel %vm622, %v2305, 0.0
        %2316 = vadd.xlane.f32.xlu0 %v2315
        %v2317 = vpop.xlane.xlu0 %2316
        %v2318 = vsub.f32 1.0, %v2308
        %v2319 = vsub.f32 1.0, %v2311
        %v2320 = vsub.f32 1.0, %v2314
        %v2321 = vsub.f32 1.0, %v2317
        %v2322 = vmax.f32 %v2318, 0.0
        %v2323 = vmax.f32 %v2319, 0.0
        %v2324 = vmax.f32 %v2320, 0.0
        %v2325 = vmax.f32 %v2321, 0.0
        %v2326 = vrsqrt.pop %v2322
        %v2327 = vmul.f32 %v2326, %v2322
        %v2328 = vmul.f32 %v2327, %v2326
        %v2329 = vmul.f32 0.5, %v2328
        %v2330 = vsub.f32 1.5, %v2329
        %v2331 = vmul.f32 %v2326, %v2330
        %v2332 = vmul.f32 %v2322, %v2331
        %vm2333 = vcmp.eq.f32.partialorder %v2322, inf
        %v2334 = vsel %vm2333, %v2322, %v2332
        %vm2335 = vcmp.eq.f32.partialorder %v2322, 0.0
        %v2336 = vand.u32 %v2322, 2147483648
        %v2337 = vsel %vm2335, %v2336, %v2334
        %v2338 = vrsqrt.pop %v2323
        %v2339 = vmul.f32 %v2338, %v2323
        %v2340 = vmul.f32 %v2339, %v2338
        %v2341 = vmul.f32 0.5, %v2340
        %v2342 = vsub.f32 1.5, %v2341
        %v2343 = vmul.f32 %v2338, %v2342
        %v2344 = vmul.f32 %v2323, %v2343
        %vm2345 = vcmp.eq.f32.partialorder %v2323, inf
        %v2346 = vsel %vm2345, %v2323, %v2344
        %vm2347 = vcmp.eq.f32.partialorder %v2323, 0.0
        %v2348 = vand.u32 %v2323, 2147483648
        %v2349 = vsel %vm2347, %v2348, %v2346
        %v2350 = vrsqrt.pop %v2324
        %v2351 = vmul.f32 %v2350, %v2324
        %v2352 = vmul.f32 %v2351, %v2350
        %v2353 = vmul.f32 0.5, %v2352
        %v2354 = vsub.f32 1.5, %v2353
        %v2355 = vmul.f32 %v2350, %v2354
        %v2356 = vmul.f32 %v2324, %v2355
        %vm2357 = vcmp.eq.f32.partialorder %v2324, inf
        %v2358 = vsel %vm2357, %v2324, %v2356
        %vm2359 = vcmp.eq.f32.partialorder %v2324, 0.0
        %v2360 = vand.u32 %v2324, 2147483648
        %v2361 = vsel %vm2359, %v2360, %v2358
        %v2362 = vrsqrt.pop %v2325
        %v2363 = vmul.f32 %v2362, %v2325
        %v2364 = vmul.f32 %v2363, %v2362
        %v2365 = vmul.f32 0.5, %v2364
        %v2366 = vsub.f32 1.5, %v2365
        %v2367 = vmul.f32 %v2362, %v2366
        %v2368 = vmul.f32 %v2325, %v2367
        %vm2369 = vcmp.eq.f32.partialorder %v2325, inf
        %v2370 = vsel %vm2369, %v2325, %v2368
        %vm2371 = vcmp.eq.f32.partialorder %v2325, 0.0
        %v2372 = vand.u32 %v2325, 2147483648
        %v2373 = vsel %vm2371, %v2372, %v2370
        %v2374 = vadd.f32 %v2337, 1.0
        %v2375 = vadd.f32 %v2349, 1.0
        %v2376 = vadd.f32 %v2361, 1.0
        %v2377 = vadd.f32 %v2373, 1.0
        %v2378 = vrcp.pop %v2374
        %v2379 = vrcp.pop %v2375
        %v2380 = vrcp.pop %v2376
        %v2381 = vrcp.pop %v2377
        %v2382 = vmul.f32 %v2298, %v2378
        %v2383 = vmul.f32 %v2299, %v2379
        %v2384 = vmul.f32 %v2300, %v2380
        %v2385 = vmul.f32 %v2301, %v2381
        %v2386 = vmul.f32 %v2382, %v2382
        %v2387 = vmul.f32 %v2383, %v2383
        %v2388 = vmul.f32 %v2384, %v2384
        %v2389 = vmul.f32 %v2385, %v2385
        %v2390 = vsel %vm622, %v2386, 0.0
        %2391 = vadd.xlane.f32.xlu0 %v2390
        %v2392 = vpop.xlane.xlu0 %2391
        %v2393 = vsel %vm622, %v2387, 0.0
        %2394 = vadd.xlane.f32.xlu0 %v2393
        %v2395 = vpop.xlane.xlu0 %2394
        %v2396 = vsel %vm622, %v2388, 0.0
        %2397 = vadd.xlane.f32.xlu0 %v2396
        %v2398 = vpop.xlane.xlu0 %2397
        %v2399 = vsel %vm622, %v2389, 0.0
        %2400 = vadd.xlane.f32.xlu0 %v2399
        %v2401 = vpop.xlane.xlu0 %2400
        %v2402 = vsub.f32 1.0, %v2392
        %v2403 = vsub.f32 1.0, %v2395
        %v2404 = vsub.f32 1.0, %v2398
        %v2405 = vsub.f32 1.0, %v2401
        %v2406 = vmax.f32 %v2402, 1e-06
        %v2407 = vmax.f32 %v2403, 1e-06
        %v2408 = vmax.f32 %v2404, 1e-06
        %v2409 = vmax.f32 %v2405, 1e-06
        %v2410 = vadd.f32 %v2392, 1.0
        %v2411 = vadd.f32 %v2395, 1.0
        %v2412 = vadd.f32 %v2398, 1.0
        %v2413 = vadd.f32 %v2401, 1.0
        %v2414 = vrcp.pop %v2406
        %v2415 = vmul.f32 %v2406, %v2414
        %v2416 = vsub.f32 1.0, %v2415
        %v2417 = vmul.f32 %v2414, %v2416
        %v2418 = vadd.f32 %v2414, %v2417
        %vm2419 = vweird.f32 %v2406
        %vm2420 = vweird.f32 %v2414
        %vm2421 = vmor %vm2419, %vm2420
        %v2422 = vsel %vm2421, %v2414, %v2418
        %v2423 = vand.u32 2147483647, %v2406
        %vm2424 = vcmp.eq.f32.partialorder %v2423, 8.507059e+37
        %v2425 = vand.u32 %v2406, 2147483648
        %v2426 = vor.u32 1.1754944e-38, %v2425
        %v2427 = vsel %vm2424, %v2426, %v2422
        %v2428 = vmul.f32 %v2410, %v2427
        %v2429 = vrcp.pop %v2407
        %v2430 = vmul.f32 %v2407, %v2429
        %v2431 = vsub.f32 1.0, %v2430
        %v2432 = vmul.f32 %v2429, %v2431
        %v2433 = vadd.f32 %v2429, %v2432
        %vm2434 = vweird.f32 %v2407
        %vm2435 = vweird.f32 %v2429
        %vm2436 = vmor %vm2434, %vm2435
        %v2437 = vsel %vm2436, %v2429, %v2433
        %v2438 = vand.u32 2147483647, %v2407
        %vm2439 = vcmp.eq.f32.partialorder %v2438, 8.507059e+37
        %v2440 = vand.u32 %v2407, 2147483648
        %v2441 = vor.u32 1.1754944e-38, %v2440
        %v2442 = vsel %vm2439, %v2441, %v2437
        %v2443 = vmul.f32 %v2411, %v2442
        %v2444 = vrcp.pop %v2408
        %v2445 = vmul.f32 %v2408, %v2444
        %v2446 = vsub.f32 1.0, %v2445
        %v2447 = vmul.f32 %v2444, %v2446
        %v2448 = vadd.f32 %v2444, %v2447
        %vm2449 = vweird.f32 %v2408
        %vm2450 = vweird.f32 %v2444
        %vm2451 = vmor %vm2449, %vm2450
        %v2452 = vsel %vm2451, %v2444, %v2448
        %v2453 = vand.u32 2147483647, %v2408
        %vm2454 = vcmp.eq.f32.partialorder %v2453, 8.507059e+37
        %v2455 = vand.u32 %v2408, 2147483648
        %v2456 = vor.u32 1.1754944e-38, %v2455
        %v2457 = vsel %vm2454, %v2456, %v2452
        %v2458 = vmul.f32 %v2412, %v2457
        %v2459 = vrcp.pop %v2409
        %v2460 = vmul.f32 %v2409, %v2459
        %v2461 = vsub.f32 1.0, %v2460
        %v2462 = vmul.f32 %v2459, %v2461
        %v2463 = vadd.f32 %v2459, %v2462
        %vm2464 = vweird.f32 %v2409
        %vm2465 = vweird.f32 %v2459
        %vm2466 = vmor %vm2464, %vm2465
        %v2467 = vsel %vm2466, %v2459, %v2463
        %v2468 = vand.u32 2147483647, %v2409
        %vm2469 = vcmp.eq.f32.partialorder %v2468, 8.507059e+37
        %v2470 = vand.u32 %v2409, 2147483648
        %v2471 = vor.u32 1.1754944e-38, %v2470
        %v2472 = vsel %vm2469, %v2471, %v2467
        %v2473 = vmul.f32 %v2413, %v2472
        %v2474 = vmul.f32 %v2382, 2.0
        %v2475 = vmul.f32 %v2383, 2.0
        %v2476 = vmul.f32 %v2384, 2.0
        %v2477 = vmul.f32 %v2385, 2.0
        %v2478 = vmul.f32 %v2474, %v2427
        %v2479 = vmul.f32 %v2475, %v2442
        %v2480 = vmul.f32 %v2476, %v2457
        %v2481 = vmul.f32 %v2477, %v2472
        %v2482 = vperm.slane %v2478, 0
        %v2483 = vperm.slane %v2479, 0
        %v2484 = vperm.slane %v2480, 0
        %v2485 = vperm.slane %v2481, 0
        %v2486 = vmul.f32 %v2482, %v462
        %v2487 = vmul.f32 %v2483, %v463
        %v2488 = vmul.f32 %v2484, %v464
        %v2489 = vmul.f32 %v2485, %v465
        %v2490 = vsel %vm373, %v2486, 0.0
        %2491 = vadd.xlane.f32.xlu0 %v2490
        %v2492 = vpop.xlane.xlu0 %2491
        %v2493 = vsel %vm373, %v2487, 0.0
        %2494 = vadd.xlane.f32.xlu0 %v2493
        %v2495 = vpop.xlane.xlu0 %2494
        %v2496 = vsel %vm373, %v2488, 0.0
        %2497 = vadd.xlane.f32.xlu0 %v2496
        %v2498 = vpop.xlane.xlu0 %2497
        %v2499 = vsel %vm373, %v2489, 0.0
        %2500 = vadd.xlane.f32.xlu0 %v2499
        %v2501 = vpop.xlane.xlu0 %2500
        %v2502 = vperm.slane %v2428, 0
        %v2503 = vperm.slane %v2443, 0
        %v2504 = vperm.slane %v2458, 0
        %v2505 = vperm.slane %v2473, 0
        %v2506 = vmul.f32 %v2502, %v412
        %v2507 = vmul.f32 %v2503, %v427
        %v2508 = vmul.f32 %v2504, %v442
        %v2509 = vmul.f32 %v2505, %v457
        %v2510 = vsub.f32 %v2492, %v2506
        %v2511 = vsub.f32 %v2495, %v2507
        %v2512 = vsub.f32 %v2498, %v2508
        %v2513 = vsub.f32 %v2501, %v2509
        %v2514 = vsub.f32 0.0, %v2510
        %v2515 = vsub.f32 0.0, %v2511
        %v2516 = vsub.f32 0.0, %v2512
        %v2517 = vsub.f32 0.0, %v2513
        %v2518 = vsub.f32 %v2514, 1.0
        %v2519 = vsub.f32 %v2515, 1.0
        %v2520 = vsub.f32 %v2516, 1.0
        %v2521 = vsub.f32 %v2517, 1.0
        %v2522 = vmax.f32 %v2518, 1e-06
        %v2523 = vmax.f32 %v2519, 1e-06
        %v2524 = vmax.f32 %v2520, 1e-06
        %v2525 = vmax.f32 %v2521, 1e-06
        %v2526 = vadd.f32 %v2522, 1.0
        %v2527 = vadd.f32 %v2523, 1.0
        %v2528 = vadd.f32 %v2524, 1.0
        %v2529 = vadd.f32 %v2525, 1.0
        %v2530 = vadd.f32 %v2522, 2.0
        %v2531 = vadd.f32 %v2523, 2.0
        %v2532 = vadd.f32 %v2524, 2.0
        %v2533 = vadd.f32 %v2525, 2.0
        %v2534 = vmul.f32 %v2522, %v2530
        %v2535 = vmul.f32 %v2523, %v2531
        %v2536 = vmul.f32 %v2524, %v2532
        %v2537 = vmul.f32 %v2525, %v2533
        %v2538 = vrsqrt.pop %v2534
        %v2539 = vmul.f32 %v2538, %v2534
        %v2540 = vmul.f32 %v2539, %v2538
        %v2541 = vmul.f32 0.5, %v2540
        %v2542 = vsub.f32 1.5, %v2541
        %v2543 = vmul.f32 %v2538, %v2542
        %v2544 = vmul.f32 %v2534, %v2543
        %vm2545 = vcmp.eq.f32.partialorder %v2534, inf
        %v2546 = vsel %vm2545, %v2534, %v2544
        %vm2547 = vcmp.eq.f32.partialorder %v2534, 0.0
        %v2548 = vand.u32 %v2534, 2147483648
        %v2549 = vsel %vm2547, %v2548, %v2546
        %v2550 = vrsqrt.pop %v2535
        %v2551 = vmul.f32 %v2550, %v2535
        %v2552 = vmul.f32 %v2551, %v2550
        %v2553 = vmul.f32 0.5, %v2552
        %v2554 = vsub.f32 1.5, %v2553
        %v2555 = vmul.f32 %v2550, %v2554
        %v2556 = vmul.f32 %v2535, %v2555
        %vm2557 = vcmp.eq.f32.partialorder %v2535, inf
        %v2558 = vsel %vm2557, %v2535, %v2556
        %vm2559 = vcmp.eq.f32.partialorder %v2535, 0.0
        %v2560 = vand.u32 %v2535, 2147483648
        %v2561 = vsel %vm2559, %v2560, %v2558
        %v2562 = vrsqrt.pop %v2536
        %v2563 = vmul.f32 %v2562, %v2536
        %v2564 = vmul.f32 %v2563, %v2562
        %v2565 = vmul.f32 0.5, %v2564
        %v2566 = vsub.f32 1.5, %v2565
        %v2567 = vmul.f32 %v2562, %v2566
        %v2568 = vmul.f32 %v2536, %v2567
        %vm2569 = vcmp.eq.f32.partialorder %v2536, inf
        %v2570 = vsel %vm2569, %v2536, %v2568
        %vm2571 = vcmp.eq.f32.partialorder %v2536, 0.0
        %v2572 = vand.u32 %v2536, 2147483648
        %v2573 = vsel %vm2571, %v2572, %v2570
        %v2574 = vrsqrt.pop %v2537
        %v2575 = vmul.f32 %v2574, %v2537
        %v2576 = vmul.f32 %v2575, %v2574
        %v2577 = vmul.f32 0.5, %v2576
        %v2578 = vsub.f32 1.5, %v2577
        %v2579 = vmul.f32 %v2574, %v2578
        %v2580 = vmul.f32 %v2537, %v2579
        %vm2581 = vcmp.eq.f32.partialorder %v2537, inf
        %v2582 = vsel %vm2581, %v2537, %v2580
        %vm2583 = vcmp.eq.f32.partialorder %v2537, 0.0
        %v2584 = vand.u32 %v2537, 2147483648
        %v2585 = vsel %vm2583, %v2584, %v2582
        %v2586 = vadd.f32 %v2526, %v2549
        %v2587 = vadd.f32 %v2527, %v2561
        %v2588 = vadd.f32 %v2528, %v2573
        %v2589 = vadd.f32 %v2529, %v2585
        %v2590 = vlog2.pop %v2586
        %v2591 = vmul.f32 %v2590, 0.6931472
        %v2592 = vlog2.pop %v2587
        %v2593 = vmul.f32 %v2592, 0.6931472
        %v2594 = vlog2.pop %v2588
        %v2595 = vmul.f32 %v2594, 0.6931472
        %v2596 = vlog2.pop %v2589
        %v2597 = vmul.f32 %v2596, 0.6931472
        %s2598 = sld [smem:[#allocation2 + $0x80]]
        %v2599 = vstv %s2598
        %v2600 = vmul.f32 %v2591, %v2599
        %v2601 = vmul.f32 %v2593, %v2599
        %v2602 = vmul.f32 %v2595, %v2599
        %v2603 = vmul.f32 %v2597, %v2599
        %s2604 = sld [smem:[#allocation2 + $0x88]]
        %v2605 = vstv %s2604
        %v2606 = vadd.f32 %v2600, %v2605
        %v2607 = vadd.f32 %v2601, %v2605
        %v2608 = vadd.f32 %v2602, %v2605
        %v2609 = vadd.f32 %v2603, %v2605
        %v2610 = vmax.f32 %v2606, 0.0
        %v2611 = vmax.f32 %v2607, 0.0
        %v2612 = vmax.f32 %v2608, 0.0
        %v2613 = vmax.f32 %v2609, 0.0
        %s2614 = sld [smem:[#allocation2 + $0x81]]
        %v2615 = vstv %s2614
        %v2616 = vmul.f32 %v2591, %v2615
        %v2617 = vmul.f32 %v2593, %v2615
        %v2618 = vmul.f32 %v2595, %v2615
        %v2619 = vmul.f32 %v2597, %v2615
        %s2620 = sld [smem:[#allocation2 + $0x89]]
        %v2621 = vstv %s2620
        %v2622 = vadd.f32 %v2616, %v2621
        %v2623 = vadd.f32 %v2617, %v2621
        %v2624 = vadd.f32 %v2618, %v2621
        %v2625 = vadd.f32 %v2619, %v2621
        %v2626 = vmax.f32 %v2622, 0.0
        %v2627 = vmax.f32 %v2623, 0.0
        %v2628 = vmax.f32 %v2624, 0.0
        %v2629 = vmax.f32 %v2625, 0.0
        %s2630 = sld [smem:[#allocation2 + $0x82]]
        %v2631 = vstv %s2630
        %v2632 = vmul.f32 %v2591, %v2631
        %v2633 = vmul.f32 %v2593, %v2631
        %v2634 = vmul.f32 %v2595, %v2631
        %v2635 = vmul.f32 %v2597, %v2631
        %s2636 = sld [smem:[#allocation2 + $0x8a]]
        %v2637 = vstv %s2636
        %v2638 = vadd.f32 %v2632, %v2637
        %v2639 = vadd.f32 %v2633, %v2637
        %v2640 = vadd.f32 %v2634, %v2637
        %v2641 = vadd.f32 %v2635, %v2637
        %v2642 = vmax.f32 %v2638, 0.0
        %v2643 = vmax.f32 %v2639, 0.0
        %v2644 = vmax.f32 %v2640, 0.0
        %v2645 = vmax.f32 %v2641, 0.0
        %s2646 = sld [smem:[#allocation2 + $0x83]]
        %v2647 = vstv %s2646
        %v2648 = vmul.f32 %v2591, %v2647
        %v2649 = vmul.f32 %v2593, %v2647
        %v2650 = vmul.f32 %v2595, %v2647
        %v2651 = vmul.f32 %v2597, %v2647
        %s2652 = sld [smem:[#allocation2 + $0x8b]]
        %v2653 = vstv %s2652
        %v2654 = vadd.f32 %v2648, %v2653
        %v2655 = vadd.f32 %v2649, %v2653
        %v2656 = vadd.f32 %v2650, %v2653
        %v2657 = vadd.f32 %v2651, %v2653
        %v2658 = vmax.f32 %v2654, 0.0
        %v2659 = vmax.f32 %v2655, 0.0
        %v2660 = vmax.f32 %v2656, 0.0
        %v2661 = vmax.f32 %v2657, 0.0
        %s2662 = sld [smem:[#allocation2 + $0x84]]
        %v2663 = vstv %s2662
        %v2664 = vmul.f32 %v2591, %v2663
        %v2665 = vmul.f32 %v2593, %v2663
        %v2666 = vmul.f32 %v2595, %v2663
        %v2667 = vmul.f32 %v2597, %v2663
        %s2668 = sld [smem:[#allocation2 + $0x8c]]
        %v2669 = vstv %s2668
        %v2670 = vadd.f32 %v2664, %v2669
        %v2671 = vadd.f32 %v2665, %v2669
        %v2672 = vadd.f32 %v2666, %v2669
        %v2673 = vadd.f32 %v2667, %v2669
        %v2674 = vmax.f32 %v2670, 0.0
        %v2675 = vmax.f32 %v2671, 0.0
        %v2676 = vmax.f32 %v2672, 0.0
        %v2677 = vmax.f32 %v2673, 0.0
        %s2678 = sld [smem:[#allocation2 + $0x85]]
        %v2679 = vstv %s2678
        %v2680 = vmul.f32 %v2591, %v2679
        %v2681 = vmul.f32 %v2593, %v2679
        %v2682 = vmul.f32 %v2595, %v2679
        %v2683 = vmul.f32 %v2597, %v2679
        %s2684 = sld [smem:[#allocation2 + $0x8d]]
        %v2685 = vstv %s2684
        %v2686 = vadd.f32 %v2680, %v2685
        %v2687 = vadd.f32 %v2681, %v2685
        %v2688 = vadd.f32 %v2682, %v2685
        %v2689 = vadd.f32 %v2683, %v2685
        %v2690 = vmax.f32 %v2686, 0.0
        %v2691 = vmax.f32 %v2687, 0.0
        %v2692 = vmax.f32 %v2688, 0.0
        %v2693 = vmax.f32 %v2689, 0.0
        %s2694 = sld [smem:[#allocation2 + $0x86]]
        %v2695 = vstv %s2694
        %v2696 = vmul.f32 %v2591, %v2695
        %v2697 = vmul.f32 %v2593, %v2695
        %v2698 = vmul.f32 %v2595, %v2695
        %v2699 = vmul.f32 %v2597, %v2695
        %s2700 = sld [smem:[#allocation2 + $0x8e]]
        %v2701 = vstv %s2700
        %v2702 = vadd.f32 %v2696, %v2701
        %v2703 = vadd.f32 %v2697, %v2701
        %v2704 = vadd.f32 %v2698, %v2701
        %v2705 = vadd.f32 %v2699, %v2701
        %v2706 = vmax.f32 %v2702, 0.0
        %v2707 = vmax.f32 %v2703, 0.0
        %v2708 = vmax.f32 %v2704, 0.0
        %v2709 = vmax.f32 %v2705, 0.0
        %s2710 = sld [smem:[#allocation2 + $0x87]]
        %v2711 = vstv %s2710
        %v2712 = vmul.f32 %v2591, %v2711
        %v2713 = vmul.f32 %v2593, %v2711
        %v2714 = vmul.f32 %v2595, %v2711
        %v2715 = vmul.f32 %v2597, %v2711
        %s2716 = sld [smem:[#allocation2 + $0x8f]]
        %v2717 = vstv %s2716
        %v2718 = vadd.f32 %v2712, %v2717
        %v2719 = vadd.f32 %v2713, %v2717
        %v2720 = vadd.f32 %v2714, %v2717
        %v2721 = vadd.f32 %v2715, %v2717
        %v2722 = vmax.f32 %v2718, 0.0
        %v2723 = vmax.f32 %v2719, 0.0
        %v2724 = vmax.f32 %v2720, 0.0
        %v2725 = vmax.f32 %v2721, 0.0
        %s2726 = sld [smem:[#allocation2 + $0x90]]
        %v2727 = vstv %s2726
        %v2728 = vmul.f32 %v2610, %v2727
        %v2729 = vmul.f32 %v2611, %v2727
        %v2730 = vmul.f32 %v2612, %v2727
        %v2731 = vmul.f32 %v2613, %v2727
        %s2732 = sld [smem:[#allocation2 + $0x98]]
        %v2733 = vstv %s2732
        %v2734 = vmul.f32 %v2626, %v2733
        %v2735 = vmul.f32 %v2627, %v2733
        %v2736 = vmul.f32 %v2628, %v2733
        %v2737 = vmul.f32 %v2629, %v2733
        %v2738 = vadd.f32 %v2728, %v2734
        %v2739 = vadd.f32 %v2729, %v2735
        %v2740 = vadd.f32 %v2730, %v2736
        %v2741 = vadd.f32 %v2731, %v2737
        %s2742 = sld [smem:[#allocation2 + $0xa0]]
        %v2743 = vstv %s2742
        %v2744 = vmul.f32 %v2642, %v2743
        %v2745 = vmul.f32 %v2643, %v2743
        %v2746 = vmul.f32 %v2644, %v2743
        %v2747 = vmul.f32 %v2645, %v2743
        %v2748 = vadd.f32 %v2738, %v2744
        %v2749 = vadd.f32 %v2739, %v2745
        %v2750 = vadd.f32 %v2740, %v2746
        %v2751 = vadd.f32 %v2741, %v2747
        %s2752 = sld [smem:[#allocation2 + $0xa8]]
        %v2753 = vstv %s2752
        %v2754 = vmul.f32 %v2658, %v2753
        %v2755 = vmul.f32 %v2659, %v2753
        %v2756 = vmul.f32 %v2660, %v2753
        %v2757 = vmul.f32 %v2661, %v2753
        %v2758 = vadd.f32 %v2748, %v2754
        %v2759 = vadd.f32 %v2749, %v2755
        %v2760 = vadd.f32 %v2750, %v2756
        %v2761 = vadd.f32 %v2751, %v2757
        %s2762 = sld [smem:[#allocation2 + $0xb0]]
        %v2763 = vstv %s2762
        %v2764 = vmul.f32 %v2674, %v2763
        %v2765 = vmul.f32 %v2675, %v2763
        %v2766 = vmul.f32 %v2676, %v2763
        %v2767 = vmul.f32 %v2677, %v2763
        %v2768 = vadd.f32 %v2758, %v2764
        %v2769 = vadd.f32 %v2759, %v2765
        %v2770 = vadd.f32 %v2760, %v2766
        %v2771 = vadd.f32 %v2761, %v2767
        %s2772 = sld [smem:[#allocation2 + $0xb8]]
        %v2773 = vstv %s2772
        %v2774 = vmul.f32 %v2690, %v2773
        %v2775 = vmul.f32 %v2691, %v2773
        %v2776 = vmul.f32 %v2692, %v2773
        %v2777 = vmul.f32 %v2693, %v2773
        %v2778 = vadd.f32 %v2768, %v2774
        %v2779 = vadd.f32 %v2769, %v2775
        %v2780 = vadd.f32 %v2770, %v2776
        %v2781 = vadd.f32 %v2771, %v2777
        %s2782 = sld [smem:[#allocation2 + $0xc0]]
        %v2783 = vstv %s2782
        %v2784 = vmul.f32 %v2706, %v2783
        %v2785 = vmul.f32 %v2707, %v2783
        %v2786 = vmul.f32 %v2708, %v2783
        %v2787 = vmul.f32 %v2709, %v2783
        %v2788 = vadd.f32 %v2778, %v2784
        %v2789 = vadd.f32 %v2779, %v2785
        %v2790 = vadd.f32 %v2780, %v2786
        %v2791 = vadd.f32 %v2781, %v2787
        %s2792 = sld [smem:[#allocation2 + $0xc8]]
        %v2793 = vstv %s2792
        %v2794 = vmul.f32 %v2722, %v2793
        %v2795 = vmul.f32 %v2723, %v2793
        %v2796 = vmul.f32 %v2724, %v2793
        %v2797 = vmul.f32 %v2725, %v2793
        %v2798 = vadd.f32 %v2788, %v2794
        %v2799 = vadd.f32 %v2789, %v2795
        %v2800 = vadd.f32 %v2790, %v2796
        %v2801 = vadd.f32 %v2791, %v2797
        %s2802 = sld [smem:[#allocation2 + $0xd0]]
        %v2803 = vstv %s2802
        %v2804 = vadd.f32 %v2798, %v2803
        %v2805 = vadd.f32 %v2799, %v2803
        %v2806 = vadd.f32 %v2800, %v2803
        %v2807 = vadd.f32 %v2801, %v2803
        %v2808 = vmax.f32 %v2804, 0.0
        %v2809 = vmax.f32 %v2805, 0.0
        %v2810 = vmax.f32 %v2806, 0.0
        %v2811 = vmax.f32 %v2807, 0.0
        %s2812 = sld [smem:[#allocation2 + $0x91]]
        %v2813 = vstv %s2812
        %v2814 = vmul.f32 %v2610, %v2813
        %v2815 = vmul.f32 %v2611, %v2813
        %v2816 = vmul.f32 %v2612, %v2813
        %v2817 = vmul.f32 %v2613, %v2813
        %s2818 = sld [smem:[#allocation2 + $0x99]]
        %v2819 = vstv %s2818
        %v2820 = vmul.f32 %v2626, %v2819
        %v2821 = vmul.f32 %v2627, %v2819
        %v2822 = vmul.f32 %v2628, %v2819
        %v2823 = vmul.f32 %v2629, %v2819
        %v2824 = vadd.f32 %v2814, %v2820
        %v2825 = vadd.f32 %v2815, %v2821
        %v2826 = vadd.f32 %v2816, %v2822
        %v2827 = vadd.f32 %v2817, %v2823
        %s2828 = sld [smem:[#allocation2 + $0xa1]]
        %v2829 = vstv %s2828
        %v2830 = vmul.f32 %v2642, %v2829
        %v2831 = vmul.f32 %v2643, %v2829
        %v2832 = vmul.f32 %v2644, %v2829
        %v2833 = vmul.f32 %v2645, %v2829
        %v2834 = vadd.f32 %v2824, %v2830
        %v2835 = vadd.f32 %v2825, %v2831
        %v2836 = vadd.f32 %v2826, %v2832
        %v2837 = vadd.f32 %v2827, %v2833
        %s2838 = sld [smem:[#allocation2 + $0xa9]]
        %v2839 = vstv %s2838
        %v2840 = vmul.f32 %v2658, %v2839
        %v2841 = vmul.f32 %v2659, %v2839
        %v2842 = vmul.f32 %v2660, %v2839
        %v2843 = vmul.f32 %v2661, %v2839
        %v2844 = vadd.f32 %v2834, %v2840
        %v2845 = vadd.f32 %v2835, %v2841
        %v2846 = vadd.f32 %v2836, %v2842
        %v2847 = vadd.f32 %v2837, %v2843
        %s2848 = sld [smem:[#allocation2 + $0xb1]]
        %v2849 = vstv %s2848
        %v2850 = vmul.f32 %v2674, %v2849
        %v2851 = vmul.f32 %v2675, %v2849
        %v2852 = vmul.f32 %v2676, %v2849
        %v2853 = vmul.f32 %v2677, %v2849
        %v2854 = vadd.f32 %v2844, %v2850
        %v2855 = vadd.f32 %v2845, %v2851
        %v2856 = vadd.f32 %v2846, %v2852
        %v2857 = vadd.f32 %v2847, %v2853
        %s2858 = sld [smem:[#allocation2 + $0xb9]]
        %v2859 = vstv %s2858
        %v2860 = vmul.f32 %v2690, %v2859
        %v2861 = vmul.f32 %v2691, %v2859
        %v2862 = vmul.f32 %v2692, %v2859
        %v2863 = vmul.f32 %v2693, %v2859
        %v2864 = vadd.f32 %v2854, %v2860
        %v2865 = vadd.f32 %v2855, %v2861
        %v2866 = vadd.f32 %v2856, %v2862
        %v2867 = vadd.f32 %v2857, %v2863
        %s2868 = sld [smem:[#allocation2 + $0xc1]]
        %v2869 = vstv %s2868
        %v2870 = vmul.f32 %v2706, %v2869
        %v2871 = vmul.f32 %v2707, %v2869
        %v2872 = vmul.f32 %v2708, %v2869
        %v2873 = vmul.f32 %v2709, %v2869
        %v2874 = vadd.f32 %v2864, %v2870
        %v2875 = vadd.f32 %v2865, %v2871
        %v2876 = vadd.f32 %v2866, %v2872
        %v2877 = vadd.f32 %v2867, %v2873
        %s2878 = sld [smem:[#allocation2 + $0xc9]]
        %v2879 = vstv %s2878
        %v2880 = vmul.f32 %v2722, %v2879
        %v2881 = vmul.f32 %v2723, %v2879
        %v2882 = vmul.f32 %v2724, %v2879
        %v2883 = vmul.f32 %v2725, %v2879
        %v2884 = vadd.f32 %v2874, %v2880
        %v2885 = vadd.f32 %v2875, %v2881
        %v2886 = vadd.f32 %v2876, %v2882
        %v2887 = vadd.f32 %v2877, %v2883
        %s2888 = sld [smem:[#allocation2 + $0xd1]]
        %v2889 = vstv %s2888
        %v2890 = vadd.f32 %v2884, %v2889
        %v2891 = vadd.f32 %v2885, %v2889
        %v2892 = vadd.f32 %v2886, %v2889
        %v2893 = vadd.f32 %v2887, %v2889
        %v2894 = vmax.f32 %v2890, 0.0
        %v2895 = vmax.f32 %v2891, 0.0
        %v2896 = vmax.f32 %v2892, 0.0
        %v2897 = vmax.f32 %v2893, 0.0
        %s2898 = sld [smem:[#allocation2 + $0x92]]
        %v2899 = vstv %s2898
        %v2900 = vmul.f32 %v2610, %v2899
        %v2901 = vmul.f32 %v2611, %v2899
        %v2902 = vmul.f32 %v2612, %v2899
        %v2903 = vmul.f32 %v2613, %v2899
        %s2904 = sld [smem:[#allocation2 + $0x9a]]
        %v2905 = vstv %s2904
        %v2906 = vmul.f32 %v2626, %v2905
        %v2907 = vmul.f32 %v2627, %v2905
        %v2908 = vmul.f32 %v2628, %v2905
        %v2909 = vmul.f32 %v2629, %v2905
        %v2910 = vadd.f32 %v2900, %v2906
        %v2911 = vadd.f32 %v2901, %v2907
        %v2912 = vadd.f32 %v2902, %v2908
        %v2913 = vadd.f32 %v2903, %v2909
        %s2914 = sld [smem:[#allocation2 + $0xa2]]
        %v2915 = vstv %s2914
        %v2916 = vmul.f32 %v2642, %v2915
        %v2917 = vmul.f32 %v2643, %v2915
        %v2918 = vmul.f32 %v2644, %v2915
        %v2919 = vmul.f32 %v2645, %v2915
        %v2920 = vadd.f32 %v2910, %v2916
        %v2921 = vadd.f32 %v2911, %v2917
        %v2922 = vadd.f32 %v2912, %v2918
        %v2923 = vadd.f32 %v2913, %v2919
        %s2924 = sld [smem:[#allocation2 + $0xaa]]
        %v2925 = vstv %s2924
        %v2926 = vmul.f32 %v2658, %v2925
        %v2927 = vmul.f32 %v2659, %v2925
        %v2928 = vmul.f32 %v2660, %v2925
        %v2929 = vmul.f32 %v2661, %v2925
        %v2930 = vadd.f32 %v2920, %v2926
        %v2931 = vadd.f32 %v2921, %v2927
        %v2932 = vadd.f32 %v2922, %v2928
        %v2933 = vadd.f32 %v2923, %v2929
        %s2934 = sld [smem:[#allocation2 + $0xb2]]
        %v2935 = vstv %s2934
        %v2936 = vmul.f32 %v2674, %v2935
        %v2937 = vmul.f32 %v2675, %v2935
        %v2938 = vmul.f32 %v2676, %v2935
        %v2939 = vmul.f32 %v2677, %v2935
        %v2940 = vadd.f32 %v2930, %v2936
        %v2941 = vadd.f32 %v2931, %v2937
        %v2942 = vadd.f32 %v2932, %v2938
        %v2943 = vadd.f32 %v2933, %v2939
        %s2944 = sld [smem:[#allocation2 + $0xba]]
        %v2945 = vstv %s2944
        %v2946 = vmul.f32 %v2690, %v2945
        %v2947 = vmul.f32 %v2691, %v2945
        %v2948 = vmul.f32 %v2692, %v2945
        %v2949 = vmul.f32 %v2693, %v2945
        %v2950 = vadd.f32 %v2940, %v2946
        %v2951 = vadd.f32 %v2941, %v2947
        %v2952 = vadd.f32 %v2942, %v2948
        %v2953 = vadd.f32 %v2943, %v2949
        %s2954 = sld [smem:[#allocation2 + $0xc2]]
        %v2955 = vstv %s2954
        %v2956 = vmul.f32 %v2706, %v2955
        %v2957 = vmul.f32 %v2707, %v2955
        %v2958 = vmul.f32 %v2708, %v2955
        %v2959 = vmul.f32 %v2709, %v2955
        %v2960 = vadd.f32 %v2950, %v2956
        %v2961 = vadd.f32 %v2951, %v2957
        %v2962 = vadd.f32 %v2952, %v2958
        %v2963 = vadd.f32 %v2953, %v2959
        %s2964 = sld [smem:[#allocation2 + $0xca]]
        %v2965 = vstv %s2964
        %v2966 = vmul.f32 %v2722, %v2965
        %v2967 = vmul.f32 %v2723, %v2965
        %v2968 = vmul.f32 %v2724, %v2965
        %v2969 = vmul.f32 %v2725, %v2965
        %v2970 = vadd.f32 %v2960, %v2966
        %v2971 = vadd.f32 %v2961, %v2967
        %v2972 = vadd.f32 %v2962, %v2968
        %v2973 = vadd.f32 %v2963, %v2969
        %s2974 = sld [smem:[#allocation2 + $0xd2]]
        %v2975 = vstv %s2974
        %v2976 = vadd.f32 %v2970, %v2975
        %v2977 = vadd.f32 %v2971, %v2975
        %v2978 = vadd.f32 %v2972, %v2975
        %v2979 = vadd.f32 %v2973, %v2975
        %v2980 = vmax.f32 %v2976, 0.0
        %v2981 = vmax.f32 %v2977, 0.0
        %v2982 = vmax.f32 %v2978, 0.0
        %v2983 = vmax.f32 %v2979, 0.0
        %s2984 = sld [smem:[#allocation2 + $0x93]]
        %v2985 = vstv %s2984
        %v2986 = vmul.f32 %v2610, %v2985
        %v2987 = vmul.f32 %v2611, %v2985
        %v2988 = vmul.f32 %v2612, %v2985
        %v2989 = vmul.f32 %v2613, %v2985
        %s2990 = sld [smem:[#allocation2 + $0x9b]]
        %v2991 = vstv %s2990
        %v2992 = vmul.f32 %v2626, %v2991
        %v2993 = vmul.f32 %v2627, %v2991
        %v2994 = vmul.f32 %v2628, %v2991
        %v2995 = vmul.f32 %v2629, %v2991
        %v2996 = vadd.f32 %v2986, %v2992
        %v2997 = vadd.f32 %v2987, %v2993
        %v2998 = vadd.f32 %v2988, %v2994
        %v2999 = vadd.f32 %v2989, %v2995
        %s3000 = sld [smem:[#allocation2 + $0xa3]]
        %v3001 = vstv %s3000
        %v3002 = vmul.f32 %v2642, %v3001
        %v3003 = vmul.f32 %v2643, %v3001
        %v3004 = vmul.f32 %v2644, %v3001
        %v3005 = vmul.f32 %v2645, %v3001
        %v3006 = vadd.f32 %v2996, %v3002
        %v3007 = vadd.f32 %v2997, %v3003
        %v3008 = vadd.f32 %v2998, %v3004
        %v3009 = vadd.f32 %v2999, %v3005
        %s3010 = sld [smem:[#allocation2 + $0xab]]
        %v3011 = vstv %s3010
        %v3012 = vmul.f32 %v2658, %v3011
        %v3013 = vmul.f32 %v2659, %v3011
        %v3014 = vmul.f32 %v2660, %v3011
        %v3015 = vmul.f32 %v2661, %v3011
        %v3016 = vadd.f32 %v3006, %v3012
        %v3017 = vadd.f32 %v3007, %v3013
        %v3018 = vadd.f32 %v3008, %v3014
        %v3019 = vadd.f32 %v3009, %v3015
        %s3020 = sld [smem:[#allocation2 + $0xb3]]
        %v3021 = vstv %s3020
        %v3022 = vmul.f32 %v2674, %v3021
        %v3023 = vmul.f32 %v2675, %v3021
        %v3024 = vmul.f32 %v2676, %v3021
        %v3025 = vmul.f32 %v2677, %v3021
        %v3026 = vadd.f32 %v3016, %v3022
        %v3027 = vadd.f32 %v3017, %v3023
        %v3028 = vadd.f32 %v3018, %v3024
        %v3029 = vadd.f32 %v3019, %v3025
        %s3030 = sld [smem:[#allocation2 + $0xbb]]
        %v3031 = vstv %s3030
        %v3032 = vmul.f32 %v2690, %v3031
        %v3033 = vmul.f32 %v2691, %v3031
        %v3034 = vmul.f32 %v2692, %v3031
        %v3035 = vmul.f32 %v2693, %v3031
        %v3036 = vadd.f32 %v3026, %v3032
        %v3037 = vadd.f32 %v3027, %v3033
        %v3038 = vadd.f32 %v3028, %v3034
        %v3039 = vadd.f32 %v3029, %v3035
        %s3040 = sld [smem:[#allocation2 + $0xc3]]
        %v3041 = vstv %s3040
        %v3042 = vmul.f32 %v2706, %v3041
        %v3043 = vmul.f32 %v2707, %v3041
        %v3044 = vmul.f32 %v2708, %v3041
        %v3045 = vmul.f32 %v2709, %v3041
        %v3046 = vadd.f32 %v3036, %v3042
        %v3047 = vadd.f32 %v3037, %v3043
        %v3048 = vadd.f32 %v3038, %v3044
        %v3049 = vadd.f32 %v3039, %v3045
        %s3050 = sld [smem:[#allocation2 + $0xcb]]
        %v3051 = vstv %s3050
        %v3052 = vmul.f32 %v2722, %v3051
        %v3053 = vmul.f32 %v2723, %v3051
        %v3054 = vmul.f32 %v2724, %v3051
        %v3055 = vmul.f32 %v2725, %v3051
        %v3056 = vadd.f32 %v3046, %v3052
        %v3057 = vadd.f32 %v3047, %v3053
        %v3058 = vadd.f32 %v3048, %v3054
        %v3059 = vadd.f32 %v3049, %v3055
        %s3060 = sld [smem:[#allocation2 + $0xd3]]
        %v3061 = vstv %s3060
        %v3062 = vadd.f32 %v3056, %v3061
        %v3063 = vadd.f32 %v3057, %v3061
        %v3064 = vadd.f32 %v3058, %v3061
        %v3065 = vadd.f32 %v3059, %v3061
        %v3066 = vmax.f32 %v3062, 0.0
        %v3067 = vmax.f32 %v3063, 0.0
        %v3068 = vmax.f32 %v3064, 0.0
        %v3069 = vmax.f32 %v3065, 0.0
        %s3070 = sld [smem:[#allocation2 + $0x94]]
        %v3071 = vstv %s3070
        %v3072 = vmul.f32 %v2610, %v3071
        %v3073 = vmul.f32 %v2611, %v3071
        %v3074 = vmul.f32 %v2612, %v3071
        %v3075 = vmul.f32 %v2613, %v3071
        %s3076 = sld [smem:[#allocation2 + $0x9c]]
        %v3077 = vstv %s3076
        %v3078 = vmul.f32 %v2626, %v3077
        %v3079 = vmul.f32 %v2627, %v3077
        %v3080 = vmul.f32 %v2628, %v3077
        %v3081 = vmul.f32 %v2629, %v3077
        %v3082 = vadd.f32 %v3072, %v3078
        %v3083 = vadd.f32 %v3073, %v3079
        %v3084 = vadd.f32 %v3074, %v3080
        %v3085 = vadd.f32 %v3075, %v3081
        %s3086 = sld [smem:[#allocation2 + $0xa4]]
        %v3087 = vstv %s3086
        %v3088 = vmul.f32 %v2642, %v3087
        %v3089 = vmul.f32 %v2643, %v3087
        %v3090 = vmul.f32 %v2644, %v3087
        %v3091 = vmul.f32 %v2645, %v3087
        %v3092 = vadd.f32 %v3082, %v3088
        %v3093 = vadd.f32 %v3083, %v3089
        %v3094 = vadd.f32 %v3084, %v3090
        %v3095 = vadd.f32 %v3085, %v3091
        %s3096 = sld [smem:[#allocation2 + $0xac]]
        %v3097 = vstv %s3096
        %v3098 = vmul.f32 %v2658, %v3097
        %v3099 = vmul.f32 %v2659, %v3097
        %v3100 = vmul.f32 %v2660, %v3097
        %v3101 = vmul.f32 %v2661, %v3097
        %v3102 = vadd.f32 %v3092, %v3098
        %v3103 = vadd.f32 %v3093, %v3099
        %v3104 = vadd.f32 %v3094, %v3100
        %v3105 = vadd.f32 %v3095, %v3101
        %s3106 = sld [smem:[#allocation2 + $0xb4]]
        %v3107 = vstv %s3106
        %v3108 = vmul.f32 %v2674, %v3107
        %v3109 = vmul.f32 %v2675, %v3107
        %v3110 = vmul.f32 %v2676, %v3107
        %v3111 = vmul.f32 %v2677, %v3107
        %v3112 = vadd.f32 %v3102, %v3108
        %v3113 = vadd.f32 %v3103, %v3109
        %v3114 = vadd.f32 %v3104, %v3110
        %v3115 = vadd.f32 %v3105, %v3111
        %s3116 = sld [smem:[#allocation2 + $0xbc]]
        %v3117 = vstv %s3116
        %v3118 = vmul.f32 %v2690, %v3117
        %v3119 = vmul.f32 %v2691, %v3117
        %v3120 = vmul.f32 %v2692, %v3117
        %v3121 = vmul.f32 %v2693, %v3117
        %v3122 = vadd.f32 %v3112, %v3118
        %v3123 = vadd.f32 %v3113, %v3119
        %v3124 = vadd.f32 %v3114, %v3120
        %v3125 = vadd.f32 %v3115, %v3121
        %s3126 = sld [smem:[#allocation2 + $0xc4]]
        %v3127 = vstv %s3126
        %v3128 = vmul.f32 %v2706, %v3127
        %v3129 = vmul.f32 %v2707, %v3127
        %v3130 = vmul.f32 %v2708, %v3127
        %v3131 = vmul.f32 %v2709, %v3127
        %v3132 = vadd.f32 %v3122, %v3128
        %v3133 = vadd.f32 %v3123, %v3129
        %v3134 = vadd.f32 %v3124, %v3130
        %v3135 = vadd.f32 %v3125, %v3131
        %s3136 = sld [smem:[#allocation2 + $0xcc]]
        %v3137 = vstv %s3136
        %v3138 = vmul.f32 %v2722, %v3137
        %v3139 = vmul.f32 %v2723, %v3137
        %v3140 = vmul.f32 %v2724, %v3137
        %v3141 = vmul.f32 %v2725, %v3137
        %v3142 = vadd.f32 %v3132, %v3138
        %v3143 = vadd.f32 %v3133, %v3139
        %v3144 = vadd.f32 %v3134, %v3140
        %v3145 = vadd.f32 %v3135, %v3141
        %s3146 = sld [smem:[#allocation2 + $0xd4]]
        %v3147 = vstv %s3146
        %v3148 = vadd.f32 %v3142, %v3147
        %v3149 = vadd.f32 %v3143, %v3147
        %v3150 = vadd.f32 %v3144, %v3147
        %v3151 = vadd.f32 %v3145, %v3147
        %v3152 = vmax.f32 %v3148, 0.0
        %v3153 = vmax.f32 %v3149, 0.0
        %v3154 = vmax.f32 %v3150, 0.0
        %v3155 = vmax.f32 %v3151, 0.0
        %s3156 = sld [smem:[#allocation2 + $0x95]]
        %v3157 = vstv %s3156
        %v3158 = vmul.f32 %v2610, %v3157
        %v3159 = vmul.f32 %v2611, %v3157
        %v3160 = vmul.f32 %v2612, %v3157
        %v3161 = vmul.f32 %v2613, %v3157
        %s3162 = sld [smem:[#allocation2 + $0x9d]]
        %v3163 = vstv %s3162
        %v3164 = vmul.f32 %v2626, %v3163
        %v3165 = vmul.f32 %v2627, %v3163
        %v3166 = vmul.f32 %v2628, %v3163
        %v3167 = vmul.f32 %v2629, %v3163
        %v3168 = vadd.f32 %v3158, %v3164
        %v3169 = vadd.f32 %v3159, %v3165
        %v3170 = vadd.f32 %v3160, %v3166
        %v3171 = vadd.f32 %v3161, %v3167
        %s3172 = sld [smem:[#allocation2 + $0xa5]]
        %v3173 = vstv %s3172
        %v3174 = vmul.f32 %v2642, %v3173
        %v3175 = vmul.f32 %v2643, %v3173
        %v3176 = vmul.f32 %v2644, %v3173
        %v3177 = vmul.f32 %v2645, %v3173
        %v3178 = vadd.f32 %v3168, %v3174
        %v3179 = vadd.f32 %v3169, %v3175
        %v3180 = vadd.f32 %v3170, %v3176
        %v3181 = vadd.f32 %v3171, %v3177
        %s3182 = sld [smem:[#allocation2 + $0xad]]
        %v3183 = vstv %s3182
        %v3184 = vmul.f32 %v2658, %v3183
        %v3185 = vmul.f32 %v2659, %v3183
        %v3186 = vmul.f32 %v2660, %v3183
        %v3187 = vmul.f32 %v2661, %v3183
        %v3188 = vadd.f32 %v3178, %v3184
        %v3189 = vadd.f32 %v3179, %v3185
        %v3190 = vadd.f32 %v3180, %v3186
        %v3191 = vadd.f32 %v3181, %v3187
        %s3192 = sld [smem:[#allocation2 + $0xb5]]
        %v3193 = vstv %s3192
        %v3194 = vmul.f32 %v2674, %v3193
        %v3195 = vmul.f32 %v2675, %v3193
        %v3196 = vmul.f32 %v2676, %v3193
        %v3197 = vmul.f32 %v2677, %v3193
        %v3198 = vadd.f32 %v3188, %v3194
        %v3199 = vadd.f32 %v3189, %v3195
        %v3200 = vadd.f32 %v3190, %v3196
        %v3201 = vadd.f32 %v3191, %v3197
        %s3202 = sld [smem:[#allocation2 + $0xbd]]
        %v3203 = vstv %s3202
        %v3204 = vmul.f32 %v2690, %v3203
        %v3205 = vmul.f32 %v2691, %v3203
        %v3206 = vmul.f32 %v2692, %v3203
        %v3207 = vmul.f32 %v2693, %v3203
        %v3208 = vadd.f32 %v3198, %v3204
        %v3209 = vadd.f32 %v3199, %v3205
        %v3210 = vadd.f32 %v3200, %v3206
        %v3211 = vadd.f32 %v3201, %v3207
        %s3212 = sld [smem:[#allocation2 + $0xc5]]
        %v3213 = vstv %s3212
        %v3214 = vmul.f32 %v2706, %v3213
        %v3215 = vmul.f32 %v2707, %v3213
        %v3216 = vmul.f32 %v2708, %v3213
        %v3217 = vmul.f32 %v2709, %v3213
        %v3218 = vadd.f32 %v3208, %v3214
        %v3219 = vadd.f32 %v3209, %v3215
        %v3220 = vadd.f32 %v3210, %v3216
        %v3221 = vadd.f32 %v3211, %v3217
        %s3222 = sld [smem:[#allocation2 + $0xcd]]
        %v3223 = vstv %s3222
        %v3224 = vmul.f32 %v2722, %v3223
        %v3225 = vmul.f32 %v2723, %v3223
        %v3226 = vmul.f32 %v2724, %v3223
        %v3227 = vmul.f32 %v2725, %v3223
        %v3228 = vadd.f32 %v3218, %v3224
        %v3229 = vadd.f32 %v3219, %v3225
        %v3230 = vadd.f32 %v3220, %v3226
        %v3231 = vadd.f32 %v3221, %v3227
        %s3232 = sld [smem:[#allocation2 + $0xd5]]
        %v3233 = vstv %s3232
        %v3234 = vadd.f32 %v3228, %v3233
        %v3235 = vadd.f32 %v3229, %v3233
        %v3236 = vadd.f32 %v3230, %v3233
        %v3237 = vadd.f32 %v3231, %v3233
        %v3238 = vmax.f32 %v3234, 0.0
        %v3239 = vmax.f32 %v3235, 0.0
        %v3240 = vmax.f32 %v3236, 0.0
        %v3241 = vmax.f32 %v3237, 0.0
        %s3242 = sld [smem:[#allocation2 + $0x96]]
        %v3243 = vstv %s3242
        %v3244 = vmul.f32 %v2610, %v3243
        %v3245 = vmul.f32 %v2611, %v3243
        %v3246 = vmul.f32 %v2612, %v3243
        %v3247 = vmul.f32 %v2613, %v3243
        %s3248 = sld [smem:[#allocation2 + $0x9e]]
        %v3249 = vstv %s3248
        %v3250 = vmul.f32 %v2626, %v3249
        %v3251 = vmul.f32 %v2627, %v3249
        %v3252 = vmul.f32 %v2628, %v3249
        %v3253 = vmul.f32 %v2629, %v3249
        %v3254 = vadd.f32 %v3244, %v3250
        %v3255 = vadd.f32 %v3245, %v3251
        %v3256 = vadd.f32 %v3246, %v3252
        %v3257 = vadd.f32 %v3247, %v3253
        %s3258 = sld [smem:[#allocation2 + $0xa6]]
        %v3259 = vstv %s3258
        %v3260 = vmul.f32 %v2642, %v3259
        %v3261 = vmul.f32 %v2643, %v3259
        %v3262 = vmul.f32 %v2644, %v3259
        %v3263 = vmul.f32 %v2645, %v3259
        %v3264 = vadd.f32 %v3254, %v3260
        %v3265 = vadd.f32 %v3255, %v3261
        %v3266 = vadd.f32 %v3256, %v3262
        %v3267 = vadd.f32 %v3257, %v3263
        %s3268 = sld [smem:[#allocation2 + $0xae]]
        %v3269 = vstv %s3268
        %v3270 = vmul.f32 %v2658, %v3269
        %v3271 = vmul.f32 %v2659, %v3269
        %v3272 = vmul.f32 %v2660, %v3269
        %v3273 = vmul.f32 %v2661, %v3269
        %v3274 = vadd.f32 %v3264, %v3270
        %v3275 = vadd.f32 %v3265, %v3271
        %v3276 = vadd.f32 %v3266, %v3272
        %v3277 = vadd.f32 %v3267, %v3273
        %s3278 = sld [smem:[#allocation2 + $0xb6]]
        %v3279 = vstv %s3278
        %v3280 = vmul.f32 %v2674, %v3279
        %v3281 = vmul.f32 %v2675, %v3279
        %v3282 = vmul.f32 %v2676, %v3279
        %v3283 = vmul.f32 %v2677, %v3279
        %v3284 = vadd.f32 %v3274, %v3280
        %v3285 = vadd.f32 %v3275, %v3281
        %v3286 = vadd.f32 %v3276, %v3282
        %v3287 = vadd.f32 %v3277, %v3283
        %s3288 = sld [smem:[#allocation2 + $0xbe]]
        %v3289 = vstv %s3288
        %v3290 = vmul.f32 %v2690, %v3289
        %v3291 = vmul.f32 %v2691, %v3289
        %v3292 = vmul.f32 %v2692, %v3289
        %v3293 = vmul.f32 %v2693, %v3289
        %v3294 = vadd.f32 %v3284, %v3290
        %v3295 = vadd.f32 %v3285, %v3291
        %v3296 = vadd.f32 %v3286, %v3292
        %v3297 = vadd.f32 %v3287, %v3293
        %s3298 = sld [smem:[#allocation2 + $0xc6]]
        %v3299 = vstv %s3298
        %v3300 = vmul.f32 %v2706, %v3299
        %v3301 = vmul.f32 %v2707, %v3299
        %v3302 = vmul.f32 %v2708, %v3299
        %v3303 = vmul.f32 %v2709, %v3299
        %v3304 = vadd.f32 %v3294, %v3300
        %v3305 = vadd.f32 %v3295, %v3301
        %v3306 = vadd.f32 %v3296, %v3302
        %v3307 = vadd.f32 %v3297, %v3303
        %s3308 = sld [smem:[#allocation2 + $0xce]]
        %v3309 = vstv %s3308
        %v3310 = vmul.f32 %v2722, %v3309
        %v3311 = vmul.f32 %v2723, %v3309
        %v3312 = vmul.f32 %v2724, %v3309
        %v3313 = vmul.f32 %v2725, %v3309
        %v3314 = vadd.f32 %v3304, %v3310
        %v3315 = vadd.f32 %v3305, %v3311
        %v3316 = vadd.f32 %v3306, %v3312
        %v3317 = vadd.f32 %v3307, %v3313
        %s3318 = sld [smem:[#allocation2 + $0xd6]]
        %v3319 = vstv %s3318
        %v3320 = vadd.f32 %v3314, %v3319
        %v3321 = vadd.f32 %v3315, %v3319
        %v3322 = vadd.f32 %v3316, %v3319
        %v3323 = vadd.f32 %v3317, %v3319
        %v3324 = vmax.f32 %v3320, 0.0
        %v3325 = vmax.f32 %v3321, 0.0
        %v3326 = vmax.f32 %v3322, 0.0
        %v3327 = vmax.f32 %v3323, 0.0
        %s3328 = sld [smem:[#allocation2 + $0x97]]
        %v3329 = vstv %s3328
        %v3330 = vmul.f32 %v2610, %v3329
        %v3331 = vmul.f32 %v2611, %v3329
        %v3332 = vmul.f32 %v2612, %v3329
        %v3333 = vmul.f32 %v2613, %v3329
        %s3334 = sld [smem:[#allocation2 + $0x9f]]
        %v3335 = vstv %s3334
        %v3336 = vmul.f32 %v2626, %v3335
        %v3337 = vmul.f32 %v2627, %v3335
        %v3338 = vmul.f32 %v2628, %v3335
        %v3339 = vmul.f32 %v2629, %v3335
        %v3340 = vadd.f32 %v3330, %v3336
        %v3341 = vadd.f32 %v3331, %v3337
        %v3342 = vadd.f32 %v3332, %v3338
        %v3343 = vadd.f32 %v3333, %v3339
        %s3344 = sld [smem:[#allocation2 + $0xa7]]
        %v3345 = vstv %s3344
        %v3346 = vmul.f32 %v2642, %v3345
        %v3347 = vmul.f32 %v2643, %v3345
        %v3348 = vmul.f32 %v2644, %v3345
        %v3349 = vmul.f32 %v2645, %v3345
        %v3350 = vadd.f32 %v3340, %v3346
        %v3351 = vadd.f32 %v3341, %v3347
        %v3352 = vadd.f32 %v3342, %v3348
        %v3353 = vadd.f32 %v3343, %v3349
        %s3354 = sld [smem:[#allocation2 + $0xaf]]
        %v3355 = vstv %s3354
        %v3356 = vmul.f32 %v2658, %v3355
        %v3357 = vmul.f32 %v2659, %v3355
        %v3358 = vmul.f32 %v2660, %v3355
        %v3359 = vmul.f32 %v2661, %v3355
        %v3360 = vadd.f32 %v3350, %v3356
        %v3361 = vadd.f32 %v3351, %v3357
        %v3362 = vadd.f32 %v3352, %v3358
        %v3363 = vadd.f32 %v3353, %v3359
        %s3364 = sld [smem:[#allocation2 + $0xb7]]
        %v3365 = vstv %s3364
        %v3366 = vmul.f32 %v2674, %v3365
        %v3367 = vmul.f32 %v2675, %v3365
        %v3368 = vmul.f32 %v2676, %v3365
        %v3369 = vmul.f32 %v2677, %v3365
        %v3370 = vadd.f32 %v3360, %v3366
        %v3371 = vadd.f32 %v3361, %v3367
        %v3372 = vadd.f32 %v3362, %v3368
        %v3373 = vadd.f32 %v3363, %v3369
        %s3374 = sld [smem:[#allocation2 + $0xbf]]
        %v3375 = vstv %s3374
        %v3376 = vmul.f32 %v2690, %v3375
        %v3377 = vmul.f32 %v2691, %v3375
        %v3378 = vmul.f32 %v2692, %v3375
        %v3379 = vmul.f32 %v2693, %v3375
        %v3380 = vadd.f32 %v3370, %v3376
        %v3381 = vadd.f32 %v3371, %v3377
        %v3382 = vadd.f32 %v3372, %v3378
        %v3383 = vadd.f32 %v3373, %v3379
        %s3384 = sld [smem:[#allocation2 + $0xc7]]
        %v3385 = vstv %s3384
        %v3386 = vmul.f32 %v2706, %v3385
        %v3387 = vmul.f32 %v2707, %v3385
        %v3388 = vmul.f32 %v2708, %v3385
        %v3389 = vmul.f32 %v2709, %v3385
        %v3390 = vadd.f32 %v3380, %v3386
        %v3391 = vadd.f32 %v3381, %v3387
        %v3392 = vadd.f32 %v3382, %v3388
        %v3393 = vadd.f32 %v3383, %v3389
        %s3394 = sld [smem:[#allocation2 + $0xcf]]
        %v3395 = vstv %s3394
        %v3396 = vmul.f32 %v2722, %v3395
        %v3397 = vmul.f32 %v2723, %v3395
        %v3398 = vmul.f32 %v2724, %v3395
        %v3399 = vmul.f32 %v2725, %v3395
        %v3400 = vadd.f32 %v3390, %v3396
        %v3401 = vadd.f32 %v3391, %v3397
        %v3402 = vadd.f32 %v3392, %v3398
        %v3403 = vadd.f32 %v3393, %v3399
        %s3404 = sld [smem:[#allocation2 + $0xd7]]
        %v3405 = vstv %s3404
        %v3406 = vadd.f32 %v3400, %v3405
        %v3407 = vadd.f32 %v3401, %v3405
        %v3408 = vadd.f32 %v3402, %v3405
        %v3409 = vadd.f32 %v3403, %v3405
        %v3410 = vmax.f32 %v3406, 0.0
        %v3411 = vmax.f32 %v3407, 0.0
        %v3412 = vmax.f32 %v3408, 0.0
        %v3413 = vmax.f32 %v3409, 0.0
        %s3414 = sld [smem:[#allocation2 + $0xd8]]
        %v3415 = vstv %s3414
        %v3416 = vmul.f32 %v2808, %v3415
        %v3417 = vmul.f32 %v2809, %v3415
        %v3418 = vmul.f32 %v2810, %v3415
        %v3419 = vmul.f32 %v2811, %v3415
        %s3420 = sld [smem:[#allocation2 + $0xd9]]
        %v3421 = vstv %s3420
        %v3422 = vmul.f32 %v2894, %v3421
        %v3423 = vmul.f32 %v2895, %v3421
        %v3424 = vmul.f32 %v2896, %v3421
        %v3425 = vmul.f32 %v2897, %v3421
        %v3426 = vadd.f32 %v3416, %v3422
        %v3427 = vadd.f32 %v3417, %v3423
        %v3428 = vadd.f32 %v3418, %v3424
        %v3429 = vadd.f32 %v3419, %v3425
        %s3430 = sld [smem:[#allocation2 + $0xda]]
        %v3431 = vstv %s3430
        %v3432 = vmul.f32 %v2980, %v3431
        %v3433 = vmul.f32 %v2981, %v3431
        %v3434 = vmul.f32 %v2982, %v3431
        %v3435 = vmul.f32 %v2983, %v3431
        %v3436 = vadd.f32 %v3426, %v3432
        %v3437 = vadd.f32 %v3427, %v3433
        %v3438 = vadd.f32 %v3428, %v3434
        %v3439 = vadd.f32 %v3429, %v3435
        %s3440 = sld [smem:[#allocation2 + $0xdb]]
        %v3441 = vstv %s3440
        %v3442 = vmul.f32 %v3066, %v3441
        %v3443 = vmul.f32 %v3067, %v3441
        %v3444 = vmul.f32 %v3068, %v3441
        %v3445 = vmul.f32 %v3069, %v3441
        %v3446 = vadd.f32 %v3436, %v3442
        %v3447 = vadd.f32 %v3437, %v3443
        %v3448 = vadd.f32 %v3438, %v3444
        %v3449 = vadd.f32 %v3439, %v3445
        %s3450 = sld [smem:[#allocation2 + $0xdc]]
        %v3451 = vstv %s3450
        %v3452 = vmul.f32 %v3152, %v3451
        %v3453 = vmul.f32 %v3153, %v3451
        %v3454 = vmul.f32 %v3154, %v3451
        %v3455 = vmul.f32 %v3155, %v3451
        %v3456 = vadd.f32 %v3446, %v3452
        %v3457 = vadd.f32 %v3447, %v3453
        %v3458 = vadd.f32 %v3448, %v3454
        %v3459 = vadd.f32 %v3449, %v3455
        %s3460 = sld [smem:[#allocation2 + $0xdd]]
        %v3461 = vstv %s3460
        %v3462 = vmul.f32 %v3238, %v3461
        %v3463 = vmul.f32 %v3239, %v3461
        %v3464 = vmul.f32 %v3240, %v3461
        %v3465 = vmul.f32 %v3241, %v3461
        %v3466 = vadd.f32 %v3456, %v3462
        %v3467 = vadd.f32 %v3457, %v3463
        %v3468 = vadd.f32 %v3458, %v3464
        %v3469 = vadd.f32 %v3459, %v3465
        %s3470 = sld [smem:[#allocation2 + $0xde]]
        %v3471 = vstv %s3470
        %v3472 = vmul.f32 %v3324, %v3471
        %v3473 = vmul.f32 %v3325, %v3471
        %v3474 = vmul.f32 %v3326, %v3471
        %v3475 = vmul.f32 %v3327, %v3471
        %v3476 = vadd.f32 %v3466, %v3472
        %v3477 = vadd.f32 %v3467, %v3473
        %v3478 = vadd.f32 %v3468, %v3474
        %v3479 = vadd.f32 %v3469, %v3475
        %s3480 = sld [smem:[#allocation2 + $0xdf]]
        %v3481 = vstv %s3480
        %v3482 = vmul.f32 %v3410, %v3481
        %v3483 = vmul.f32 %v3411, %v3481
        %v3484 = vmul.f32 %v3412, %v3481
        %v3485 = vmul.f32 %v3413, %v3481
        %v3486 = vadd.f32 %v3476, %v3482
        %v3487 = vadd.f32 %v3477, %v3483
        %v3488 = vadd.f32 %v3478, %v3484
        %v3489 = vadd.f32 %v3479, %v3485
        %s3490 = sld [smem:[#allocation2 + $0xe0]]
        %v3491 = vstv %s3490
        %v3492 = vadd.f32 %v3486, %v3491
        %v3493 = vadd.f32 %v3487, %v3491
        %v3494 = vadd.f32 %v3488, %v3491
        %v3495 = vadd.f32 %v3489, %v3491
        %v3496 = vsub.f32 0.0, %v3492
        %v3497 = vsub.f32 0.0, %v3493
        %v3498 = vsub.f32 0.0, %v3494
        %v3499 = vsub.f32 0.0, %v3495
        %v3500 = vmul.f32 %v3496, 1.442695
        %v3501 = vpow.pop %v3500
        %v3502 = vmul.f32 %v3497, 1.442695
        %v3503 = vpow.pop %v3502
        %v3504 = vmul.f32 %v3498, 1.442695
        %v3505 = vpow.pop %v3504
        %v3506 = vmul.f32 %v3499, 1.442695
        %v3507 = vpow.pop %v3506
        %v3508 = vadd.f32 %v3501, 1.0
        %v3509 = vadd.f32 %v3503, 1.0
        %v3510 = vadd.f32 %v3505, 1.0
        %v3511 = vadd.f32 %v3507, 1.0
        %v3512 = vrcp.pop %v3508
        %v3513 = vmul.f32 %v3508, %v3512
        %v3514 = vsub.f32 1.0, %v3513
        %v3515 = vmul.f32 %v3512, %v3514
        %v3516 = vadd.f32 %v3512, %v3515
        %vm3517 = vweird.f32 %v3508
        %vm3518 = vweird.f32 %v3512
        %vm3519 = vmor %vm3517, %vm3518
        %v3520 = vsel %vm3519, %v3512, %v3516
        %v3521 = vand.u32 2147483647, %v3508
        %vm3522 = vcmp.eq.f32.partialorder %v3521, 8.507059e+37
        %v3523 = vand.u32 %v3508, 2147483648
        %v3524 = vor.u32 1.1754944e-38, %v3523
        %v3525 = vsel %vm3522, %v3524, %v3520
        %v3526 = vmul.f32 1.0, %v3525
        %v3527 = vrcp.pop %v3509
        %v3528 = vmul.f32 %v3509, %v3527
        %v3529 = vsub.f32 1.0, %v3528
        %v3530 = vmul.f32 %v3527, %v3529
        %v3531 = vadd.f32 %v3527, %v3530
        %vm3532 = vweird.f32 %v3509
        %vm3533 = vweird.f32 %v3527
        %vm3534 = vmor %vm3532, %vm3533
        %v3535 = vsel %vm3534, %v3527, %v3531
        %v3536 = vand.u32 2147483647, %v3509
        %vm3537 = vcmp.eq.f32.partialorder %v3536, 8.507059e+37
        %v3538 = vand.u32 %v3509, 2147483648
        %v3539 = vor.u32 1.1754944e-38, %v3538
        %v3540 = vsel %vm3537, %v3539, %v3535
        %v3541 = vmul.f32 1.0, %v3540
        %v3542 = vrcp.pop %v3510
        %v3543 = vmul.f32 %v3510, %v3542
        %v3544 = vsub.f32 1.0, %v3543
        %v3545 = vmul.f32 %v3542, %v3544
        %v3546 = vadd.f32 %v3542, %v3545
        %vm3547 = vweird.f32 %v3510
        %vm3548 = vweird.f32 %v3542
        %vm3549 = vmor %vm3547, %vm3548
        %v3550 = vsel %vm3549, %v3542, %v3546
        %v3551 = vand.u32 2147483647, %v3510
        %vm3552 = vcmp.eq.f32.partialorder %v3551, 8.507059e+37
        %v3553 = vand.u32 %v3510, 2147483648
        %v3554 = vor.u32 1.1754944e-38, %v3553
        %v3555 = vsel %vm3552, %v3554, %v3550
        %v3556 = vmul.f32 1.0, %v3555
        %v3557 = vrcp.pop %v3511
        %v3558 = vmul.f32 %v3511, %v3557
        %v3559 = vsub.f32 1.0, %v3558
        %v3560 = vmul.f32 %v3557, %v3559
        %v3561 = vadd.f32 %v3557, %v3560
        %vm3562 = vweird.f32 %v3511
        %vm3563 = vweird.f32 %v3557
        %vm3564 = vmor %vm3562, %vm3563
        %v3565 = vsel %vm3564, %v3557, %v3561
        %v3566 = vand.u32 2147483647, %v3511
        %vm3567 = vcmp.eq.f32.partialorder %v3566, 8.507059e+37
        %v3568 = vand.u32 %v3511, 2147483648
        %v3569 = vor.u32 1.1754944e-38, %v3568
        %v3570 = vsel %vm3567, %v3569, %v3565
        %v3571 = vmul.f32 1.0, %v3570
        %v3572 = vadd.f32 %v3526, 1e-06
        %v3573 = vadd.f32 %v3541, 1e-06
        %v3574 = vadd.f32 %v3556, 1e-06
        %v3575 = vadd.f32 %v3571, 1e-06
        %v3576 = vrcp.pop %v3572
        %v3577 = vmul.f32 %v3572, %v3576
        %v3578 = vsub.f32 1.0, %v3577
        %v3579 = vmul.f32 %v3576, %v3578
        %v3580 = vadd.f32 %v3576, %v3579
        %vm3581 = vweird.f32 %v3572
        %vm3582 = vweird.f32 %v3576
        %vm3583 = vmor %vm3581, %vm3582
        %v3584 = vsel %vm3583, %v3576, %v3580
        %v3585 = vand.u32 2147483647, %v3572
        %vm3586 = vcmp.eq.f32.partialorder %v3585, 8.507059e+37
        %v3587 = vand.u32 %v3572, 2147483648
        %v3588 = vor.u32 1.1754944e-38, %v3587
        %v3589 = vsel %vm3586, %v3588, %v3584
        %v3590 = vmul.f32 1.0, %v3589
        %v3591 = vrcp.pop %v3573
        %v3592 = vmul.f32 %v3573, %v3591
        %v3593 = vsub.f32 1.0, %v3592
        %v3594 = vmul.f32 %v3591, %v3593
        %v3595 = vadd.f32 %v3591, %v3594
        %vm3596 = vweird.f32 %v3573
        %vm3597 = vweird.f32 %v3591
        %vm3598 = vmor %vm3596, %vm3597
        %v3599 = vsel %vm3598, %v3591, %v3595
        %v3600 = vand.u32 2147483647, %v3573
        %vm3601 = vcmp.eq.f32.partialorder %v3600, 8.507059e+37
        %v3602 = vand.u32 %v3573, 2147483648
        %v3603 = vor.u32 1.1754944e-38, %v3602
        %v3604 = vsel %vm3601, %v3603, %v3599
        %v3605 = vmul.f32 1.0, %v3604
        %v3606 = vrcp.pop %v3574
        %v3607 = vmul.f32 %v3574, %v3606
        %v3608 = vsub.f32 1.0, %v3607
        %v3609 = vmul.f32 %v3606, %v3608
        %v3610 = vadd.f32 %v3606, %v3609
        %vm3611 = vweird.f32 %v3574
        %vm3612 = vweird.f32 %v3606
        %vm3613 = vmor %vm3611, %vm3612
        %v3614 = vsel %vm3613, %v3606, %v3610
        %v3615 = vand.u32 2147483647, %v3574
        %vm3616 = vcmp.eq.f32.partialorder %v3615, 8.507059e+37
        %v3617 = vand.u32 %v3574, 2147483648
        %v3618 = vor.u32 1.1754944e-38, %v3617
        %v3619 = vsel %vm3616, %v3618, %v3614
        %v3620 = vmul.f32 1.0, %v3619
        %v3621 = vrcp.pop %v3575
        %v3622 = vmul.f32 %v3575, %v3621
        %v3623 = vsub.f32 1.0, %v3622
        %v3624 = vmul.f32 %v3621, %v3623
        %v3625 = vadd.f32 %v3621, %v3624
        %vm3626 = vweird.f32 %v3575
        %vm3627 = vweird.f32 %v3621
        %vm3628 = vmor %vm3626, %vm3627
        %v3629 = vsel %vm3628, %v3621, %v3625
        %v3630 = vand.u32 2147483647, %v3575
        %vm3631 = vcmp.eq.f32.partialorder %v3630, 8.507059e+37
        %v3632 = vand.u32 %v3575, 2147483648
        %v3633 = vor.u32 1.1754944e-38, %v3632
        %v3634 = vsel %vm3631, %v3633, %v3629
        %v3635 = vmul.f32 1.0, %v3634
        %v3636 = vsel %vm1877, %v3590, -1e+30
        %v3637 = vsel %vm1878, %v3605, -1e+30
        %v3638 = vsel %vm1879, %v3620, -1e+30
        %v3639 = vsel %vm1880, %v3635, -1e+30
        %v3640 = vsel %vm1885, %v3636, -inf
        %v3641 = vrot.slane %v3640, 4
        %v3642 = vmax.f32 %v3640, %v3641
        %v3643 = vrot.slane %v3642, 2
        %v3644 = vmax.f32 %v3642, %v3643
        %v3645 = vrot.slane %v3644, 1
        %v3646 = vmax.f32 %v3644, %v3645
        %v3647 = vsel %vm1885, %v3637, -inf
        %v3648 = vrot.slane %v3647, 4
        %v3649 = vmax.f32 %v3647, %v3648
        %v3650 = vrot.slane %v3649, 2
        %v3651 = vmax.f32 %v3649, %v3650
        %v3652 = vrot.slane %v3651, 1
        %v3653 = vmax.f32 %v3651, %v3652
        %v3654 = vsel %vm1885, %v3638, -inf
        %v3655 = vrot.slane %v3654, 4
        %v3656 = vmax.f32 %v3654, %v3655
        %v3657 = vrot.slane %v3656, 2
        %v3658 = vmax.f32 %v3656, %v3657
        %v3659 = vrot.slane %v3658, 1
        %v3660 = vmax.f32 %v3658, %v3659
        %v3661 = vsel %vm1885, %v3639, -inf
        %v3662 = vrot.slane %v3661, 4
        %v3663 = vmax.f32 %v3661, %v3662
        %v3664 = vrot.slane %v3663, 2
        %v3665 = vmax.f32 %v3663, %v3664
        %v3666 = vrot.slane %v3665, 1
        %v3667 = vmax.f32 %v3665, %v3666
        %v3668 = vsub.f32 %v3590, %v3646
        %v3669 = vsub.f32 %v3605, %v3653
        %v3670 = vsub.f32 %v3620, %v3660
        %v3671 = vsub.f32 %v3635, %v3667
        %v3672 = vmin.f32 %v3668, 0.0
        %v3673 = vmin.f32 %v3669, 0.0
        %v3674 = vmin.f32 %v3670, 0.0
        %v3675 = vmin.f32 %v3671, 0.0
        %v3676 = vmul.f32 %v3672, 1.442695
        %v3677 = vpow.pop %v3676
        %v3678 = vmul.f32 %v3673, 1.442695
        %v3679 = vpow.pop %v3678
        %v3680 = vmul.f32 %v3674, 1.442695
        %v3681 = vpow.pop %v3680
        %v3682 = vmul.f32 %v3675, 1.442695
        %v3683 = vpow.pop %v3682
        %v3684 = vmul.f32 %v3677, %v365
        %v3685 = vmul.f32 %v3679, %v366
        %v3686 = vmul.f32 %v3681, %v367
        %v3687 = vmul.f32 %v3683, %v368
        %3689 = vset.pattern.permute.xlu0 0
        %3690 = vperm.xlu0 %3689, %v3684
        %v3691 = vpop.permute.xlu0 %3690
        %3694 = vset.pattern.permute.xlu0 0
        %3695 = vperm.xlu0 %3694, %v3685
        %v3696 = vpop.permute.xlu0 %3695
        %3699 = vset.pattern.permute.xlu0 0
        %3700 = vperm.xlu0 %3699, %v3686
        %v3701 = vpop.permute.xlu0 %3700
        %3704 = vset.pattern.permute.xlu0 0
        %3705 = vperm.xlu0 %3704, %v3687
        %v3706 = vpop.permute.xlu0 %3705
        %v3708 = vmul.f32 %v3691, %v614
        %v3709 = vmul.f32 %v3696, %v615
        %v3710 = vmul.f32 %v3701, %v616
        %v3711 = vmul.f32 %v3706, %v617
        %v3712 = vsel %vm373, %v3708, 0.0
        %v3713 = vrot.slane %v3712, 4
        %v3714 = vadd.f32 %v3712, %v3713
        %v3715 = vrot.slane %v3714, 2
        %v3716 = vadd.f32 %v3714, %v3715
        %v3717 = vrot.slane %v3716, 1
        %v3718 = vadd.f32 %v3716, %v3717
        %v3719 = vsel %vm373, %v3709, 0.0
        %v3720 = vrot.slane %v3719, 4
        %v3721 = vadd.f32 %v3719, %v3720
        %v3722 = vrot.slane %v3721, 2
        %v3723 = vadd.f32 %v3721, %v3722
        %v3724 = vrot.slane %v3723, 1
        %v3725 = vadd.f32 %v3723, %v3724
        %v3726 = vsel %vm373, %v3710, 0.0
        %v3727 = vrot.slane %v3726, 4
        %v3728 = vadd.f32 %v3726, %v3727
        %v3729 = vrot.slane %v3728, 2
        %v3730 = vadd.f32 %v3728, %v3729
        %v3731 = vrot.slane %v3730, 1
        %v3732 = vadd.f32 %v3730, %v3731
        %v3733 = vsel %vm373, %v3711, 0.0
        %v3734 = vrot.slane %v3733, 4
        %v3735 = vadd.f32 %v3733, %v3734
        %v3736 = vrot.slane %v3735, 2
        %v3737 = vadd.f32 %v3735, %v3736
        %v3738 = vrot.slane %v3737, 1
        %v3739 = vadd.f32 %v3737, %v3738
        %v3740 = vmul.f32 %v3684, %v583
        %v3741 = vmul.f32 %v3685, %v593
        %v3742 = vmul.f32 %v3686, %v603
        %v3743 = vmul.f32 %v3687, %v613
        %v3744 = vsel %vm1885, %v3740, 0.0
        %v3745 = vrot.slane %v3744, 4
        %v3746 = vadd.f32 %v3744, %v3745
        %v3747 = vrot.slane %v3746, 2
        %v3748 = vadd.f32 %v3746, %v3747
        %v3749 = vrot.slane %v3748, 1
        %v3750 = vadd.f32 %v3748, %v3749
        %v3751 = vsel %vm1885, %v3741, 0.0
        %v3752 = vrot.slane %v3751, 4
        %v3753 = vadd.f32 %v3751, %v3752
        %v3754 = vrot.slane %v3753, 2
        %v3755 = vadd.f32 %v3753, %v3754
        %v3756 = vrot.slane %v3755, 1
        %v3757 = vadd.f32 %v3755, %v3756
        %v3758 = vsel %vm1885, %v3742, 0.0
        %v3759 = vrot.slane %v3758, 4
        %v3760 = vadd.f32 %v3758, %v3759
        %v3761 = vrot.slane %v3760, 2
        %v3762 = vadd.f32 %v3760, %v3761
        %v3763 = vrot.slane %v3762, 1
        %v3764 = vadd.f32 %v3762, %v3763
        %v3765 = vsel %vm1885, %v3743, 0.0
        %v3766 = vrot.slane %v3765, 4
        %v3767 = vadd.f32 %v3765, %v3766
        %v3768 = vrot.slane %v3767, 2
        %v3769 = vadd.f32 %v3767, %v3768
        %v3770 = vrot.slane %v3769, 1
        %v3771 = vadd.f32 %v3769, %v3770
        %v3772 = vmax.f32 %v3750, 1e-06
        %v3773 = vmax.f32 %v3757, 1e-06
        %v3774 = vmax.f32 %v3764, 1e-06
        %v3775 = vmax.f32 %v3771, 1e-06
        %v3776 = vrcp.pop %v3772
        %v3777 = vrcp.pop %v3773
        %v3778 = vrcp.pop %v3774
        %v3779 = vrcp.pop %v3775
        %3781 = vset.pattern.permute.xlu0 0
        %3782 = vperm.xlu0 %3781, %v3776
        %v3783 = vpop.permute.xlu0 %3782
        %3786 = vset.pattern.permute.xlu0 0
        %3787 = vperm.xlu0 %3786, %v3777
        %v3788 = vpop.permute.xlu0 %3787
        %3791 = vset.pattern.permute.xlu0 0
        %3792 = vperm.xlu0 %3791, %v3778
        %v3793 = vpop.permute.xlu0 %3792
        %3796 = vset.pattern.permute.xlu0 0
        %3797 = vperm.xlu0 %3796, %v3779
        %v3798 = vpop.permute.xlu0 %3797
        %v3800 = vmul.f32 %v3718, %v3783
        %v3801 = vmul.f32 %v3725, %v3788
        %v3802 = vmul.f32 %v3732, %v3793
        %v3803 = vmul.f32 %v3739, %v3798
        %v3804 = vmul.f32 %v3800, %v2055
        %v3805 = vmul.f32 %v3801, %v2061
        %v3806 = vmul.f32 %v3802, %v2067
        %v3807 = vmul.f32 %v3803, %v2073
        %v3808 = vrcp.pop %v2410
        %v3809 = vmul.f32 %v2410, %v3808
        %v3810 = vsub.f32 1.0, %v3809
        %v3811 = vmul.f32 %v3808, %v3810
        %v3812 = vadd.f32 %v3808, %v3811
        %vm3813 = vweird.f32 %v2410
        %vm3814 = vweird.f32 %v3808
        %vm3815 = vmor %vm3813, %vm3814
        %v3816 = vsel %vm3815, %v3808, %v3812
        %v3817 = vand.u32 2147483647, %v2410
        %vm3818 = vcmp.eq.f32.partialorder %v3817, 8.507059e+37
        %v3819 = vand.u32 %v2410, 2147483648
        %v3820 = vor.u32 1.1754944e-38, %v3819
        %v3821 = vsel %vm3818, %v3820, %v3816
        %v3822 = vmul.f32 %v2474, %v3821
        %v3823 = vrcp.pop %v2411
        %v3824 = vmul.f32 %v2411, %v3823
        %v3825 = vsub.f32 1.0, %v3824
        %v3826 = vmul.f32 %v3823, %v3825
        %v3827 = vadd.f32 %v3823, %v3826
        %vm3828 = vweird.f32 %v2411
        %vm3829 = vweird.f32 %v3823
        %vm3830 = vmor %vm3828, %vm3829
        %v3831 = vsel %vm3830, %v3823, %v3827
        %v3832 = vand.u32 2147483647, %v2411
        %vm3833 = vcmp.eq.f32.partialorder %v3832, 8.507059e+37
        %v3834 = vand.u32 %v2411, 2147483648
        %v3835 = vor.u32 1.1754944e-38, %v3834
        %v3836 = vsel %vm3833, %v3835, %v3831
        %v3837 = vmul.f32 %v2475, %v3836
        %v3838 = vrcp.pop %v2412
        %v3839 = vmul.f32 %v2412, %v3838
        %v3840 = vsub.f32 1.0, %v3839
        %v3841 = vmul.f32 %v3838, %v3840
        %v3842 = vadd.f32 %v3838, %v3841
        %vm3843 = vweird.f32 %v2412
        %vm3844 = vweird.f32 %v3838
        %vm3845 = vmor %vm3843, %vm3844
        %v3846 = vsel %vm3845, %v3838, %v3842
        %v3847 = vand.u32 2147483647, %v2412
        %vm3848 = vcmp.eq.f32.partialorder %v3847, 8.507059e+37
        %v3849 = vand.u32 %v2412, 2147483648
        %v3850 = vor.u32 1.1754944e-38, %v3849
        %v3851 = vsel %vm3848, %v3850, %v3846
        %v3852 = vmul.f32 %v2476, %v3851
        %v3853 = vrcp.pop %v2413
        %v3854 = vmul.f32 %v2413, %v3853
        %v3855 = vsub.f32 1.0, %v3854
        %v3856 = vmul.f32 %v3853, %v3855
        %v3857 = vadd.f32 %v3853, %v3856
        %vm3858 = vweird.f32 %v2413
        %vm3859 = vweird.f32 %v3853
        %vm3860 = vmor %vm3858, %vm3859
        %v3861 = vsel %vm3860, %v3853, %v3857
        %v3862 = vand.u32 2147483647, %v2413
        %vm3863 = vcmp.eq.f32.partialorder %v3862, 8.507059e+37
        %v3864 = vand.u32 %v2413, 2147483648
        %v3865 = vor.u32 1.1754944e-38, %v3864
        %v3866 = vsel %vm3863, %v3865, %v3861
        %v3867 = vmul.f32 %v2477, %v3866
        %v3868 = vmul.f32 %v3822, %v3822
        %v3869 = vmul.f32 %v3837, %v3837
        %v3870 = vmul.f32 %v3852, %v3852
        %v3871 = vmul.f32 %v3867, %v3867
        %v3872 = vsel %vm622, %v3868, 0.0
        %3873 = vadd.xlane.f32.xlu0 %v3872
        %v3874 = vpop.xlane.xlu0 %3873
        %v3875 = vsel %vm622, %v3869, 0.0
        %3876 = vadd.xlane.f32.xlu0 %v3875
        %v3877 = vpop.xlane.xlu0 %3876
        %v3878 = vsel %vm622, %v3870, 0.0
        %3879 = vadd.xlane.f32.xlu0 %v3878
        %v3880 = vpop.xlane.xlu0 %3879
        %v3881 = vsel %vm622, %v3871, 0.0
        %3882 = vadd.xlane.f32.xlu0 %v3881
        %v3883 = vpop.xlane.xlu0 %3882
        %v3884 = vsub.f32 1.0, %v3874
        %v3885 = vsub.f32 1.0, %v3877
        %v3886 = vsub.f32 1.0, %v3880
        %v3887 = vsub.f32 1.0, %v3883
        %v3888 = vmax.f32 %v3884, 1e-06
        %v3889 = vmax.f32 %v3885, 1e-06
        %v3890 = vmax.f32 %v3886, 1e-06
        %v3891 = vmax.f32 %v3887, 1e-06
        %v3892 = vrsqrt.pop %v3888
        %v3893 = vmul.f32 %v3892, %v3888
        %v3894 = vmul.f32 %v3893, %v3892
        %v3895 = vmul.f32 0.5, %v3894
        %v3896 = vsub.f32 1.5, %v3895
        %v3897 = vmul.f32 %v3892, %v3896
        %vm3898 = vweird.f32 %v3888
        %vm3899 = vweird.f32 %v3892
        %vm3900 = vmor %vm3898, %vm3899
        %v3901 = vsel %vm3900, %v3892, %v3897
        %v3902 = vrsqrt.pop %v3889
        %v3903 = vmul.f32 %v3902, %v3889
        %v3904 = vmul.f32 %v3903, %v3902
        %v3905 = vmul.f32 0.5, %v3904
        %v3906 = vsub.f32 1.5, %v3905
        %v3907 = vmul.f32 %v3902, %v3906
        %vm3908 = vweird.f32 %v3889
        %vm3909 = vweird.f32 %v3902
        %vm3910 = vmor %vm3908, %vm3909
        %v3911 = vsel %vm3910, %v3902, %v3907
        %v3912 = vrsqrt.pop %v3890
        %v3913 = vmul.f32 %v3912, %v3890
        %v3914 = vmul.f32 %v3913, %v3912
        %v3915 = vmul.f32 0.5, %v3914
        %v3916 = vsub.f32 1.5, %v3915
        %v3917 = vmul.f32 %v3912, %v3916
        %vm3918 = vweird.f32 %v3890
        %vm3919 = vweird.f32 %v3912
        %vm3920 = vmor %vm3918, %vm3919
        %v3921 = vsel %vm3920, %v3912, %v3917
        %v3922 = vrsqrt.pop %v3891
        %v3923 = vmul.f32 %v3922, %v3891
        %v3924 = vmul.f32 %v3923, %v3922
        %v3925 = vmul.f32 0.5, %v3924
        %v3926 = vsub.f32 1.5, %v3925
        %v3927 = vmul.f32 %v3922, %v3926
        %vm3928 = vweird.f32 %v3891
        %vm3929 = vweird.f32 %v3922
        %vm3930 = vmor %vm3928, %vm3929
        %v3931 = vsel %vm3930, %v3922, %v3927
        %v3932 = vmul.f32 %v3804, %v3804
        %v3933 = vmul.f32 %v3805, %v3805
        %v3934 = vmul.f32 %v3806, %v3806
        %v3935 = vmul.f32 %v3807, %v3807
        %v3936 = vsel %vm373, %v3932, 0.0
        %3937 = vadd.xlane.f32.xlu0 %v3936
        %v3938 = vpop.xlane.xlu0 %3937
        %v3939 = vsel %vm373, %v3933, 0.0
        %3940 = vadd.xlane.f32.xlu0 %v3939
        %v3941 = vpop.xlane.xlu0 %3940
        %v3942 = vsel %vm373, %v3934, 0.0
        %3943 = vadd.xlane.f32.xlu0 %v3942
        %v3944 = vpop.xlane.xlu0 %3943
        %v3945 = vsel %vm373, %v3935, 0.0
        %3946 = vadd.xlane.f32.xlu0 %v3945
        %v3947 = vpop.xlane.xlu0 %3946
        %v3948 = vsub.f32 1.0, %v3938
        %v3949 = vsub.f32 1.0, %v3941
        %v3950 = vsub.f32 1.0, %v3944
        %v3951 = vsub.f32 1.0, %v3947
        %v3952 = vmax.f32 %v3948, 1e-06
        %v3953 = vmax.f32 %v3949, 1e-06
        %v3954 = vmax.f32 %v3950, 1e-06
        %v3955 = vmax.f32 %v3951, 1e-06
        %v3956 = vrsqrt.pop %v3952
        %v3957 = vmul.f32 %v3956, %v3952
        %v3958 = vmul.f32 %v3957, %v3956
        %v3959 = vmul.f32 0.5, %v3958
        %v3960 = vsub.f32 1.5, %v3959
        %v3961 = vmul.f32 %v3956, %v3960
        %vm3962 = vweird.f32 %v3952
        %vm3963 = vweird.f32 %v3956
        %vm3964 = vmor %vm3962, %vm3963
        %v3965 = vsel %vm3964, %v3956, %v3961
        %v3966 = vrsqrt.pop %v3953
        %v3967 = vmul.f32 %v3966, %v3953
        %v3968 = vmul.f32 %v3967, %v3966
        %v3969 = vmul.f32 0.5, %v3968
        %v3970 = vsub.f32 1.5, %v3969
        %v3971 = vmul.f32 %v3966, %v3970
        %vm3972 = vweird.f32 %v3953
        %vm3973 = vweird.f32 %v3966
        %vm3974 = vmor %vm3972, %vm3973
        %v3975 = vsel %vm3974, %v3966, %v3971
        %v3976 = vrsqrt.pop %v3954
        %v3977 = vmul.f32 %v3976, %v3954
        %v3978 = vmul.f32 %v3977, %v3976
        %v3979 = vmul.f32 0.5, %v3978
        %v3980 = vsub.f32 1.5, %v3979
        %v3981 = vmul.f32 %v3976, %v3980
        %vm3982 = vweird.f32 %v3954
        %vm3983 = vweird.f32 %v3976
        %vm3984 = vmor %vm3982, %vm3983
        %v3985 = vsel %vm3984, %v3976, %v3981
        %v3986 = vrsqrt.pop %v3955
        %v3987 = vmul.f32 %v3986, %v3955
        %v3988 = vmul.f32 %v3987, %v3986
        %v3989 = vmul.f32 0.5, %v3988
        %v3990 = vsub.f32 1.5, %v3989
        %v3991 = vmul.f32 %v3986, %v3990
        %vm3992 = vweird.f32 %v3955
        %vm3993 = vweird.f32 %v3986
        %vm3994 = vmor %vm3992, %vm3993
        %v3995 = vsel %vm3994, %v3986, %v3991
        %s3996 = sld [smem:[#allocation2 + $0xe1]]
        %s3997 = ssub.f32 1.0, %s3996
        %v3998 = vstv %s3996
        %v3999 = vmul.f32 %v3998, %v3901
        %v4000 = vmul.f32 %v3998, %v3911
        %v4001 = vmul.f32 %v3998, %v3921
        %v4002 = vmul.f32 %v3998, %v3931
        %v4003 = vmul.f32 %v3999, %v3822
        %v4004 = vmul.f32 %v4000, %v3837
        %v4005 = vmul.f32 %v4001, %v3852
        %v4006 = vmul.f32 %v4002, %v3867
        %v4007 = vstv %s3997
        %v4008 = vmul.f32 %v4007, %v3965
        %v4009 = vmul.f32 %v4007, %v3975
        %v4010 = vmul.f32 %v4007, %v3985
        %v4011 = vmul.f32 %v4007, %v3995
        %v4012 = vmul.f32 %v4008, %v3804
        %v4013 = vmul.f32 %v4009, %v3805
        %v4014 = vmul.f32 %v4010, %v3806
        %v4015 = vmul.f32 %v4011, %v3807
        %v4016 = vadd.f32 %v4003, %v4012
        %v4017 = vadd.f32 %v4004, %v4013
        %v4018 = vadd.f32 %v4005, %v4014
        %v4019 = vadd.f32 %v4006, %v4015
        %v4020 = vadd.f32 %v3999, %v4008
        %v4021 = vadd.f32 %v4000, %v4009
        %v4022 = vadd.f32 %v4001, %v4010
        %v4023 = vadd.f32 %v4002, %v4011
        %v4024 = vrcp.pop %v4020
        %v4025 = vrcp.pop %v4021
        %v4026 = vrcp.pop %v4022
        %v4027 = vrcp.pop %v4023
        %v4028 = vmul.f32 %v4016, %v4024
        %v4029 = vmul.f32 %v4017, %v4025
        %v4030 = vmul.f32 %v4018, %v4026
        %v4031 = vmul.f32 %v4019, %v4027
        %v4032 = vmul.f32 %v4028, %v4028
        %v4033 = vmul.f32 %v4029, %v4029
        %v4034 = vmul.f32 %v4030, %v4030
        %v4035 = vmul.f32 %v4031, %v4031
        %v4036 = vsel %vm622, %v4032, 0.0
        %4037 = vadd.xlane.f32.xlu0 %v4036
        %v4038 = vpop.xlane.xlu0 %4037
        %v4039 = vsel %vm622, %v4033, 0.0
        %4040 = vadd.xlane.f32.xlu0 %v4039
        %v4041 = vpop.xlane.xlu0 %4040
        %v4042 = vsel %vm622, %v4034, 0.0
        %4043 = vadd.xlane.f32.xlu0 %v4042
        %v4044 = vpop.xlane.xlu0 %4043
        %v4045 = vsel %vm622, %v4035, 0.0
        %4046 = vadd.xlane.f32.xlu0 %v4045
        %v4047 = vpop.xlane.xlu0 %4046
        %v4048 = vsub.f32 1.0, %v4038
        %v4049 = vsub.f32 1.0, %v4041
        %v4050 = vsub.f32 1.0, %v4044
        %v4051 = vsub.f32 1.0, %v4047
        %v4052 = vmax.f32 %v4048, 0.0
        %v4053 = vmax.f32 %v4049, 0.0
        %v4054 = vmax.f32 %v4050, 0.0
        %v4055 = vmax.f32 %v4051, 0.0
        %v4056 = vrsqrt.pop %v4052
        %v4057 = vmul.f32 %v4056, %v4052
        %v4058 = vmul.f32 %v4057, %v4056
        %v4059 = vmul.f32 0.5, %v4058
        %v4060 = vsub.f32 1.5, %v4059
        %v4061 = vmul.f32 %v4056, %v4060
        %v4062 = vmul.f32 %v4052, %v4061
        %vm4063 = vcmp.eq.f32.partialorder %v4052, inf
        %v4064 = vsel %vm4063, %v4052, %v4062
        %vm4065 = vcmp.eq.f32.partialorder %v4052, 0.0
        %v4066 = vand.u32 %v4052, 2147483648
        %v4067 = vsel %vm4065, %v4066, %v4064
        %v4068 = vrsqrt.pop %v4053
        %v4069 = vmul.f32 %v4068, %v4053
        %v4070 = vmul.f32 %v4069, %v4068
        %v4071 = vmul.f32 0.5, %v4070
        %v4072 = vsub.f32 1.5, %v4071
        %v4073 = vmul.f32 %v4068, %v4072
        %v4074 = vmul.f32 %v4053, %v4073
        %vm4075 = vcmp.eq.f32.partialorder %v4053, inf
        %v4076 = vsel %vm4075, %v4053, %v4074
        %vm4077 = vcmp.eq.f32.partialorder %v4053, 0.0
        %v4078 = vand.u32 %v4053, 2147483648
        %v4079 = vsel %vm4077, %v4078, %v4076
        %v4080 = vrsqrt.pop %v4054
        %v4081 = vmul.f32 %v4080, %v4054
        %v4082 = vmul.f32 %v4081, %v4080
        %v4083 = vmul.f32 0.5, %v4082
        %v4084 = vsub.f32 1.5, %v4083
        %v4085 = vmul.f32 %v4080, %v4084
        %v4086 = vmul.f32 %v4054, %v4085
        %vm4087 = vcmp.eq.f32.partialorder %v4054, inf
        %v4088 = vsel %vm4087, %v4054, %v4086
        %vm4089 = vcmp.eq.f32.partialorder %v4054, 0.0
        %v4090 = vand.u32 %v4054, 2147483648
        %v4091 = vsel %vm4089, %v4090, %v4088
        %v4092 = vrsqrt.pop %v4055
        %v4093 = vmul.f32 %v4092, %v4055
        %v4094 = vmul.f32 %v4093, %v4092
        %v4095 = vmul.f32 0.5, %v4094
        %v4096 = vsub.f32 1.5, %v4095
        %v4097 = vmul.f32 %v4092, %v4096
        %v4098 = vmul.f32 %v4055, %v4097
        %vm4099 = vcmp.eq.f32.partialorder %v4055, inf
        %v4100 = vsel %vm4099, %v4055, %v4098
        %vm4101 = vcmp.eq.f32.partialorder %v4055, 0.0
        %v4102 = vand.u32 %v4055, 2147483648
        %v4103 = vsel %vm4101, %v4102, %v4100
        %v4104 = vadd.f32 %v4067, 1.0
        %v4105 = vadd.f32 %v4079, 1.0
        %v4106 = vadd.f32 %v4091, 1.0
        %v4107 = vadd.f32 %v4103, 1.0
        %v4108 = vrcp.pop %v4104
        %v4109 = vrcp.pop %v4105
        %v4110 = vrcp.pop %v4106
        %v4111 = vrcp.pop %v4107
        %v4112 = vmul.f32 %v4028, %v4108
        %v4113 = vmul.f32 %v4029, %v4109
        %v4114 = vmul.f32 %v4030, %v4110
        %v4115 = vmul.f32 %v4031, %v4111
        %v4116 = vmul.f32 %v4112, %v4112
        %v4117 = vmul.f32 %v4113, %v4113
        %v4118 = vmul.f32 %v4114, %v4114
        %v4119 = vmul.f32 %v4115, %v4115
        %v4120 = vsel %vm622, %v4116, 0.0
        %4121 = vadd.xlane.f32.xlu0 %v4120
        %v4122 = vpop.xlane.xlu0 %4121
        %v4123 = vsel %vm622, %v4117, 0.0
        %4124 = vadd.xlane.f32.xlu0 %v4123
        %v4125 = vpop.xlane.xlu0 %4124
        %v4126 = vsel %vm622, %v4118, 0.0
        %4127 = vadd.xlane.f32.xlu0 %v4126
        %v4128 = vpop.xlane.xlu0 %4127
        %v4129 = vsel %vm622, %v4119, 0.0
        %4130 = vadd.xlane.f32.xlu0 %v4129
        %v4131 = vpop.xlane.xlu0 %4130
        %v4132 = vsub.f32 1.0, %v4122
        %v4133 = vsub.f32 1.0, %v4125
        %v4134 = vsub.f32 1.0, %v4128
        %v4135 = vsub.f32 1.0, %v4131
        %v4136 = vmax.f32 %v4132, 1e-06
        %v4137 = vmax.f32 %v4133, 1e-06
        %v4138 = vmax.f32 %v4134, 1e-06
        %v4139 = vmax.f32 %v4135, 1e-06
        %v4140 = vadd.f32 %v4122, 1.0
        %v4141 = vadd.f32 %v4125, 1.0
        %v4142 = vadd.f32 %v4128, 1.0
        %v4143 = vadd.f32 %v4131, 1.0
        %v4144 = vrcp.pop %v4136
        %v4145 = vmul.f32 %v4136, %v4144
        %v4146 = vsub.f32 1.0, %v4145
        %v4147 = vmul.f32 %v4144, %v4146
        %v4148 = vadd.f32 %v4144, %v4147
        %vm4149 = vweird.f32 %v4136
        %vm4150 = vweird.f32 %v4144
        %vm4151 = vmor %vm4149, %vm4150
        %v4152 = vsel %vm4151, %v4144, %v4148
        %v4153 = vand.u32 2147483647, %v4136
        %vm4154 = vcmp.eq.f32.partialorder %v4153, 8.507059e+37
        %v4155 = vand.u32 %v4136, 2147483648
        %v4156 = vor.u32 1.1754944e-38, %v4155
        %v4157 = vsel %vm4154, %v4156, %v4152
        %v4158 = vmul.f32 %v4140, %v4157
        %v4159 = vrcp.pop %v4137
        %v4160 = vmul.f32 %v4137, %v4159
        %v4161 = vsub.f32 1.0, %v4160
        %v4162 = vmul.f32 %v4159, %v4161
        %v4163 = vadd.f32 %v4159, %v4162
        %vm4164 = vweird.f32 %v4137
        %vm4165 = vweird.f32 %v4159
        %vm4166 = vmor %vm4164, %vm4165
        %v4167 = vsel %vm4166, %v4159, %v4163
        %v4168 = vand.u32 2147483647, %v4137
        %vm4169 = vcmp.eq.f32.partialorder %v4168, 8.507059e+37
        %v4170 = vand.u32 %v4137, 2147483648
        %v4171 = vor.u32 1.1754944e-38, %v4170
        %v4172 = vsel %vm4169, %v4171, %v4167
        %v4173 = vmul.f32 %v4141, %v4172
        %v4174 = vrcp.pop %v4138
        %v4175 = vmul.f32 %v4138, %v4174
        %v4176 = vsub.f32 1.0, %v4175
        %v4177 = vmul.f32 %v4174, %v4176
        %v4178 = vadd.f32 %v4174, %v4177
        %vm4179 = vweird.f32 %v4138
        %vm4180 = vweird.f32 %v4174
        %vm4181 = vmor %vm4179, %vm4180
        %v4182 = vsel %vm4181, %v4174, %v4178
        %v4183 = vand.u32 2147483647, %v4138
        %vm4184 = vcmp.eq.f32.partialorder %v4183, 8.507059e+37
        %v4185 = vand.u32 %v4138, 2147483648
        %v4186 = vor.u32 1.1754944e-38, %v4185
        %v4187 = vsel %vm4184, %v4186, %v4182
        %v4188 = vmul.f32 %v4142, %v4187
        %v4189 = vrcp.pop %v4139
        %v4190 = vmul.f32 %v4139, %v4189
        %v4191 = vsub.f32 1.0, %v4190
        %v4192 = vmul.f32 %v4189, %v4191
        %v4193 = vadd.f32 %v4189, %v4192
        %vm4194 = vweird.f32 %v4139
        %vm4195 = vweird.f32 %v4189
        %vm4196 = vmor %vm4194, %vm4195
        %v4197 = vsel %vm4196, %v4189, %v4193
        %v4198 = vand.u32 2147483647, %v4139
        %vm4199 = vcmp.eq.f32.partialorder %v4198, 8.507059e+37
        %v4200 = vand.u32 %v4139, 2147483648
        %v4201 = vor.u32 1.1754944e-38, %v4200
        %v4202 = vsel %vm4199, %v4201, %v4197
        %v4203 = vmul.f32 %v4143, %v4202
        %v4204 = vmul.f32 %v4112, 2.0
        %v4205 = vmul.f32 %v4113, 2.0
        %v4206 = vmul.f32 %v4114, 2.0
        %v4207 = vmul.f32 %v4115, 2.0
        %v4208 = vmul.f32 %v4204, %v4157
        %v4209 = vmul.f32 %v4205, %v4172
        %v4210 = vmul.f32 %v4206, %v4187
        %v4211 = vmul.f32 %v4207, %v4202
        %v4212 = vperm.slane %v4208, 0
        %v4213 = vperm.slane %v4209, 0
        %v4214 = vperm.slane %v4210, 0
        %v4215 = vperm.slane %v4211, 0
        %v4216 = vmul.f32 %v4212, %v462
        %v4217 = vmul.f32 %v4213, %v463
        %v4218 = vmul.f32 %v4214, %v464
        %v4219 = vmul.f32 %v4215, %v465
        %v4220 = vsel %vm373, %v4216, 0.0
        %4221 = vadd.xlane.f32.xlu0 %v4220
        %v4222 = vpop.xlane.xlu0 %4221
        %v4223 = vsel %vm373, %v4217, 0.0
        %4224 = vadd.xlane.f32.xlu0 %v4223
        %v4225 = vpop.xlane.xlu0 %4224
        %v4226 = vsel %vm373, %v4218, 0.0
        %4227 = vadd.xlane.f32.xlu0 %v4226
        %v4228 = vpop.xlane.xlu0 %4227
        %v4229 = vsel %vm373, %v4219, 0.0
        %4230 = vadd.xlane.f32.xlu0 %v4229
        %v4231 = vpop.xlane.xlu0 %4230
        %v4232 = vperm.slane %v4158, 0
        %v4233 = vperm.slane %v4173, 0
        %v4234 = vperm.slane %v4188, 0
        %v4235 = vperm.slane %v4203, 0
        %v4236 = vmul.f32 %v4232, %v412
        %v4237 = vmul.f32 %v4233, %v427
        %v4238 = vmul.f32 %v4234, %v442
        %v4239 = vmul.f32 %v4235, %v457
        %v4240 = vsub.f32 %v4222, %v4236
        %v4241 = vsub.f32 %v4225, %v4237
        %v4242 = vsub.f32 %v4228, %v4238
        %v4243 = vsub.f32 %v4231, %v4239
        %v4244 = vsub.f32 0.0, %v4240
        %v4245 = vsub.f32 0.0, %v4241
        %v4246 = vsub.f32 0.0, %v4242
        %v4247 = vsub.f32 0.0, %v4243
        %v4248 = vsub.f32 %v4244, 1.0
        %v4249 = vsub.f32 %v4245, 1.0
        %v4250 = vsub.f32 %v4246, 1.0
        %v4251 = vsub.f32 %v4247, 1.0
        %v4252 = vmax.f32 %v4248, 1e-06
        %v4253 = vmax.f32 %v4249, 1e-06
        %v4254 = vmax.f32 %v4250, 1e-06
        %v4255 = vmax.f32 %v4251, 1e-06
        %v4256 = vadd.f32 %v4252, 1.0
        %v4257 = vadd.f32 %v4253, 1.0
        %v4258 = vadd.f32 %v4254, 1.0
        %v4259 = vadd.f32 %v4255, 1.0
        %v4260 = vadd.f32 %v4252, 2.0
        %v4261 = vadd.f32 %v4253, 2.0
        %v4262 = vadd.f32 %v4254, 2.0
        %v4263 = vadd.f32 %v4255, 2.0
        %v4264 = vmul.f32 %v4252, %v4260
        %v4265 = vmul.f32 %v4253, %v4261
        %v4266 = vmul.f32 %v4254, %v4262
        %v4267 = vmul.f32 %v4255, %v4263
        %v4268 = vrsqrt.pop %v4264
        %v4269 = vmul.f32 %v4268, %v4264
        %v4270 = vmul.f32 %v4269, %v4268
        %v4271 = vmul.f32 0.5, %v4270
        %v4272 = vsub.f32 1.5, %v4271
        %v4273 = vmul.f32 %v4268, %v4272
        %v4274 = vmul.f32 %v4264, %v4273
        %vm4275 = vcmp.eq.f32.partialorder %v4264, inf
        %v4276 = vsel %vm4275, %v4264, %v4274
        %vm4277 = vcmp.eq.f32.partialorder %v4264, 0.0
        %v4278 = vand.u32 %v4264, 2147483648
        %v4279 = vsel %vm4277, %v4278, %v4276
        %v4280 = vrsqrt.pop %v4265
        %v4281 = vmul.f32 %v4280, %v4265
        %v4282 = vmul.f32 %v4281, %v4280
        %v4283 = vmul.f32 0.5, %v4282
        %v4284 = vsub.f32 1.5, %v4283
        %v4285 = vmul.f32 %v4280, %v4284
        %v4286 = vmul.f32 %v4265, %v4285
        %vm4287 = vcmp.eq.f32.partialorder %v4265, inf
        %v4288 = vsel %vm4287, %v4265, %v4286
        %vm4289 = vcmp.eq.f32.partialorder %v4265, 0.0
        %v4290 = vand.u32 %v4265, 2147483648
        %v4291 = vsel %vm4289, %v4290, %v4288
        %v4292 = vrsqrt.pop %v4266
        %v4293 = vmul.f32 %v4292, %v4266
        %v4294 = vmul.f32 %v4293, %v4292
        %v4295 = vmul.f32 0.5, %v4294
        %v4296 = vsub.f32 1.5, %v4295
        %v4297 = vmul.f32 %v4292, %v4296
        %v4298 = vmul.f32 %v4266, %v4297
        %vm4299 = vcmp.eq.f32.partialorder %v4266, inf
        %v4300 = vsel %vm4299, %v4266, %v4298
        %vm4301 = vcmp.eq.f32.partialorder %v4266, 0.0
        %v4302 = vand.u32 %v4266, 2147483648
        %v4303 = vsel %vm4301, %v4302, %v4300
        %v4304 = vrsqrt.pop %v4267
        %v4305 = vmul.f32 %v4304, %v4267
        %v4306 = vmul.f32 %v4305, %v4304
        %v4307 = vmul.f32 0.5, %v4306
        %v4308 = vsub.f32 1.5, %v4307
        %v4309 = vmul.f32 %v4304, %v4308
        %v4310 = vmul.f32 %v4267, %v4309
        %vm4311 = vcmp.eq.f32.partialorder %v4267, inf
        %v4312 = vsel %vm4311, %v4267, %v4310
        %vm4313 = vcmp.eq.f32.partialorder %v4267, 0.0
        %v4314 = vand.u32 %v4267, 2147483648
        %v4315 = vsel %vm4313, %v4314, %v4312
        %v4316 = vadd.f32 %v4256, %v4279
        %v4317 = vadd.f32 %v4257, %v4291
        %v4318 = vadd.f32 %v4258, %v4303
        %v4319 = vadd.f32 %v4259, %v4315
        %v4320 = vlog2.pop %v4316
        %v4321 = vmul.f32 %v4320, 0.6931472
        %v4322 = vlog2.pop %v4317
        %v4323 = vmul.f32 %v4322, 0.6931472
        %v4324 = vlog2.pop %v4318
        %v4325 = vmul.f32 %v4324, 0.6931472
        %v4326 = vlog2.pop %v4319
        %v4327 = vmul.f32 %v4326, 0.6931472
        %s4328 = sld [smem:[#allocation2 + $0x100]]
        %v4329 = vstv %s4328
        %v4330 = vmul.f32 %v4321, %v4329
        %v4331 = vmul.f32 %v4323, %v4329
        %v4332 = vmul.f32 %v4325, %v4329
        %v4333 = vmul.f32 %v4327, %v4329
        %s4334 = sld [smem:[#allocation2 + $0x108]]
        %v4335 = vstv %s4334
        %v4336 = vadd.f32 %v4330, %v4335
        %v4337 = vadd.f32 %v4331, %v4335
        %v4338 = vadd.f32 %v4332, %v4335
        %v4339 = vadd.f32 %v4333, %v4335
        %v4340 = vmax.f32 %v4336, 0.0
        %v4341 = vmax.f32 %v4337, 0.0
        %v4342 = vmax.f32 %v4338, 0.0
        %v4343 = vmax.f32 %v4339, 0.0
        %s4344 = sld [smem:[#allocation2 + $0x101]]
        %v4345 = vstv %s4344
        %v4346 = vmul.f32 %v4321, %v4345
        %v4347 = vmul.f32 %v4323, %v4345
        %v4348 = vmul.f32 %v4325, %v4345
        %v4349 = vmul.f32 %v4327, %v4345
        %s4350 = sld [smem:[#allocation2 + $0x109]]
        %v4351 = vstv %s4350
        %v4352 = vadd.f32 %v4346, %v4351
        %v4353 = vadd.f32 %v4347, %v4351
        %v4354 = vadd.f32 %v4348, %v4351
        %v4355 = vadd.f32 %v4349, %v4351
        %v4356 = vmax.f32 %v4352, 0.0
        %v4357 = vmax.f32 %v4353, 0.0
        %v4358 = vmax.f32 %v4354, 0.0
        %v4359 = vmax.f32 %v4355, 0.0
        %s4360 = sld [smem:[#allocation2 + $0x102]]
        %v4361 = vstv %s4360
        %v4362 = vmul.f32 %v4321, %v4361
        %v4363 = vmul.f32 %v4323, %v4361
        %v4364 = vmul.f32 %v4325, %v4361
        %v4365 = vmul.f32 %v4327, %v4361
        %s4366 = sld [smem:[#allocation2 + $0x10a]]
        %v4367 = vstv %s4366
        %v4368 = vadd.f32 %v4362, %v4367
        %v4369 = vadd.f32 %v4363, %v4367
        %v4370 = vadd.f32 %v4364, %v4367
        %v4371 = vadd.f32 %v4365, %v4367
        %v4372 = vmax.f32 %v4368, 0.0
        %v4373 = vmax.f32 %v4369, 0.0
        %v4374 = vmax.f32 %v4370, 0.0
        %v4375 = vmax.f32 %v4371, 0.0
        %s4376 = sld [smem:[#allocation2 + $0x103]]
        %v4377 = vstv %s4376
        %v4378 = vmul.f32 %v4321, %v4377
        %v4379 = vmul.f32 %v4323, %v4377
        %v4380 = vmul.f32 %v4325, %v4377
        %v4381 = vmul.f32 %v4327, %v4377
        %s4382 = sld [smem:[#allocation2 + $0x10b]]
        %v4383 = vstv %s4382
        %v4384 = vadd.f32 %v4378, %v4383
        %v4385 = vadd.f32 %v4379, %v4383
        %v4386 = vadd.f32 %v4380, %v4383
        %v4387 = vadd.f32 %v4381, %v4383
        %v4388 = vmax.f32 %v4384, 0.0
        %v4389 = vmax.f32 %v4385, 0.0
        %v4390 = vmax.f32 %v4386, 0.0
        %v4391 = vmax.f32 %v4387, 0.0
        %s4392 = sld [smem:[#allocation2 + $0x104]]
        %v4393 = vstv %s4392
        %v4394 = vmul.f32 %v4321, %v4393
        %v4395 = vmul.f32 %v4323, %v4393
        %v4396 = vmul.f32 %v4325, %v4393
        %v4397 = vmul.f32 %v4327, %v4393
        %s4398 = sld [smem:[#allocation2 + $0x10c]]
        %v4399 = vstv %s4398
        %v4400 = vadd.f32 %v4394, %v4399
        %v4401 = vadd.f32 %v4395, %v4399
        %v4402 = vadd.f32 %v4396, %v4399
        %v4403 = vadd.f32 %v4397, %v4399
        %v4404 = vmax.f32 %v4400, 0.0
        %v4405 = vmax.f32 %v4401, 0.0
        %v4406 = vmax.f32 %v4402, 0.0
        %v4407 = vmax.f32 %v4403, 0.0
        %s4408 = sld [smem:[#allocation2 + $0x105]]
        %v4409 = vstv %s4408
        %v4410 = vmul.f32 %v4321, %v4409
        %v4411 = vmul.f32 %v4323, %v4409
        %v4412 = vmul.f32 %v4325, %v4409
        %v4413 = vmul.f32 %v4327, %v4409
        %s4414 = sld [smem:[#allocation2 + $0x10d]]
        %v4415 = vstv %s4414
        %v4416 = vadd.f32 %v4410, %v4415
        %v4417 = vadd.f32 %v4411, %v4415
        %v4418 = vadd.f32 %v4412, %v4415
        %v4419 = vadd.f32 %v4413, %v4415
        %v4420 = vmax.f32 %v4416, 0.0
        %v4421 = vmax.f32 %v4417, 0.0
        %v4422 = vmax.f32 %v4418, 0.0
        %v4423 = vmax.f32 %v4419, 0.0
        %s4424 = sld [smem:[#allocation2 + $0x106]]
        %v4425 = vstv %s4424
        %v4426 = vmul.f32 %v4321, %v4425
        %v4427 = vmul.f32 %v4323, %v4425
        %v4428 = vmul.f32 %v4325, %v4425
        %v4429 = vmul.f32 %v4327, %v4425
        %s4430 = sld [smem:[#allocation2 + $0x10e]]
        %v4431 = vstv %s4430
        %v4432 = vadd.f32 %v4426, %v4431
        %v4433 = vadd.f32 %v4427, %v4431
        %v4434 = vadd.f32 %v4428, %v4431
        %v4435 = vadd.f32 %v4429, %v4431
        %v4436 = vmax.f32 %v4432, 0.0
        %v4437 = vmax.f32 %v4433, 0.0
        %v4438 = vmax.f32 %v4434, 0.0
        %v4439 = vmax.f32 %v4435, 0.0
        %s4440 = sld [smem:[#allocation2 + $0x107]]
        %v4441 = vstv %s4440
        %v4442 = vmul.f32 %v4321, %v4441
        %v4443 = vmul.f32 %v4323, %v4441
        %v4444 = vmul.f32 %v4325, %v4441
        %v4445 = vmul.f32 %v4327, %v4441
        %s4446 = sld [smem:[#allocation2 + $0x10f]]
        %v4447 = vstv %s4446
        %v4448 = vadd.f32 %v4442, %v4447
        %v4449 = vadd.f32 %v4443, %v4447
        %v4450 = vadd.f32 %v4444, %v4447
        %v4451 = vadd.f32 %v4445, %v4447
        %v4452 = vmax.f32 %v4448, 0.0
        %v4453 = vmax.f32 %v4449, 0.0
        %v4454 = vmax.f32 %v4450, 0.0
        %v4455 = vmax.f32 %v4451, 0.0
        %s4456 = sld [smem:[#allocation2 + $0x110]]
        %v4457 = vstv %s4456
        %v4458 = vmul.f32 %v4340, %v4457
        %v4459 = vmul.f32 %v4341, %v4457
        %v4460 = vmul.f32 %v4342, %v4457
        %v4461 = vmul.f32 %v4343, %v4457
        %s4462 = sld [smem:[#allocation2 + $0x118]]
        %v4463 = vstv %s4462
        %v4464 = vmul.f32 %v4356, %v4463
        %v4465 = vmul.f32 %v4357, %v4463
        %v4466 = vmul.f32 %v4358, %v4463
        %v4467 = vmul.f32 %v4359, %v4463
        %v4468 = vadd.f32 %v4458, %v4464
        %v4469 = vadd.f32 %v4459, %v4465
        %v4470 = vadd.f32 %v4460, %v4466
        %v4471 = vadd.f32 %v4461, %v4467
        %s4472 = sld [smem:[#allocation2 + $0x120]]
        %v4473 = vstv %s4472
        %v4474 = vmul.f32 %v4372, %v4473
        %v4475 = vmul.f32 %v4373, %v4473
        %v4476 = vmul.f32 %v4374, %v4473
        %v4477 = vmul.f32 %v4375, %v4473
        %v4478 = vadd.f32 %v4468, %v4474
        %v4479 = vadd.f32 %v4469, %v4475
        %v4480 = vadd.f32 %v4470, %v4476
        %v4481 = vadd.f32 %v4471, %v4477
        %s4482 = sld [smem:[#allocation2 + $0x128]]
        %v4483 = vstv %s4482
        %v4484 = vmul.f32 %v4388, %v4483
        %v4485 = vmul.f32 %v4389, %v4483
        %v4486 = vmul.f32 %v4390, %v4483
        %v4487 = vmul.f32 %v4391, %v4483
        %v4488 = vadd.f32 %v4478, %v4484
        %v4489 = vadd.f32 %v4479, %v4485
        %v4490 = vadd.f32 %v4480, %v4486
        %v4491 = vadd.f32 %v4481, %v4487
        %s4492 = sld [smem:[#allocation2 + $0x130]]
        %v4493 = vstv %s4492
        %v4494 = vmul.f32 %v4404, %v4493
        %v4495 = vmul.f32 %v4405, %v4493
        %v4496 = vmul.f32 %v4406, %v4493
        %v4497 = vmul.f32 %v4407, %v4493
        %v4498 = vadd.f32 %v4488, %v4494
        %v4499 = vadd.f32 %v4489, %v4495
        %v4500 = vadd.f32 %v4490, %v4496
        %v4501 = vadd.f32 %v4491, %v4497
        %s4502 = sld [smem:[#allocation2 + $0x138]]
        %v4503 = vstv %s4502
        %v4504 = vmul.f32 %v4420, %v4503
        %v4505 = vmul.f32 %v4421, %v4503
        %v4506 = vmul.f32 %v4422, %v4503
        %v4507 = vmul.f32 %v4423, %v4503
        %v4508 = vadd.f32 %v4498, %v4504
        %v4509 = vadd.f32 %v4499, %v4505
        %v4510 = vadd.f32 %v4500, %v4506
        %v4511 = vadd.f32 %v4501, %v4507
        %s4512 = sld [smem:[#allocation2 + $0x140]]
        %v4513 = vstv %s4512
        %v4514 = vmul.f32 %v4436, %v4513
        %v4515 = vmul.f32 %v4437, %v4513
        %v4516 = vmul.f32 %v4438, %v4513
        %v4517 = vmul.f32 %v4439, %v4513
        %v4518 = vadd.f32 %v4508, %v4514
        %v4519 = vadd.f32 %v4509, %v4515
        %v4520 = vadd.f32 %v4510, %v4516
        %v4521 = vadd.f32 %v4511, %v4517
        %s4522 = sld [smem:[#allocation2 + $0x148]]
        %v4523 = vstv %s4522
        %v4524 = vmul.f32 %v4452, %v4523
        %v4525 = vmul.f32 %v4453, %v4523
        %v4526 = vmul.f32 %v4454, %v4523
        %v4527 = vmul.f32 %v4455, %v4523
        %v4528 = vadd.f32 %v4518, %v4524
        %v4529 = vadd.f32 %v4519, %v4525
        %v4530 = vadd.f32 %v4520, %v4526
        %v4531 = vadd.f32 %v4521, %v4527
        %s4532 = sld [smem:[#allocation2 + $0x150]]
        %v4533 = vstv %s4532
        %v4534 = vadd.f32 %v4528, %v4533
        %v4535 = vadd.f32 %v4529, %v4533
        %v4536 = vadd.f32 %v4530, %v4533
        %v4537 = vadd.f32 %v4531, %v4533
        %v4538 = vmax.f32 %v4534, 0.0
        %v4539 = vmax.f32 %v4535, 0.0
        %v4540 = vmax.f32 %v4536, 0.0
        %v4541 = vmax.f32 %v4537, 0.0
        %s4542 = sld [smem:[#allocation2 + $0x111]]
        %v4543 = vstv %s4542
        %v4544 = vmul.f32 %v4340, %v4543
        %v4545 = vmul.f32 %v4341, %v4543
        %v4546 = vmul.f32 %v4342, %v4543
        %v4547 = vmul.f32 %v4343, %v4543
        %s4548 = sld [smem:[#allocation2 + $0x119]]
        %v4549 = vstv %s4548
        %v4550 = vmul.f32 %v4356, %v4549
        %v4551 = vmul.f32 %v4357, %v4549
        %v4552 = vmul.f32 %v4358, %v4549
        %v4553 = vmul.f32 %v4359, %v4549
        %v4554 = vadd.f32 %v4544, %v4550
        %v4555 = vadd.f32 %v4545, %v4551
        %v4556 = vadd.f32 %v4546, %v4552
        %v4557 = vadd.f32 %v4547, %v4553
        %s4558 = sld [smem:[#allocation2 + $0x121]]
        %v4559 = vstv %s4558
        %v4560 = vmul.f32 %v4372, %v4559
        %v4561 = vmul.f32 %v4373, %v4559
        %v4562 = vmul.f32 %v4374, %v4559
        %v4563 = vmul.f32 %v4375, %v4559
        %v4564 = vadd.f32 %v4554, %v4560
        %v4565 = vadd.f32 %v4555, %v4561
        %v4566 = vadd.f32 %v4556, %v4562
        %v4567 = vadd.f32 %v4557, %v4563
        %s4568 = sld [smem:[#allocation2 + $0x129]]
        %v4569 = vstv %s4568
        %v4570 = vmul.f32 %v4388, %v4569
        %v4571 = vmul.f32 %v4389, %v4569
        %v4572 = vmul.f32 %v4390, %v4569
        %v4573 = vmul.f32 %v4391, %v4569
        %v4574 = vadd.f32 %v4564, %v4570
        %v4575 = vadd.f32 %v4565, %v4571
        %v4576 = vadd.f32 %v4566, %v4572
        %v4577 = vadd.f32 %v4567, %v4573
        %s4578 = sld [smem:[#allocation2 + $0x131]]
        %v4579 = vstv %s4578
        %v4580 = vmul.f32 %v4404, %v4579
        %v4581 = vmul.f32 %v4405, %v4579
        %v4582 = vmul.f32 %v4406, %v4579
        %v4583 = vmul.f32 %v4407, %v4579
        %v4584 = vadd.f32 %v4574, %v4580
        %v4585 = vadd.f32 %v4575, %v4581
        %v4586 = vadd.f32 %v4576, %v4582
        %v4587 = vadd.f32 %v4577, %v4583
        %s4588 = sld [smem:[#allocation2 + $0x139]]
        %v4589 = vstv %s4588
        %v4590 = vmul.f32 %v4420, %v4589
        %v4591 = vmul.f32 %v4421, %v4589
        %v4592 = vmul.f32 %v4422, %v4589
        %v4593 = vmul.f32 %v4423, %v4589
        %v4594 = vadd.f32 %v4584, %v4590
        %v4595 = vadd.f32 %v4585, %v4591
        %v4596 = vadd.f32 %v4586, %v4592
        %v4597 = vadd.f32 %v4587, %v4593
        %s4598 = sld [smem:[#allocation2 + $0x141]]
        %v4599 = vstv %s4598
        %v4600 = vmul.f32 %v4436, %v4599
        %v4601 = vmul.f32 %v4437, %v4599
        %v4602 = vmul.f32 %v4438, %v4599
        %v4603 = vmul.f32 %v4439, %v4599
        %v4604 = vadd.f32 %v4594, %v4600
        %v4605 = vadd.f32 %v4595, %v4601
        %v4606 = vadd.f32 %v4596, %v4602
        %v4607 = vadd.f32 %v4597, %v4603
        %s4608 = sld [smem:[#allocation2 + $0x149]]
        %v4609 = vstv %s4608
        %v4610 = vmul.f32 %v4452, %v4609
        %v4611 = vmul.f32 %v4453, %v4609
        %v4612 = vmul.f32 %v4454, %v4609
        %v4613 = vmul.f32 %v4455, %v4609
        %v4614 = vadd.f32 %v4604, %v4610
        %v4615 = vadd.f32 %v4605, %v4611
        %v4616 = vadd.f32 %v4606, %v4612
        %v4617 = vadd.f32 %v4607, %v4613
        %s4618 = sld [smem:[#allocation2 + $0x151]]
        %v4619 = vstv %s4618
        %v4620 = vadd.f32 %v4614, %v4619
        %v4621 = vadd.f32 %v4615, %v4619
        %v4622 = vadd.f32 %v4616, %v4619
        %v4623 = vadd.f32 %v4617, %v4619
        %v4624 = vmax.f32 %v4620, 0.0
        %v4625 = vmax.f32 %v4621, 0.0
        %v4626 = vmax.f32 %v4622, 0.0
        %v4627 = vmax.f32 %v4623, 0.0
        %s4628 = sld [smem:[#allocation2 + $0x112]]
        %v4629 = vstv %s4628
        %v4630 = vmul.f32 %v4340, %v4629
        %v4631 = vmul.f32 %v4341, %v4629
        %v4632 = vmul.f32 %v4342, %v4629
        %v4633 = vmul.f32 %v4343, %v4629
        %s4634 = sld [smem:[#allocation2 + $0x11a]]
        %v4635 = vstv %s4634
        %v4636 = vmul.f32 %v4356, %v4635
        %v4637 = vmul.f32 %v4357, %v4635
        %v4638 = vmul.f32 %v4358, %v4635
        %v4639 = vmul.f32 %v4359, %v4635
        %v4640 = vadd.f32 %v4630, %v4636
        %v4641 = vadd.f32 %v4631, %v4637
        %v4642 = vadd.f32 %v4632, %v4638
        %v4643 = vadd.f32 %v4633, %v4639
        %s4644 = sld [smem:[#allocation2 + $0x122]]
        %v4645 = vstv %s4644
        %v4646 = vmul.f32 %v4372, %v4645
        %v4647 = vmul.f32 %v4373, %v4645
        %v4648 = vmul.f32 %v4374, %v4645
        %v4649 = vmul.f32 %v4375, %v4645
        %v4650 = vadd.f32 %v4640, %v4646
        %v4651 = vadd.f32 %v4641, %v4647
        %v4652 = vadd.f32 %v4642, %v4648
        %v4653 = vadd.f32 %v4643, %v4649
        %s4654 = sld [smem:[#allocation2 + $0x12a]]
        %v4655 = vstv %s4654
        %v4656 = vmul.f32 %v4388, %v4655
        %v4657 = vmul.f32 %v4389, %v4655
        %v4658 = vmul.f32 %v4390, %v4655
        %v4659 = vmul.f32 %v4391, %v4655
        %v4660 = vadd.f32 %v4650, %v4656
        %v4661 = vadd.f32 %v4651, %v4657
        %v4662 = vadd.f32 %v4652, %v4658
        %v4663 = vadd.f32 %v4653, %v4659
        %s4664 = sld [smem:[#allocation2 + $0x132]]
        %v4665 = vstv %s4664
        %v4666 = vmul.f32 %v4404, %v4665
        %v4667 = vmul.f32 %v4405, %v4665
        %v4668 = vmul.f32 %v4406, %v4665
        %v4669 = vmul.f32 %v4407, %v4665
        %v4670 = vadd.f32 %v4660, %v4666
        %v4671 = vadd.f32 %v4661, %v4667
        %v4672 = vadd.f32 %v4662, %v4668
        %v4673 = vadd.f32 %v4663, %v4669
        %s4674 = sld [smem:[#allocation2 + $0x13a]]
        %v4675 = vstv %s4674
        %v4676 = vmul.f32 %v4420, %v4675
        %v4677 = vmul.f32 %v4421, %v4675
        %v4678 = vmul.f32 %v4422, %v4675
        %v4679 = vmul.f32 %v4423, %v4675
        %v4680 = vadd.f32 %v4670, %v4676
        %v4681 = vadd.f32 %v4671, %v4677
        %v4682 = vadd.f32 %v4672, %v4678
        %v4683 = vadd.f32 %v4673, %v4679
        %s4684 = sld [smem:[#allocation2 + $0x142]]
        %v4685 = vstv %s4684
        %v4686 = vmul.f32 %v4436, %v4685
        %v4687 = vmul.f32 %v4437, %v4685
        %v4688 = vmul.f32 %v4438, %v4685
        %v4689 = vmul.f32 %v4439, %v4685
        %v4690 = vadd.f32 %v4680, %v4686
        %v4691 = vadd.f32 %v4681, %v4687
        %v4692 = vadd.f32 %v4682, %v4688
        %v4693 = vadd.f32 %v4683, %v4689
        %s4694 = sld [smem:[#allocation2 + $0x14a]]
        %v4695 = vstv %s4694
        %v4696 = vmul.f32 %v4452, %v4695
        %v4697 = vmul.f32 %v4453, %v4695
        %v4698 = vmul.f32 %v4454, %v4695
        %v4699 = vmul.f32 %v4455, %v4695
        %v4700 = vadd.f32 %v4690, %v4696
        %v4701 = vadd.f32 %v4691, %v4697
        %v4702 = vadd.f32 %v4692, %v4698
        %v4703 = vadd.f32 %v4693, %v4699
        %s4704 = sld [smem:[#allocation2 + $0x152]]
        %v4705 = vstv %s4704
        %v4706 = vadd.f32 %v4700, %v4705
        %v4707 = vadd.f32 %v4701, %v4705
        %v4708 = vadd.f32 %v4702, %v4705
        %v4709 = vadd.f32 %v4703, %v4705
        %v4710 = vmax.f32 %v4706, 0.0
        %v4711 = vmax.f32 %v4707, 0.0
        %v4712 = vmax.f32 %v4708, 0.0
        %v4713 = vmax.f32 %v4709, 0.0
        %s4714 = sld [smem:[#allocation2 + $0x113]]
        %v4715 = vstv %s4714
        %v4716 = vmul.f32 %v4340, %v4715
        %v4717 = vmul.f32 %v4341, %v4715
        %v4718 = vmul.f32 %v4342, %v4715
        %v4719 = vmul.f32 %v4343, %v4715
        %s4720 = sld [smem:[#allocation2 + $0x11b]]
        %v4721 = vstv %s4720
        %v4722 = vmul.f32 %v4356, %v4721
        %v4723 = vmul.f32 %v4357, %v4721
        %v4724 = vmul.f32 %v4358, %v4721
        %v4725 = vmul.f32 %v4359, %v4721
        %v4726 = vadd.f32 %v4716, %v4722
        %v4727 = vadd.f32 %v4717, %v4723
        %v4728 = vadd.f32 %v4718, %v4724
        %v4729 = vadd.f32 %v4719, %v4725
        %s4730 = sld [smem:[#allocation2 + $0x123]]
        %v4731 = vstv %s4730
        %v4732 = vmul.f32 %v4372, %v4731
        %v4733 = vmul.f32 %v4373, %v4731
        %v4734 = vmul.f32 %v4374, %v4731
        %v4735 = vmul.f32 %v4375, %v4731
        %v4736 = vadd.f32 %v4726, %v4732
        %v4737 = vadd.f32 %v4727, %v4733
        %v4738 = vadd.f32 %v4728, %v4734
        %v4739 = vadd.f32 %v4729, %v4735
        %s4740 = sld [smem:[#allocation2 + $0x12b]]
        %v4741 = vstv %s4740
        %v4742 = vmul.f32 %v4388, %v4741
        %v4743 = vmul.f32 %v4389, %v4741
        %v4744 = vmul.f32 %v4390, %v4741
        %v4745 = vmul.f32 %v4391, %v4741
        %v4746 = vadd.f32 %v4736, %v4742
        %v4747 = vadd.f32 %v4737, %v4743
        %v4748 = vadd.f32 %v4738, %v4744
        %v4749 = vadd.f32 %v4739, %v4745
        %s4750 = sld [smem:[#allocation2 + $0x133]]
        %v4751 = vstv %s4750
        %v4752 = vmul.f32 %v4404, %v4751
        %v4753 = vmul.f32 %v4405, %v4751
        %v4754 = vmul.f32 %v4406, %v4751
        %v4755 = vmul.f32 %v4407, %v4751
        %v4756 = vadd.f32 %v4746, %v4752
        %v4757 = vadd.f32 %v4747, %v4753
        %v4758 = vadd.f32 %v4748, %v4754
        %v4759 = vadd.f32 %v4749, %v4755
        %s4760 = sld [smem:[#allocation2 + $0x13b]]
        %v4761 = vstv %s4760
        %v4762 = vmul.f32 %v4420, %v4761
        %v4763 = vmul.f32 %v4421, %v4761
        %v4764 = vmul.f32 %v4422, %v4761
        %v4765 = vmul.f32 %v4423, %v4761
        %v4766 = vadd.f32 %v4756, %v4762
        %v4767 = vadd.f32 %v4757, %v4763
        %v4768 = vadd.f32 %v4758, %v4764
        %v4769 = vadd.f32 %v4759, %v4765
        %s4770 = sld [smem:[#allocation2 + $0x143]]
        %v4771 = vstv %s4770
        %v4772 = vmul.f32 %v4436, %v4771
        %v4773 = vmul.f32 %v4437, %v4771
        %v4774 = vmul.f32 %v4438, %v4771
        %v4775 = vmul.f32 %v4439, %v4771
        %v4776 = vadd.f32 %v4766, %v4772
        %v4777 = vadd.f32 %v4767, %v4773
        %v4778 = vadd.f32 %v4768, %v4774
        %v4779 = vadd.f32 %v4769, %v4775
        %s4780 = sld [smem:[#allocation2 + $0x14b]]
        %v4781 = vstv %s4780
        %v4782 = vmul.f32 %v4452, %v4781
        %v4783 = vmul.f32 %v4453, %v4781
        %v4784 = vmul.f32 %v4454, %v4781
        %v4785 = vmul.f32 %v4455, %v4781
        %v4786 = vadd.f32 %v4776, %v4782
        %v4787 = vadd.f32 %v4777, %v4783
        %v4788 = vadd.f32 %v4778, %v4784
        %v4789 = vadd.f32 %v4779, %v4785
        %s4790 = sld [smem:[#allocation2 + $0x153]]
        %v4791 = vstv %s4790
        %v4792 = vadd.f32 %v4786, %v4791
        %v4793 = vadd.f32 %v4787, %v4791
        %v4794 = vadd.f32 %v4788, %v4791
        %v4795 = vadd.f32 %v4789, %v4791
        %v4796 = vmax.f32 %v4792, 0.0
        %v4797 = vmax.f32 %v4793, 0.0
        %v4798 = vmax.f32 %v4794, 0.0
        %v4799 = vmax.f32 %v4795, 0.0
        %s4800 = sld [smem:[#allocation2 + $0x114]]
        %v4801 = vstv %s4800
        %v4802 = vmul.f32 %v4340, %v4801
        %v4803 = vmul.f32 %v4341, %v4801
        %v4804 = vmul.f32 %v4342, %v4801
        %v4805 = vmul.f32 %v4343, %v4801
        %s4806 = sld [smem:[#allocation2 + $0x11c]]
        %v4807 = vstv %s4806
        %v4808 = vmul.f32 %v4356, %v4807
        %v4809 = vmul.f32 %v4357, %v4807
        %v4810 = vmul.f32 %v4358, %v4807
        %v4811 = vmul.f32 %v4359, %v4807
        %v4812 = vadd.f32 %v4802, %v4808
        %v4813 = vadd.f32 %v4803, %v4809
        %v4814 = vadd.f32 %v4804, %v4810
        %v4815 = vadd.f32 %v4805, %v4811
        %s4816 = sld [smem:[#allocation2 + $0x124]]
        %v4817 = vstv %s4816
        %v4818 = vmul.f32 %v4372, %v4817
        %v4819 = vmul.f32 %v4373, %v4817
        %v4820 = vmul.f32 %v4374, %v4817
        %v4821 = vmul.f32 %v4375, %v4817
        %v4822 = vadd.f32 %v4812, %v4818
        %v4823 = vadd.f32 %v4813, %v4819
        %v4824 = vadd.f32 %v4814, %v4820
        %v4825 = vadd.f32 %v4815, %v4821
        %s4826 = sld [smem:[#allocation2 + $0x12c]]
        %v4827 = vstv %s4826
        %v4828 = vmul.f32 %v4388, %v4827
        %v4829 = vmul.f32 %v4389, %v4827
        %v4830 = vmul.f32 %v4390, %v4827
        %v4831 = vmul.f32 %v4391, %v4827
        %v4832 = vadd.f32 %v4822, %v4828
        %v4833 = vadd.f32 %v4823, %v4829
        %v4834 = vadd.f32 %v4824, %v4830
        %v4835 = vadd.f32 %v4825, %v4831
        %s4836 = sld [smem:[#allocation2 + $0x134]]
        %v4837 = vstv %s4836
        %v4838 = vmul.f32 %v4404, %v4837
        %v4839 = vmul.f32 %v4405, %v4837
        %v4840 = vmul.f32 %v4406, %v4837
        %v4841 = vmul.f32 %v4407, %v4837
        %v4842 = vadd.f32 %v4832, %v4838
        %v4843 = vadd.f32 %v4833, %v4839
        %v4844 = vadd.f32 %v4834, %v4840
        %v4845 = vadd.f32 %v4835, %v4841
        %s4846 = sld [smem:[#allocation2 + $0x13c]]
        %v4847 = vstv %s4846
        %v4848 = vmul.f32 %v4420, %v4847
        %v4849 = vmul.f32 %v4421, %v4847
        %v4850 = vmul.f32 %v4422, %v4847
        %v4851 = vmul.f32 %v4423, %v4847
        %v4852 = vadd.f32 %v4842, %v4848
        %v4853 = vadd.f32 %v4843, %v4849
        %v4854 = vadd.f32 %v4844, %v4850
        %v4855 = vadd.f32 %v4845, %v4851
        %s4856 = sld [smem:[#allocation2 + $0x144]]
        %v4857 = vstv %s4856
        %v4858 = vmul.f32 %v4436, %v4857
        %v4859 = vmul.f32 %v4437, %v4857
        %v4860 = vmul.f32 %v4438, %v4857
        %v4861 = vmul.f32 %v4439, %v4857
        %v4862 = vadd.f32 %v4852, %v4858
        %v4863 = vadd.f32 %v4853, %v4859
        %v4864 = vadd.f32 %v4854, %v4860
        %v4865 = vadd.f32 %v4855, %v4861
        %s4866 = sld [smem:[#allocation2 + $0x14c]]
        %v4867 = vstv %s4866
        %v4868 = vmul.f32 %v4452, %v4867
        %v4869 = vmul.f32 %v4453, %v4867
        %v4870 = vmul.f32 %v4454, %v4867
        %v4871 = vmul.f32 %v4455, %v4867
        %v4872 = vadd.f32 %v4862, %v4868
        %v4873 = vadd.f32 %v4863, %v4869
        %v4874 = vadd.f32 %v4864, %v4870
        %v4875 = vadd.f32 %v4865, %v4871
        %s4876 = sld [smem:[#allocation2 + $0x154]]
        %v4877 = vstv %s4876
        %v4878 = vadd.f32 %v4872, %v4877
        %v4879 = vadd.f32 %v4873, %v4877
        %v4880 = vadd.f32 %v4874, %v4877
        %v4881 = vadd.f32 %v4875, %v4877
        %v4882 = vmax.f32 %v4878, 0.0
        %v4883 = vmax.f32 %v4879, 0.0
        %v4884 = vmax.f32 %v4880, 0.0
        %v4885 = vmax.f32 %v4881, 0.0
        %s4886 = sld [smem:[#allocation2 + $0x115]]
        %v4887 = vstv %s4886
        %v4888 = vmul.f32 %v4340, %v4887
        %v4889 = vmul.f32 %v4341, %v4887
        %v4890 = vmul.f32 %v4342, %v4887
        %v4891 = vmul.f32 %v4343, %v4887
        %s4892 = sld [smem:[#allocation2 + $0x11d]]
        %v4893 = vstv %s4892
        %v4894 = vmul.f32 %v4356, %v4893
        %v4895 = vmul.f32 %v4357, %v4893
        %v4896 = vmul.f32 %v4358, %v4893
        %v4897 = vmul.f32 %v4359, %v4893
        %v4898 = vadd.f32 %v4888, %v4894
        %v4899 = vadd.f32 %v4889, %v4895
        %v4900 = vadd.f32 %v4890, %v4896
        %v4901 = vadd.f32 %v4891, %v4897
        %s4902 = sld [smem:[#allocation2 + $0x125]]
        %v4903 = vstv %s4902
        %v4904 = vmul.f32 %v4372, %v4903
        %v4905 = vmul.f32 %v4373, %v4903
        %v4906 = vmul.f32 %v4374, %v4903
        %v4907 = vmul.f32 %v4375, %v4903
        %v4908 = vadd.f32 %v4898, %v4904
        %v4909 = vadd.f32 %v4899, %v4905
        %v4910 = vadd.f32 %v4900, %v4906
        %v4911 = vadd.f32 %v4901, %v4907
        %s4912 = sld [smem:[#allocation2 + $0x12d]]
        %v4913 = vstv %s4912
        %v4914 = vmul.f32 %v4388, %v4913
        %v4915 = vmul.f32 %v4389, %v4913
        %v4916 = vmul.f32 %v4390, %v4913
        %v4917 = vmul.f32 %v4391, %v4913
        %v4918 = vadd.f32 %v4908, %v4914
        %v4919 = vadd.f32 %v4909, %v4915
        %v4920 = vadd.f32 %v4910, %v4916
        %v4921 = vadd.f32 %v4911, %v4917
        %s4922 = sld [smem:[#allocation2 + $0x135]]
        %v4923 = vstv %s4922
        %v4924 = vmul.f32 %v4404, %v4923
        %v4925 = vmul.f32 %v4405, %v4923
        %v4926 = vmul.f32 %v4406, %v4923
        %v4927 = vmul.f32 %v4407, %v4923
        %v4928 = vadd.f32 %v4918, %v4924
        %v4929 = vadd.f32 %v4919, %v4925
        %v4930 = vadd.f32 %v4920, %v4926
        %v4931 = vadd.f32 %v4921, %v4927
        %s4932 = sld [smem:[#allocation2 + $0x13d]]
        %v4933 = vstv %s4932
        %v4934 = vmul.f32 %v4420, %v4933
        %v4935 = vmul.f32 %v4421, %v4933
        %v4936 = vmul.f32 %v4422, %v4933
        %v4937 = vmul.f32 %v4423, %v4933
        %v4938 = vadd.f32 %v4928, %v4934
        %v4939 = vadd.f32 %v4929, %v4935
        %v4940 = vadd.f32 %v4930, %v4936
        %v4941 = vadd.f32 %v4931, %v4937
        %s4942 = sld [smem:[#allocation2 + $0x145]]
        %v4943 = vstv %s4942
        %v4944 = vmul.f32 %v4436, %v4943
        %v4945 = vmul.f32 %v4437, %v4943
        %v4946 = vmul.f32 %v4438, %v4943
        %v4947 = vmul.f32 %v4439, %v4943
        %v4948 = vadd.f32 %v4938, %v4944
        %v4949 = vadd.f32 %v4939, %v4945
        %v4950 = vadd.f32 %v4940, %v4946
        %v4951 = vadd.f32 %v4941, %v4947
        %s4952 = sld [smem:[#allocation2 + $0x14d]]
        %v4953 = vstv %s4952
        %v4954 = vmul.f32 %v4452, %v4953
        %v4955 = vmul.f32 %v4453, %v4953
        %v4956 = vmul.f32 %v4454, %v4953
        %v4957 = vmul.f32 %v4455, %v4953
        %v4958 = vadd.f32 %v4948, %v4954
        %v4959 = vadd.f32 %v4949, %v4955
        %v4960 = vadd.f32 %v4950, %v4956
        %v4961 = vadd.f32 %v4951, %v4957
        %s4962 = sld [smem:[#allocation2 + $0x155]]
        %v4963 = vstv %s4962
        %v4964 = vadd.f32 %v4958, %v4963
        %v4965 = vadd.f32 %v4959, %v4963
        %v4966 = vadd.f32 %v4960, %v4963
        %v4967 = vadd.f32 %v4961, %v4963
        %v4968 = vmax.f32 %v4964, 0.0
        %v4969 = vmax.f32 %v4965, 0.0
        %v4970 = vmax.f32 %v4966, 0.0
        %v4971 = vmax.f32 %v4967, 0.0
        %s4972 = sld [smem:[#allocation2 + $0x116]]
        %v4973 = vstv %s4972
        %v4974 = vmul.f32 %v4340, %v4973
        %v4975 = vmul.f32 %v4341, %v4973
        %v4976 = vmul.f32 %v4342, %v4973
        %v4977 = vmul.f32 %v4343, %v4973
        %s4978 = sld [smem:[#allocation2 + $0x11e]]
        %v4979 = vstv %s4978
        %v4980 = vmul.f32 %v4356, %v4979
        %v4981 = vmul.f32 %v4357, %v4979
        %v4982 = vmul.f32 %v4358, %v4979
        %v4983 = vmul.f32 %v4359, %v4979
        %v4984 = vadd.f32 %v4974, %v4980
        %v4985 = vadd.f32 %v4975, %v4981
        %v4986 = vadd.f32 %v4976, %v4982
        %v4987 = vadd.f32 %v4977, %v4983
        %s4988 = sld [smem:[#allocation2 + $0x126]]
        %v4989 = vstv %s4988
        %v4990 = vmul.f32 %v4372, %v4989
        %v4991 = vmul.f32 %v4373, %v4989
        %v4992 = vmul.f32 %v4374, %v4989
        %v4993 = vmul.f32 %v4375, %v4989
        %v4994 = vadd.f32 %v4984, %v4990
        %v4995 = vadd.f32 %v4985, %v4991
        %v4996 = vadd.f32 %v4986, %v4992
        %v4997 = vadd.f32 %v4987, %v4993
        %s4998 = sld [smem:[#allocation2 + $0x12e]]
        %v4999 = vstv %s4998
        %v5000 = vmul.f32 %v4388, %v4999
        %v5001 = vmul.f32 %v4389, %v4999
        %v5002 = vmul.f32 %v4390, %v4999
        %v5003 = vmul.f32 %v4391, %v4999
        %v5004 = vadd.f32 %v4994, %v5000
        %v5005 = vadd.f32 %v4995, %v5001
        %v5006 = vadd.f32 %v4996, %v5002
        %v5007 = vadd.f32 %v4997, %v5003
        %s5008 = sld [smem:[#allocation2 + $0x136]]
        %v5009 = vstv %s5008
        %v5010 = vmul.f32 %v4404, %v5009
        %v5011 = vmul.f32 %v4405, %v5009
        %v5012 = vmul.f32 %v4406, %v5009
        %v5013 = vmul.f32 %v4407, %v5009
        %v5014 = vadd.f32 %v5004, %v5010
        %v5015 = vadd.f32 %v5005, %v5011
        %v5016 = vadd.f32 %v5006, %v5012
        %v5017 = vadd.f32 %v5007, %v5013
        %s5018 = sld [smem:[#allocation2 + $0x13e]]
        %v5019 = vstv %s5018
        %v5020 = vmul.f32 %v4420, %v5019
        %v5021 = vmul.f32 %v4421, %v5019
        %v5022 = vmul.f32 %v4422, %v5019
        %v5023 = vmul.f32 %v4423, %v5019
        %v5024 = vadd.f32 %v5014, %v5020
        %v5025 = vadd.f32 %v5015, %v5021
        %v5026 = vadd.f32 %v5016, %v5022
        %v5027 = vadd.f32 %v5017, %v5023
        %s5028 = sld [smem:[#allocation2 + $0x146]]
        %v5029 = vstv %s5028
        %v5030 = vmul.f32 %v4436, %v5029
        %v5031 = vmul.f32 %v4437, %v5029
        %v5032 = vmul.f32 %v4438, %v5029
        %v5033 = vmul.f32 %v4439, %v5029
        %v5034 = vadd.f32 %v5024, %v5030
        %v5035 = vadd.f32 %v5025, %v5031
        %v5036 = vadd.f32 %v5026, %v5032
        %v5037 = vadd.f32 %v5027, %v5033
        %s5038 = sld [smem:[#allocation2 + $0x14e]]
        %v5039 = vstv %s5038
        %v5040 = vmul.f32 %v4452, %v5039
        %v5041 = vmul.f32 %v4453, %v5039
        %v5042 = vmul.f32 %v4454, %v5039
        %v5043 = vmul.f32 %v4455, %v5039
        %v5044 = vadd.f32 %v5034, %v5040
        %v5045 = vadd.f32 %v5035, %v5041
        %v5046 = vadd.f32 %v5036, %v5042
        %v5047 = vadd.f32 %v5037, %v5043
        %s5048 = sld [smem:[#allocation2 + $0x156]]
        %v5049 = vstv %s5048
        %v5050 = vadd.f32 %v5044, %v5049
        %v5051 = vadd.f32 %v5045, %v5049
        %v5052 = vadd.f32 %v5046, %v5049
        %v5053 = vadd.f32 %v5047, %v5049
        %v5054 = vmax.f32 %v5050, 0.0
        %v5055 = vmax.f32 %v5051, 0.0
        %v5056 = vmax.f32 %v5052, 0.0
        %v5057 = vmax.f32 %v5053, 0.0
        %s5058 = sld [smem:[#allocation2 + $0x117]]
        %v5059 = vstv %s5058
        %v5060 = vmul.f32 %v4340, %v5059
        %v5061 = vmul.f32 %v4341, %v5059
        %v5062 = vmul.f32 %v4342, %v5059
        %v5063 = vmul.f32 %v4343, %v5059
        %s5064 = sld [smem:[#allocation2 + $0x11f]]
        %v5065 = vstv %s5064
        %v5066 = vmul.f32 %v4356, %v5065
        %v5067 = vmul.f32 %v4357, %v5065
        %v5068 = vmul.f32 %v4358, %v5065
        %v5069 = vmul.f32 %v4359, %v5065
        %v5070 = vadd.f32 %v5060, %v5066
        %v5071 = vadd.f32 %v5061, %v5067
        %v5072 = vadd.f32 %v5062, %v5068
        %v5073 = vadd.f32 %v5063, %v5069
        %s5074 = sld [smem:[#allocation2 + $0x127]]
        %v5075 = vstv %s5074
        %v5076 = vmul.f32 %v4372, %v5075
        %v5077 = vmul.f32 %v4373, %v5075
        %v5078 = vmul.f32 %v4374, %v5075
        %v5079 = vmul.f32 %v4375, %v5075
        %v5080 = vadd.f32 %v5070, %v5076
        %v5081 = vadd.f32 %v5071, %v5077
        %v5082 = vadd.f32 %v5072, %v5078
        %v5083 = vadd.f32 %v5073, %v5079
        %s5084 = sld [smem:[#allocation2 + $0x12f]]
        %v5085 = vstv %s5084
        %v5086 = vmul.f32 %v4388, %v5085
        %v5087 = vmul.f32 %v4389, %v5085
        %v5088 = vmul.f32 %v4390, %v5085
        %v5089 = vmul.f32 %v4391, %v5085
        %v5090 = vadd.f32 %v5080, %v5086
        %v5091 = vadd.f32 %v5081, %v5087
        %v5092 = vadd.f32 %v5082, %v5088
        %v5093 = vadd.f32 %v5083, %v5089
        %s5094 = sld [smem:[#allocation2 + $0x137]]
        %v5095 = vstv %s5094
        %v5096 = vmul.f32 %v4404, %v5095
        %v5097 = vmul.f32 %v4405, %v5095
        %v5098 = vmul.f32 %v4406, %v5095
        %v5099 = vmul.f32 %v4407, %v5095
        %v5100 = vadd.f32 %v5090, %v5096
        %v5101 = vadd.f32 %v5091, %v5097
        %v5102 = vadd.f32 %v5092, %v5098
        %v5103 = vadd.f32 %v5093, %v5099
        %s5104 = sld [smem:[#allocation2 + $0x13f]]
        %v5105 = vstv %s5104
        %v5106 = vmul.f32 %v4420, %v5105
        %v5107 = vmul.f32 %v4421, %v5105
        %v5108 = vmul.f32 %v4422, %v5105
        %v5109 = vmul.f32 %v4423, %v5105
        %v5110 = vadd.f32 %v5100, %v5106
        %v5111 = vadd.f32 %v5101, %v5107
        %v5112 = vadd.f32 %v5102, %v5108
        %v5113 = vadd.f32 %v5103, %v5109
        %s5114 = sld [smem:[#allocation2 + $0x147]]
        %v5115 = vstv %s5114
        %v5116 = vmul.f32 %v4436, %v5115
        %v5117 = vmul.f32 %v4437, %v5115
        %v5118 = vmul.f32 %v4438, %v5115
        %v5119 = vmul.f32 %v4439, %v5115
        %v5120 = vadd.f32 %v5110, %v5116
        %v5121 = vadd.f32 %v5111, %v5117
        %v5122 = vadd.f32 %v5112, %v5118
        %v5123 = vadd.f32 %v5113, %v5119
        %s5124 = sld [smem:[#allocation2 + $0x14f]]
        %v5125 = vstv %s5124
        %v5126 = vmul.f32 %v4452, %v5125
        %v5127 = vmul.f32 %v4453, %v5125
        %v5128 = vmul.f32 %v4454, %v5125
        %v5129 = vmul.f32 %v4455, %v5125
        %v5130 = vadd.f32 %v5120, %v5126
        %v5131 = vadd.f32 %v5121, %v5127
        %v5132 = vadd.f32 %v5122, %v5128
        %v5133 = vadd.f32 %v5123, %v5129
        %s5134 = sld [smem:[#allocation2 + $0x157]]
        %v5135 = vstv %s5134
        %v5136 = vadd.f32 %v5130, %v5135
        %v5137 = vadd.f32 %v5131, %v5135
        %v5138 = vadd.f32 %v5132, %v5135
        %v5139 = vadd.f32 %v5133, %v5135
        %v5140 = vmax.f32 %v5136, 0.0
        %v5141 = vmax.f32 %v5137, 0.0
        %v5142 = vmax.f32 %v5138, 0.0
        %v5143 = vmax.f32 %v5139, 0.0
        %s5144 = sld [smem:[#allocation2 + $0x158]]
        %v5145 = vstv %s5144
        %v5146 = vmul.f32 %v4538, %v5145
        %v5147 = vmul.f32 %v4539, %v5145
        %v5148 = vmul.f32 %v4540, %v5145
        %v5149 = vmul.f32 %v4541, %v5145
        %s5150 = sld [smem:[#allocation2 + $0x159]]
        %v5151 = vstv %s5150
        %v5152 = vmul.f32 %v4624, %v5151
        %v5153 = vmul.f32 %v4625, %v5151
        %v5154 = vmul.f32 %v4626, %v5151
        %v5155 = vmul.f32 %v4627, %v5151
        %v5156 = vadd.f32 %v5146, %v5152
        %v5157 = vadd.f32 %v5147, %v5153
        %v5158 = vadd.f32 %v5148, %v5154
        %v5159 = vadd.f32 %v5149, %v5155
        %s5160 = sld [smem:[#allocation2 + $0x15a]]
        %v5161 = vstv %s5160
        %v5162 = vmul.f32 %v4710, %v5161
        %v5163 = vmul.f32 %v4711, %v5161
        %v5164 = vmul.f32 %v4712, %v5161
        %v5165 = vmul.f32 %v4713, %v5161
        %v5166 = vadd.f32 %v5156, %v5162
        %v5167 = vadd.f32 %v5157, %v5163
        %v5168 = vadd.f32 %v5158, %v5164
        %v5169 = vadd.f32 %v5159, %v5165
        %s5170 = sld [smem:[#allocation2 + $0x15b]]
        %v5171 = vstv %s5170
        %v5172 = vmul.f32 %v4796, %v5171
        %v5173 = vmul.f32 %v4797, %v5171
        %v5174 = vmul.f32 %v4798, %v5171
        %v5175 = vmul.f32 %v4799, %v5171
        %v5176 = vadd.f32 %v5166, %v5172
        %v5177 = vadd.f32 %v5167, %v5173
        %v5178 = vadd.f32 %v5168, %v5174
        %v5179 = vadd.f32 %v5169, %v5175
        %s5180 = sld [smem:[#allocation2 + $0x15c]]
        %v5181 = vstv %s5180
        %v5182 = vmul.f32 %v4882, %v5181
        %v5183 = vmul.f32 %v4883, %v5181
        %v5184 = vmul.f32 %v4884, %v5181
        %v5185 = vmul.f32 %v4885, %v5181
        %v5186 = vadd.f32 %v5176, %v5182
        %v5187 = vadd.f32 %v5177, %v5183
        %v5188 = vadd.f32 %v5178, %v5184
        %v5189 = vadd.f32 %v5179, %v5185
        %s5190 = sld [smem:[#allocation2 + $0x15d]]
        %v5191 = vstv %s5190
        %v5192 = vmul.f32 %v4968, %v5191
        %v5193 = vmul.f32 %v4969, %v5191
        %v5194 = vmul.f32 %v4970, %v5191
        %v5195 = vmul.f32 %v4971, %v5191
        %v5196 = vadd.f32 %v5186, %v5192
        %v5197 = vadd.f32 %v5187, %v5193
        %v5198 = vadd.f32 %v5188, %v5194
        %v5199 = vadd.f32 %v5189, %v5195
        %s5200 = sld [smem:[#allocation2 + $0x15e]]
        %v5201 = vstv %s5200
        %v5202 = vmul.f32 %v5054, %v5201
        %v5203 = vmul.f32 %v5055, %v5201
        %v5204 = vmul.f32 %v5056, %v5201
        %v5205 = vmul.f32 %v5057, %v5201
        %v5206 = vadd.f32 %v5196, %v5202
        %v5207 = vadd.f32 %v5197, %v5203
        %v5208 = vadd.f32 %v5198, %v5204
        %v5209 = vadd.f32 %v5199, %v5205
        %s5210 = sld [smem:[#allocation2 + $0x15f]]
        %v5211 = vstv %s5210
        %v5212 = vmul.f32 %v5140, %v5211
        %v5213 = vmul.f32 %v5141, %v5211
        %v5214 = vmul.f32 %v5142, %v5211
        %v5215 = vmul.f32 %v5143, %v5211
        %v5216 = vadd.f32 %v5206, %v5212
        %v5217 = vadd.f32 %v5207, %v5213
        %v5218 = vadd.f32 %v5208, %v5214
        %v5219 = vadd.f32 %v5209, %v5215
        %s5220 = sld [smem:[#allocation2 + $0x160]]
        %v5221 = vstv %s5220
        %v5222 = vadd.f32 %v5216, %v5221
        %v5223 = vadd.f32 %v5217, %v5221
        %v5224 = vadd.f32 %v5218, %v5221
        %v5225 = vadd.f32 %v5219, %v5221
        %v5226 = vsub.f32 0.0, %v5222
        %v5227 = vsub.f32 0.0, %v5223
        %v5228 = vsub.f32 0.0, %v5224
        %v5229 = vsub.f32 0.0, %v5225
        %v5230 = vmul.f32 %v5226, 1.442695
        %v5231 = vpow.pop %v5230
        %v5232 = vmul.f32 %v5227, 1.442695
        %v5233 = vpow.pop %v5232
        %v5234 = vmul.f32 %v5228, 1.442695
        %v5235 = vpow.pop %v5234
        %v5236 = vmul.f32 %v5229, 1.442695
        %v5237 = vpow.pop %v5236
        %v5238 = vadd.f32 %v5231, 1.0
        %v5239 = vadd.f32 %v5233, 1.0
        %v5240 = vadd.f32 %v5235, 1.0
        %v5241 = vadd.f32 %v5237, 1.0
        %v5242 = vrcp.pop %v5238
        %v5243 = vmul.f32 %v5238, %v5242
        %v5244 = vsub.f32 1.0, %v5243
        %v5245 = vmul.f32 %v5242, %v5244
        %v5246 = vadd.f32 %v5242, %v5245
        %vm5247 = vweird.f32 %v5238
        %vm5248 = vweird.f32 %v5242
        %vm5249 = vmor %vm5247, %vm5248
        %v5250 = vsel %vm5249, %v5242, %v5246
        %v5251 = vand.u32 2147483647, %v5238
        %vm5252 = vcmp.eq.f32.partialorder %v5251, 8.507059e+37
        %v5253 = vand.u32 %v5238, 2147483648
        %v5254 = vor.u32 1.1754944e-38, %v5253
        %v5255 = vsel %vm5252, %v5254, %v5250
        %v5256 = vmul.f32 1.0, %v5255
        %v5257 = vrcp.pop %v5239
        %v5258 = vmul.f32 %v5239, %v5257
        %v5259 = vsub.f32 1.0, %v5258
        %v5260 = vmul.f32 %v5257, %v5259
        %v5261 = vadd.f32 %v5257, %v5260
        %vm5262 = vweird.f32 %v5239
        %vm5263 = vweird.f32 %v5257
        %vm5264 = vmor %vm5262, %vm5263
        %v5265 = vsel %vm5264, %v5257, %v5261
        %v5266 = vand.u32 2147483647, %v5239
        %vm5267 = vcmp.eq.f32.partialorder %v5266, 8.507059e+37
        %v5268 = vand.u32 %v5239, 2147483648
        %v5269 = vor.u32 1.1754944e-38, %v5268
        %v5270 = vsel %vm5267, %v5269, %v5265
        %v5271 = vmul.f32 1.0, %v5270
        %v5272 = vrcp.pop %v5240
        %v5273 = vmul.f32 %v5240, %v5272
        %v5274 = vsub.f32 1.0, %v5273
        %v5275 = vmul.f32 %v5272, %v5274
        %v5276 = vadd.f32 %v5272, %v5275
        %vm5277 = vweird.f32 %v5240
        %vm5278 = vweird.f32 %v5272
        %vm5279 = vmor %vm5277, %vm5278
        %v5280 = vsel %vm5279, %v5272, %v5276
        %v5281 = vand.u32 2147483647, %v5240
        %vm5282 = vcmp.eq.f32.partialorder %v5281, 8.507059e+37
        %v5283 = vand.u32 %v5240, 2147483648
        %v5284 = vor.u32 1.1754944e-38, %v5283
        %v5285 = vsel %vm5282, %v5284, %v5280
        %v5286 = vmul.f32 1.0, %v5285
        %v5287 = vrcp.pop %v5241
        %v5288 = vmul.f32 %v5241, %v5287
        %v5289 = vsub.f32 1.0, %v5288
        %v5290 = vmul.f32 %v5287, %v5289
        %v5291 = vadd.f32 %v5287, %v5290
        %vm5292 = vweird.f32 %v5241
        %vm5293 = vweird.f32 %v5287
        %vm5294 = vmor %vm5292, %vm5293
        %v5295 = vsel %vm5294, %v5287, %v5291
        %v5296 = vand.u32 2147483647, %v5241
        %vm5297 = vcmp.eq.f32.partialorder %v5296, 8.507059e+37
        %v5298 = vand.u32 %v5241, 2147483648
        %v5299 = vor.u32 1.1754944e-38, %v5298
        %v5300 = vsel %vm5297, %v5299, %v5295
        %v5301 = vmul.f32 1.0, %v5300
        %v5302 = vadd.f32 %v5256, 1e-06
        %v5303 = vadd.f32 %v5271, 1e-06
        %v5304 = vadd.f32 %v5286, 1e-06
        %v5305 = vadd.f32 %v5301, 1e-06
        %v5306 = vrcp.pop %v5302
        %v5307 = vmul.f32 %v5302, %v5306
        %v5308 = vsub.f32 1.0, %v5307
        %v5309 = vmul.f32 %v5306, %v5308
        %v5310 = vadd.f32 %v5306, %v5309
        %vm5311 = vweird.f32 %v5302
        %vm5312 = vweird.f32 %v5306
        %vm5313 = vmor %vm5311, %vm5312
        %v5314 = vsel %vm5313, %v5306, %v5310
        %v5315 = vand.u32 2147483647, %v5302
        %vm5316 = vcmp.eq.f32.partialorder %v5315, 8.507059e+37
        %v5317 = vand.u32 %v5302, 2147483648
        %v5318 = vor.u32 1.1754944e-38, %v5317
        %v5319 = vsel %vm5316, %v5318, %v5314
        %v5320 = vmul.f32 1.0, %v5319
        %v5321 = vrcp.pop %v5303
        %v5322 = vmul.f32 %v5303, %v5321
        %v5323 = vsub.f32 1.0, %v5322
        %v5324 = vmul.f32 %v5321, %v5323
        %v5325 = vadd.f32 %v5321, %v5324
        %vm5326 = vweird.f32 %v5303
        %vm5327 = vweird.f32 %v5321
        %vm5328 = vmor %vm5326, %vm5327
        %v5329 = vsel %vm5328, %v5321, %v5325
        %v5330 = vand.u32 2147483647, %v5303
        %vm5331 = vcmp.eq.f32.partialorder %v5330, 8.507059e+37
        %v5332 = vand.u32 %v5303, 2147483648
        %v5333 = vor.u32 1.1754944e-38, %v5332
        %v5334 = vsel %vm5331, %v5333, %v5329
        %v5335 = vmul.f32 1.0, %v5334
        %v5336 = vrcp.pop %v5304
        %v5337 = vmul.f32 %v5304, %v5336
        %v5338 = vsub.f32 1.0, %v5337
        %v5339 = vmul.f32 %v5336, %v5338
        %v5340 = vadd.f32 %v5336, %v5339
        %vm5341 = vweird.f32 %v5304
        %vm5342 = vweird.f32 %v5336
        %vm5343 = vmor %vm5341, %vm5342
        %v5344 = vsel %vm5343, %v5336, %v5340
        %v5345 = vand.u32 2147483647, %v5304
        %vm5346 = vcmp.eq.f32.partialorder %v5345, 8.507059e+37
        %v5347 = vand.u32 %v5304, 2147483648
        %v5348 = vor.u32 1.1754944e-38, %v5347
        %v5349 = vsel %vm5346, %v5348, %v5344
        %v5350 = vmul.f32 1.0, %v5349
        %v5351 = vrcp.pop %v5305
        %v5352 = vmul.f32 %v5305, %v5351
        %v5353 = vsub.f32 1.0, %v5352
        %v5354 = vmul.f32 %v5351, %v5353
        %v5355 = vadd.f32 %v5351, %v5354
        %vm5356 = vweird.f32 %v5305
        %vm5357 = vweird.f32 %v5351
        %vm5358 = vmor %vm5356, %vm5357
        %v5359 = vsel %vm5358, %v5351, %v5355
        %v5360 = vand.u32 2147483647, %v5305
        %vm5361 = vcmp.eq.f32.partialorder %v5360, 8.507059e+37
        %v5362 = vand.u32 %v5305, 2147483648
        %v5363 = vor.u32 1.1754944e-38, %v5362
        %v5364 = vsel %vm5361, %v5363, %v5359
        %v5365 = vmul.f32 1.0, %v5364
        %v5366 = vsel %vm1877, %v5320, -1e+30
        %v5367 = vsel %vm1878, %v5335, -1e+30
        %v5368 = vsel %vm1879, %v5350, -1e+30
        %v5369 = vsel %vm1880, %v5365, -1e+30
        %v5370 = vsel %vm1885, %v5366, -inf
        %v5371 = vrot.slane %v5370, 4
        %v5372 = vmax.f32 %v5370, %v5371
        %v5373 = vrot.slane %v5372, 2
        %v5374 = vmax.f32 %v5372, %v5373
        %v5375 = vrot.slane %v5374, 1
        %v5376 = vmax.f32 %v5374, %v5375
        %v5377 = vsel %vm1885, %v5367, -inf
        %v5378 = vrot.slane %v5377, 4
        %v5379 = vmax.f32 %v5377, %v5378
        %v5380 = vrot.slane %v5379, 2
        %v5381 = vmax.f32 %v5379, %v5380
        %v5382 = vrot.slane %v5381, 1
        %v5383 = vmax.f32 %v5381, %v5382
        %v5384 = vsel %vm1885, %v5368, -inf
        %v5385 = vrot.slane %v5384, 4
        %v5386 = vmax.f32 %v5384, %v5385
        %v5387 = vrot.slane %v5386, 2
        %v5388 = vmax.f32 %v5386, %v5387
        %v5389 = vrot.slane %v5388, 1
        %v5390 = vmax.f32 %v5388, %v5389
        %v5391 = vsel %vm1885, %v5369, -inf
        %v5392 = vrot.slane %v5391, 4
        %v5393 = vmax.f32 %v5391, %v5392
        %v5394 = vrot.slane %v5393, 2
        %v5395 = vmax.f32 %v5393, %v5394
        %v5396 = vrot.slane %v5395, 1
        %v5397 = vmax.f32 %v5395, %v5396
        %v5398 = vsub.f32 %v5320, %v5376
        %v5399 = vsub.f32 %v5335, %v5383
        %v5400 = vsub.f32 %v5350, %v5390
        %v5401 = vsub.f32 %v5365, %v5397
        %v5402 = vmin.f32 %v5398, 0.0
        %v5403 = vmin.f32 %v5399, 0.0
        %v5404 = vmin.f32 %v5400, 0.0
        %v5405 = vmin.f32 %v5401, 0.0
        %v5406 = vmul.f32 %v5402, 1.442695
        %v5407 = vpow.pop %v5406
        %v5408 = vmul.f32 %v5403, 1.442695
        %v5409 = vpow.pop %v5408
        %v5410 = vmul.f32 %v5404, 1.442695
        %v5411 = vpow.pop %v5410
        %v5412 = vmul.f32 %v5405, 1.442695
        %v5413 = vpow.pop %v5412
        %v5414 = vmul.f32 %v5407, %v365
        %v5415 = vmul.f32 %v5409, %v366
        %v5416 = vmul.f32 %v5411, %v367
        %v5417 = vmul.f32 %v5413, %v368
        %5419 = vset.pattern.permute.xlu0 0
        %5420 = vperm.xlu0 %5419, %v5414
        %v5421 = vpop.permute.xlu0 %5420
        %5424 = vset.pattern.permute.xlu0 0
        %5425 = vperm.xlu0 %5424, %v5415
        %v5426 = vpop.permute.xlu0 %5425
        %5429 = vset.pattern.permute.xlu0 0
        %5430 = vperm.xlu0 %5429, %v5416
        %v5431 = vpop.permute.xlu0 %5430
        %5434 = vset.pattern.permute.xlu0 0
        %5435 = vperm.xlu0 %5434, %v5417
        %v5436 = vpop.permute.xlu0 %5435
        %v5438 = vmul.f32 %v5421, %v614
        %v5439 = vmul.f32 %v5426, %v615
        %v5440 = vmul.f32 %v5431, %v616
        %v5441 = vmul.f32 %v5436, %v617
        %v5442 = vsel %vm373, %v5438, 0.0
        %v5443 = vrot.slane %v5442, 4
        %v5444 = vadd.f32 %v5442, %v5443
        %v5445 = vrot.slane %v5444, 2
        %v5446 = vadd.f32 %v5444, %v5445
        %v5447 = vrot.slane %v5446, 1
        %v5448 = vadd.f32 %v5446, %v5447
        %v5449 = vsel %vm373, %v5439, 0.0
        %v5450 = vrot.slane %v5449, 4
        %v5451 = vadd.f32 %v5449, %v5450
        %v5452 = vrot.slane %v5451, 2
        %v5453 = vadd.f32 %v5451, %v5452
        %v5454 = vrot.slane %v5453, 1
        %v5455 = vadd.f32 %v5453, %v5454
        %v5456 = vsel %vm373, %v5440, 0.0
        %v5457 = vrot.slane %v5456, 4
        %v5458 = vadd.f32 %v5456, %v5457
        %v5459 = vrot.slane %v5458, 2
        %v5460 = vadd.f32 %v5458, %v5459
        %v5461 = vrot.slane %v5460, 1
        %v5462 = vadd.f32 %v5460, %v5461
        %v5463 = vsel %vm373, %v5441, 0.0
        %v5464 = vrot.slane %v5463, 4
        %v5465 = vadd.f32 %v5463, %v5464
        %v5466 = vrot.slane %v5465, 2
        %v5467 = vadd.f32 %v5465, %v5466
        %v5468 = vrot.slane %v5467, 1
        %v5469 = vadd.f32 %v5467, %v5468
        %v5470 = vmul.f32 %v5414, %v583
        %v5471 = vmul.f32 %v5415, %v593
        %v5472 = vmul.f32 %v5416, %v603
        %v5473 = vmul.f32 %v5417, %v613
        %v5474 = vsel %vm1885, %v5470, 0.0
        %v5475 = vrot.slane %v5474, 4
        %v5476 = vadd.f32 %v5474, %v5475
        %v5477 = vrot.slane %v5476, 2
        %v5478 = vadd.f32 %v5476, %v5477
        %v5479 = vrot.slane %v5478, 1
        %v5480 = vadd.f32 %v5478, %v5479
        %v5481 = vsel %vm1885, %v5471, 0.0
        %v5482 = vrot.slane %v5481, 4
        %v5483 = vadd.f32 %v5481, %v5482
        %v5484 = vrot.slane %v5483, 2
        %v5485 = vadd.f32 %v5483, %v5484
        %v5486 = vrot.slane %v5485, 1
        %v5487 = vadd.f32 %v5485, %v5486
        %v5488 = vsel %vm1885, %v5472, 0.0
        %v5489 = vrot.slane %v5488, 4
        %v5490 = vadd.f32 %v5488, %v5489
        %v5491 = vrot.slane %v5490, 2
        %v5492 = vadd.f32 %v5490, %v5491
        %v5493 = vrot.slane %v5492, 1
        %v5494 = vadd.f32 %v5492, %v5493
        %v5495 = vsel %vm1885, %v5473, 0.0
        %v5496 = vrot.slane %v5495, 4
        %v5497 = vadd.f32 %v5495, %v5496
        %v5498 = vrot.slane %v5497, 2
        %v5499 = vadd.f32 %v5497, %v5498
        %v5500 = vrot.slane %v5499, 1
        %v5501 = vadd.f32 %v5499, %v5500
        %v5502 = vmax.f32 %v5480, 1e-06
        %v5503 = vmax.f32 %v5487, 1e-06
        %v5504 = vmax.f32 %v5494, 1e-06
        %v5505 = vmax.f32 %v5501, 1e-06
        %v5506 = vrcp.pop %v5502
        %v5507 = vrcp.pop %v5503
        %v5508 = vrcp.pop %v5504
        %v5509 = vrcp.pop %v5505
        %5511 = vset.pattern.permute.xlu0 0
        %5512 = vperm.xlu0 %5511, %v5506
        %v5513 = vpop.permute.xlu0 %5512
        %5516 = vset.pattern.permute.xlu0 0
        %5517 = vperm.xlu0 %5516, %v5507
        %v5518 = vpop.permute.xlu0 %5517
        %5521 = vset.pattern.permute.xlu0 0
        %5522 = vperm.xlu0 %5521, %v5508
        %v5523 = vpop.permute.xlu0 %5522
        %5526 = vset.pattern.permute.xlu0 0
        %5527 = vperm.xlu0 %5526, %v5509
        %v5528 = vpop.permute.xlu0 %5527
        %v5530 = vmul.f32 %v5448, %v5513
        %v5531 = vmul.f32 %v5455, %v5518
        %v5532 = vmul.f32 %v5462, %v5523
        %v5533 = vmul.f32 %v5469, %v5528
        %v5534 = vmul.f32 %v5530, %v2055
        %v5535 = vmul.f32 %v5531, %v2061
        %v5536 = vmul.f32 %v5532, %v2067
        %v5537 = vmul.f32 %v5533, %v2073
        %v5538 = vrcp.pop %v4140
        %v5539 = vmul.f32 %v4140, %v5538
        %v5540 = vsub.f32 1.0, %v5539
        %v5541 = vmul.f32 %v5538, %v5540
        %v5542 = vadd.f32 %v5538, %v5541
        %vm5543 = vweird.f32 %v4140
        %vm5544 = vweird.f32 %v5538
        %vm5545 = vmor %vm5543, %vm5544
        %v5546 = vsel %vm5545, %v5538, %v5542
        %v5547 = vand.u32 2147483647, %v4140
        %vm5548 = vcmp.eq.f32.partialorder %v5547, 8.507059e+37
        %v5549 = vand.u32 %v4140, 2147483648
        %v5550 = vor.u32 1.1754944e-38, %v5549
        %v5551 = vsel %vm5548, %v5550, %v5546
        %v5552 = vmul.f32 %v4204, %v5551
        %v5553 = vrcp.pop %v4141
        %v5554 = vmul.f32 %v4141, %v5553
        %v5555 = vsub.f32 1.0, %v5554
        %v5556 = vmul.f32 %v5553, %v5555
        %v5557 = vadd.f32 %v5553, %v5556
        %vm5558 = vweird.f32 %v4141
        %vm5559 = vweird.f32 %v5553
        %vm5560 = vmor %vm5558, %vm5559
        %v5561 = vsel %vm5560, %v5553, %v5557
        %v5562 = vand.u32 2147483647, %v4141
        %vm5563 = vcmp.eq.f32.partialorder %v5562, 8.507059e+37
        %v5564 = vand.u32 %v4141, 2147483648
        %v5565 = vor.u32 1.1754944e-38, %v5564
        %v5566 = vsel %vm5563, %v5565, %v5561
        %v5567 = vmul.f32 %v4205, %v5566
        %v5568 = vrcp.pop %v4142
        %v5569 = vmul.f32 %v4142, %v5568
        %v5570 = vsub.f32 1.0, %v5569
        %v5571 = vmul.f32 %v5568, %v5570
        %v5572 = vadd.f32 %v5568, %v5571
        %vm5573 = vweird.f32 %v4142
        %vm5574 = vweird.f32 %v5568
        %vm5575 = vmor %vm5573, %vm5574
        %v5576 = vsel %vm5575, %v5568, %v5572
        %v5577 = vand.u32 2147483647, %v4142
        %vm5578 = vcmp.eq.f32.partialorder %v5577, 8.507059e+37
        %v5579 = vand.u32 %v4142, 2147483648
        %v5580 = vor.u32 1.1754944e-38, %v5579
        %v5581 = vsel %vm5578, %v5580, %v5576
        %v5582 = vmul.f32 %v4206, %v5581
        %v5583 = vrcp.pop %v4143
        %v5584 = vmul.f32 %v4143, %v5583
        %v5585 = vsub.f32 1.0, %v5584
        %v5586 = vmul.f32 %v5583, %v5585
        %v5587 = vadd.f32 %v5583, %v5586
        %vm5588 = vweird.f32 %v4143
        %vm5589 = vweird.f32 %v5583
        %vm5590 = vmor %vm5588, %vm5589
        %v5591 = vsel %vm5590, %v5583, %v5587
        %v5592 = vand.u32 2147483647, %v4143
        %vm5593 = vcmp.eq.f32.partialorder %v5592, 8.507059e+37
        %v5594 = vand.u32 %v4143, 2147483648
        %v5595 = vor.u32 1.1754944e-38, %v5594
        %v5596 = vsel %vm5593, %v5595, %v5591
        %v5597 = vmul.f32 %v4207, %v5596
        %v5598 = vmul.f32 %v5552, %v5552
        %v5599 = vmul.f32 %v5567, %v5567
        %v5600 = vmul.f32 %v5582, %v5582
        %v5601 = vmul.f32 %v5597, %v5597
        %v5602 = vsel %vm622, %v5598, 0.0
        %5603 = vadd.xlane.f32.xlu0 %v5602
        %v5604 = vpop.xlane.xlu0 %5603
        %v5605 = vsel %vm622, %v5599, 0.0
        %5606 = vadd.xlane.f32.xlu0 %v5605
        %v5607 = vpop.xlane.xlu0 %5606
        %v5608 = vsel %vm622, %v5600, 0.0
        %5609 = vadd.xlane.f32.xlu0 %v5608
        %v5610 = vpop.xlane.xlu0 %5609
        %v5611 = vsel %vm622, %v5601, 0.0
        %5612 = vadd.xlane.f32.xlu0 %v5611
        %v5613 = vpop.xlane.xlu0 %5612
        %v5614 = vsub.f32 1.0, %v5604
        %v5615 = vsub.f32 1.0, %v5607
        %v5616 = vsub.f32 1.0, %v5610
        %v5617 = vsub.f32 1.0, %v5613
        %v5618 = vmax.f32 %v5614, 1e-06
        %v5619 = vmax.f32 %v5615, 1e-06
        %v5620 = vmax.f32 %v5616, 1e-06
        %v5621 = vmax.f32 %v5617, 1e-06
        %v5622 = vrsqrt.pop %v5618
        %v5623 = vmul.f32 %v5622, %v5618
        %v5624 = vmul.f32 %v5623, %v5622
        %v5625 = vmul.f32 0.5, %v5624
        %v5626 = vsub.f32 1.5, %v5625
        %v5627 = vmul.f32 %v5622, %v5626
        %vm5628 = vweird.f32 %v5618
        %vm5629 = vweird.f32 %v5622
        %vm5630 = vmor %vm5628, %vm5629
        %v5631 = vsel %vm5630, %v5622, %v5627
        %v5632 = vrsqrt.pop %v5619
        %v5633 = vmul.f32 %v5632, %v5619
        %v5634 = vmul.f32 %v5633, %v5632
        %v5635 = vmul.f32 0.5, %v5634
        %v5636 = vsub.f32 1.5, %v5635
        %v5637 = vmul.f32 %v5632, %v5636
        %vm5638 = vweird.f32 %v5619
        %vm5639 = vweird.f32 %v5632
        %vm5640 = vmor %vm5638, %vm5639
        %v5641 = vsel %vm5640, %v5632, %v5637
        %v5642 = vrsqrt.pop %v5620
        %v5643 = vmul.f32 %v5642, %v5620
        %v5644 = vmul.f32 %v5643, %v5642
        %v5645 = vmul.f32 0.5, %v5644
        %v5646 = vsub.f32 1.5, %v5645
        %v5647 = vmul.f32 %v5642, %v5646
        %vm5648 = vweird.f32 %v5620
        %vm5649 = vweird.f32 %v5642
        %vm5650 = vmor %vm5648, %vm5649
        %v5651 = vsel %vm5650, %v5642, %v5647
        %v5652 = vrsqrt.pop %v5621
        %v5653 = vmul.f32 %v5652, %v5621
        %v5654 = vmul.f32 %v5653, %v5652
        %v5655 = vmul.f32 0.5, %v5654
        %v5656 = vsub.f32 1.5, %v5655
        %v5657 = vmul.f32 %v5652, %v5656
        %vm5658 = vweird.f32 %v5621
        %vm5659 = vweird.f32 %v5652
        %vm5660 = vmor %vm5658, %vm5659
        %v5661 = vsel %vm5660, %v5652, %v5657
        %v5662 = vmul.f32 %v5534, %v5534
        %v5663 = vmul.f32 %v5535, %v5535
        %v5664 = vmul.f32 %v5536, %v5536
        %v5665 = vmul.f32 %v5537, %v5537
        %v5666 = vsel %vm373, %v5662, 0.0
        %5667 = vadd.xlane.f32.xlu0 %v5666
        %v5668 = vpop.xlane.xlu0 %5667
        %v5669 = vsel %vm373, %v5663, 0.0
        %5670 = vadd.xlane.f32.xlu0 %v5669
        %v5671 = vpop.xlane.xlu0 %5670
        %v5672 = vsel %vm373, %v5664, 0.0
        %5673 = vadd.xlane.f32.xlu0 %v5672
        %v5674 = vpop.xlane.xlu0 %5673
        %v5675 = vsel %vm373, %v5665, 0.0
        %5676 = vadd.xlane.f32.xlu0 %v5675
        %v5677 = vpop.xlane.xlu0 %5676
        %v5678 = vsub.f32 1.0, %v5668
        %v5679 = vsub.f32 1.0, %v5671
        %v5680 = vsub.f32 1.0, %v5674
        %v5681 = vsub.f32 1.0, %v5677
        %v5682 = vmax.f32 %v5678, 1e-06
        %v5683 = vmax.f32 %v5679, 1e-06
        %v5684 = vmax.f32 %v5680, 1e-06
        %v5685 = vmax.f32 %v5681, 1e-06
        %v5686 = vrsqrt.pop %v5682
        %v5687 = vmul.f32 %v5686, %v5682
        %v5688 = vmul.f32 %v5687, %v5686
        %v5689 = vmul.f32 0.5, %v5688
        %v5690 = vsub.f32 1.5, %v5689
        %v5691 = vmul.f32 %v5686, %v5690
        %vm5692 = vweird.f32 %v5682
        %vm5693 = vweird.f32 %v5686
        %vm5694 = vmor %vm5692, %vm5693
        %v5695 = vsel %vm5694, %v5686, %v5691
        %v5696 = vrsqrt.pop %v5683
        %v5697 = vmul.f32 %v5696, %v5683
        %v5698 = vmul.f32 %v5697, %v5696
        %v5699 = vmul.f32 0.5, %v5698
        %v5700 = vsub.f32 1.5, %v5699
        %v5701 = vmul.f32 %v5696, %v5700
        %vm5702 = vweird.f32 %v5683
        %vm5703 = vweird.f32 %v5696
        %vm5704 = vmor %vm5702, %vm5703
        %v5705 = vsel %vm5704, %v5696, %v5701
        %v5706 = vrsqrt.pop %v5684
        %v5707 = vmul.f32 %v5706, %v5684
        %v5708 = vmul.f32 %v5707, %v5706
        %v5709 = vmul.f32 0.5, %v5708
        %v5710 = vsub.f32 1.5, %v5709
        %v5711 = vmul.f32 %v5706, %v5710
        %vm5712 = vweird.f32 %v5684
        %vm5713 = vweird.f32 %v5706
        %vm5714 = vmor %vm5712, %vm5713
        %v5715 = vsel %vm5714, %v5706, %v5711
        %v5716 = vrsqrt.pop %v5685
        %v5717 = vmul.f32 %v5716, %v5685
        %v5718 = vmul.f32 %v5717, %v5716
        %v5719 = vmul.f32 0.5, %v5718
        %v5720 = vsub.f32 1.5, %v5719
        %v5721 = vmul.f32 %v5716, %v5720
        %vm5722 = vweird.f32 %v5685
        %vm5723 = vweird.f32 %v5716
        %vm5724 = vmor %vm5722, %vm5723
        %v5725 = vsel %vm5724, %v5716, %v5721
        %s5726 = sld [smem:[#allocation2 + $0x161]]
        %s5727 = ssub.f32 1.0, %s5726
        %v5728 = vstv %s5726
        %v5729 = vmul.f32 %v5728, %v5631
        %v5730 = vmul.f32 %v5728, %v5641
        %v5731 = vmul.f32 %v5728, %v5651
        %v5732 = vmul.f32 %v5728, %v5661
        %v5733 = vmul.f32 %v5729, %v5552
        %v5734 = vmul.f32 %v5730, %v5567
        %v5735 = vmul.f32 %v5731, %v5582
        %v5736 = vmul.f32 %v5732, %v5597
        %v5737 = vstv %s5727
        %v5738 = vmul.f32 %v5737, %v5695
        %v5739 = vmul.f32 %v5737, %v5705
        %v5740 = vmul.f32 %v5737, %v5715
        %v5741 = vmul.f32 %v5737, %v5725
        %v5742 = vmul.f32 %v5738, %v5534
        %v5743 = vmul.f32 %v5739, %v5535
        %v5744 = vmul.f32 %v5740, %v5536
        %v5745 = vmul.f32 %v5741, %v5537
        %v5746 = vadd.f32 %v5733, %v5742
        %v5747 = vadd.f32 %v5734, %v5743
        %v5748 = vadd.f32 %v5735, %v5744
        %v5749 = vadd.f32 %v5736, %v5745
        %v5750 = vadd.f32 %v5729, %v5738
        %v5751 = vadd.f32 %v5730, %v5739
        %v5752 = vadd.f32 %v5731, %v5740
        %v5753 = vadd.f32 %v5732, %v5741
        %v5754 = vrcp.pop %v5750
        %v5755 = vrcp.pop %v5751
        %v5756 = vrcp.pop %v5752
        %v5757 = vrcp.pop %v5753
        %v5758 = vmul.f32 %v5746, %v5754
        %v5759 = vmul.f32 %v5747, %v5755
        %v5760 = vmul.f32 %v5748, %v5756
        %v5761 = vmul.f32 %v5749, %v5757
        %v5762 = vmul.f32 %v5758, %v5758
        %v5763 = vmul.f32 %v5759, %v5759
        %v5764 = vmul.f32 %v5760, %v5760
        %v5765 = vmul.f32 %v5761, %v5761
        %v5766 = vsel %vm622, %v5762, 0.0
        %5767 = vadd.xlane.f32.xlu0 %v5766
        %v5768 = vpop.xlane.xlu0 %5767
        %v5769 = vsel %vm622, %v5763, 0.0
        %5770 = vadd.xlane.f32.xlu0 %v5769
        %v5771 = vpop.xlane.xlu0 %5770
        %v5772 = vsel %vm622, %v5764, 0.0
        %5773 = vadd.xlane.f32.xlu0 %v5772
        %v5774 = vpop.xlane.xlu0 %5773
        %v5775 = vsel %vm622, %v5765, 0.0
        %5776 = vadd.xlane.f32.xlu0 %v5775
        %v5777 = vpop.xlane.xlu0 %5776
        %v5778 = vsub.f32 1.0, %v5768
        %v5779 = vsub.f32 1.0, %v5771
        %v5780 = vsub.f32 1.0, %v5774
        %v5781 = vsub.f32 1.0, %v5777
        %v5782 = vmax.f32 %v5778, 0.0
        %v5783 = vmax.f32 %v5779, 0.0
        %v5784 = vmax.f32 %v5780, 0.0
        %v5785 = vmax.f32 %v5781, 0.0
        %v5786 = vrsqrt.pop %v5782
        %v5787 = vmul.f32 %v5786, %v5782
        %v5788 = vmul.f32 %v5787, %v5786
        %v5789 = vmul.f32 0.5, %v5788
        %v5790 = vsub.f32 1.5, %v5789
        %v5791 = vmul.f32 %v5786, %v5790
        %v5792 = vmul.f32 %v5782, %v5791
        %vm5793 = vcmp.eq.f32.partialorder %v5782, inf
        %v5794 = vsel %vm5793, %v5782, %v5792
        %vm5795 = vcmp.eq.f32.partialorder %v5782, 0.0
        %v5796 = vand.u32 %v5782, 2147483648
        %v5797 = vsel %vm5795, %v5796, %v5794
        %v5798 = vrsqrt.pop %v5783
        %v5799 = vmul.f32 %v5798, %v5783
        %v5800 = vmul.f32 %v5799, %v5798
        %v5801 = vmul.f32 0.5, %v5800
        %v5802 = vsub.f32 1.5, %v5801
        %v5803 = vmul.f32 %v5798, %v5802
        %v5804 = vmul.f32 %v5783, %v5803
        %vm5805 = vcmp.eq.f32.partialorder %v5783, inf
        %v5806 = vsel %vm5805, %v5783, %v5804
        %vm5807 = vcmp.eq.f32.partialorder %v5783, 0.0
        %v5808 = vand.u32 %v5783, 2147483648
        %v5809 = vsel %vm5807, %v5808, %v5806
        %v5810 = vrsqrt.pop %v5784
        %v5811 = vmul.f32 %v5810, %v5784
        %v5812 = vmul.f32 %v5811, %v5810
        %v5813 = vmul.f32 0.5, %v5812
        %v5814 = vsub.f32 1.5, %v5813
        %v5815 = vmul.f32 %v5810, %v5814
        %v5816 = vmul.f32 %v5784, %v5815
        %vm5817 = vcmp.eq.f32.partialorder %v5784, inf
        %v5818 = vsel %vm5817, %v5784, %v5816
        %vm5819 = vcmp.eq.f32.partialorder %v5784, 0.0
        %v5820 = vand.u32 %v5784, 2147483648
        %v5821 = vsel %vm5819, %v5820, %v5818
        %v5822 = vrsqrt.pop %v5785
        %v5823 = vmul.f32 %v5822, %v5785
        %v5824 = vmul.f32 %v5823, %v5822
        %v5825 = vmul.f32 0.5, %v5824
        %v5826 = vsub.f32 1.5, %v5825
        %v5827 = vmul.f32 %v5822, %v5826
        %v5828 = vmul.f32 %v5785, %v5827
        %vm5829 = vcmp.eq.f32.partialorder %v5785, inf
        %v5830 = vsel %vm5829, %v5785, %v5828
        %vm5831 = vcmp.eq.f32.partialorder %v5785, 0.0
        %v5832 = vand.u32 %v5785, 2147483648
        %v5833 = vsel %vm5831, %v5832, %v5830
        %v5834 = vadd.f32 %v5797, 1.0
        %v5835 = vadd.f32 %v5809, 1.0
        %v5836 = vadd.f32 %v5821, 1.0
        %v5837 = vadd.f32 %v5833, 1.0
        %v5838 = vrcp.pop %v5834
        %v5839 = vrcp.pop %v5835
        %v5840 = vrcp.pop %v5836
        %v5841 = vrcp.pop %v5837
        %v5842 = vmul.f32 %v5758, %v5838
        %v5843 = vmul.f32 %v5759, %v5839
        %v5844 = vmul.f32 %v5760, %v5840
        %v5845 = vmul.f32 %v5761, %v5841
        %5846 = vst.msk [vmem:[%s347] sm:$0x1] %vm622, %v5842
        %5847 = vst.msk [vmem:[%s347 + $0x1] sm:$0x1] %vm622, %v5843
        %5848 = vst.msk [vmem:[%s347 + $0x2] sm:$0x1] %vm622, %v5844
        %5849 = vst.msk [vmem:[%s347 + $0x3] sm:$0x1] %vm622, %v5845
        %s5850 = smul.u32 4, %s18
        %p5851 = scmp.lt.s32.totalorder %s5850, 7
        %s5852 = scalar_select %p5851, %s5850, 7
        %s5853 = scalar_lea.vmem %s6, %s5852
        // Predicated region
        $region49: #{hyperbolic_path_search.1} parent=43 // pred_check
          %p5854 = pneg %p187
        $region50: #{hyperbolic_path_search.1} parent=43 // pred_check_branch
          %5856 = sbr.rel (%p5854) target = $region52
        $region51: #{hyperbolic_path_search.1} parent=43 // pred_region
          %s5857 = smul.u32 4, %s18
        $region52: #{hyperbolic_path_search.1} parent=43 // pred_fallthru
          _
      $region44: #{hyperbolic_path_search.1} parent=5 // pred_fallthru
        _
      %p5858 = scmp.le.s32.totalorder 2, %s13
      // Predicated region
      $region53: #{hyperbolic_path_search.1} parent=5 // pred_check
        %p5859 = pneg %p5858
      $region54: #{hyperbolic_path_search.1} parent=5 // pred_check_branch
        %5861 = sbr.rel (%p5859) target = $region56
      $region55: #{hyperbolic_path_search.1} parent=5 // pred_region
        %s5862 = ssub.s32 %s13, 2
        // Predicated region
        $region57: #{hyperbolic_path_search.1} parent=55 // pred_check
          %p5863 = pneg %p193
        $region58: #{hyperbolic_path_search.1} parent=55 // pred_check_branch
          %5865 = sbr.rel (%p5863) target = $region60
        $region59: #{hyperbolic_path_search.1} parent=55 // pred_region
          %s5866 = smul.u32 4, %s19
          %p5867 = scmp.lt.s32.totalorder %s5866, 7
          %s5868 = scalar_select %p5867, %s5866, 7
          %s5869 = scalar_lea.vmem %s6, %s5868
        $region60: #{hyperbolic_path_search.1} parent=55 // pred_fallthru
          _
      $region56: #{hyperbolic_path_search.1} parent=5 // pred_fallthru
        _
    $region6: #{hyperbolic_path_search.1} parent=1 // loop_footer
      %s17 = sadd.s32 1, %s13
    $region7: #{hyperbolic_path_search.1} parent=1 // loop_footer_branch
      %12 = sbr.rel target = $region3
    $region8: #{hyperbolic_path_search.1} parent=1 // loop_exit
      _
    %5870 = vsyncpa [#allocation3], 1
    %s5871 = scalar_lea.sflag [#allocation3], 1
    %5872 = vsyncpa %s5871, 1

</llo_original>
